<compile_context>
chip_gen: v6e
topology: v6e:2x2x1
jax: 0.10.0
libtpu: 0.0.40
codegen_flags: <defaults>
</compile_context>

<pallas_src>
import math

import jax
import jax.numpy as jnp
from jax import lax
from jax.experimental import pallas as pl
from jax.experimental.pallas import tpu as pltpu

# ----------------------------- model dimensions -----------------------------
N_TOK = 16                      # sequence length n
D_MODEL = 32                    # d_model == h_dim (dim_per_head)
N_LAYER = 2
NUM_HEADS = 2
D_HEAD = D_MODEL                # LSHAttnBucketing: per-head dim == h_dim
EXPAND = 2
D_INNER = EXPAND * D_MODEL      # Mamba d_inner
D_STATE = 16                    # Mamba SSM state size
D_CONV = 4                      # Mamba depthwise conv width
DT_RANK = max(1, math.ceil(D_MODEL / 16))
EPS = 1e-5

# Set to jnp.bfloat16 on v6e/v7x to cut MXU pass count ~3x (f32 keeps exact reference parity;
# all VPU/EUP elementwise math stays f32 either way, which is what v5e wants).
MXU_DTYPE = jnp.float32


# ------------------------------- shared helpers ------------------------------
def _mm(a, b):
    """MXU matmul with optional low-precision operand cast, f32 accumulation."""
    return jnp.dot(a.astype(MXU_DTYPE), b.astype(MXU_DTYPE),
                   preferred_element_type=jnp.float32)


def _mm_t(a, b):
    """a @ b.T (contract last dims of both), f32 accumulation."""
    return lax.dot_general(a.astype(MXU_DTYPE), b.astype(MXU_DTYPE),
                           (((1,), (1,)), ((), ())),
                           preferred_element_type=jnp.float32)


def _layernorm(x, w, b):
    mu = jnp.mean(x, axis=-1, keepdims=True)
    xc = x - mu
    var = jnp.mean(xc * xc, axis=-1, keepdims=True)
    return xc * lax.rsqrt(var + EPS) * w + b


def _softplus(x):
    # numerically stable for any magnitude (no exp overflow branch)
    return jnp.maximum(x, 0.0) + jnp.log1p(jnp.exp(-jnp.abs(x)))


def _silu(x):
    return x * jax.nn.sigmoid(x)


# ------------------------------ fused forward kernel -------------------------
def mixer_kernel(x_ref,          # (n, d_model)
                 attn_vec_ref,   # (3, d_model): norm1 w, norm1 b, out-proj bias
                 wqkv_ref,       # (d_model, 3*H*dh) with 1/sqrt(dh) folded into q cols
                 wo_ref,         # (H*dh, d_model)
                 lnvec_ref,      # (L, 2, d_model): block LN weight, bias
                 wxz_ref,        # (L, d_model, 2*d_inner): in_proj x|z
                 convw_ref,      # (L, d_conv, d_inner)
                 mvec_ref,       # (L, 3, d_inner): conv bias, dt bias, D
                 wdtc_ref,       # (L, d_inner, dt_rank + d_state): x_proj dt|C columns
                 wbT_ref,        # (L, d_state, d_inner): x_proj B rows (transposed layout)
                 wdt_ref,        # (L, dt_rank, d_inner)
                 alogT_ref,      # (L, d_state, d_inner)
                 wout_ref,       # (L, d_inner, d_model)
                 normf_ref,      # (2, d_model)
                 o_ref,          # (n, d_model)
                 u_s,            # VMEM (n, d_inner)    dt * x
                 dt_s,           # VMEM (n, d_inner)
                 bT_s,           # VMEM (d_state, n)
                 c_s,            # VMEM (n, d_state)
                 y_s):           # VMEM (n, d_inner)    scan output rows
    # ------------------ LSH attention block ------------------
    # TODO(synk): HEPTAttention's E2LSH bucketing / OR-construction and the w_rpe relative
    # positional bias (driven by `coords`) are external deps; plain multi-head softmax attention
    # over the same norm1 + q/k/v projections is used instead.
    x = x_ref[...]
    xn = _layernorm(x, attn_vec_ref[0:1, :], attn_vec_ref[1:2, :])
    qkv = _mm(xn, wqkv_ref[...])                               # (n, 3*H*dh)
    HD = NUM_HEADS * D_HEAD
    q, k, v = qkv[:, :HD], qkv[:, HD:2 * HD], qkv[:, 2 * HD:]
    attn_out = jnp.zeros((N_TOK, D_MODEL), jnp.float32)
    for h in range(NUM_HEADS):
        lo, hi = h * D_HEAD, (h + 1) * D_HEAD
        s = _mm_t(q[:, lo:hi], k[:, lo:hi])                    # (n, n); scale pre-folded
        s = s - jnp.max(s, axis=-1, keepdims=True)
        p = jnp.exp(s)
        p = p * pl.reciprocal(jnp.sum(p, axis=-1, keepdims=True), approx=True)
        head = _mm(p, v[:, lo:hi])                             # (n, dh) head output
        attn_out = attn_out + _mm(head, wo_ref[lo:hi, :])      # per-head slice of out-proj
    hs = attn_out + attn_vec_ref[2:3, :]
    res = None

    # causal-conv masks (token t < shift reads the left zero padding); hoisted out of layers
    row_idx = lax.broadcasted_iota(jnp.int32, (N_TOK, 1), 0)
    conv_masks = [row_idx >= s for s in range(1, D_CONV)]

    # ------------------ Mamba blocks ------------------
    for l in range(N_LAYER):
        residual = hs if res is None else hs + res             # Block: residual = hidden + residual
        xln = _layernorm(residual, lnvec_ref[l, 0:1, :], lnvec_ref[l, 1:2, :])

        # in_proj (x and z halves in one matmul)
        xz = _mm(xln, wxz_ref[l])                              # (n, 2*d_inner)
        xin, z = xz[:, :D_INNER], xz[:, D_INNER:]

        # depthwise causal conv1d (width D_CONV, left pad D_CONV-1) + SiLU:
        # sublane rotations (XLU) + VPU multiply-adds, no MXU.
        # roll(x, s)[t] == x[(t - s) mod n]; mask wrapped rows (t < s) to zero.
        acc = jnp.zeros((N_TOK, D_INNER), jnp.float32) + mvec_ref[l, 0:1, :]
        for kk in range(D_CONV):
            shift = D_CONV - 1 - kk
            if shift == 0:
                term = xin
            else:
                term = jnp.where(conv_masks[shift - 1],
                                 pltpu.roll(xin, shift, axis=0), 0.0)
            acc = acc + convw_ref[l, kk:kk + 1, :] * term
        xc = _silu(acc)

        # x_proj: dt (low rank) | C in one matmul; B via a transposed contraction so the scan
        # can read (d_state, 1) columns directly.
        xdc = _mm(xc, wdtc_ref[l])                             # (n, dt_rank + d_state)
        c_s[...] = xdc[:, DT_RANK:]                            # (n, d_state)
        bT_s[...] = _mm_t(wbT_ref[l], xc)                      # (d_state, n)

        dt = _softplus(_mm(xdc[:, :DT_RANK], wdt_ref[l]) + mvec_ref[l, 1:2, :])
        dt_s[...] = dt                                         # (n, d_inner)
        u_s[...] = dt * xc                                     # hoisted dt * x
        A_T = -jnp.exp(alogT_ref[l])                           # (d_state, d_inner)

        # selective scan, fully unrolled over tokens; row/col selects are cheap VMEM slices.
        h_state = jnp.zeros((D_STATE, D_INNER), jnp.float32)
        for t in range(N_TOK):
            dA_t = jnp.exp(A_T * dt_s[t:t + 1, :])             # independent of carry -> overlaps
            h_state = dA_t * h_state + bT_s[:, t:t + 1] * u_s[t:t + 1, :]
            y_s[t:t + 1, :] = _mm(c_s[t:t + 1, :], h_state)    # (1, d_inner), off the carry chain
        y = y_s[...] + mvec_ref[l, 2:3, :] * xc                # + D * x (hoisted)

        # gate + out projection
        y = y * _silu(z)
        hs = _mm(y, wout_ref[l])
        res = residual

    # ------------------ final add + LayerNorm ------------------
    o_ref[...] = _layernorm(hs + res, normf_ref[0:1, :], normf_ref[1:2, :])


def _pallas_forward(x, packed):
    scratch = [
        pltpu.VMEM((N_TOK, D_INNER), jnp.float32),             # u_s
        pltpu.VMEM((N_TOK, D_INNER), jnp.float32),             # dt_s
        pltpu.VMEM((D_STATE, N_TOK), jnp.float32),             # bT_s
        pltpu.VMEM((N_TOK, D_STATE), jnp.float32),             # c_s
        pltpu.VMEM((N_TOK, D_INNER), jnp.float32),             # y_s
    ]
    return pl.pallas_call(
        mixer_kernel,
        out_shape=jax.ShapeDtypeStruct((N_TOK, D_MODEL), jnp.float32),
        scratch_shapes=scratch,
    )(x, packed["attn_vec"], packed["wqkv"], packed["wo"],
      packed["lnvec"], packed["wxz"], packed["convw"], packed["mvec"],
      packed["wdtc"], packed["wbT"], packed["wdt"], packed["alogT"],
      packed["wout"], packed["normf"])


# ------------------------------ parameter init -------------------------------
def init_params(key):
    def nrm(k, shape, std=0.02):
        return std * jax.random.normal(k, shape, jnp.float32)

    keys = iter(jax.random.split(key, 64))
    params = {}
    params["lsh"] = dict(
        n1w=jnp.ones((1, D_MODEL), jnp.float32),
        n1b=jnp.zeros((1, D_MODEL), jnp.float32),
        wq=nrm(next(keys), (D_MODEL, NUM_HEADS * D_HEAD)),
        wk=nrm(next(keys), (D_MODEL, NUM_HEADS * D_HEAD)),
        wv=nrm(next(keys), (D_MODEL, NUM_HEADS * D_HEAD)),
        wo=nrm(next(keys), (NUM_HEADS * D_HEAD, D_MODEL)),
        bo=jnp.zeros((1, D_MODEL), jnp.float32),
    )

    a_log_t = jnp.log(jnp.broadcast_to(
        jnp.arange(1, D_STATE + 1, dtype=jnp.float32)[:, None], (D_STATE, D_INNER)))
    layers = []
    for _ in range(N_LAYER):
        dt_std = DT_RANK ** -0.5
        dt = jnp.exp(jax.random.uniform(next(keys), (1, D_INNER), jnp.float32)
                     * (math.log(0.1) - math.log(1e-3)) + math.log(1e-3))
        dt = jnp.maximum(dt, 1e-4)
        inv_softplus_dt = dt + jnp.log(-jnp.expm1(-dt))
        layers.append(dict(
            lnw=jnp.ones((1, D_MODEL), jnp.float32),
            lnb=jnp.zeros((1, D_MODEL), jnp.float32),
            wx=nrm(next(keys), (D_MODEL, D_INNER)),
            wz=nrm(next(keys), (D_MODEL, D_INNER)),
            convw=nrm(next(keys), (D_CONV, D_INNER), std=0.5 / math.sqrt(D_CONV)),
            convb=jnp.zeros((1, D_INNER), jnp.float32),
            w_dt_in=nrm(next(keys), (D_INNER, DT_RANK)),
            wB_T=nrm(next(keys), (D_STATE, D_INNER)),
            wC=nrm(next(keys), (D_INNER, D_STATE)),
            wdt=jax.random.uniform(next(keys), (DT_RANK, D_INNER), jnp.float32,
                                   minval=-dt_std, maxval=dt_std),
            bdt=inv_softplus_dt,
            a_log_t=a_log_t,
            d_vec=jnp.ones((1, D_INNER), jnp.float32),
            # _init_weights rescales out_proj by 1/sqrt(n_layer)
            wout=nrm(next(keys), (D_INNER, D_MODEL)) / math.sqrt(N_LAYER),
        ))
    params["layers"] = layers
    params["norm_f"] = dict(w=jnp.ones((1, D_MODEL), jnp.float32),
                            b=jnp.zeros((1, D_MODEL), jnp.float32))
    return params


def pack_params(params):
    """One-time repack into a few stacked, kernel-friendly arrays."""
    p = params["lsh"]
    scale = 1.0 / math.sqrt(D_HEAD)                      # folded into q columns
    packed = dict(
        attn_vec=jnp.concatenate([p["n1w"], p["n1b"], p["bo"]], axis=0),
        wqkv=jnp.concatenate([p["wq"] * scale, p["wk"], p["wv"]], axis=1),
        wo=p["wo"],
        normf=jnp.concatenate([params["norm_f"]["w"], params["norm_f"]["b"]], axis=0),
    )
    ls = params["layers"]
    packed["lnvec"] = jnp.stack([jnp.concatenate([l["lnw"], l["lnb"]], 0) for l in ls])
    packed["wxz"] = jnp.stack([jnp.concatenate([l["wx"], l["wz"]], 1) for l in ls])
    packed["convw"] = jnp.stack([l["convw"] for l in ls])
    packed["mvec"] = jnp.stack(
        [jnp.concatenate([l["convb"], l["bdt"], l["d_vec"]], 0) for l in ls])
    packed["wdtc"] = jnp.stack([jnp.concatenate([l["w_dt_in"], l["wC"]], 1) for l in ls])
    packed["wbT"] = jnp.stack([l["wB_T"] for l in ls])
    packed["wdt"] = jnp.stack([l["wdt"] for l in ls])
    packed["alogT"] = jnp.stack([l["a_log_t"] for l in ls])
    packed["wout"] = jnp.stack([l["wout"] for l in ls])
    return packed


# -------------------------------- forward pass -------------------------------
@jax.jit
def mixer_model_forward(input_ids, coords, packed):
    # TODO(synk): `coords` feeds HEPTAttention's w_rpe relative positional encoding, which is
    # stubbed (see kernel); it is accepted but unused.
    del coords
    n, d = input_ids.shape[-2], input_ids.shape[-1]
    x = input_ids.reshape(n, d).astype(jnp.float32)      # hidden_states.view(n, d)
    out = _pallas_forward(x, packed)
    return out.reshape(1, n, d)


if __name__ == "__main__":
    key = jax.random.PRNGKey(0)
    k1, k2, k3 = jax.random.split(key, 3)
    input_ids = jax.random.normal(k1, (1, N_TOK, D_MODEL), jnp.float32)
    coords = jax.random.normal(k2, (N_TOK, 6), jnp.float32)
    params = init_params(k3)
    packed = pack_params(params)                          # one-time packing, not per-call work

    out = mixer_model_forward(input_ids, coords, packed)
    out = jax.block_until_ready(out)
    assert out.shape == (1, N_TOK, D_MODEL)
    assert bool(jnp.all(jnp.isfinite(out)))
    print("KERNEL_OK")
</pallas_src>

<mosaic_0001>
module attributes {stable_mosaic.version = 11 : i64} {
  func.func @mixer_kernel(%arg0: memref<16x32xf32, #tpu.memory_space<vmem>>, %arg1: memref<3x32xf32, #tpu.memory_space<vmem>>, %arg2: memref<32x192xf32, #tpu.memory_space<vmem>>, %arg3: memref<64x32xf32, #tpu.memory_space<vmem>>, %arg4: memref<2x2x32xf32, #tpu.memory_space<vmem>>, %arg5: memref<2x32x128xf32, #tpu.memory_space<vmem>>, %arg6: memref<2x4x64xf32, #tpu.memory_space<vmem>>, %arg7: memref<2x3x64xf32, #tpu.memory_space<vmem>>, %arg8: memref<2x64x18xf32, #tpu.memory_space<vmem>>, %arg9: memref<2x16x64xf32, #tpu.memory_space<vmem>>, %arg10: memref<2x2x64xf32, #tpu.memory_space<vmem>>, %arg11: memref<2x16x64xf32, #tpu.memory_space<vmem>>, %arg12: memref<2x64x32xf32, #tpu.memory_space<vmem>>, %arg13: memref<2x32xf32, #tpu.memory_space<vmem>>, %arg14: memref<16x32xf32, #tpu.memory_space<vmem>>, %arg15: memref<16x64xf32, #tpu.memory_space<vmem>>, %arg16: memref<16x64xf32, #tpu.memory_space<vmem>>, %arg17: memref<16x16xf32, #tpu.memory_space<vmem>>, %arg18: memref<16x16xf32, #tpu.memory_space<vmem>>, %arg19: memref<16x64xf32, #tpu.memory_space<vmem>>) attributes {dimension_semantics = [], scalar_prefetch = 0 : i64, scratch_operands = 5 : i64, tpu.core_type = #tpu.core_type<tc>} {
    %c0 = arith.constant 0 : index
    %c0_0 = arith.constant 0 : index
    %0 = vector.load %arg0[%c0, %c0_0] : memref<16x32xf32, #tpu.memory_space<vmem>>, vector<16x32xf32>
    %c0_1 = arith.constant 0 : index
    %c0_2 = arith.constant 0 : index
    %1 = vector.load %arg1[%c0_1, %c0_2] : memref<3x32xf32, #tpu.memory_space<vmem>>, vector<1x32xf32>
    %c1 = arith.constant 1 : index
    %c0_3 = arith.constant 0 : index
    %2 = vector.load %arg1[%c1, %c0_3] : memref<3x32xf32, #tpu.memory_space<vmem>>, vector<1x32xf32>
    %cst = arith.constant dense<0.000000e+00> : vector<16xf32>
    %3 = vector.multi_reduction <add>, %0, %cst [1] : vector<16x32xf32> to vector<16xf32>
    %4 = vector.shape_cast %3 : vector<16xf32> to vector<16x1xf32>
    %cst_4 = arith.constant 3.200000e+01 : f32
    %5 = vector.broadcast %cst_4 : f32 to vector<16x1xf32>
    %6 = arith.divf %4, %5 : vector<16x1xf32>
    %7 = vector.broadcast %6 : vector<16x1xf32> to vector<16x32xf32>
    %8 = arith.subf %0, %7 : vector<16x32xf32>
    %9 = arith.mulf %8, %8 : vector<16x32xf32>
    %cst_5 = arith.constant dense<0.000000e+00> : vector<16xf32>
    %10 = vector.multi_reduction <add>, %9, %cst_5 [1] : vector<16x32xf32> to vector<16xf32>
    %11 = vector.shape_cast %10 : vector<16xf32> to vector<16x1xf32>
    %cst_6 = arith.constant 3.200000e+01 : f32
    %12 = vector.broadcast %cst_6 : f32 to vector<16x1xf32>
    %13 = arith.divf %11, %12 : vector<16x1xf32>
    %cst_7 = arith.constant 9.99999974E-6 : f32
    %14 = vector.broadcast %cst_7 : f32 to vector<16x1xf32>
    %15 = arith.addf %13, %14 : vector<16x1xf32>
    %16 = math.rsqrt %15 : vector<16x1xf32>
    %17 = vector.broadcast %16 : vector<16x1xf32> to vector<16x32xf32>
    %18 = arith.mulf %8, %17 : vector<16x32xf32>
    %19 = vector.broadcast %1 : vector<1x32xf32> to vector<16x32xf32>
    %20 = arith.mulf %18, %19 : vector<16x32xf32>
    %21 = vector.broadcast %2 : vector<1x32xf32> to vector<16x32xf32>
    %22 = arith.addf %20, %21 : vector<16x32xf32>
    %c0_8 = arith.constant 0 : index
    %c0_9 = arith.constant 0 : index
    %23 = vector.load %arg2[%c0_8, %c0_9] : memref<32x192xf32, #tpu.memory_space<vmem>>, vector<32x192xf32>
    %cst_10 = arith.constant dense<0.000000e+00> : vector<16x192xf32>
    %24 = tpu.matmul %22, %23, %cst_10 {dimension_numbers = #tpu.dot_dimension_numbers<[1], [0], [0], [1], [0, 0, 1, 1], [], []>} : vector<16x32xf32>, vector<32x192xf32>, vector<16x192xf32> -> vector<16x192xf32>
    %25 = vector.extract_strided_slice %24 {offsets = [0, 0], sizes = [16, 64], strides = [1, 1]} : vector<16x192xf32> to vector<16x64xf32>
    %26 = vector.extract_strided_slice %24 {offsets = [0, 64], sizes = [16, 64], strides = [1, 1]} : vector<16x192xf32> to vector<16x64xf32>
    %27 = vector.extract_strided_slice %24 {offsets = [0, 128], sizes = [16, 64], strides = [1, 1]} : vector<16x192xf32> to vector<16x64xf32>
    %cst_11 = arith.constant 0.000000e+00 : f32
    %28 = vector.broadcast %cst_11 : f32 to vector<16x32xf32>
    %29 = vector.extract_strided_slice %25 {offsets = [0, 0], sizes = [16, 32], strides = [1, 1]} : vector<16x64xf32> to vector<16x32xf32>
    %30 = vector.extract_strided_slice %26 {offsets = [0, 0], sizes = [16, 32], strides = [1, 1]} : vector<16x64xf32> to vector<16x32xf32>
    %cst_12 = arith.constant dense<0.000000e+00> : vector<16x16xf32>
    %31 = tpu.matmul %29, %30, %cst_12 {dimension_numbers = #tpu.dot_dimension_numbers<[1], [1], [0], [0], [0, 0, 1, 0], [], []>} : vector<16x32xf32>, vector<16x32xf32>, vector<16x16xf32> -> vector<16x16xf32>
    %cst_13 = arith.constant dense<0xFF800000> : vector<16xf32>
    %32 = vector.multi_reduction <maximumf>, %31, %cst_13 [1] : vector<16x16xf32> to vector<16xf32>
    %33 = vector.shape_cast %32 : vector<16xf32> to vector<16x1xf32>
    %34 = vector.broadcast %33 : vector<16x1xf32> to vector<16x16xf32>
    %35 = arith.subf %31, %34 : vector<16x16xf32>
    %36 = math.exp %35 : vector<16x16xf32>
    %cst_14 = arith.constant dense<0.000000e+00> : vector<16xf32>
    %37 = vector.multi_reduction <add>, %36, %cst_14 [1] : vector<16x16xf32> to vector<16xf32>
    %38 = vector.shape_cast %37 : vector<16xf32> to vector<16x1xf32>
    %39 = tpu.reciprocal %38 {approx = true} : vector<16x1xf32> -> vector<16x1xf32>
    %40 = vector.broadcast %39 : vector<16x1xf32> to vector<16x16xf32>
    %41 = arith.mulf %36, %40 : vector<16x16xf32>
    %42 = vector.extract_strided_slice %27 {offsets = [0, 0], sizes = [16, 32], strides = [1, 1]} : vector<16x64xf32> to vector<16x32xf32>
    %cst_15 = arith.constant dense<0.000000e+00> : vector<16x32xf32>
    %43 = tpu.matmul %41, %42, %cst_15 {dimension_numbers = #tpu.dot_dimension_numbers<[1], [0], [0], [1], [0, 0, 1, 1], [], []>} : vector<16x16xf32>, vector<16x32xf32>, vector<16x32xf32> -> vector<16x32xf32>
    %c0_16 = arith.constant 0 : index
    %c0_17 = arith.constant 0 : index
    %44 = vector.load %arg3[%c0_16, %c0_17] : memref<64x32xf32, #tpu.memory_space<vmem>>, vector<32x32xf32>
    %cst_18 = arith.constant dense<0.000000e+00> : vector<16x32xf32>
    %45 = tpu.matmul %43, %44, %cst_18 {dimension_numbers = #tpu.dot_dimension_numbers<[1], [0], [0], [1], [0, 0, 1, 1], [], []>} : vector<16x32xf32>, vector<32x32xf32>, vector<16x32xf32> -> vector<16x32xf32>
    %46 = arith.addf %28, %45 : vector<16x32xf32>
    %47 = vector.extract_strided_slice %25 {offsets = [0, 32], sizes = [16, 32], strides = [1, 1]} : vector<16x64xf32> to vector<16x32xf32>
    %48 = vector.extract_strided_slice %26 {offsets = [0, 32], sizes = [16, 32], strides = [1, 1]} : vector<16x64xf32> to vector<16x32xf32>
    %cst_19 = arith.constant dense<0.000000e+00> : vector<16x16xf32>
    %49 = tpu.matmul %47, %48, %cst_19 {dimension_numbers = #tpu.dot_dimension_numbers<[1], [1], [0], [0], [0, 0, 1, 0], [], []>} : vector<16x32xf32>, vector<16x32xf32>, vector<16x16xf32> -> vector<16x16xf32>
    %cst_20 = arith.constant dense<0xFF800000> : vector<16xf32>
    %50 = vector.multi_reduction <maximumf>, %49, %cst_20 [1] : vector<16x16xf32> to vector<16xf32>
    %51 = vector.shape_cast %50 : vector<16xf32> to vector<16x1xf32>
    %52 = vector.broadcast %51 : vector<16x1xf32> to vector<16x16xf32>
    %53 = arith.subf %49, %52 : vector<16x16xf32>
    %54 = math.exp %53 : vector<16x16xf32>
    %cst_21 = arith.constant dense<0.000000e+00> : vector<16xf32>
    %55 = vector.multi_reduction <add>, %54, %cst_21 [1] : vector<16x16xf32> to vector<16xf32>
    %56 = vector.shape_cast %55 : vector<16xf32> to vector<16x1xf32>
    %57 = tpu.reciprocal %56 {approx = true} : vector<16x1xf32> -> vector<16x1xf32>
    %58 = vector.broadcast %57 : vector<16x1xf32> to vector<16x16xf32>
    %59 = arith.mulf %54, %58 : vector<16x16xf32>
    %60 = vector.extract_strided_slice %27 {offsets = [0, 32], sizes = [16, 32], strides = [1, 1]} : vector<16x64xf32> to vector<16x32xf32>
    %cst_22 = arith.constant dense<0.000000e+00> : vector<16x32xf32>
    %61 = tpu.matmul %59, %60, %cst_22 {dimension_numbers = #tpu.dot_dimension_numbers<[1], [0], [0], [1], [0, 0, 1, 1], [], []>} : vector<16x16xf32>, vector<16x32xf32>, vector<16x32xf32> -> vector<16x32xf32>
    %c32 = arith.constant 32 : index
    %c0_23 = arith.constant 0 : index
    %62 = vector.load %arg3[%c32, %c0_23] : memref<64x32xf32, #tpu.memory_space<vmem>>, vector<32x32xf32>
    %cst_24 = arith.constant dense<0.000000e+00> : vector<16x32xf32>
    %63 = tpu.matmul %61, %62, %cst_24 {dimension_numbers = #tpu.dot_dimension_numbers<[1], [0], [0], [1], [0, 0, 1, 1], [], []>} : vector<16x32xf32>, vector<32x32xf32>, vector<16x32xf32> -> vector<16x32xf32>
    %64 = arith.addf %46, %63 : vector<16x32xf32>
    %c2 = arith.constant 2 : index
    %c0_25 = arith.constant 0 : index
    %65 = vector.load %arg1[%c2, %c0_25] : memref<3x32xf32, #tpu.memory_space<vmem>>, vector<1x32xf32>
    %66 = vector.broadcast %65 : vector<1x32xf32> to vector<16x32xf32>
    %67 = arith.addf %64, %66 : vector<16x32xf32>
    %68 = tpu.iota {dimensions = array<i32: 0>} : vector<16x1xi32>
    %c1_i32 = arith.constant 1 : i32
    %69 = vector.broadcast %c1_i32 : i32 to vector<16x1xi32>
    %70 = arith.cmpi sge, %68, %69 : vector<16x1xi32>
    %c2_i32 = arith.constant 2 : i32
    %71 = vector.broadcast %c2_i32 : i32 to vector<16x1xi32>
    %72 = arith.cmpi sge, %68, %71 : vector<16x1xi32>
    %c3_i32 = arith.constant 3 : i32
    %73 = vector.broadcast %c3_i32 : i32 to vector<16x1xi32>
    %74 = arith.cmpi sge, %68, %73 : vector<16x1xi32>
    %c0_26 = arith.constant 0 : index
    %c0_27 = arith.constant 0 : index
    %c0_28 = arith.constant 0 : index
    %75 = vector.load %arg4[%c0_26, %c0_27, %c0_28] : memref<2x2x32xf32, #tpu.memory_space<vmem>>, vector<1x1x32xf32>
    %76 = vector.shape_cast %75 : vector<1x1x32xf32> to vector<1x32xf32>
    %c0_29 = arith.constant 0 : index
    %c1_30 = arith.constant 1 : index
    %c0_31 = arith.constant 0 : index
    %77 = vector.load %arg4[%c0_29, %c1_30, %c0_31] : memref<2x2x32xf32, #tpu.memory_space<vmem>>, vector<1x1x32xf32>
    %78 = vector.shape_cast %77 : vector<1x1x32xf32> to vector<1x32xf32>
    %cst_32 = arith.constant dense<0.000000e+00> : vector<16xf32>
    %79 = vector.multi_reduction <add>, %67, %cst_32 [1] : vector<16x32xf32> to vector<16xf32>
    %80 = vector.shape_cast %79 : vector<16xf32> to vector<16x1xf32>
    %cst_33 = arith.constant 3.200000e+01 : f32
    %81 = vector.broadcast %cst_33 : f32 to vector<16x1xf32>
    %82 = arith.divf %80, %81 : vector<16x1xf32>
    %83 = vector.broadcast %82 : vector<16x1xf32> to vector<16x32xf32>
    %84 = arith.subf %67, %83 : vector<16x32xf32>
    %85 = arith.mulf %84, %84 : vector<16x32xf32>
    %cst_34 = arith.constant dense<0.000000e+00> : vector<16xf32>
    %86 = vector.multi_reduction <add>, %85, %cst_34 [1] : vector<16x32xf32> to vector<16xf32>
    %87 = vector.shape_cast %86 : vector<16xf32> to vector<16x1xf32>
    %cst_35 = arith.constant 3.200000e+01 : f32
    %88 = vector.broadcast %cst_35 : f32 to vector<16x1xf32>
    %89 = arith.divf %87, %88 : vector<16x1xf32>
    %cst_36 = arith.constant 9.99999974E-6 : f32
    %90 = vector.broadcast %cst_36 : f32 to vector<16x1xf32>
    %91 = arith.addf %89, %90 : vector<16x1xf32>
    %92 = math.rsqrt %91 : vector<16x1xf32>
    %93 = vector.broadcast %92 : vector<16x1xf32> to vector<16x32xf32>
    %94 = arith.mulf %84, %93 : vector<16x32xf32>
    %95 = vector.broadcast %76 : vector<1x32xf32> to vector<16x32xf32>
    %96 = arith.mulf %94, %95 : vector<16x32xf32>
    %97 = vector.broadcast %78 : vector<1x32xf32> to vector<16x32xf32>
    %98 = arith.addf %96, %97 : vector<16x32xf32>
    %c0_37 = arith.constant 0 : index
    %c0_38 = arith.constant 0 : index
    %c0_39 = arith.constant 0 : index
    %99 = vector.load %arg5[%c0_37, %c0_38, %c0_39] : memref<2x32x128xf32, #tpu.memory_space<vmem>>, vector<1x32x128xf32>
    %100 = vector.shape_cast %99 : vector<1x32x128xf32> to vector<32x128xf32>
    %cst_40 = arith.constant dense<0.000000e+00> : vector<16x128xf32>
    %101 = tpu.matmul %98, %100, %cst_40 {dimension_numbers = #tpu.dot_dimension_numbers<[1], [0], [0], [1], [0, 0, 1, 1], [], []>} : vector<16x32xf32>, vector<32x128xf32>, vector<16x128xf32> -> vector<16x128xf32>
    %102 = vector.extract_strided_slice %101 {offsets = [0, 0], sizes = [16, 64], strides = [1, 1]} : vector<16x128xf32> to vector<16x64xf32>
    %103 = vector.extract_strided_slice %101 {offsets = [0, 64], sizes = [16, 64], strides = [1, 1]} : vector<16x128xf32> to vector<16x64xf32>
    %cst_41 = arith.constant 0.000000e+00 : f32
    %104 = vector.broadcast %cst_41 : f32 to vector<16x64xf32>
    %c0_42 = arith.constant 0 : index
    %c0_43 = arith.constant 0 : index
    %c0_44 = arith.constant 0 : index
    %105 = vector.load %arg7[%c0_42, %c0_43, %c0_44] : memref<2x3x64xf32, #tpu.memory_space<vmem>>, vector<1x1x64xf32>
    %106 = vector.shape_cast %105 : vector<1x1x64xf32> to vector<1x64xf32>
    %107 = vector.broadcast %106 : vector<1x64xf32> to vector<16x64xf32>
    %108 = arith.addf %104, %107 : vector<16x64xf32>
    %c3_i32_45 = arith.constant 3 : i32
    %109 = tpu.dynamic_rotate %102 by %c3_i32_45 dim 0 : vector<16x64xf32>, i32 -> vector<16x64xf32>
    %cst_46 = arith.constant 0.000000e+00 : f32
    %110 = vector.shape_cast %74 : vector<16x1xi1> to vector<16x1xi1>
    %111 = vector.broadcast %110 : vector<16x1xi1> to vector<16x64xi1>
    %112 = vector.broadcast %cst_46 : f32 to vector<16x64xf32>
    %113 = arith.select %111, %109, %112 : vector<16x64xi1>, vector<16x64xf32>
    %c0_47 = arith.constant 0 : index
    %c0_48 = arith.constant 0 : index
    %c0_49 = arith.constant 0 : index
    %114 = vector.load %arg6[%c0_47, %c0_48, %c0_49] : memref<2x4x64xf32, #tpu.memory_space<vmem>>, vector<1x1x64xf32>
    %115 = vector.shape_cast %114 : vector<1x1x64xf32> to vector<1x64xf32>
    %116 = vector.broadcast %115 : vector<1x64xf32> to vector<16x64xf32>
    %117 = arith.mulf %116, %113 : vector<16x64xf32>
    %118 = arith.addf %108, %117 : vector<16x64xf32>
    %c2_i32_50 = arith.constant 2 : i32
    %119 = tpu.dynamic_rotate %102 by %c2_i32_50 dim 0 : vector<16x64xf32>, i32 -> vector<16x64xf32>
    %cst_51 = arith.constant 0.000000e+00 : f32
    %120 = vector.shape_cast %72 : vector<16x1xi1> to vector<16x1xi1>
    %121 = vector.broadcast %120 : vector<16x1xi1> to vector<16x64xi1>
    %122 = vector.broadcast %cst_51 : f32 to vector<16x64xf32>
    %123 = arith.select %121, %119, %122 : vector<16x64xi1>, vector<16x64xf32>
    %c0_52 = arith.constant 0 : index
    %c1_53 = arith.constant 1 : index
    %c0_54 = arith.constant 0 : index
    %124 = vector.load %arg6[%c0_52, %c1_53, %c0_54] : memref<2x4x64xf32, #tpu.memory_space<vmem>>, vector<1x1x64xf32>
    %125 = vector.shape_cast %124 : vector<1x1x64xf32> to vector<1x64xf32>
    %126 = vector.broadcast %125 : vector<1x64xf32> to vector<16x64xf32>
    %127 = arith.mulf %126, %123 : vector<16x64xf32>
    %128 = arith.addf %118, %127 : vector<16x64xf32>
    %c1_i32_55 = arith.constant 1 : i32
    %129 = tpu.dynamic_rotate %102 by %c1_i32_55 dim 0 : vector<16x64xf32>, i32 -> vector<16x64xf32>
    %cst_56 = arith.constant 0.000000e+00 : f32
    %130 = vector.shape_cast %70 : vector<16x1xi1> to vector<16x1xi1>
    %131 = vector.broadcast %130 : vector<16x1xi1> to vector<16x64xi1>
    %132 = vector.broadcast %cst_56 : f32 to vector<16x64xf32>
    %133 = arith.select %131, %129, %132 : vector<16x64xi1>, vector<16x64xf32>
    %c0_57 = arith.constant 0 : index
    %c2_58 = arith.constant 2 : index
    %c0_59 = arith.constant 0 : index
    %134 = vector.load %arg6[%c0_57, %c2_58, %c0_59] : memref<2x4x64xf32, #tpu.memory_space<vmem>>, vector<1x1x64xf32>
    %135 = vector.shape_cast %134 : vector<1x1x64xf32> to vector<1x64xf32>
    %136 = vector.broadcast %135 : vector<1x64xf32> to vector<16x64xf32>
    %137 = arith.mulf %136, %133 : vector<16x64xf32>
    %138 = arith.addf %128, %137 : vector<16x64xf32>
    %c0_60 = arith.constant 0 : index
    %c3 = arith.constant 3 : index
    %c0_61 = arith.constant 0 : index
    %139 = vector.load %arg6[%c0_60, %c3, %c0_61] : memref<2x4x64xf32, #tpu.memory_space<vmem>>, vector<1x1x64xf32>
    %140 = vector.shape_cast %139 : vector<1x1x64xf32> to vector<1x64xf32>
    %141 = vector.broadcast %140 : vector<1x64xf32> to vector<16x64xf32>
    %142 = arith.mulf %141, %102 : vector<16x64xf32>
    %143 = arith.addf %138, %142 : vector<16x64xf32>
    %144 = arith.negf %143 : vector<16x64xf32>
    %145 = math.exp %144 : vector<16x64xf32>
    %cst_62 = arith.constant 1.000000e+00 : f32
    %146 = vector.broadcast %cst_62 : f32 to vector<16x64xf32>
    %147 = arith.addf %146, %145 : vector<16x64xf32>
    %148 = arith.divf %146, %147 : vector<16x64xf32>
    %149 = arith.mulf %143, %148 : vector<16x64xf32>
    %c0_63 = arith.constant 0 : index
    %c0_64 = arith.constant 0 : index
    %c0_65 = arith.constant 0 : index
    %150 = vector.load %arg8[%c0_63, %c0_64, %c0_65] : memref<2x64x18xf32, #tpu.memory_space<vmem>>, vector<1x64x18xf32>
    %151 = vector.shape_cast %150 : vector<1x64x18xf32> to vector<64x18xf32>
    %cst_66 = arith.constant dense<0.000000e+00> : vector<16x18xf32>
    %152 = tpu.matmul %149, %151, %cst_66 {dimension_numbers = #tpu.dot_dimension_numbers<[1], [0], [0], [1], [0, 0, 1, 1], [], []>} : vector<16x64xf32>, vector<64x18xf32>, vector<16x18xf32> -> vector<16x18xf32>
    %153 = vector.extract_strided_slice %152 {offsets = [0, 2], sizes = [16, 16], strides = [1, 1]} : vector<16x18xf32> to vector<16x16xf32>
    %c0_67 = arith.constant 0 : index
    %c0_68 = arith.constant 0 : index
    %154 = vector.load %arg18[%c0_67, %c0_68] : memref<16x16xf32, #tpu.memory_space<vmem>>, vector<16x16xf32>
    tpu.vector_store %arg18[%c0_67, %c0_68], %153 {strides = array<i32>} : memref<16x16xf32, #tpu.memory_space<vmem>>, vector<16x16xf32>,
    %c0_69 = arith.constant 0 : index
    %c0_70 = arith.constant 0 : index
    %c0_71 = arith.constant 0 : index
    %155 = vector.load %arg9[%c0_69, %c0_70, %c0_71] : memref<2x16x64xf32, #tpu.memory_space<vmem>>, vector<1x16x64xf32>
    %156 = vector.shape_cast %155 : vector<1x16x64xf32> to vector<16x64xf32>
    %cst_72 = arith.constant dense<0.000000e+00> : vector<16x16xf32>
    %157 = tpu.matmul %156, %149, %cst_72 {dimension_numbers = #tpu.dot_dimension_numbers<[1], [1], [0], [0], [0, 0, 1, 0], [], []>} : vector<16x64xf32>, vector<16x64xf32>, vector<16x16xf32> -> vector<16x16xf32>
    %c0_73 = arith.constant 0 : index
    %c0_74 = arith.constant 0 : index
    %158 = vector.load %arg17[%c0_73, %c0_74] : memref<16x16xf32, #tpu.memory_space<vmem>>, vector<16x16xf32>
    tpu.vector_store %arg17[%c0_73, %c0_74], %157 {strides = array<i32>} : memref<16x16xf32, #tpu.memory_space<vmem>>, vector<16x16xf32>,
    %159 = vector.extract_strided_slice %152 {offsets = [0, 0], sizes = [16, 2], strides = [1, 1]} : vector<16x18xf32> to vector<16x2xf32>
    %c0_75 = arith.constant 0 : index
    %c0_76 = arith.constant 0 : index
    %c0_77 = arith.constant 0 : index
    %160 = vector.load %arg10[%c0_75, %c0_76, %c0_77] : memref<2x2x64xf32, #tpu.memory_space<vmem>>, vector<1x2x64xf32>
    %161 = vector.shape_cast %160 : vector<1x2x64xf32> to vector<2x64xf32>
    %cst_78 = arith.constant dense<0.000000e+00> : vector<16x64xf32>
    %162 = tpu.matmul %159, %161, %cst_78 {dimension_numbers = #tpu.dot_dimension_numbers<[1], [0], [0], [1], [0, 0, 1, 1], [], []>} : vector<16x2xf32>, vector<2x64xf32>, vector<16x64xf32> -> vector<16x64xf32>
    %c0_79 = arith.constant 0 : index
    %c1_80 = arith.constant 1 : index
    %c0_81 = arith.constant 0 : index
    %163 = vector.load %arg7[%c0_79, %c1_80, %c0_81] : memref<2x3x64xf32, #tpu.memory_space<vmem>>, vector<1x1x64xf32>
    %164 = vector.shape_cast %163 : vector<1x1x64xf32> to vector<1x64xf32>
    %165 = vector.broadcast %164 : vector<1x64xf32> to vector<16x64xf32>
    %166 = arith.addf %162, %165 : vector<16x64xf32>
    %cst_82 = arith.constant 0.000000e+00 : f32
    %167 = vector.broadcast %cst_82 : f32 to vector<16x64xf32>
    %168 = arith.maximumf %166, %167 : vector<16x64xf32>
    %169 = math.absf %166 : vector<16x64xf32>
    %cst_83 = arith.constant 0.000000e+00 : f32
    %170 = vector.broadcast %cst_83 : f32 to vector<16x64xf32>
    %171 = arith.subf %170, %169 : vector<16x64xf32>
    %172 = math.exp %171 : vector<16x64xf32>
    %173 = math.log1p %172 : vector<16x64xf32>
    %174 = arith.addf %168, %173 : vector<16x64xf32>
    %c0_84 = arith.constant 0 : index
    %c0_85 = arith.constant 0 : index
    %175 = vector.load %arg16[%c0_84, %c0_85] : memref<16x64xf32, #tpu.memory_space<vmem>>, vector<16x64xf32>
    tpu.vector_store %arg16[%c0_84, %c0_85], %174 {strides = array<i32>} : memref<16x64xf32, #tpu.memory_space<vmem>>, vector<16x64xf32>,
    %176 = arith.mulf %174, %149 : vector<16x64xf32>
    %c0_86 = arith.constant 0 : index
    %c0_87 = arith.constant 0 : index
    %177 = vector.load %arg15[%c0_86, %c0_87] : memref<16x64xf32, #tpu.memory_space<vmem>>, vector<16x64xf32>
    tpu.vector_store %arg15[%c0_86, %c0_87], %176 {strides = array<i32>} : memref<16x64xf32, #tpu.memory_space<vmem>>, vector<16x64xf32>,
    %c0_88 = arith.constant 0 : index
    %c0_89 = arith.constant 0 : index
    %c0_90 = arith.constant 0 : index
    %178 = vector.load %arg11[%c0_88, %c0_89, %c0_90] : memref<2x16x64xf32, #tpu.memory_space<vmem>>, vector<1x16x64xf32>
    %179 = vector.shape_cast %178 : vector<1x16x64xf32> to vector<16x64xf32>
    %180 = math.exp %179 : vector<16x64xf32>
    %cst_91 = arith.constant 0.000000e+00 : f32
    %181 = vector.broadcast %cst_91 : f32 to vector<16x64xf32>
    %182 = arith.subf %181, %180 : vector<16x64xf32>
    %cst_92 = arith.constant 0.000000e+00 : f32
    %183 = vector.broadcast %cst_92 : f32 to vector<16x64xf32>
    %c0_93 = arith.constant 0 : index
    %c0_94 = arith.constant 0 : index
    %184 = vector.load %arg16[%c0_93, %c0_94] : memref<16x64xf32, #tpu.memory_space<vmem>>, vector<1x64xf32>
    %185 = vector.broadcast %184 : vector<1x64xf32> to vector<16x64xf32>
    %186 = arith.mulf %182, %185 : vector<16x64xf32>
    %187 = math.exp %186 : vector<16x64xf32>
    %188 = arith.mulf %187, %183 : vector<16x64xf32>
    %c0_95 = arith.constant 0 : index
    %c0_96 = arith.constant 0 : index
    %189 = vector.load %arg17[%c0_95, %c0_96] : memref<16x16xf32, #tpu.memory_space<vmem>>, vector<16x1xf32>
    %c0_97 = arith.constant 0 : index
    %c0_98 = arith.constant 0 : index
    %190 = vector.load %arg15[%c0_97, %c0_98] : memref<16x64xf32, #tpu.memory_space<vmem>>, vector<1x64xf32>
    %191 = vector.broadcast %189 : vector<16x1xf32> to vector<16x64xf32>
    %192 = vector.broadcast %190 : vector<1x64xf32> to vector<16x64xf32>
    %193 = arith.mulf %191, %192 : vector<16x64xf32>
    %194 = arith.addf %188, %193 : vector<16x64xf32>
    %c0_99 = arith.constant 0 : index
    %c0_100 = arith.constant 0 : index
    %195 = vector.load %arg18[%c0_99, %c0_100] : memref<16x16xf32, #tpu.memory_space<vmem>>, vector<1x16xf32>
    %cst_101 = arith.constant dense<0.000000e+00> : vector<1x64xf32>
    %196 = tpu.matmul %195, %194, %cst_101 {dimension_numbers = #tpu.dot_dimension_numbers<[1], [0], [0], [1], [0, 0, 1, 1], [], []>} : vector<1x16xf32>, vector<16x64xf32>, vector<1x64xf32> -> vector<1x64xf32>
    %c0_102 = arith.constant 0 : index
    %c0_103 = arith.constant 0 : index
    %197 = vector.load %arg19[%c0_102, %c0_103] : memref<16x64xf32, #tpu.memory_space<vmem>>, vector<1x64xf32>
    tpu.vector_store %arg19[%c0_102, %c0_103], %196 {strides = array<i32>} : memref<16x64xf32, #tpu.memory_space<vmem>>, vector<1x64xf32>,
    %c1_104 = arith.constant 1 : index
    %c0_105 = arith.constant 0 : index
    %198 = vector.load %arg16[%c1_104, %c0_105] : memref<16x64xf32, #tpu.memory_space<vmem>>, vector<1x64xf32>
    %199 = vector.broadcast %198 : vector<1x64xf32> to vector<16x64xf32>
    %200 = arith.mulf %182, %199 : vector<16x64xf32>
    %201 = math.exp %200 : vector<16x64xf32>
    %202 = arith.mulf %201, %194 : vector<16x64xf32>
    %c0_106 = arith.constant 0 : index
    %c1_107 = arith.constant 1 : index
    %203 = vector.load %arg17[%c0_106, %c1_107] : memref<16x16xf32, #tpu.memory_space<vmem>>, vector<16x1xf32>
    %c1_108 = arith.constant 1 : index
    %c0_109 = arith.constant 0 : index
    %204 = vector.load %arg15[%c1_108, %c0_109] : memref<16x64xf32, #tpu.memory_space<vmem>>, vector<1x64xf32>
    %205 = vector.broadcast %203 : vector<16x1xf32> to vector<16x64xf32>
    %206 = vector.broadcast %204 : vector<1x64xf32> to vector<16x64xf32>
    %207 = arith.mulf %205, %206 : vector<16x64xf32>
    %208 = arith.addf %202, %207 : vector<16x64xf32>
    %c1_110 = arith.constant 1 : index
    %c0_111 = arith.constant 0 : index
    %209 = vector.load %arg18[%c1_110, %c0_111] : memref<16x16xf32, #tpu.memory_space<vmem>>, vector<1x16xf32>
    %cst_112 = arith.constant dense<0.000000e+00> : vector<1x64xf32>
    %210 = tpu.matmul %209, %208, %cst_112 {dimension_numbers = #tpu.dot_dimension_numbers<[1], [0], [0], [1], [0, 0, 1, 1], [], []>} : vector<1x16xf32>, vector<16x64xf32>, vector<1x64xf32> -> vector<1x64xf32>
    %c1_113 = arith.constant 1 : index
    %c0_114 = arith.constant 0 : index
    %211 = vector.load %arg19[%c1_113, %c0_114] : memref<16x64xf32, #tpu.memory_space<vmem>>, vector<1x64xf32>
    tpu.vector_store %arg19[%c1_113, %c0_114], %210 {strides = array<i32>} : memref<16x64xf32, #tpu.memory_space<vmem>>, vector<1x64xf32>,
    %c2_115 = arith.constant 2 : index
    %c0_116 = arith.constant 0 : index
    %212 = vector.load %arg16[%c2_115, %c0_116] : memref<16x64xf32, #tpu.memory_space<vmem>>, vector<1x64xf32>
    %213 = vector.broadcast %212 : vector<1x64xf32> to vector<16x64xf32>
    %214 = arith.mulf %182, %213 : vector<16x64xf32>
    %215 = math.exp %214 : vector<16x64xf32>
    %216 = arith.mulf %215, %208 : vector<16x64xf32>
    %c0_117 = arith.constant 0 : index
    %c2_118 = arith.constant 2 : index
    %217 = vector.load %arg17[%c0_117, %c2_118] : memref<16x16xf32, #tpu.memory_space<vmem>>, vector<16x1xf32>
    %c2_119 = arith.constant 2 : index
    %c0_120 = arith.constant 0 : index
    %218 = vector.load %arg15[%c2_119, %c0_120] : memref<16x64xf32, #tpu.memory_space<vmem>>, vector<1x64xf32>
    %219 = vector.broadcast %217 : vector<16x1xf32> to vector<16x64xf32>
    %220 = vector.broadcast %218 : vector<1x64xf32> to vector<16x64xf32>
    %221 = arith.mulf %219, %220 : vector<16x64xf32>
    %222 = arith.addf %216, %221 : vector<16x64xf32>
    %c2_121 = arith.constant 2 : index
    %c0_122 = arith.constant 0 : index
    %223 = vector.load %arg18[%c2_121, %c0_122] : memref<16x16xf32, #tpu.memory_space<vmem>>, vector<1x16xf32>
    %cst_123 = arith.constant dense<0.000000e+00> : vector<1x64xf32>
    %224 = tpu.matmul %223, %222, %cst_123 {dimension_numbers = #tpu.dot_dimension_numbers<[1], [0], [0], [1], [0, 0, 1, 1], [], []>} : vector<1x16xf32>, vector<16x64xf32>, vector<1x64xf32> -> vector<1x64xf32>
    %c2_124 = arith.constant 2 : index
    %c0_125 = arith.constant 0 : index
    %225 = vector.load %arg19[%c2_124, %c0_125] : memref<16x64xf32, #tpu.memory_space<vmem>>, vector<1x64xf32>
    tpu.vector_store %arg19[%c2_124, %c0_125], %224 {strides = array<i32>} : memref<16x64xf32, #tpu.memory_space<vmem>>, vector<1x64xf32>,
    %c3_126 = arith.constant 3 : index
    %c0_127 = arith.constant 0 : index
    %226 = vector.load %arg16[%c3_126, %c0_127] : memref<16x64xf32, #tpu.memory_space<vmem>>, vector<1x64xf32>
    %227 = vector.broadcast %226 : vector<1x64xf32> to vector<16x64xf32>
    %228 = arith.mulf %182, %227 : vector<16x64xf32>
    %229 = math.exp %228 : vector<16x64xf32>
    %230 = arith.mulf %229, %222 : vector<16x64xf32>
    %c0_128 = arith.constant 0 : index
    %c3_129 = arith.constant 3 : index
    %231 = vector.load %arg17[%c0_128, %c3_129] : memref<16x16xf32, #tpu.memory_space<vmem>>, vector<16x1xf32>
    %c3_130 = arith.constant 3 : index
    %c0_131 = arith.constant 0 : index
    %232 = vector.load %arg15[%c3_130, %c0_131] : memref<16x64xf32, #tpu.memory_space<vmem>>, vector<1x64xf32>
    %233 = vector.broadcast %231 : vector<16x1xf32> to vector<16x64xf32>
    %234 = vector.broadcast %232 : vector<1x64xf32> to vector<16x64xf32>
    %235 = arith.mulf %233, %234 : vector<16x64xf32>
    %236 = arith.addf %230, %235 : vector<16x64xf32>
    %c3_132 = arith.constant 3 : index
    %c0_133 = arith.constant 0 : index
    %237 = vector.load %arg18[%c3_132, %c0_133] : memref<16x16xf32, #tpu.memory_space<vmem>>, vector<1x16xf32>
    %cst_134 = arith.constant dense<0.000000e+00> : vector<1x64xf32>
    %238 = tpu.matmul %237, %236, %cst_134 {dimension_numbers = #tpu.dot_dimension_numbers<[1], [0], [0], [1], [0, 0, 1, 1], [], []>} : vector<1x16xf32>, vector<16x64xf32>, vector<1x64xf32> -> vector<1x64xf32>
    %c3_135 = arith.constant 3 : index
    %c0_136 = arith.constant 0 : index
    %239 = vector.load %arg19[%c3_135, %c0_136] : memref<16x64xf32, #tpu.memory_space<vmem>>, vector<1x64xf32>
    tpu.vector_store %arg19[%c3_135, %c0_136], %238 {strides = array<i32>} : memref<16x64xf32, #tpu.memory_space<vmem>>, vector<1x64xf32>,
    %c4 = arith.constant 4 : index
    %c0_137 = arith.constant 0 : index
    %240 = vector.load %arg16[%c4, %c0_137] : memref<16x64xf32, #tpu.memory_space<vmem>>, vector<1x64xf32>
    %241 = vector.broadcast %240 : vector<1x64xf32> to vector<16x64xf32>
    %242 = arith.mulf %182, %241 : vector<16x64xf32>
    %243 = math.exp %242 : vector<16x64xf32>
    %244 = arith.mulf %243, %236 : vector<16x64xf32>
    %c0_138 = arith.constant 0 : index
    %c4_139 = arith.constant 4 : index
    %245 = vector.load %arg17[%c0_138, %c4_139] : memref<16x16xf32, #tpu.memory_space<vmem>>, vector<16x1xf32>
    %c4_140 = arith.constant 4 : index
    %c0_141 = arith.constant 0 : index
    %246 = vector.load %arg15[%c4_140, %c0_141] : memref<16x64xf32, #tpu.memory_space<vmem>>, vector<1x64xf32>
    %247 = vector.broadcast %245 : vector<16x1xf32> to vector<16x64xf32>
    %248 = vector.broadcast %246 : vector<1x64xf32> to vector<16x64xf32>
    %249 = arith.mulf %247, %248 : vector<16x64xf32>
    %250 = arith.addf %244, %249 : vector<16x64xf32>
    %c4_142 = arith.constant 4 : index
    %c0_143 = arith.constant 0 : index
    %251 = vector.load %arg18[%c4_142, %c0_143] : memref<16x16xf32, #tpu.memory_space<vmem>>, vector<1x16xf32>
    %cst_144 = arith.constant dense<0.000000e+00> : vector<1x64xf32>
    %252 = tpu.matmul %251, %250, %cst_144 {dimension_numbers = #tpu.dot_dimension_numbers<[1], [0], [0], [1], [0, 0, 1, 1], [], []>} : vector<1x16xf32>, vector<16x64xf32>, vector<1x64xf32> -> vector<1x64xf32>
    %c4_145 = arith.constant 4 : index
    %c0_146 = arith.constant 0 : index
    %253 = vector.load %arg19[%c4_145, %c0_146] : memref<16x64xf32, #tpu.memory_space<vmem>>, vector<1x64xf32>
    tpu.vector_store %arg19[%c4_145, %c0_146], %252 {strides = array<i32>} : memref<16x64xf32, #tpu.memory_space<vmem>>, vector<1x64xf32>,
    %c5 = arith.constant 5 : index
    %c0_147 = arith.constant 0 : index
    %254 = vector.load %arg16[%c5, %c0_147] : memref<16x64xf32, #tpu.memory_space<vmem>>, vector<1x64xf32>
    %255 = vector.broadcast %254 : vector<1x64xf32> to vector<16x64xf32>
    %256 = arith.mulf %182, %255 : vector<16x64xf32>
    %257 = math.exp %256 : vector<16x64xf32>
    %258 = arith.mulf %257, %250 : vector<16x64xf32>
    %c0_148 = arith.constant 0 : index
    %c5_149 = arith.constant 5 : index
    %259 = vector.load %arg17[%c0_148, %c5_149] : memref<16x16xf32, #tpu.memory_space<vmem>>, vector<16x1xf32>
    %c5_150 = arith.constant 5 : index
    %c0_151 = arith.constant 0 : index
    %260 = vector.load %arg15[%c5_150, %c0_151] : memref<16x64xf32, #tpu.memory_space<vmem>>, vector<1x64xf32>
    %261 = vector.broadcast %259 : vector<16x1xf32> to vector<16x64xf32>
    %262 = vector.broadcast %260 : vector<1x64xf32> to vector<16x64xf32>
    %263 = arith.mulf %261, %262 : vector<16x64xf32>
    %264 = arith.addf %258, %263 : vector<16x64xf32>
    %c5_152 = arith.constant 5 : index
    %c0_153 = arith.constant 0 : index
    %265 = vector.load %arg18[%c5_152, %c0_153] : memref<16x16xf32, #tpu.memory_space<vmem>>, vector<1x16xf32>
    %cst_154 = arith.constant dense<0.000000e+00> : vector<1x64xf32>
    %266 = tpu.matmul %265, %264, %cst_154 {dimension_numbers = #tpu.dot_dimension_numbers<[1], [0], [0], [1], [0, 0, 1, 1], [], []>} : vector<1x16xf32>, vector<16x64xf32>, vector<1x64xf32> -> vector<1x64xf32>
    %c5_155 = arith.constant 5 : index
    %c0_156 = arith.constant 0 : index
    %267 = vector.load %arg19[%c5_155, %c0_156] : memref<16x64xf32, #tpu.memory_space<vmem>>, vector<1x64xf32>
    tpu.vector_store %arg19[%c5_155, %c0_156], %266 {strides = array<i32>} : memref<16x64xf32, #tpu.memory_space<vmem>>, vector<1x64xf32>,
    %c6 = arith.constant 6 : index
    %c0_157 = arith.constant 0 : index
    %268 = vector.load %arg16[%c6, %c0_157] : memref<16x64xf32, #tpu.memory_space<vmem>>, vector<1x64xf32>
    %269 = vector.broadcast %268 : vector<1x64xf32> to vector<16x64xf32>
    %270 = arith.mulf %182, %269 : vector<16x64xf32>
    %271 = math.exp %270 : vector<16x64xf32>
    %272 = arith.mulf %271, %264 : vector<16x64xf32>
    %c0_158 = arith.constant 0 : index
    %c6_159 = arith.constant 6 : index
    %273 = vector.load %arg17[%c0_158, %c6_159] : memref<16x16xf32, #tpu.memory_space<vmem>>, vector<16x1xf32>
    %c6_160 = arith.constant 6 : index
    %c0_161 = arith.constant 0 : index
    %274 = vector.load %arg15[%c6_160, %c0_161] : memref<16x64xf32, #tpu.memory_space<vmem>>, vector<1x64xf32>
    %275 = vector.broadcast %273 : vector<16x1xf32> to vector<16x64xf32>
    %276 = vector.broadcast %274 : vector<1x64xf32> to vector<16x64xf32>
    %277 = arith.mulf %275, %276 : vector<16x64xf32>
    %278 = arith.addf %272, %277 : vector<16x64xf32>
    %c6_162 = arith.constant 6 : index
    %c0_163 = arith.constant 0 : index
    %279 = vector.load %arg18[%c6_162, %c0_163] : memref<16x16xf32, #tpu.memory_space<vmem>>, vector<1x16xf32>
    %cst_164 = arith.constant dense<0.000000e+00> : vector<1x64xf32>
    %280 = tpu.matmul %279, %278, %cst_164 {dimension_numbers = #tpu.dot_dimension_numbers<[1], [0], [0], [1], [0, 0, 1, 1], [], []>} : vector<1x16xf32>, vector<16x64xf32>, vector<1x64xf32> -> vector<1x64xf32>
    %c6_165 = arith.constant 6 : index
    %c0_166 = arith.constant 0 : index
    %281 = vector.load %arg19[%c6_165, %c0_166] : memref<16x64xf32, #tpu.memory_space<vmem>>, vector<1x64xf32>
    tpu.vector_store %arg19[%c6_165, %c0_166], %280 {strides = array<i32>} : memref<16x64xf32, #tpu.memory_space<vmem>>, vector<1x64xf32>,
    %c7 = arith.constant 7 : index
    %c0_167 = arith.constant 0 : index
    %282 = vector.load %arg16[%c7, %c0_167] : memref<16x64xf32, #tpu.memory_space<vmem>>, vector<1x64xf32>
    %283 = vector.broadcast %282 : vector<1x64xf32> to vector<16x64xf32>
    %284 = arith.mulf %182, %283 : vector<16x64xf32>
    %285 = math.exp %284 : vector<16x64xf32>
    %286 = arith.mulf %285, %278 : vector<16x64xf32>
    %c0_168 = arith.constant 0 : index
    %c7_169 = arith.constant 7 : index
    %287 = vector.load %arg17[%c0_168, %c7_169] : memref<16x16xf32, #tpu.memory_space<vmem>>, vector<16x1xf32>
    %c7_170 = arith.constant 7 : index
    %c0_171 = arith.constant 0 : index
    %288 = vector.load %arg15[%c7_170, %c0_171] : memref<16x64xf32, #tpu.memory_space<vmem>>, vector<1x64xf32>
    %289 = vector.broadcast %287 : vector<16x1xf32> to vector<16x64xf32>
    %290 = vector.broadcast %288 : vector<1x64xf32> to vector<16x64xf32>
    %291 = arith.mulf %289, %290 : vector<16x64xf32>
    %292 = arith.addf %286, %291 : vector<16x64xf32>
    %c7_172 = arith.constant 7 : index
    %c0_173 = arith.constant 0 : index
    %293 = vector.load %arg18[%c7_172, %c0_173] : memref<16x16xf32, #tpu.memory_space<vmem>>, vector<1x16xf32>
    %cst_174 = arith.constant dense<0.000000e+00> : vector<1x64xf32>
    %294 = tpu.matmul %293, %292, %cst_174 {dimension_numbers = #tpu.dot_dimension_numbers<[1], [0], [0], [1], [0, 0, 1, 1], [], []>} : vector<1x16xf32>, vector<16x64xf32>, vector<1x64xf32> -> vector<1x64xf32>
    %c7_175 = arith.constant 7 : index
    %c0_176 = arith.constant 0 : index
    %295 = vector.load %arg19[%c7_175, %c0_176] : memref<16x64xf32, #tpu.memory_space<vmem>>, vector<1x64xf32>
    tpu.vector_store %arg19[%c7_175, %c0_176], %294 {strides = array<i32>} : memref<16x64xf32, #tpu.memory_space<vmem>>, vector<1x64xf32>,
    %c8 = arith.constant 8 : index
    %c0_177 = arith.constant 0 : index
    %296 = vector.load %arg16[%c8, %c0_177] : memref<16x64xf32, #tpu.memory_space<vmem>>, vector<1x64xf32>
    %297 = vector.broadcast %296 : vector<1x64xf32> to vector<16x64xf32>
    %298 = arith.mulf %182, %297 : vector<16x64xf32>
    %299 = math.exp %298 : vector<16x64xf32>
    %300 = arith.mulf %299, %292 : vector<16x64xf32>
    %c0_178 = arith.constant 0 : index
    %c8_179 = arith.constant 8 : index
    %301 = vector.load %arg17[%c0_178, %c8_179] : memref<16x16xf32, #tpu.memory_space<vmem>>, vector<16x1xf32>
    %c8_180 = arith.constant 8 : index
    %c0_181 = arith.constant 0 : index
    %302 = vector.load %arg15[%c8_180, %c0_181] : memref<16x64xf32, #tpu.memory_space<vmem>>, vector<1x64xf32>
    %303 = vector.broadcast %301 : vector<16x1xf32> to vector<16x64xf32>
    %304 = vector.broadcast %302 : vector<1x64xf32> to vector<16x64xf32>
    %305 = arith.mulf %303, %304 : vector<16x64xf32>
    %306 = arith.addf %300, %305 : vector<16x64xf32>
    %c8_182 = arith.constant 8 : index
    %c0_183 = arith.constant 0 : index
    %307 = vector.load %arg18[%c8_182, %c0_183] : memref<16x16xf32, #tpu.memory_space<vmem>>, vector<1x16xf32>
    %cst_184 = arith.constant dense<0.000000e+00> : vector<1x64xf32>
    %308 = tpu.matmul %307, %306, %cst_184 {dimension_numbers = #tpu.dot_dimension_numbers<[1], [0], [0], [1], [0, 0, 1, 1], [], []>} : vector<1x16xf32>, vector<16x64xf32>, vector<1x64xf32> -> vector<1x64xf32>
    %c8_185 = arith.constant 8 : index
    %c0_186 = arith.constant 0 : index
    %309 = vector.load %arg19[%c8_185, %c0_186] : memref<16x64xf32, #tpu.memory_space<vmem>>, vector<1x64xf32>
    tpu.vector_store %arg19[%c8_185, %c0_186], %308 {strides = array<i32>} : memref<16x64xf32, #tpu.memory_space<vmem>>, vector<1x64xf32>,
    %c9 = arith.constant 9 : index
    %c0_187 = arith.constant 0 : index
    %310 = vector.load %arg16[%c9, %c0_187] : memref<16x64xf32, #tpu.memory_space<vmem>>, vector<1x64xf32>
    %311 = vector.broadcast %310 : vector<1x64xf32> to vector<16x64xf32>
    %312 = arith.mulf %182, %311 : vector<16x64xf32>
    %313 = math.exp %312 : vector<16x64xf32>
    %314 = arith.mulf %313, %306 : vector<16x64xf32>
    %c0_188 = arith.constant 0 : index
    %c9_189 = arith.constant 9 : index
    %315 = vector.load %arg17[%c0_188, %c9_189] : memref<16x16xf32, #tpu.memory_space<vmem>>, vector<16x1xf32>
    %c9_190 = arith.constant 9 : index
    %c0_191 = arith.constant 0 : index
    %316 = vector.load %arg15[%c9_190, %c0_191] : memref<16x64xf32, #tpu.memory_space<vmem>>, vector<1x64xf32>
    %317 = vector.broadcast %315 : vector<16x1xf32> to vector<16x64xf32>
    %318 = vector.broadcast %316 : vector<1x64xf32> to vector<16x64xf32>
    %319 = arith.mulf %317, %318 : vector<16x64xf32>
    %320 = arith.addf %314, %319 : vector<16x64xf32>
    %c9_192 = arith.constant 9 : index
    %c0_193 = arith.constant 0 : index
    %321 = vector.load %arg18[%c9_192, %c0_193] : memref<16x16xf32, #tpu.memory_space<vmem>>, vector<1x16xf32>
    %cst_194 = arith.constant dense<0.000000e+00> : vector<1x64xf32>
    %322 = tpu.matmul %321, %320, %cst_194 {dimension_numbers = #tpu.dot_dimension_numbers<[1], [0], [0], [1], [0, 0, 1, 1], [], []>} : vector<1x16xf32>, vector<16x64xf32>, vector<1x64xf32> -> vector<1x64xf32>
    %c9_195 = arith.constant 9 : index
    %c0_196 = arith.constant 0 : index
    %323 = vector.load %arg19[%c9_195, %c0_196] : memref<16x64xf32, #tpu.memory_space<vmem>>, vector<1x64xf32>
    tpu.vector_store %arg19[%c9_195, %c0_196], %322 {strides = array<i32>} : memref<16x64xf32, #tpu.memory_space<vmem>>, vector<1x64xf32>,
    %c10 = arith.constant 10 : index
    %c0_197 = arith.constant 0 : index
    %324 = vector.load %arg16[%c10, %c0_197] : memref<16x64xf32, #tpu.memory_space<vmem>>, vector<1x64xf32>
    %325 = vector.broadcast %324 : vector<1x64xf32> to vector<16x64xf32>
    %326 = arith.mulf %182, %325 : vector<16x64xf32>
    %327 = math.exp %326 : vector<16x64xf32>
    %328 = arith.mulf %327, %320 : vector<16x64xf32>
    %c0_198 = arith.constant 0 : index
    %c10_199 = arith.constant 10 : index
    %329 = vector.load %arg17[%c0_198, %c10_199] : memref<16x16xf32, #tpu.memory_space<vmem>>, vector<16x1xf32>
    %c10_200 = arith.constant 10 : index
    %c0_201 = arith.constant 0 : index
    %330 = vector.load %arg15[%c10_200, %c0_201] : memref<16x64xf32, #tpu.memory_space<vmem>>, vector<1x64xf32>
    %331 = vector.broadcast %329 : vector<16x1xf32> to vector<16x64xf32>
    %332 = vector.broadcast %330 : vector<1x64xf32> to vector<16x64xf32>
    %333 = arith.mulf %331, %332 : vector<16x64xf32>
    %334 = arith.addf %328, %333 : vector<16x64xf32>
    %c10_202 = arith.constant 10 : index
    %c0_203 = arith.constant 0 : index
    %335 = vector.load %arg18[%c10_202, %c0_203] : memref<16x16xf32, #tpu.memory_space<vmem>>, vector<1x16xf32>
    %cst_204 = arith.constant dense<0.000000e+00> : vector<1x64xf32>
    %336 = tpu.matmul %335, %334, %cst_204 {dimension_numbers = #tpu.dot_dimension_numbers<[1], [0], [0], [1], [0, 0, 1, 1], [], []>} : vector<1x16xf32>, vector<16x64xf32>, vector<1x64xf32> -> vector<1x64xf32>
    %c10_205 = arith.constant 10 : index
    %c0_206 = arith.constant 0 : index
    %337 = vector.load %arg19[%c10_205, %c0_206] : memref<16x64xf32, #tpu.memory_space<vmem>>, vector<1x64xf32>
    tpu.vector_store %arg19[%c10_205, %c0_206], %336 {strides = array<i32>} : memref<16x64xf32, #tpu.memory_space<vmem>>, vector<1x64xf32>,
    %c11 = arith.constant 11 : index
    %c0_207 = arith.constant 0 : index
    %338 = vector.load %arg16[%c11, %c0_207] : memref<16x64xf32, #tpu.memory_space<vmem>>, vector<1x64xf32>
    %339 = vector.broadcast %338 : vector<1x64xf32> to vector<16x64xf32>
    %340 = arith.mulf %182, %339 : vector<16x64xf32>
    %341 = math.exp %340 : vector<16x64xf32>
    %342 = arith.mulf %341, %334 : vector<16x64xf32>
    %c0_208 = arith.constant 0 : index
    %c11_209 = arith.constant 11 : index
    %343 = vector.load %arg17[%c0_208, %c11_209] : memref<16x16xf32, #tpu.memory_space<vmem>>, vector<16x1xf32>
    %c11_210 = arith.constant 11 : index
    %c0_211 = arith.constant 0 : index
    %344 = vector.load %arg15[%c11_210, %c0_211] : memref<16x64xf32, #tpu.memory_space<vmem>>, vector<1x64xf32>
    %345 = vector.broadcast %343 : vector<16x1xf32> to vector<16x64xf32>
    %346 = vector.broadcast %344 : vector<1x64xf32> to vector<16x64xf32>
    %347 = arith.mulf %345, %346 : vector<16x64xf32>
    %348 = arith.addf %342, %347 : vector<16x64xf32>
    %c11_212 = arith.constant 11 : index
    %c0_213 = arith.constant 0 : index
    %349 = vector.load %arg18[%c11_212, %c0_213] : memref<16x16xf32, #tpu.memory_space<vmem>>, vector<1x16xf32>
    %cst_214 = arith.constant dense<0.000000e+00> : vector<1x64xf32>
    %350 = tpu.matmul %349, %348, %cst_214 {dimension_numbers = #tpu.dot_dimension_numbers<[1], [0], [0], [1], [0, 0, 1, 1], [], []>} : vector<1x16xf32>, vector<16x64xf32>, vector<1x64xf32> -> vector<1x64xf32>
    %c11_215 = arith.constant 11 : index
    %c0_216 = arith.constant 0 : index
    %351 = vector.load %arg19[%c11_215, %c0_216] : memref<16x64xf32, #tpu.memory_space<vmem>>, vector<1x64xf32>
    tpu.vector_store %arg19[%c11_215, %c0_216], %350 {strides = array<i32>} : memref<16x64xf32, #tpu.memory_space<vmem>>, vector<1x64xf32>,
    %c12 = arith.constant 12 : index
    %c0_217 = arith.constant 0 : index
    %352 = vector.load %arg16[%c12, %c0_217] : memref<16x64xf32, #tpu.memory_space<vmem>>, vector<1x64xf32>
    %353 = vector.broadcast %352 : vector<1x64xf32> to vector<16x64xf32>
    %354 = arith.mulf %182, %353 : vector<16x64xf32>
    %355 = math.exp %354 : vector<16x64xf32>
    %356 = arith.mulf %355, %348 : vector<16x64xf32>
    %c0_218 = arith.constant 0 : index
    %c12_219 = arith.constant 12 : index
    %357 = vector.load %arg17[%c0_218, %c12_219] : memref<16x16xf32, #tpu.memory_space<vmem>>, vector<16x1xf32>
    %c12_220 = arith.constant 12 : index
    %c0_221 = arith.constant 0 : index
    %358 = vector.load %arg15[%c12_220, %c0_221] : memref<16x64xf32, #tpu.memory_space<vmem>>, vector<1x64xf32>
    %359 = vector.broadcast %357 : vector<16x1xf32> to vector<16x64xf32>
    %360 = vector.broadcast %358 : vector<1x64xf32> to vector<16x64xf32>
    %361 = arith.mulf %359, %360 : vector<16x64xf32>
    %362 = arith.addf %356, %361 : vector<16x64xf32>
    %c12_222 = arith.constant 12 : index
    %c0_223 = arith.constant 0 : index
    %363 = vector.load %arg18[%c12_222, %c0_223] : memref<16x16xf32, #tpu.memory_space<vmem>>, vector<1x16xf32>
    %cst_224 = arith.constant dense<0.000000e+00> : vector<1x64xf32>
    %364 = tpu.matmul %363, %362, %cst_224 {dimension_numbers = #tpu.dot_dimension_numbers<[1], [0], [0], [1], [0, 0, 1, 1], [], []>} : vector<1x16xf32>, vector<16x64xf32>, vector<1x64xf32> -> vector<1x64xf32>
    %c12_225 = arith.constant 12 : index
    %c0_226 = arith.constant 0 : index
    %365 = vector.load %arg19[%c12_225, %c0_226] : memref<16x64xf32, #tpu.memory_space<vmem>>, vector<1x64xf32>
    tpu.vector_store %arg19[%c12_225, %c0_226], %364 {strides = array<i32>} : memref<16x64xf32, #tpu.memory_space<vmem>>, vector<1x64xf32>,
    %c13 = arith.constant 13 : index
    %c0_227 = arith.constant 0 : index
    %366 = vector.load %arg16[%c13, %c0_227] : memref<16x64xf32, #tpu.memory_space<vmem>>, vector<1x64xf32>
    %367 = vector.broadcast %366 : vector<1x64xf32> to vector<16x64xf32>
    %368 = arith.mulf %182, %367 : vector<16x64xf32>
    %369 = math.exp %368 : vector<16x64xf32>
    %370 = arith.mulf %369, %362 : vector<16x64xf32>
    %c0_228 = arith.constant 0 : index
    %c13_229 = arith.constant 13 : index
    %371 = vector.load %arg17[%c0_228, %c13_229] : memref<16x16xf32, #tpu.memory_space<vmem>>, vector<16x1xf32>
    %c13_230 = arith.constant 13 : index
    %c0_231 = arith.constant 0 : index
    %372 = vector.load %arg15[%c13_230, %c0_231] : memref<16x64xf32, #tpu.memory_space<vmem>>, vector<1x64xf32>
    %373 = vector.broadcast %371 : vector<16x1xf32> to vector<16x64xf32>
    %374 = vector.broadcast %372 : vector<1x64xf32> to vector<16x64xf32>
    %375 = arith.mulf %373, %374 : vector<16x64xf32>
    %376 = arith.addf %370, %375 : vector<16x64xf32>
    %c13_232 = arith.constant 13 : index
    %c0_233 = arith.constant 0 : index
    %377 = vector.load %arg18[%c13_232, %c0_233] : memref<16x16xf32, #tpu.memory_space<vmem>>, vector<1x16xf32>
    %cst_234 = arith.constant dense<0.000000e+00> : vector<1x64xf32>
    %378 = tpu.matmul %377, %376, %cst_234 {dimension_numbers = #tpu.dot_dimension_numbers<[1], [0], [0], [1], [0, 0, 1, 1], [], []>} : vector<1x16xf32>, vector<16x64xf32>, vector<1x64xf32> -> vector<1x64xf32>
    %c13_235 = arith.constant 13 : index
    %c0_236 = arith.constant 0 : index
    %379 = vector.load %arg19[%c13_235, %c0_236] : memref<16x64xf32, #tpu.memory_space<vmem>>, vector<1x64xf32>
    tpu.vector_store %arg19[%c13_235, %c0_236], %378 {strides = array<i32>} : memref<16x64xf32, #tpu.memory_space<vmem>>, vector<1x64xf32>,
    %c14 = arith.constant 14 : index
    %c0_237 = arith.constant 0 : index
    %380 = vector.load %arg16[%c14, %c0_237] : memref<16x64xf32, #tpu.memory_space<vmem>>, vector<1x64xf32>
    %381 = vector.broadcast %380 : vector<1x64xf32> to vector<16x64xf32>
    %382 = arith.mulf %182, %381 : vector<16x64xf32>
    %383 = math.exp %382 : vector<16x64xf32>
    %384 = arith.mulf %383, %376 : vector<16x64xf32>
    %c0_238 = arith.constant 0 : index
    %c14_239 = arith.constant 14 : index
    %385 = vector.load %arg17[%c0_238, %c14_239] : memref<16x16xf32, #tpu.memory_space<vmem>>, vector<16x1xf32>
    %c14_240 = arith.constant 14 : index
    %c0_241 = arith.constant 0 : index
    %386 = vector.load %arg15[%c14_240, %c0_241] : memref<16x64xf32, #tpu.memory_space<vmem>>, vector<1x64xf32>
    %387 = vector.broadcast %385 : vector<16x1xf32> to vector<16x64xf32>
    %388 = vector.broadcast %386 : vector<1x64xf32> to vector<16x64xf32>
    %389 = arith.mulf %387, %388 : vector<16x64xf32>
    %390 = arith.addf %384, %389 : vector<16x64xf32>
    %c14_242 = arith.constant 14 : index
    %c0_243 = arith.constant 0 : index
    %391 = vector.load %arg18[%c14_242, %c0_243] : memref<16x16xf32, #tpu.memory_space<vmem>>, vector<1x16xf32>
    %cst_244 = arith.constant dense<0.000000e+00> : vector<1x64xf32>
    %392 = tpu.matmul %391, %390, %cst_244 {dimension_numbers = #tpu.dot_dimension_numbers<[1], [0], [0], [1], [0, 0, 1, 1], [], []>} : vector<1x16xf32>, vector<16x64xf32>, vector<1x64xf32> -> vector<1x64xf32>
    %c14_245 = arith.constant 14 : index
    %c0_246 = arith.constant 0 : index
    %393 = vector.load %arg19[%c14_245, %c0_246] : memref<16x64xf32, #tpu.memory_space<vmem>>, vector<1x64xf32>
    tpu.vector_store %arg19[%c14_245, %c0_246], %392 {strides = array<i32>} : memref<16x64xf32, #tpu.memory_space<vmem>>, vector<1x64xf32>,
    %c15 = arith.constant 15 : index
    %c0_247 = arith.constant 0 : index
    %394 = vector.load %arg16[%c15, %c0_247] : memref<16x64xf32, #tpu.memory_space<vmem>>, vector<1x64xf32>
    %395 = vector.broadcast %394 : vector<1x64xf32> to vector<16x64xf32>
    %396 = arith.mulf %182, %395 : vector<16x64xf32>
    %397 = math.exp %396 : vector<16x64xf32>
    %398 = arith.mulf %397, %390 : vector<16x64xf32>
    %c0_248 = arith.constant 0 : index
    %c15_249 = arith.constant 15 : index
    %399 = vector.load %arg17[%c0_248, %c15_249] : memref<16x16xf32, #tpu.memory_space<vmem>>, vector<16x1xf32>
    %c15_250 = arith.constant 15 : index
    %c0_251 = arith.constant 0 : index
    %400 = vector.load %arg15[%c15_250, %c0_251] : memref<16x64xf32, #tpu.memory_space<vmem>>, vector<1x64xf32>
    %401 = vector.broadcast %399 : vector<16x1xf32> to vector<16x64xf32>
    %402 = vector.broadcast %400 : vector<1x64xf32> to vector<16x64xf32>
    %403 = arith.mulf %401, %402 : vector<16x64xf32>
    %404 = arith.addf %398, %403 : vector<16x64xf32>
    %c15_252 = arith.constant 15 : index
    %c0_253 = arith.constant 0 : index
    %405 = vector.load %arg18[%c15_252, %c0_253] : memref<16x16xf32, #tpu.memory_space<vmem>>, vector<1x16xf32>
    %cst_254 = arith.constant dense<0.000000e+00> : vector<1x64xf32>
    %406 = tpu.matmul %405, %404, %cst_254 {dimension_numbers = #tpu.dot_dimension_numbers<[1], [0], [0], [1], [0, 0, 1, 1], [], []>} : vector<1x16xf32>, vector<16x64xf32>, vector<1x64xf32> -> vector<1x64xf32>
    %c15_255 = arith.constant 15 : index
    %c0_256 = arith.constant 0 : index
    %407 = vector.load %arg19[%c15_255, %c0_256] : memref<16x64xf32, #tpu.memory_space<vmem>>, vector<1x64xf32>
    tpu.vector_store %arg19[%c15_255, %c0_256], %406 {strides = array<i32>} : memref<16x64xf32, #tpu.memory_space<vmem>>, vector<1x64xf32>,
    %c0_257 = arith.constant 0 : index
    %c0_258 = arith.constant 0 : index
    %408 = vector.load %arg19[%c0_257, %c0_258] : memref<16x64xf32, #tpu.memory_space<vmem>>, vector<16x64xf32>
    %c0_259 = arith.constant 0 : index
    %c2_260 = arith.constant 2 : index
    %c0_261 = arith.constant 0 : index
    %409 = vector.load %arg7[%c0_259, %c2_260, %c0_261] : memref<2x3x64xf32, #tpu.memory_space<vmem>>, vector<1x1x64xf32>
    %410 = vector.shape_cast %409 : vector<1x1x64xf32> to vector<1x64xf32>
    %411 = vector.broadcast %410 : vector<1x64xf32> to vector<16x64xf32>
    %412 = arith.mulf %411, %149 : vector<16x64xf32>
    %413 = arith.addf %408, %412 : vector<16x64xf32>
    %414 = arith.negf %103 : vector<16x64xf32>
    %415 = math.exp %414 : vector<16x64xf32>
    %cst_262 = arith.constant 1.000000e+00 : f32
    %416 = vector.broadcast %cst_262 : f32 to vector<16x64xf32>
    %417 = arith.addf %416, %415 : vector<16x64xf32>
    %418 = arith.divf %416, %417 : vector<16x64xf32>
    %419 = arith.mulf %103, %418 : vector<16x64xf32>
    %420 = arith.mulf %413, %419 : vector<16x64xf32>
    %c0_263 = arith.constant 0 : index
    %c0_264 = arith.constant 0 : index
    %c0_265 = arith.constant 0 : index
    %421 = vector.load %arg12[%c0_263, %c0_264, %c0_265] : memref<2x64x32xf32, #tpu.memory_space<vmem>>, vector<1x64x32xf32>
    %422 = vector.shape_cast %421 : vector<1x64x32xf32> to vector<64x32xf32>
    %cst_266 = arith.constant dense<0.000000e+00> : vector<16x32xf32>
    %423 = tpu.matmul %420, %422, %cst_266 {dimension_numbers = #tpu.dot_dimension_numbers<[1], [0], [0], [1], [0, 0, 1, 1], [], []>} : vector<16x64xf32>, vector<64x32xf32>, vector<16x32xf32> -> vector<16x32xf32>
    %424 = arith.addf %423, %67 : vector<16x32xf32>
    %c1_267 = arith.constant 1 : index
    %c0_268 = arith.constant 0 : index
    %c0_269 = arith.constant 0 : index
    %425 = vector.load %arg4[%c1_267, %c0_268, %c0_269] : memref<2x2x32xf32, #tpu.memory_space<vmem>>, vector<1x1x32xf32>
    %426 = vector.shape_cast %425 : vector<1x1x32xf32> to vector<1x32xf32>
    %c1_270 = arith.constant 1 : index
    %c1_271 = arith.constant 1 : index
    %c0_272 = arith.constant 0 : index
    %427 = vector.load %arg4[%c1_270, %c1_271, %c0_272] : memref<2x2x32xf32, #tpu.memory_space<vmem>>, vector<1x1x32xf32>
    %428 = vector.shape_cast %427 : vector<1x1x32xf32> to vector<1x32xf32>
    %cst_273 = arith.constant dense<0.000000e+00> : vector<16xf32>
    %429 = vector.multi_reduction <add>, %424, %cst_273 [1] : vector<16x32xf32> to vector<16xf32>
    %430 = vector.shape_cast %429 : vector<16xf32> to vector<16x1xf32>
    %cst_274 = arith.constant 3.200000e+01 : f32
    %431 = vector.broadcast %cst_274 : f32 to vector<16x1xf32>
    %432 = arith.divf %430, %431 : vector<16x1xf32>
    %433 = vector.broadcast %432 : vector<16x1xf32> to vector<16x32xf32>
    %434 = arith.subf %424, %433 : vector<16x32xf32>
    %435 = arith.mulf %434, %434 : vector<16x32xf32>
    %cst_275 = arith.constant dense<0.000000e+00> : vector<16xf32>
    %436 = vector.multi_reduction <add>, %435, %cst_275 [1] : vector<16x32xf32> to vector<16xf32>
    %437 = vector.shape_cast %436 : vector<16xf32> to vector<16x1xf32>
    %cst_276 = arith.constant 3.200000e+01 : f32
    %438 = vector.broadcast %cst_276 : f32 to vector<16x1xf32>
    %439 = arith.divf %437, %438 : vector<16x1xf32>
    %cst_277 = arith.constant 9.99999974E-6 : f32
    %440 = vector.broadcast %cst_277 : f32 to vector<16x1xf32>
    %441 = arith.addf %439, %440 : vector<16x1xf32>
    %442 = math.rsqrt %441 : vector<16x1xf32>
    %443 = vector.broadcast %442 : vector<16x1xf32> to vector<16x32xf32>
    %444 = arith.mulf %434, %443 : vector<16x32xf32>
    %445 = vector.broadcast %426 : vector<1x32xf32> to vector<16x32xf32>
    %446 = arith.mulf %444, %445 : vector<16x32xf32>
    %447 = vector.broadcast %428 : vector<1x32xf32> to vector<16x32xf32>
    %448 = arith.addf %446, %447 : vector<16x32xf32>
    %c1_278 = arith.constant 1 : index
    %c0_279 = arith.constant 0 : index
    %c0_280 = arith.constant 0 : index
    %449 = vector.load %arg5[%c1_278, %c0_279, %c0_280] : memref<2x32x128xf32, #tpu.memory_space<vmem>>, vector<1x32x128xf32>
    %450 = vector.shape_cast %449 : vector<1x32x128xf32> to vector<32x128xf32>
    %cst_281 = arith.constant dense<0.000000e+00> : vector<16x128xf32>
    %451 = tpu.matmul %448, %450, %cst_281 {dimension_numbers = #tpu.dot_dimension_numbers<[1], [0], [0], [1], [0, 0, 1, 1], [], []>} : vector<16x32xf32>, vector<32x128xf32>, vector<16x128xf32> -> vector<16x128xf32>
    %452 = vector.extract_strided_slice %451 {offsets = [0, 0], sizes = [16, 64], strides = [1, 1]} : vector<16x128xf32> to vector<16x64xf32>
    %453 = vector.extract_strided_slice %451 {offsets = [0, 64], sizes = [16, 64], strides = [1, 1]} : vector<16x128xf32> to vector<16x64xf32>
    %cst_282 = arith.constant 0.000000e+00 : f32
    %454 = vector.broadcast %cst_282 : f32 to vector<16x64xf32>
    %c1_283 = arith.constant 1 : index
    %c0_284 = arith.constant 0 : index
    %c0_285 = arith.constant 0 : index
    %455 = vector.load %arg7[%c1_283, %c0_284, %c0_285] : memref<2x3x64xf32, #tpu.memory_space<vmem>>, vector<1x1x64xf32>
    %456 = vector.shape_cast %455 : vector<1x1x64xf32> to vector<1x64xf32>
    %457 = vector.broadcast %456 : vector<1x64xf32> to vector<16x64xf32>
    %458 = arith.addf %454, %457 : vector<16x64xf32>
    %c3_i32_286 = arith.constant 3 : i32
    %459 = tpu.dynamic_rotate %452 by %c3_i32_286 dim 0 : vector<16x64xf32>, i32 -> vector<16x64xf32>
    %cst_287 = arith.constant 0.000000e+00 : f32
    %460 = vector.shape_cast %74 : vector<16x1xi1> to vector<16x1xi1>
    %461 = vector.broadcast %460 : vector<16x1xi1> to vector<16x64xi1>
    %462 = vector.broadcast %cst_287 : f32 to vector<16x64xf32>
    %463 = arith.select %461, %459, %462 : vector<16x64xi1>, vector<16x64xf32>
    %c1_288 = arith.constant 1 : index
    %c0_289 = arith.constant 0 : index
    %c0_290 = arith.constant 0 : index
    %464 = vector.load %arg6[%c1_288, %c0_289, %c0_290] : memref<2x4x64xf32, #tpu.memory_space<vmem>>, vector<1x1x64xf32>
    %465 = vector.shape_cast %464 : vector<1x1x64xf32> to vector<1x64xf32>
    %466 = vector.broadcast %465 : vector<1x64xf32> to vector<16x64xf32>
    %467 = arith.mulf %466, %463 : vector<16x64xf32>
    %468 = arith.addf %458, %467 : vector<16x64xf32>
    %c2_i32_291 = arith.constant 2 : i32
    %469 = tpu.dynamic_rotate %452 by %c2_i32_291 dim 0 : vector<16x64xf32>, i32 -> vector<16x64xf32>
    %cst_292 = arith.constant 0.000000e+00 : f32
    %470 = vector.shape_cast %72 : vector<16x1xi1> to vector<16x1xi1>
    %471 = vector.broadcast %470 : vector<16x1xi1> to vector<16x64xi1>
    %472 = vector.broadcast %cst_292 : f32 to vector<16x64xf32>
    %473 = arith.select %471, %469, %472 : vector<16x64xi1>, vector<16x64xf32>
    %c1_293 = arith.constant 1 : index
    %c1_294 = arith.constant 1 : index
    %c0_295 = arith.constant 0 : index
    %474 = vector.load %arg6[%c1_293, %c1_294, %c0_295] : memref<2x4x64xf32, #tpu.memory_space<vmem>>, vector<1x1x64xf32>
    %475 = vector.shape_cast %474 : vector<1x1x64xf32> to vector<1x64xf32>
    %476 = vector.broadcast %475 : vector<1x64xf32> to vector<16x64xf32>
    %477 = arith.mulf %476, %473 : vector<16x64xf32>
    %478 = arith.addf %468, %477 : vector<16x64xf32>
    %c1_i32_296 = arith.constant 1 : i32
    %479 = tpu.dynamic_rotate %452 by %c1_i32_296 dim 0 : vector<16x64xf32>, i32 -> vector<16x64xf32>
    %cst_297 = arith.constant 0.000000e+00 : f32
    %480 = vector.shape_cast %70 : vector<16x1xi1> to vector<16x1xi1>
    %481 = vector.broadcast %480 : vector<16x1xi1> to vector<16x64xi1>
    %482 = vector.broadcast %cst_297 : f32 to vector<16x64xf32>
    %483 = arith.select %481, %479, %482 : vector<16x64xi1>, vector<16x64xf32>
    %c1_298 = arith.constant 1 : index
    %c2_299 = arith.constant 2 : index
    %c0_300 = arith.constant 0 : index
    %484 = vector.load %arg6[%c1_298, %c2_299, %c0_300] : memref<2x4x64xf32, #tpu.memory_space<vmem>>, vector<1x1x64xf32>
    %485 = vector.shape_cast %484 : vector<1x1x64xf32> to vector<1x64xf32>
    %486 = vector.broadcast %485 : vector<1x64xf32> to vector<16x64xf32>
    %487 = arith.mulf %486, %483 : vector<16x64xf32>
    %488 = arith.addf %478, %487 : vector<16x64xf32>
    %c1_301 = arith.constant 1 : index
    %c3_302 = arith.constant 3 : index
    %c0_303 = arith.constant 0 : index
    %489 = vector.load %arg6[%c1_301, %c3_302, %c0_303] : memref<2x4x64xf32, #tpu.memory_space<vmem>>, vector<1x1x64xf32>
    %490 = vector.shape_cast %489 : vector<1x1x64xf32> to vector<1x64xf32>
    %491 = vector.broadcast %490 : vector<1x64xf32> to vector<16x64xf32>
    %492 = arith.mulf %491, %452 : vector<16x64xf32>
    %493 = arith.addf %488, %492 : vector<16x64xf32>
    %494 = arith.negf %493 : vector<16x64xf32>
    %495 = math.exp %494 : vector<16x64xf32>
    %cst_304 = arith.constant 1.000000e+00 : f32
    %496 = vector.broadcast %cst_304 : f32 to vector<16x64xf32>
    %497 = arith.addf %496, %495 : vector<16x64xf32>
    %498 = arith.divf %496, %497 : vector<16x64xf32>
    %499 = arith.mulf %493, %498 : vector<16x64xf32>
    %c1_305 = arith.constant 1 : index
    %c0_306 = arith.constant 0 : index
    %c0_307 = arith.constant 0 : index
    %500 = vector.load %arg8[%c1_305, %c0_306, %c0_307] : memref<2x64x18xf32, #tpu.memory_space<vmem>>, vector<1x64x18xf32>
    %501 = vector.shape_cast %500 : vector<1x64x18xf32> to vector<64x18xf32>
    %cst_308 = arith.constant dense<0.000000e+00> : vector<16x18xf32>
    %502 = tpu.matmul %499, %501, %cst_308 {dimension_numbers = #tpu.dot_dimension_numbers<[1], [0], [0], [1], [0, 0, 1, 1], [], []>} : vector<16x64xf32>, vector<64x18xf32>, vector<16x18xf32> -> vector<16x18xf32>
    %503 = vector.extract_strided_slice %502 {offsets = [0, 2], sizes = [16, 16], strides = [1, 1]} : vector<16x18xf32> to vector<16x16xf32>
    %c0_309 = arith.constant 0 : index
    %c0_310 = arith.constant 0 : index
    %504 = vector.load %arg18[%c0_309, %c0_310] : memref<16x16xf32, #tpu.memory_space<vmem>>, vector<16x16xf32>
    tpu.vector_store %arg18[%c0_309, %c0_310], %503 {strides = array<i32>} : memref<16x16xf32, #tpu.memory_space<vmem>>, vector<16x16xf32>,
    %c1_311 = arith.constant 1 : index
    %c0_312 = arith.constant 0 : index
    %c0_313 = arith.constant 0 : index
    %505 = vector.load %arg9[%c1_311, %c0_312, %c0_313] : memref<2x16x64xf32, #tpu.memory_space<vmem>>, vector<1x16x64xf32>
    %506 = vector.shape_cast %505 : vector<1x16x64xf32> to vector<16x64xf32>
    %cst_314 = arith.constant dense<0.000000e+00> : vector<16x16xf32>
    %507 = tpu.matmul %506, %499, %cst_314 {dimension_numbers = #tpu.dot_dimension_numbers<[1], [1], [0], [0], [0, 0, 1, 0], [], []>} : vector<16x64xf32>, vector<16x64xf32>, vector<16x16xf32> -> vector<16x16xf32>
    %c0_315 = arith.constant 0 : index
    %c0_316 = arith.constant 0 : index
    %508 = vector.load %arg17[%c0_315, %c0_316] : memref<16x16xf32, #tpu.memory_space<vmem>>, vector<16x16xf32>
    tpu.vector_store %arg17[%c0_315, %c0_316], %507 {strides = array<i32>} : memref<16x16xf32, #tpu.memory_space<vmem>>, vector<16x16xf32>,
    %509 = vector.extract_strided_slice %502 {offsets = [0, 0], sizes = [16, 2], strides = [1, 1]} : vector<16x18xf32> to vector<16x2xf32>
    %c1_317 = arith.constant 1 : index
    %c0_318 = arith.constant 0 : index
    %c0_319 = arith.constant 0 : index
    %510 = vector.load %arg10[%c1_317, %c0_318, %c0_319] : memref<2x2x64xf32, #tpu.memory_space<vmem>>, vector<1x2x64xf32>
    %511 = vector.shape_cast %510 : vector<1x2x64xf32> to vector<2x64xf32>
    %cst_320 = arith.constant dense<0.000000e+00> : vector<16x64xf32>
    %512 = tpu.matmul %509, %511, %cst_320 {dimension_numbers = #tpu.dot_dimension_numbers<[1], [0], [0], [1], [0, 0, 1, 1], [], []>} : vector<16x2xf32>, vector<2x64xf32>, vector<16x64xf32> -> vector<16x64xf32>
    %c1_321 = arith.constant 1 : index
    %c1_322 = arith.constant 1 : index
    %c0_323 = arith.constant 0 : index
    %513 = vector.load %arg7[%c1_321, %c1_322, %c0_323] : memref<2x3x64xf32, #tpu.memory_space<vmem>>, vector<1x1x64xf32>
    %514 = vector.shape_cast %513 : vector<1x1x64xf32> to vector<1x64xf32>
    %515 = vector.broadcast %514 : vector<1x64xf32> to vector<16x64xf32>
    %516 = arith.addf %512, %515 : vector<16x64xf32>
    %cst_324 = arith.constant 0.000000e+00 : f32
    %517 = vector.broadcast %cst_324 : f32 to vector<16x64xf32>
    %518 = arith.maximumf %516, %517 : vector<16x64xf32>
    %519 = math.absf %516 : vector<16x64xf32>
    %cst_325 = arith.constant 0.000000e+00 : f32
    %520 = vector.broadcast %cst_325 : f32 to vector<16x64xf32>
    %521 = arith.subf %520, %519 : vector<16x64xf32>
    %522 = math.exp %521 : vector<16x64xf32>
    %523 = math.log1p %522 : vector<16x64xf32>
    %524 = arith.addf %518, %523 : vector<16x64xf32>
    %c0_326 = arith.constant 0 : index
    %c0_327 = arith.constant 0 : index
    %525 = vector.load %arg16[%c0_326, %c0_327] : memref<16x64xf32, #tpu.memory_space<vmem>>, vector<16x64xf32>
    tpu.vector_store %arg16[%c0_326, %c0_327], %524 {strides = array<i32>} : memref<16x64xf32, #tpu.memory_space<vmem>>, vector<16x64xf32>,
    %526 = arith.mulf %524, %499 : vector<16x64xf32>
    %c0_328 = arith.constant 0 : index
    %c0_329 = arith.constant 0 : index
    %527 = vector.load %arg15[%c0_328, %c0_329] : memref<16x64xf32, #tpu.memory_space<vmem>>, vector<16x64xf32>
    tpu.vector_store %arg15[%c0_328, %c0_329], %526 {strides = array<i32>} : memref<16x64xf32, #tpu.memory_space<vmem>>, vector<16x64xf32>,
    %c1_330 = arith.constant 1 : index
    %c0_331 = arith.constant 0 : index
    %c0_332 = arith.constant 0 : index
    %528 = vector.load %arg11[%c1_330, %c0_331, %c0_332] : memref<2x16x64xf32, #tpu.memory_space<vmem>>, vector<1x16x64xf32>
    %529 = vector.shape_cast %528 : vector<1x16x64xf32> to vector<16x64xf32>
    %530 = math.exp %529 : vector<16x64xf32>
    %cst_333 = arith.constant 0.000000e+00 : f32
    %531 = vector.broadcast %cst_333 : f32 to vector<16x64xf32>
    %532 = arith.subf %531, %530 : vector<16x64xf32>
    %cst_334 = arith.constant 0.000000e+00 : f32
    %533 = vector.broadcast %cst_334 : f32 to vector<16x64xf32>
    %c0_335 = arith.constant 0 : index
    %c0_336 = arith.constant 0 : index
    %534 = vector.load %arg16[%c0_335, %c0_336] : memref<16x64xf32, #tpu.memory_space<vmem>>, vector<1x64xf32>
    %535 = vector.broadcast %534 : vector<1x64xf32> to vector<16x64xf32>
    %536 = arith.mulf %532, %535 : vector<16x64xf32>
    %537 = math.exp %536 : vector<16x64xf32>
    %538 = arith.mulf %537, %533 : vector<16x64xf32>
    %c0_337 = arith.constant 0 : index
    %c0_338 = arith.constant 0 : index
    %539 = vector.load %arg17[%c0_337, %c0_338] : memref<16x16xf32, #tpu.memory_space<vmem>>, vector<16x1xf32>
    %c0_339 = arith.constant 0 : index
    %c0_340 = arith.constant 0 : index
    %540 = vector.load %arg15[%c0_339, %c0_340] : memref<16x64xf32, #tpu.memory_space<vmem>>, vector<1x64xf32>
    %541 = vector.broadcast %539 : vector<16x1xf32> to vector<16x64xf32>
    %542 = vector.broadcast %540 : vector<1x64xf32> to vector<16x64xf32>
    %543 = arith.mulf %541, %542 : vector<16x64xf32>
    %544 = arith.addf %538, %543 : vector<16x64xf32>
    %c0_341 = arith.constant 0 : index
    %c0_342 = arith.constant 0 : index
    %545 = vector.load %arg18[%c0_341, %c0_342] : memref<16x16xf32, #tpu.memory_space<vmem>>, vector<1x16xf32>
    %cst_343 = arith.constant dense<0.000000e+00> : vector<1x64xf32>
    %546 = tpu.matmul %545, %544, %cst_343 {dimension_numbers = #tpu.dot_dimension_numbers<[1], [0], [0], [1], [0, 0, 1, 1], [], []>} : vector<1x16xf32>, vector<16x64xf32>, vector<1x64xf32> -> vector<1x64xf32>
    %c0_344 = arith.constant 0 : index
    %c0_345 = arith.constant 0 : index
    %547 = vector.load %arg19[%c0_344, %c0_345] : memref<16x64xf32, #tpu.memory_space<vmem>>, vector<1x64xf32>
    tpu.vector_store %arg19[%c0_344, %c0_345], %546 {strides = array<i32>} : memref<16x64xf32, #tpu.memory_space<vmem>>, vector<1x64xf32>,
    %c1_346 = arith.constant 1 : index
    %c0_347 = arith.constant 0 : index
    %548 = vector.load %arg16[%c1_346, %c0_347] : memref<16x64xf32, #tpu.memory_space<vmem>>, vector<1x64xf32>
    %549 = vector.broadcast %548 : vector<1x64xf32> to vector<16x64xf32>
    %550 = arith.mulf %532, %549 : vector<16x64xf32>
    %551 = math.exp %550 : vector<16x64xf32>
    %552 = arith.mulf %551, %544 : vector<16x64xf32>
    %c0_348 = arith.constant 0 : index
    %c1_349 = arith.constant 1 : index
    %553 = vector.load %arg17[%c0_348, %c1_349] : memref<16x16xf32, #tpu.memory_space<vmem>>, vector<16x1xf32>
    %c1_350 = arith.constant 1 : index
    %c0_351 = arith.constant 0 : index
    %554 = vector.load %arg15[%c1_350, %c0_351] : memref<16x64xf32, #tpu.memory_space<vmem>>, vector<1x64xf32>
    %555 = vector.broadcast %553 : vector<16x1xf32> to vector<16x64xf32>
    %556 = vector.broadcast %554 : vector<1x64xf32> to vector<16x64xf32>
    %557 = arith.mulf %555, %556 : vector<16x64xf32>
    %558 = arith.addf %552, %557 : vector<16x64xf32>
    %c1_352 = arith.constant 1 : index
    %c0_353 = arith.constant 0 : index
    %559 = vector.load %arg18[%c1_352, %c0_353] : memref<16x16xf32, #tpu.memory_space<vmem>>, vector<1x16xf32>
    %cst_354 = arith.constant dense<0.000000e+00> : vector<1x64xf32>
    %560 = tpu.matmul %559, %558, %cst_354 {dimension_numbers = #tpu.dot_dimension_numbers<[1], [0], [0], [1], [0, 0, 1, 1], [], []>} : vector<1x16xf32>, vector<16x64xf32>, vector<1x64xf32> -> vector<1x64xf32>
    %c1_355 = arith.constant 1 : index
    %c0_356 = arith.constant 0 : index
    %561 = vector.load %arg19[%c1_355, %c0_356] : memref<16x64xf32, #tpu.memory_space<vmem>>, vector<1x64xf32>
    tpu.vector_store %arg19[%c1_355, %c0_356], %560 {strides = array<i32>} : memref<16x64xf32, #tpu.memory_space<vmem>>, vector<1x64xf32>,
    %c2_357 = arith.constant 2 : index
    %c0_358 = arith.constant 0 : index
    %562 = vector.load %arg16[%c2_357, %c0_358] : memref<16x64xf32, #tpu.memory_space<vmem>>, vector<1x64xf32>
    %563 = vector.broadcast %562 : vector<1x64xf32> to vector<16x64xf32>
    %564 = arith.mulf %532, %563 : vector<16x64xf32>
    %565 = math.exp %564 : vector<16x64xf32>
    %566 = arith.mulf %565, %558 : vector<16x64xf32>
    %c0_359 = arith.constant 0 : index
    %c2_360 = arith.constant 2 : index
    %567 = vector.load %arg17[%c0_359, %c2_360] : memref<16x16xf32, #tpu.memory_space<vmem>>, vector<16x1xf32>
    %c2_361 = arith.constant 2 : index
    %c0_362 = arith.constant 0 : index
    %568 = vector.load %arg15[%c2_361, %c0_362] : memref<16x64xf32, #tpu.memory_space<vmem>>, vector<1x64xf32>
    %569 = vector.broadcast %567 : vector<16x1xf32> to vector<16x64xf32>
    %570 = vector.broadcast %568 : vector<1x64xf32> to vector<16x64xf32>
    %571 = arith.mulf %569, %570 : vector<16x64xf32>
    %572 = arith.addf %566, %571 : vector<16x64xf32>
    %c2_363 = arith.constant 2 : index
    %c0_364 = arith.constant 0 : index
    %573 = vector.load %arg18[%c2_363, %c0_364] : memref<16x16xf32, #tpu.memory_space<vmem>>, vector<1x16xf32>
    %cst_365 = arith.constant dense<0.000000e+00> : vector<1x64xf32>
    %574 = tpu.matmul %573, %572, %cst_365 {dimension_numbers = #tpu.dot_dimension_numbers<[1], [0], [0], [1], [0, 0, 1, 1], [], []>} : vector<1x16xf32>, vector<16x64xf32>, vector<1x64xf32> -> vector<1x64xf32>
    %c2_366 = arith.constant 2 : index
    %c0_367 = arith.constant 0 : index
    %575 = vector.load %arg19[%c2_366, %c0_367] : memref<16x64xf32, #tpu.memory_space<vmem>>, vector<1x64xf32>
    tpu.vector_store %arg19[%c2_366, %c0_367], %574 {strides = array<i32>} : memref<16x64xf32, #tpu.memory_space<vmem>>, vector<1x64xf32>,
    %c3_368 = arith.constant 3 : index
    %c0_369 = arith.constant 0 : index
    %576 = vector.load %arg16[%c3_368, %c0_369] : memref<16x64xf32, #tpu.memory_space<vmem>>, vector<1x64xf32>
    %577 = vector.broadcast %576 : vector<1x64xf32> to vector<16x64xf32>
    %578 = arith.mulf %532, %577 : vector<16x64xf32>
    %579 = math.exp %578 : vector<16x64xf32>
    %580 = arith.mulf %579, %572 : vector<16x64xf32>
    %c0_370 = arith.constant 0 : index
    %c3_371 = arith.constant 3 : index
    %581 = vector.load %arg17[%c0_370, %c3_371] : memref<16x16xf32, #tpu.memory_space<vmem>>, vector<16x1xf32>
    %c3_372 = arith.constant 3 : index
    %c0_373 = arith.constant 0 : index
    %582 = vector.load %arg15[%c3_372, %c0_373] : memref<16x64xf32, #tpu.memory_space<vmem>>, vector<1x64xf32>
    %583 = vector.broadcast %581 : vector<16x1xf32> to vector<16x64xf32>
    %584 = vector.broadcast %582 : vector<1x64xf32> to vector<16x64xf32>
    %585 = arith.mulf %583, %584 : vector<16x64xf32>
    %586 = arith.addf %580, %585 : vector<16x64xf32>
    %c3_374 = arith.constant 3 : index
    %c0_375 = arith.constant 0 : index
    %587 = vector.load %arg18[%c3_374, %c0_375] : memref<16x16xf32, #tpu.memory_space<vmem>>, vector<1x16xf32>
    %cst_376 = arith.constant dense<0.000000e+00> : vector<1x64xf32>
    %588 = tpu.matmul %587, %586, %cst_376 {dimension_numbers = #tpu.dot_dimension_numbers<[1], [0], [0], [1], [0, 0, 1, 1], [], []>} : vector<1x16xf32>, vector<16x64xf32>, vector<1x64xf32> -> vector<1x64xf32>
    %c3_377 = arith.constant 3 : index
    %c0_378 = arith.constant 0 : index
    %589 = vector.load %arg19[%c3_377, %c0_378] : memref<16x64xf32, #tpu.memory_space<vmem>>, vector<1x64xf32>
    tpu.vector_store %arg19[%c3_377, %c0_378], %588 {strides = array<i32>} : memref<16x64xf32, #tpu.memory_space<vmem>>, vector<1x64xf32>,
    %c4_379 = arith.constant 4 : index
    %c0_380 = arith.constant 0 : index
    %590 = vector.load %arg16[%c4_379, %c0_380] : memref<16x64xf32, #tpu.memory_space<vmem>>, vector<1x64xf32>
    %591 = vector.broadcast %590 : vector<1x64xf32> to vector<16x64xf32>
    %592 = arith.mulf %532, %591 : vector<16x64xf32>
    %593 = math.exp %592 : vector<16x64xf32>
    %594 = arith.mulf %593, %586 : vector<16x64xf32>
    %c0_381 = arith.constant 0 : index
    %c4_382 = arith.constant 4 : index
    %595 = vector.load %arg17[%c0_381, %c4_382] : memref<16x16xf32, #tpu.memory_space<vmem>>, vector<16x1xf32>
    %c4_383 = arith.constant 4 : index
    %c0_384 = arith.constant 0 : index
    %596 = vector.load %arg15[%c4_383, %c0_384] : memref<16x64xf32, #tpu.memory_space<vmem>>, vector<1x64xf32>
    %597 = vector.broadcast %595 : vector<16x1xf32> to vector<16x64xf32>
    %598 = vector.broadcast %596 : vector<1x64xf32> to vector<16x64xf32>
    %599 = arith.mulf %597, %598 : vector<16x64xf32>
    %600 = arith.addf %594, %599 : vector<16x64xf32>
    %c4_385 = arith.constant 4 : index
    %c0_386 = arith.constant 0 : index
    %601 = vector.load %arg18[%c4_385, %c0_386] : memref<16x16xf32, #tpu.memory_space<vmem>>, vector<1x16xf32>
    %cst_387 = arith.constant dense<0.000000e+00> : vector<1x64xf32>
    %602 = tpu.matmul %601, %600, %cst_387 {dimension_numbers = #tpu.dot_dimension_numbers<[1], [0], [0], [1], [0, 0, 1, 1], [], []>} : vector<1x16xf32>, vector<16x64xf32>, vector<1x64xf32> -> vector<1x64xf32>
    %c4_388 = arith.constant 4 : index
    %c0_389 = arith.constant 0 : index
    %603 = vector.load %arg19[%c4_388, %c0_389] : memref<16x64xf32, #tpu.memory_space<vmem>>, vector<1x64xf32>
    tpu.vector_store %arg19[%c4_388, %c0_389], %602 {strides = array<i32>} : memref<16x64xf32, #tpu.memory_space<vmem>>, vector<1x64xf32>,
    %c5_390 = arith.constant 5 : index
    %c0_391 = arith.constant 0 : index
    %604 = vector.load %arg16[%c5_390, %c0_391] : memref<16x64xf32, #tpu.memory_space<vmem>>, vector<1x64xf32>
    %605 = vector.broadcast %604 : vector<1x64xf32> to vector<16x64xf32>
    %606 = arith.mulf %532, %605 : vector<16x64xf32>
    %607 = math.exp %606 : vector<16x64xf32>
    %608 = arith.mulf %607, %600 : vector<16x64xf32>
    %c0_392 = arith.constant 0 : index
    %c5_393 = arith.constant 5 : index
    %609 = vector.load %arg17[%c0_392, %c5_393] : memref<16x16xf32, #tpu.memory_space<vmem>>, vector<16x1xf32>
    %c5_394 = arith.constant 5 : index
    %c0_395 = arith.constant 0 : index
    %610 = vector.load %arg15[%c5_394, %c0_395] : memref<16x64xf32, #tpu.memory_space<vmem>>, vector<1x64xf32>
    %611 = vector.broadcast %609 : vector<16x1xf32> to vector<16x64xf32>
    %612 = vector.broadcast %610 : vector<1x64xf32> to vector<16x64xf32>
    %613 = arith.mulf %611, %612 : vector<16x64xf32>
    %614 = arith.addf %608, %613 : vector<16x64xf32>
    %c5_396 = arith.constant 5 : index
    %c0_397 = arith.constant 0 : index
    %615 = vector.load %arg18[%c5_396, %c0_397] : memref<16x16xf32, #tpu.memory_space<vmem>>, vector<1x16xf32>
    %cst_398 = arith.constant dense<0.000000e+00> : vector<1x64xf32>
    %616 = tpu.matmul %615, %614, %cst_398 {dimension_numbers = #tpu.dot_dimension_numbers<[1], [0], [0], [1], [0, 0, 1, 1], [], []>} : vector<1x16xf32>, vector<16x64xf32>, vector<1x64xf32> -> vector<1x64xf32>
    %c5_399 = arith.constant 5 : index
    %c0_400 = arith.constant 0 : index
    %617 = vector.load %arg19[%c5_399, %c0_400] : memref<16x64xf32, #tpu.memory_space<vmem>>, vector<1x64xf32>
    tpu.vector_store %arg19[%c5_399, %c0_400], %616 {strides = array<i32>} : memref<16x64xf32, #tpu.memory_space<vmem>>, vector<1x64xf32>,
    %c6_401 = arith.constant 6 : index
    %c0_402 = arith.constant 0 : index
    %618 = vector.load %arg16[%c6_401, %c0_402] : memref<16x64xf32, #tpu.memory_space<vmem>>, vector<1x64xf32>
    %619 = vector.broadcast %618 : vector<1x64xf32> to vector<16x64xf32>
    %620 = arith.mulf %532, %619 : vector<16x64xf32>
    %621 = math.exp %620 : vector<16x64xf32>
    %622 = arith.mulf %621, %614 : vector<16x64xf32>
    %c0_403 = arith.constant 0 : index
    %c6_404 = arith.constant 6 : index
    %623 = vector.load %arg17[%c0_403, %c6_404] : memref<16x16xf32, #tpu.memory_space<vmem>>, vector<16x1xf32>
    %c6_405 = arith.constant 6 : index
    %c0_406 = arith.constant 0 : index
    %624 = vector.load %arg15[%c6_405, %c0_406] : memref<16x64xf32, #tpu.memory_space<vmem>>, vector<1x64xf32>
    %625 = vector.broadcast %623 : vector<16x1xf32> to vector<16x64xf32>
    %626 = vector.broadcast %624 : vector<1x64xf32> to vector<16x64xf32>
    %627 = arith.mulf %625, %626 : vector<16x64xf32>
    %628 = arith.addf %622, %627 : vector<16x64xf32>
    %c6_407 = arith.constant 6 : index
    %c0_408 = arith.constant 0 : index
    %629 = vector.load %arg18[%c6_407, %c0_408] : memref<16x16xf32, #tpu.memory_space<vmem>>, vector<1x16xf32>
    %cst_409 = arith.constant dense<0.000000e+00> : vector<1x64xf32>
    %630 = tpu.matmul %629, %628, %cst_409 {dimension_numbers = #tpu.dot_dimension_numbers<[1], [0], [0], [1], [0, 0, 1, 1], [], []>} : vector<1x16xf32>, vector<16x64xf32>, vector<1x64xf32> -> vector<1x64xf32>
    %c6_410 = arith.constant 6 : index
    %c0_411 = arith.constant 0 : index
    %631 = vector.load %arg19[%c6_410, %c0_411] : memref<16x64xf32, #tpu.memory_space<vmem>>, vector<1x64xf32>
    tpu.vector_store %arg19[%c6_410, %c0_411], %630 {strides = array<i32>} : memref<16x64xf32, #tpu.memory_space<vmem>>, vector<1x64xf32>,
    %c7_412 = arith.constant 7 : index
    %c0_413 = arith.constant 0 : index
    %632 = vector.load %arg16[%c7_412, %c0_413] : memref<16x64xf32, #tpu.memory_space<vmem>>, vector<1x64xf32>
    %633 = vector.broadcast %632 : vector<1x64xf32> to vector<16x64xf32>
    %634 = arith.mulf %532, %633 : vector<16x64xf32>
    %635 = math.exp %634 : vector<16x64xf32>
    %636 = arith.mulf %635, %628 : vector<16x64xf32>
    %c0_414 = arith.constant 0 : index
    %c7_415 = arith.constant 7 : index
    %637 = vector.load %arg17[%c0_414, %c7_415] : memref<16x16xf32, #tpu.memory_space<vmem>>, vector<16x1xf32>
    %c7_416 = arith.constant 7 : index
    %c0_417 = arith.constant 0 : index
    %638 = vector.load %arg15[%c7_416, %c0_417] : memref<16x64xf32, #tpu.memory_space<vmem>>, vector<1x64xf32>
    %639 = vector.broadcast %637 : vector<16x1xf32> to vector<16x64xf32>
    %640 = vector.broadcast %638 : vector<1x64xf32> to vector<16x64xf32>
    %641 = arith.mulf %639, %640 : vector<16x64xf32>
    %642 = arith.addf %636, %641 : vector<16x64xf32>
    %c7_418 = arith.constant 7 : index
    %c0_419 = arith.constant 0 : index
    %643 = vector.load %arg18[%c7_418, %c0_419] : memref<16x16xf32, #tpu.memory_space<vmem>>, vector<1x16xf32>
    %cst_420 = arith.constant dense<0.000000e+00> : vector<1x64xf32>
    %644 = tpu.matmul %643, %642, %cst_420 {dimension_numbers = #tpu.dot_dimension_numbers<[1], [0], [0], [1], [0, 0, 1, 1], [], []>} : vector<1x16xf32>, vector<16x64xf32>, vector<1x64xf32> -> vector<1x64xf32>
    %c7_421 = arith.constant 7 : index
    %c0_422 = arith.constant 0 : index
    %645 = vector.load %arg19[%c7_421, %c0_422] : memref<16x64xf32, #tpu.memory_space<vmem>>, vector<1x64xf32>
    tpu.vector_store %arg19[%c7_421, %c0_422], %644 {strides = array<i32>} : memref<16x64xf32, #tpu.memory_space<vmem>>, vector<1x64xf32>,
    %c8_423 = arith.constant 8 : index
    %c0_424 = arith.constant 0 : index
    %646 = vector.load %arg16[%c8_423, %c0_424] : memref<16x64xf32, #tpu.memory_space<vmem>>, vector<1x64xf32>
    %647 = vector.broadcast %646 : vector<1x64xf32> to vector<16x64xf32>
    %648 = arith.mulf %532, %647 : vector<16x64xf32>
    %649 = math.exp %648 : vector<16x64xf32>
    %650 = arith.mulf %649, %642 : vector<16x64xf32>
    %c0_425 = arith.constant 0 : index
    %c8_426 = arith.constant 8 : index
    %651 = vector.load %arg17[%c0_425, %c8_426] : memref<16x16xf32, #tpu.memory_space<vmem>>, vector<16x1xf32>
    %c8_427 = arith.constant 8 : index
    %c0_428 = arith.constant 0 : index
    %652 = vector.load %arg15[%c8_427, %c0_428] : memref<16x64xf32, #tpu.memory_space<vmem>>, vector<1x64xf32>
    %653 = vector.broadcast %651 : vector<16x1xf32> to vector<16x64xf32>
    %654 = vector.broadcast %652 : vector<1x64xf32> to vector<16x64xf32>
    %655 = arith.mulf %653, %654 : vector<16x64xf32>
    %656 = arith.addf %650, %655 : vector<16x64xf32>
    %c8_429 = arith.constant 8 : index
    %c0_430 = arith.constant 0 : index
    %657 = vector.load %arg18[%c8_429, %c0_430] : memref<16x16xf32, #tpu.memory_space<vmem>>, vector<1x16xf32>
    %cst_431 = arith.constant dense<0.000000e+00> : vector<1x64xf32>
    %658 = tpu.matmul %657, %656, %cst_431 {dimension_numbers = #tpu.dot_dimension_numbers<[1], [0], [0], [1], [0, 0, 1, 1], [], []>} : vector<1x16xf32>, vector<16x64xf32>, vector<1x64xf32> -> vector<1x64xf32>
    %c8_432 = arith.constant 8 : index
    %c0_433 = arith.constant 0 : index
    %659 = vector.load %arg19[%c8_432, %c0_433] : memref<16x64xf32, #tpu.memory_space<vmem>>, vector<1x64xf32>
    tpu.vector_store %arg19[%c8_432, %c0_433], %658 {strides = array<i32>} : memref<16x64xf32, #tpu.memory_space<vmem>>, vector<1x64xf32>,
    %c9_434 = arith.constant 9 : index
    %c0_435 = arith.constant 0 : index
    %660 = vector.load %arg16[%c9_434, %c0_435] : memref<16x64xf32, #tpu.memory_space<vmem>>, vector<1x64xf32>
    %661 = vector.broadcast %660 : vector<1x64xf32> to vector<16x64xf32>
    %662 = arith.mulf %532, %661 : vector<16x64xf32>
    %663 = math.exp %662 : vector<16x64xf32>
    %664 = arith.mulf %663, %656 : vector<16x64xf32>
    %c0_436 = arith.constant 0 : index
    %c9_437 = arith.constant 9 : index
    %665 = vector.load %arg17[%c0_436, %c9_437] : memref<16x16xf32, #tpu.memory_space<vmem>>, vector<16x1xf32>
    %c9_438 = arith.constant 9 : index
    %c0_439 = arith.constant 0 : index
    %666 = vector.load %arg15[%c9_438, %c0_439] : memref<16x64xf32, #tpu.memory_space<vmem>>, vector<1x64xf32>
    %667 = vector.broadcast %665 : vector<16x1xf32> to vector<16x64xf32>
    %668 = vector.broadcast %666 : vector<1x64xf32> to vector<16x64xf32>
    %669 = arith.mulf %667, %668 : vector<16x64xf32>
    %670 = arith.addf %664, %669 : vector<16x64xf32>
    %c9_440 = arith.constant 9 : index
    %c0_441 = arith.constant 0 : index
    %671 = vector.load %arg18[%c9_440, %c0_441] : memref<16x16xf32, #tpu.memory_space<vmem>>, vector<1x16xf32>
    %cst_442 = arith.constant dense<0.000000e+00> : vector<1x64xf32>
    %672 = tpu.matmul %671, %670, %cst_442 {dimension_numbers = #tpu.dot_dimension_numbers<[1], [0], [0], [1], [0, 0, 1, 1], [], []>} : vector<1x16xf32>, vector<16x64xf32>, vector<1x64xf32> -> vector<1x64xf32>
    %c9_443 = arith.constant 9 : index
    %c0_444 = arith.constant 0 : index
    %673 = vector.load %arg19[%c9_443, %c0_444] : memref<16x64xf32, #tpu.memory_space<vmem>>, vector<1x64xf32>
    tpu.vector_store %arg19[%c9_443, %c0_444], %672 {strides = array<i32>} : memref<16x64xf32, #tpu.memory_space<vmem>>, vector<1x64xf32>,
    %c10_445 = arith.constant 10 : index
    %c0_446 = arith.constant 0 : index
    %674 = vector.load %arg16[%c10_445, %c0_446] : memref<16x64xf32, #tpu.memory_space<vmem>>, vector<1x64xf32>
    %675 = vector.broadcast %674 : vector<1x64xf32> to vector<16x64xf32>
    %676 = arith.mulf %532, %675 : vector<16x64xf32>
    %677 = math.exp %676 : vector<16x64xf32>
    %678 = arith.mulf %677, %670 : vector<16x64xf32>
    %c0_447 = arith.constant 0 : index
    %c10_448 = arith.constant 10 : index
    %679 = vector.load %arg17[%c0_447, %c10_448] : memref<16x16xf32, #tpu.memory_space<vmem>>, vector<16x1xf32>
    %c10_449 = arith.constant 10 : index
    %c0_450 = arith.constant 0 : index
    %680 = vector.load %arg15[%c10_449, %c0_450] : memref<16x64xf32, #tpu.memory_space<vmem>>, vector<1x64xf32>
    %681 = vector.broadcast %679 : vector<16x1xf32> to vector<16x64xf32>
    %682 = vector.broadcast %680 : vector<1x64xf32> to vector<16x64xf32>
    %683 = arith.mulf %681, %682 : vector<16x64xf32>
    %684 = arith.addf %678, %683 : vector<16x64xf32>
    %c10_451 = arith.constant 10 : index
    %c0_452 = arith.constant 0 : index
    %685 = vector.load %arg18[%c10_451, %c0_452] : memref<16x16xf32, #tpu.memory_space<vmem>>, vector<1x16xf32>
    %cst_453 = arith.constant dense<0.000000e+00> : vector<1x64xf32>
    %686 = tpu.matmul %685, %684, %cst_453 {dimension_numbers = #tpu.dot_dimension_numbers<[1], [0], [0], [1], [0, 0, 1, 1], [], []>} : vector<1x16xf32>, vector<16x64xf32>, vector<1x64xf32> -> vector<1x64xf32>
    %c10_454 = arith.constant 10 : index
    %c0_455 = arith.constant 0 : index
    %687 = vector.load %arg19[%c10_454, %c0_455] : memref<16x64xf32, #tpu.memory_space<vmem>>, vector<1x64xf32>
    tpu.vector_store %arg19[%c10_454, %c0_455], %686 {strides = array<i32>} : memref<16x64xf32, #tpu.memory_space<vmem>>, vector<1x64xf32>,
    %c11_456 = arith.constant 11 : index
    %c0_457 = arith.constant 0 : index
    %688 = vector.load %arg16[%c11_456, %c0_457] : memref<16x64xf32, #tpu.memory_space<vmem>>, vector<1x64xf32>
    %689 = vector.broadcast %688 : vector<1x64xf32> to vector<16x64xf32>
    %690 = arith.mulf %532, %689 : vector<16x64xf32>
    %691 = math.exp %690 : vector<16x64xf32>
    %692 = arith.mulf %691, %684 : vector<16x64xf32>
    %c0_458 = arith.constant 0 : index
    %c11_459 = arith.constant 11 : index
    %693 = vector.load %arg17[%c0_458, %c11_459] : memref<16x16xf32, #tpu.memory_space<vmem>>, vector<16x1xf32>
    %c11_460 = arith.constant 11 : index
    %c0_461 = arith.constant 0 : index
    %694 = vector.load %arg15[%c11_460, %c0_461] : memref<16x64xf32, #tpu.memory_space<vmem>>, vector<1x64xf32>
    %695 = vector.broadcast %693 : vector<16x1xf32> to vector<16x64xf32>
    %696 = vector.broadcast %694 : vector<1x64xf32> to vector<16x64xf32>
    %697 = arith.mulf %695, %696 : vector<16x64xf32>
    %698 = arith.addf %692, %697 : vector<16x64xf32>
    %c11_462 = arith.constant 11 : index
    %c0_463 = arith.constant 0 : index
    %699 = vector.load %arg18[%c11_462, %c0_463] : memref<16x16xf32, #tpu.memory_space<vmem>>, vector<1x16xf32>
    %cst_464 = arith.constant dense<0.000000e+00> : vector<1x64xf32>
    %700 = tpu.matmul %699, %698, %cst_464 {dimension_numbers = #tpu.dot_dimension_numbers<[1], [0], [0], [1], [0, 0, 1, 1], [], []>} : vector<1x16xf32>, vector<16x64xf32>, vector<1x64xf32> -> vector<1x64xf32>
    %c11_465 = arith.constant 11 : index
    %c0_466 = arith.constant 0 : index
    %701 = vector.load %arg19[%c11_465, %c0_466] : memref<16x64xf32, #tpu.memory_space<vmem>>, vector<1x64xf32>
    tpu.vector_store %arg19[%c11_465, %c0_466], %700 {strides = array<i32>} : memref<16x64xf32, #tpu.memory_space<vmem>>, vector<1x64xf32>,
    %c12_467 = arith.constant 12 : index
    %c0_468 = arith.constant 0 : index
    %702 = vector.load %arg16[%c12_467, %c0_468] : memref<16x64xf32, #tpu.memory_space<vmem>>, vector<1x64xf32>
    %703 = vector.broadcast %702 : vector<1x64xf32> to vector<16x64xf32>
    %704 = arith.mulf %532, %703 : vector<16x64xf32>
    %705 = math.exp %704 : vector<16x64xf32>
    %706 = arith.mulf %705, %698 : vector<16x64xf32>
    %c0_469 = arith.constant 0 : index
    %c12_470 = arith.constant 12 : index
    %707 = vector.load %arg17[%c0_469, %c12_470] : memref<16x16xf32, #tpu.memory_space<vmem>>, vector<16x1xf32>
    %c12_471 = arith.constant 12 : index
    %c0_472 = arith.constant 0 : index
    %708 = vector.load %arg15[%c12_471, %c0_472] : memref<16x64xf32, #tpu.memory_space<vmem>>, vector<1x64xf32>
    %709 = vector.broadcast %707 : vector<16x1xf32> to vector<16x64xf32>
    %710 = vector.broadcast %708 : vector<1x64xf32> to vector<16x64xf32>
    %711 = arith.mulf %709, %710 : vector<16x64xf32>
    %712 = arith.addf %706, %711 : vector<16x64xf32>
    %c12_473 = arith.constant 12 : index
    %c0_474 = arith.constant 0 : index
    %713 = vector.load %arg18[%c12_473, %c0_474] : memref<16x16xf32, #tpu.memory_space<vmem>>, vector<1x16xf32>
    %cst_475 = arith.constant dense<0.000000e+00> : vector<1x64xf32>
    %714 = tpu.matmul %713, %712, %cst_475 {dimension_numbers = #tpu.dot_dimension_numbers<[1], [0], [0], [1], [0, 0, 1, 1], [], []>} : vector<1x16xf32>, vector<16x64xf32>, vector<1x64xf32> -> vector<1x64xf32>
    %c12_476 = arith.constant 12 : index
    %c0_477 = arith.constant 0 : index
    %715 = vector.load %arg19[%c12_476, %c0_477] : memref<16x64xf32, #tpu.memory_space<vmem>>, vector<1x64xf32>
    tpu.vector_store %arg19[%c12_476, %c0_477], %714 {strides = array<i32>} : memref<16x64xf32, #tpu.memory_space<vmem>>, vector<1x64xf32>,
    %c13_478 = arith.constant 13 : index
    %c0_479 = arith.constant 0 : index
    %716 = vector.load %arg16[%c13_478, %c0_479] : memref<16x64xf32, #tpu.memory_space<vmem>>, vector<1x64xf32>
    %717 = vector.broadcast %716 : vector<1x64xf32> to vector<16x64xf32>
    %718 = arith.mulf %532, %717 : vector<16x64xf32>
    %719 = math.exp %718 : vector<16x64xf32>
    %720 = arith.mulf %719, %712 : vector<16x64xf32>
    %c0_480 = arith.constant 0 : index
    %c13_481 = arith.constant 13 : index
    %721 = vector.load %arg17[%c0_480, %c13_481] : memref<16x16xf32, #tpu.memory_space<vmem>>, vector<16x1xf32>
    %c13_482 = arith.constant 13 : index
    %c0_483 = arith.constant 0 : index
    %722 = vector.load %arg15[%c13_482, %c0_483] : memref<16x64xf32, #tpu.memory_space<vmem>>, vector<1x64xf32>
    %723 = vector.broadcast %721 : vector<16x1xf32> to vector<16x64xf32>
    %724 = vector.broadcast %722 : vector<1x64xf32> to vector<16x64xf32>
    %725 = arith.mulf %723, %724 : vector<16x64xf32>
    %726 = arith.addf %720, %725 : vector<16x64xf32>
    %c13_484 = arith.constant 13 : index
    %c0_485 = arith.constant 0 : index
    %727 = vector.load %arg18[%c13_484, %c0_485] : memref<16x16xf32, #tpu.memory_space<vmem>>, vector<1x16xf32>
    %cst_486 = arith.constant dense<0.000000e+00> : vector<1x64xf32>
    %728 = tpu.matmul %727, %726, %cst_486 {dimension_numbers = #tpu.dot_dimension_numbers<[1], [0], [0], [1], [0, 0, 1, 1], [], []>} : vector<1x16xf32>, vector<16x64xf32>, vector<1x64xf32> -> vector<1x64xf32>
    %c13_487 = arith.constant 13 : index
    %c0_488 = arith.constant 0 : index
    %729 = vector.load %arg19[%c13_487, %c0_488] : memref<16x64xf32, #tpu.memory_space<vmem>>, vector<1x64xf32>
    tpu.vector_store %arg19[%c13_487, %c0_488], %728 {strides = array<i32>} : memref<16x64xf32, #tpu.memory_space<vmem>>, vector<1x64xf32>,
    %c14_489 = arith.constant 14 : index
    %c0_490 = arith.constant 0 : index
    %730 = vector.load %arg16[%c14_489, %c0_490] : memref<16x64xf32, #tpu.memory_space<vmem>>, vector<1x64xf32>
    %731 = vector.broadcast %730 : vector<1x64xf32> to vector<16x64xf32>
    %732 = arith.mulf %532, %731 : vector<16x64xf32>
    %733 = math.exp %732 : vector<16x64xf32>
    %734 = arith.mulf %733, %726 : vector<16x64xf32>
    %c0_491 = arith.constant 0 : index
    %c14_492 = arith.constant 14 : index
    %735 = vector.load %arg17[%c0_491, %c14_492] : memref<16x16xf32, #tpu.memory_space<vmem>>, vector<16x1xf32>
    %c14_493 = arith.constant 14 : index
    %c0_494 = arith.constant 0 : index
    %736 = vector.load %arg15[%c14_493, %c0_494] : memref<16x64xf32, #tpu.memory_space<vmem>>, vector<1x64xf32>
    %737 = vector.broadcast %735 : vector<16x1xf32> to vector<16x64xf32>
    %738 = vector.broadcast %736 : vector<1x64xf32> to vector<16x64xf32>
    %739 = arith.mulf %737, %738 : vector<16x64xf32>
    %740 = arith.addf %734, %739 : vector<16x64xf32>
    %c14_495 = arith.constant 14 : index
    %c0_496 = arith.constant 0 : index
    %741 = vector.load %arg18[%c14_495, %c0_496] : memref<16x16xf32, #tpu.memory_space<vmem>>, vector<1x16xf32>
    %cst_497 = arith.constant dense<0.000000e+00> : vector<1x64xf32>
    %742 = tpu.matmul %741, %740, %cst_497 {dimension_numbers = #tpu.dot_dimension_numbers<[1], [0], [0], [1], [0, 0, 1, 1], [], []>} : vector<1x16xf32>, vector<16x64xf32>, vector<1x64xf32> -> vector<1x64xf32>
    %c14_498 = arith.constant 14 : index
    %c0_499 = arith.constant 0 : index
    %743 = vector.load %arg19[%c14_498, %c0_499] : memref<16x64xf32, #tpu.memory_space<vmem>>, vector<1x64xf32>
    tpu.vector_store %arg19[%c14_498, %c0_499], %742 {strides = array<i32>} : memref<16x64xf32, #tpu.memory_space<vmem>>, vector<1x64xf32>,
    %c15_500 = arith.constant 15 : index
    %c0_501 = arith.constant 0 : index
    %744 = vector.load %arg16[%c15_500, %c0_501] : memref<16x64xf32, #tpu.memory_space<vmem>>, vector<1x64xf32>
    %745 = vector.broadcast %744 : vector<1x64xf32> to vector<16x64xf32>
    %746 = arith.mulf %532, %745 : vector<16x64xf32>
    %747 = math.exp %746 : vector<16x64xf32>
    %748 = arith.mulf %747, %740 : vector<16x64xf32>
    %c0_502 = arith.constant 0 : index
    %c15_503 = arith.constant 15 : index
    %749 = vector.load %arg17[%c0_502, %c15_503] : memref<16x16xf32, #tpu.memory_space<vmem>>, vector<16x1xf32>
    %c15_504 = arith.constant 15 : index
    %c0_505 = arith.constant 0 : index
    %750 = vector.load %arg15[%c15_504, %c0_505] : memref<16x64xf32, #tpu.memory_space<vmem>>, vector<1x64xf32>
    %751 = vector.broadcast %749 : vector<16x1xf32> to vector<16x64xf32>
    %752 = vector.broadcast %750 : vector<1x64xf32> to vector<16x64xf32>
    %753 = arith.mulf %751, %752 : vector<16x64xf32>
    %754 = arith.addf %748, %753 : vector<16x64xf32>
    %c15_506 = arith.constant 15 : index
    %c0_507 = arith.constant 0 : index
    %755 = vector.load %arg18[%c15_506, %c0_507] : memref<16x16xf32, #tpu.memory_space<vmem>>, vector<1x16xf32>
    %cst_508 = arith.constant dense<0.000000e+00> : vector<1x64xf32>
    %756 = tpu.matmul %755, %754, %cst_508 {dimension_numbers = #tpu.dot_dimension_numbers<[1], [0], [0], [1], [0, 0, 1, 1], [], []>} : vector<1x16xf32>, vector<16x64xf32>, vector<1x64xf32> -> vector<1x64xf32>
    %c15_509 = arith.constant 15 : index
    %c0_510 = arith.constant 0 : index
    %757 = vector.load %arg19[%c15_509, %c0_510] : memref<16x64xf32, #tpu.memory_space<vmem>>, vector<1x64xf32>
    tpu.vector_store %arg19[%c15_509, %c0_510], %756 {strides = array<i32>} : memref<16x64xf32, #tpu.memory_space<vmem>>, vector<1x64xf32>,
    %c0_511 = arith.constant 0 : index
    %c0_512 = arith.constant 0 : index
    %758 = vector.load %arg19[%c0_511, %c0_512] : memref<16x64xf32, #tpu.memory_space<vmem>>, vector<16x64xf32>
    %c1_513 = arith.constant 1 : index
    %c2_514 = arith.constant 2 : index
    %c0_515 = arith.constant 0 : index
    %759 = vector.load %arg7[%c1_513, %c2_514, %c0_515] : memref<2x3x64xf32, #tpu.memory_space<vmem>>, vector<1x1x64xf32>
    %760 = vector.shape_cast %759 : vector<1x1x64xf32> to vector<1x64xf32>
    %761 = vector.broadcast %760 : vector<1x64xf32> to vector<16x64xf32>
    %762 = arith.mulf %761, %499 : vector<16x64xf32>
    %763 = arith.addf %758, %762 : vector<16x64xf32>
    %764 = arith.negf %453 : vector<16x64xf32>
    %765 = math.exp %764 : vector<16x64xf32>
    %cst_516 = arith.constant 1.000000e+00 : f32
    %766 = vector.broadcast %cst_516 : f32 to vector<16x64xf32>
    %767 = arith.addf %766, %765 : vector<16x64xf32>
    %768 = arith.divf %766, %767 : vector<16x64xf32>
    %769 = arith.mulf %453, %768 : vector<16x64xf32>
    %770 = arith.mulf %763, %769 : vector<16x64xf32>
    %c1_517 = arith.constant 1 : index
    %c0_518 = arith.constant 0 : index
    %c0_519 = arith.constant 0 : index
    %771 = vector.load %arg12[%c1_517, %c0_518, %c0_519] : memref<2x64x32xf32, #tpu.memory_space<vmem>>, vector<1x64x32xf32>
    %772 = vector.shape_cast %771 : vector<1x64x32xf32> to vector<64x32xf32>
    %cst_520 = arith.constant dense<0.000000e+00> : vector<16x32xf32>
    %773 = tpu.matmul %770, %772, %cst_520 {dimension_numbers = #tpu.dot_dimension_numbers<[1], [0], [0], [1], [0, 0, 1, 1], [], []>} : vector<16x64xf32>, vector<64x32xf32>, vector<16x32xf32> -> vector<16x32xf32>
    %774 = arith.addf %773, %424 : vector<16x32xf32>
    %c0_521 = arith.constant 0 : index
    %c0_522 = arith.constant 0 : index
    %775 = vector.load %arg13[%c0_521, %c0_522] : memref<2x32xf32, #tpu.memory_space<vmem>>, vector<1x32xf32>
    %c1_523 = arith.constant 1 : index
    %c0_524 = arith.constant 0 : index
    %776 = vector.load %arg13[%c1_523, %c0_524] : memref<2x32xf32, #tpu.memory_space<vmem>>, vector<1x32xf32>
    %cst_525 = arith.constant dense<0.000000e+00> : vector<16xf32>
    %777 = vector.multi_reduction <add>, %774, %cst_525 [1] : vector<16x32xf32> to vector<16xf32>
    %778 = vector.shape_cast %777 : vector<16xf32> to vector<16x1xf32>
    %cst_526 = arith.constant 3.200000e+01 : f32
    %779 = vector.broadcast %cst_526 : f32 to vector<16x1xf32>
    %780 = arith.divf %778, %779 : vector<16x1xf32>
    %781 = vector.broadcast %780 : vector<16x1xf32> to vector<16x32xf32>
    %782 = arith.subf %774, %781 : vector<16x32xf32>
    %783 = arith.mulf %782, %782 : vector<16x32xf32>
    %cst_527 = arith.constant dense<0.000000e+00> : vector<16xf32>
    %784 = vector.multi_reduction <add>, %783, %cst_527 [1] : vector<16x32xf32> to vector<16xf32>
    %785 = vector.shape_cast %784 : vector<16xf32> to vector<16x1xf32>
    %cst_528 = arith.constant 3.200000e+01 : f32
    %786 = vector.broadcast %cst_528 : f32 to vector<16x1xf32>
    %787 = arith.divf %785, %786 : vector<16x1xf32>
    %cst_529 = arith.constant 9.99999974E-6 : f32
    %788 = vector.broadcast %cst_529 : f32 to vector<16x1xf32>
    %789 = arith.addf %787, %788 : vector<16x1xf32>
    %790 = math.rsqrt %789 : vector<16x1xf32>
    %791 = vector.broadcast %790 : vector<16x1xf32> to vector<16x32xf32>
    %792 = arith.mulf %782, %791 : vector<16x32xf32>
    %793 = vector.broadcast %775 : vector<1x32xf32> to vector<16x32xf32>
    %794 = arith.mulf %792, %793 : vector<16x32xf32>
    %795 = vector.broadcast %776 : vector<1x32xf32> to vector<16x32xf32>
    %796 = arith.addf %794, %795 : vector<16x32xf32>
    %c0_530 = arith.constant 0 : index
    %c0_531 = arith.constant 0 : index
    %797 = vector.load %arg14[%c0_530, %c0_531] : memref<16x32xf32, #tpu.memory_space<vmem>>, vector<16x32xf32>
    tpu.vector_store %arg14[%c0_530, %c0_531], %796 {strides = array<i32>} : memref<16x32xf32, #tpu.memory_space<vmem>>, vector<16x32xf32>,
    return
  }
}

</mosaic_0001>

<llo_original>
// kernel: mixer_model_forward.1
$region0: #{mixer_model_forward.1}
  #allocation0 [shape = 'u32[]', space=smem, size = 0x4, offset = 0x4, fixed_abs, tag = 'smem constant byte address 0x4 - core index']
  #allocation1 [shape = 'u32[144,128]{1,0:T(1,128)}', space=vmem, size = 0x12000, scoped, tag = 'internal scratch']
  #allocation2 [shape = 'f32[16,64]{1,0:T(8,128)}', space=vmem, size = 0x2000, scoped, tag = 'scratch operand']
  #allocation3 [shape = 'f32[16,64]{1,0:T(8,128)}', space=vmem, size = 0x2000, scoped, tag = 'scratch operand']
  #allocation4 [shape = 'f32[16,16]{1,0:T(8,128)}', space=vmem, size = 0x2000, scoped, tag = 'scratch operand']
  #allocation5 [shape = 'f32[16,16]{1,0:T(8,128)}', space=vmem, size = 0x2000, scoped, tag = 'scratch operand']
  #allocation6 [shape = 'f32[16,64]{1,0:T(8,128)}', space=vmem, size = 0x2000, scoped, tag = 'scratch operand']
  %s0 = inlined_call_operand.vmem [shape: f32[16,32], index: 0, kind: input, shape index: {}]
  %s1 = inlined_call_operand.vmem [shape: f32[3,32], index: 1, kind: input, shape index: {}]
  %s2 = inlined_call_operand.vmem [shape: f32[32,192], index: 2, kind: input, shape index: {}]
  %s3 = inlined_call_operand.vmem [shape: f32[64,32], index: 3, kind: input, shape index: {}]
  %s4 = inlined_call_operand.vmem [shape: f32[2,2,32], index: 4, kind: input, shape index: {}]
  %s5 = inlined_call_operand.vmem [shape: f32[2,32,128], index: 5, kind: input, shape index: {}]
  %s6 = inlined_call_operand.vmem [shape: f32[2,4,64], index: 6, kind: input, shape index: {}]
  %s7 = inlined_call_operand.vmem [shape: f32[2,3,64], index: 7, kind: input, shape index: {}]
  %s8 = inlined_call_operand.vmem [shape: f32[2,64,18], index: 8, kind: input, shape index: {}]
  %s9 = inlined_call_operand.vmem [shape: f32[2,16,64], index: 9, kind: input, shape index: {}]
  %s10 = inlined_call_operand.vmem [shape: f32[2,2,64], index: 10, kind: input, shape index: {}]
  %s11 = inlined_call_operand.vmem [shape: f32[2,16,64], index: 11, kind: input, shape index: {}]
  %s12 = inlined_call_operand.vmem [shape: f32[2,64,32], index: 12, kind: input, shape index: {}]
  %s13 = inlined_call_operand.vmem [shape: f32[2,32], index: 13, kind: input, shape index: {}]
  %s14 = inlined_call_operand.hbm [shape: f32[16,32], index: 14, kind: output, shape index: {}]
  %s15 = sld [smem:[#allocation0]]
  $region66: #{mixer_model_forward.1} parent=0
    _
  %s17 = ssub.s32 1, %s15
  %s18 = scalar_select 0, %s17, %s15
  $region1: #{mixer_model_forward.1} parent=0
    #allocation7 [shape = 'u8[8192]{0}', space=vmem, size = 0x2000, scoped, tag = 'output window, operand 0, single buffered']
    #allocation8 [shape = 's32[1]{0}', space=sflag, size = 0x4, scoped, tag = 'scoped memory for mixer_model_forward.1']
    %19 = vsyncpa [#allocation8], 0
    // Predicated region
    $region2: #{mixer_model_forward.1} parent=1 // pred_check
      _
    $region3: #{mixer_model_forward.1} parent=1 // pred_check_branch
      %21 = sbr.rel (0) target = $region5
    $region4: #{mixer_model_forward.1} parent=1 // pred_region
      _
    $region5: #{mixer_model_forward.1} parent=1 // pred_fallthru
      _
    // Predicated region
    $region6: #{mixer_model_forward.1} parent=1 // pred_check
      _
    $region7: #{mixer_model_forward.1} parent=1 // pred_check_branch
      %23 = sbr.rel (0) target = $region9
    $region8: #{mixer_model_forward.1} parent=1 // pred_region
      _
    $region9: #{mixer_model_forward.1} parent=1 // pred_fallthru
      _
    // Predicated region
    $region10: #{mixer_model_forward.1} parent=1 // pred_check
      _
    $region11: #{mixer_model_forward.1} parent=1 // pred_check_branch
      %25 = sbr.rel (0) target = $region13
    $region12: #{mixer_model_forward.1} parent=1 // pred_region
      _
    $region13: #{mixer_model_forward.1} parent=1 // pred_fallthru
      _
    // Predicated region
    $region14: #{mixer_model_forward.1} parent=1 // pred_check
      _
    $region15: #{mixer_model_forward.1} parent=1 // pred_check_branch
      %27 = sbr.rel (0) target = $region17
    $region16: #{mixer_model_forward.1} parent=1 // pred_region
      _
    $region17: #{mixer_model_forward.1} parent=1 // pred_fallthru
      _
    // Predicated region
    $region18: #{mixer_model_forward.1} parent=1 // pred_check
      _
    $region19: #{mixer_model_forward.1} parent=1 // pred_check_branch
      %29 = sbr.rel (0) target = $region21
    $region20: #{mixer_model_forward.1} parent=1 // pred_region
      _
    $region21: #{mixer_model_forward.1} parent=1 // pred_fallthru
      _
    // Predicated region
    $region22: #{mixer_model_forward.1} parent=1 // pred_check
      _
    $region23: #{mixer_model_forward.1} parent=1 // pred_check_branch
      %31 = sbr.rel (0) target = $region25
    $region24: #{mixer_model_forward.1} parent=1 // pred_region
      _
    $region25: #{mixer_model_forward.1} parent=1 // pred_fallthru
      _
    // Predicated region
    $region26: #{mixer_model_forward.1} parent=1 // pred_check
      _
    $region27: #{mixer_model_forward.1} parent=1 // pred_check_branch
      %33 = sbr.rel (0) target = $region29
    $region28: #{mixer_model_forward.1} parent=1 // pred_region
      _
    $region29: #{mixer_model_forward.1} parent=1 // pred_fallthru
      _
    // Predicated region
    $region30: #{mixer_model_forward.1} parent=1 // pred_check
      _
    $region31: #{mixer_model_forward.1} parent=1 // pred_check_branch
      %35 = sbr.rel (0) target = $region33
    $region32: #{mixer_model_forward.1} parent=1 // pred_region
      _
    $region33: #{mixer_model_forward.1} parent=1 // pred_fallthru
      _
    // Predicated region
    $region34: #{mixer_model_forward.1} parent=1 // pred_check
      _
    $region35: #{mixer_model_forward.1} parent=1 // pred_check_branch
      %37 = sbr.rel (0) target = $region37
    $region36: #{mixer_model_forward.1} parent=1 // pred_region
      _
    $region37: #{mixer_model_forward.1} parent=1 // pred_fallthru
      _
    // Predicated region
    $region38: #{mixer_model_forward.1} parent=1 // pred_check
      _
    $region39: #{mixer_model_forward.1} parent=1 // pred_check_branch
      %39 = sbr.rel (0) target = $region41
    $region40: #{mixer_model_forward.1} parent=1 // pred_region
      _
    $region41: #{mixer_model_forward.1} parent=1 // pred_fallthru
      _
    // Predicated region
    $region42: #{mixer_model_forward.1} parent=1 // pred_check
      _
    $region43: #{mixer_model_forward.1} parent=1 // pred_check_branch
      %41 = sbr.rel (0) target = $region45
    $region44: #{mixer_model_forward.1} parent=1 // pred_region
      _
    $region45: #{mixer_model_forward.1} parent=1 // pred_fallthru
      _
    // Predicated region
    $region46: #{mixer_model_forward.1} parent=1 // pred_check
      _
    $region47: #{mixer_model_forward.1} parent=1 // pred_check_branch
      %43 = sbr.rel (0) target = $region49
    $region48: #{mixer_model_forward.1} parent=1 // pred_region
      _
    $region49: #{mixer_model_forward.1} parent=1 // pred_fallthru
      _
    // Predicated region
    $region50: #{mixer_model_forward.1} parent=1 // pred_check
      _
    $region51: #{mixer_model_forward.1} parent=1 // pred_check_branch
      %45 = sbr.rel (0) target = $region53
    $region52: #{mixer_model_forward.1} parent=1 // pred_region
      _
    $region53: #{mixer_model_forward.1} parent=1 // pred_fallthru
      _
    // Predicated region
    $region54: #{mixer_model_forward.1} parent=1 // pred_check
      _
    $region55: #{mixer_model_forward.1} parent=1 // pred_check_branch
      %47 = sbr.rel (0) target = $region57
    $region56: #{mixer_model_forward.1} parent=1 // pred_region
      _
    $region57: #{mixer_model_forward.1} parent=1 // pred_fallthru
      _
    %v48 = vld [vmem:[%s0] sm:$0xff]
    %v49 = vld [vmem:[%s0 + $0x8] sm:$0xff]
    %v50 = vld [vmem:[%s1] sm:$0x1]
    %v51 = vld [vmem:[%s1 + $0x1] sm:$0x1]
    %vm52 = vcmask 261120
    %v53 = vsel %vm52, %v48, 0.0
    %54 = vadd.xlane.f32.xlu0 %v53
    %v55 = vpop.xlane.xlu0 %54
    %v56 = vsel %vm52, %v49, 0.0
    %57 = vadd.xlane.f32.xlu0 %v56
    %v58 = vpop.xlane.xlu0 %57
    %v59 = vrcp.pop 32.0
    %v60 = vmul.f32 %v55, %v59
    %v61 = vmul.f32 %v58, %v59
    %v62 = vsub.f32 %v48, %v60
    %v63 = vsub.f32 %v49, %v61
    %v64 = vmul.f32 %v62, %v62
    %v65 = vmul.f32 %v63, %v63
    %v66 = vsel %vm52, %v64, 0.0
    %67 = vadd.xlane.f32.xlu0 %v66
    %v68 = vpop.xlane.xlu0 %67
    %v69 = vsel %vm52, %v65, 0.0
    %70 = vadd.xlane.f32.xlu0 %v69
    %v71 = vpop.xlane.xlu0 %70
    %v72 = vmul.f32 %v68, %v59
    %v73 = vmul.f32 %v71, %v59
    %v74 = vadd.f32 %v72, 1e-05
    %v75 = vadd.f32 %v73, 1e-05
    %v76 = vrsqrt.pop %v74
    %v77 = vrsqrt.pop %v75
    %v78 = vmul.f32 %v62, %v76
    %v79 = vmul.f32 %v63, %v77
    %v80 = vlaneseq
    %v81 = vshrl.u32 %v80, 7
    %v82 = vsub.s32 0, %v81
    %v83 = vrot.slane %v50, %v82
    %v84 = vmul.f32 %v78, %v83
    %v85 = vmul.f32 %v79, %v83
    %v86 = vlaneseq
    %v87 = vshrl.u32 %v86, 7
    %v88 = vsub.s32 0, %v87
    %v89 = vrot.slane %v51, %v88
    %v90 = vadd.f32 %v84, %v89
    %v91 = vadd.f32 %v85, %v89
    %v92 = vld [vmem:[%s2] sm:$0xff]
    %v93 = vld [vmem:[%s2 + $0x8] sm:$0xff]
    %v94 = vld [vmem:[%s2 + $0x10] sm:$0xff]
    %v95 = vld [vmem:[%s2 + $0x18] sm:$0xff]
    %v96 = vld [vmem:[%s2 + $0x20] sm:$0xff]
    %v97 = vld [vmem:[%s2 + $0x28] sm:$0xff]
    %v98 = vld [vmem:[%s2 + $0x30] sm:$0xff]
    %v99 = vld [vmem:[%s2 + $0x38] sm:$0xff]
    %v101 = vsel %vm52, %v90, 0
    %v104 = vsel %vm52, %v91, 0
    %106 = vmatprep.subr.mxu0 0.0
    %107 = vmatpush1.msra.mxu0 0.0
    %108 = vmatprep.subr.mxu0 0.0
    %109 = vmatpush1.msra.mxu0 0.0
    %110 = vmatprep.subr.mxu0 0.0
    %111 = vmatpush1.msra.mxu0 0.0
    %112 = vmatprep.subr.mxu0 0.0
    %113 = vmatpush1.msra.mxu0 0.0
    %114 = vmatprep.subr.mxu0 0.0
    %115 = vmatpush1.msra.mxu0 0.0
    %116 = vmatprep.subr.mxu0 0.0
    %117 = vmatpush1.msra.mxu0 0.0
    %118 = vmatprep.subr.mxu0 0.0
    %119 = vmatpush1.msra.mxu0 0.0
    %120 = vmatprep.subr.mxu0 0.0
    %121 = vmatpush1.msra.mxu0 0.0
    %122 = vmatprep.subr.mxu0 0.0
    %123 = vmatpush1.msra.mxu0 0.0
    %124 = vmatprep.subr.mxu0 0.0
    %125 = vmatpush1.msra.mxu0 0.0
    %126 = vmatprep.subr.mxu0 0.0
    %127 = vmatpush1.msra.mxu0 0.0
    %128 = vmatprep.subr.mxu0 0.0
    %129 = vmatpush1.msra.mxu0 0.0
    %130 = vmatprep.subr.mxu0 %v99
    %131 = vmatpush1.msra.mxu0 %v98
    %132 = vmatprep.subr.mxu0 %v97
    %133 = vmatpush1.msra.mxu0 %v96
    %134 = vmatprep.subr.mxu0 %v95
    %135 = vmatpush1.msra.mxu0 %v94
    %136 = vmatprep.subr.mxu0 %v93
    %137 = vmatpush1.msra.mxu0 %v92
    %138 = vmatprep.subr.mxu0 0.0
    %139 = vmatpush2.msra.mxu0 0.0
    %140 = vmatprep.subr.mxu0 0.0
    %141 = vmatpush2.msra.mxu0 0.0
    %142 = vmatprep.subr.mxu0 0.0
    %143 = vmatpush2.msra.mxu0 0.0
    %144 = vmatprep.subr.mxu0 0.0
    %145 = vmatpush2.msra.mxu0 0.0
    %146 = vmatprep.subr.mxu0 0.0
    %147 = vmatpush2.msra.mxu0 0.0
    %148 = vmatprep.subr.mxu0 0.0
    %149 = vmatpush2.msra.mxu0 0.0
    %150 = vmatprep.subr.mxu0 0.0
    %151 = vmatpush2.msra.mxu0 0.0
    %152 = vmatprep.subr.mxu0 0.0
    %153 = vmatpush2.msra.mxu0 0.0
    %154 = vmatprep.subr.mxu0 0.0
    %155 = vmatpush2.msra.mxu0 0.0
    %156 = vmatprep.subr.mxu0 0.0
    %157 = vmatpush2.msra.mxu0 0.0
    %158 = vmatprep.subr.mxu0 0.0
    %159 = vmatpush2.msra.mxu0 0.0
    %160 = vmatprep.subr.mxu0 0.0
    %161 = vmatpush2.msra.mxu0 0.0
    %162 = vmatprep.subr.mxu0 0.0
    %163 = vmatpush2.msra.mxu0 0.0
    %164 = vmatprep.subr.mxu0 0.0
    %165 = vmatpush2.msra.mxu0 0.0
    %166 = vmatprep.subr.mxu0 0.0
    %167 = vmatpush2.msra.mxu0 0.0
    %168 = vmatprep.subr.mxu0 0.0
    %169 = vmatpush2.msra.mxu0 0.0
    %170 = vmatprep.mubr.f32.mxu0 0.0
    %171 = vmatmul.mubr.f32.gmra.mxu0 %v101
    %v172 = vpop.f32.mrf.mxu0
    %v173 = vadd.f32 0.0, %v172
    %v174 = vpop.f32.mrf.mxu0
    %v175 = vadd.f32 0.0, %v174
    %176 = vmatprep.mubr.f32.mxu0 0.0
    %177 = vmatmul.mubr.f32.gmra.mxu0 %v104
    %v178 = vpop.f32.mrf.mxu0
    %v179 = vadd.f32 0.0, %v178
    %v180 = vpop.f32.mrf.mxu0
    %v181 = vadd.f32 0.0, %v180
    %182 = vdwg.mxu0
    %185 = vrot.lane.b32.xlu0 %v173, 64
    %v186 = vpop.permute.xlu0 %185
    %187 = vrot.lane.b32.xlu0 %v179, 64
    %v188 = vpop.permute.xlu0 %187
    %v189 = vsel %vm52, %v173, 0
    %v191 = vsel %vm52, %v179, 0
    %v193 = vsel %vm52, %v186, 0
    %v195 = vsel %vm52, %v188, 0
    %197 = vmatprep.subr.mxu0 0.0
    %198 = vmatpush1.xpose.msra.mxu0 0.0
    %199 = vmatprep.subr.mxu0 0.0
    %200 = vmatpush1.xpose.msra.mxu0 0.0
    %201 = vmatprep.subr.mxu0 0.0
    %202 = vmatpush1.xpose.msra.mxu0 0.0
    %203 = vmatprep.subr.mxu0 0.0
    %204 = vmatpush1.xpose.msra.mxu0 0.0
    %205 = vmatprep.subr.mxu0 0.0
    %206 = vmatpush1.xpose.msra.mxu0 0.0
    %207 = vmatprep.subr.mxu0 0.0
    %208 = vmatpush1.xpose.msra.mxu0 0.0
    %209 = vmatprep.subr.mxu0 0.0
    %210 = vmatpush1.xpose.msra.mxu0 0.0
    %211 = vmatprep.subr.mxu0 0.0
    %212 = vmatpush1.xpose.msra.mxu0 0.0
    %213 = vmatprep.subr.mxu0 0.0
    %214 = vmatpush1.xpose.msra.mxu0 0.0
    %215 = vmatprep.subr.mxu0 0.0
    %216 = vmatpush1.xpose.msra.mxu0 0.0
    %217 = vmatprep.subr.mxu0 0.0
    %218 = vmatpush1.xpose.msra.mxu0 0.0
    %219 = vmatprep.subr.mxu0 0.0
    %220 = vmatpush1.xpose.msra.mxu0 0.0
    %221 = vmatprep.subr.mxu0 0.0
    %222 = vmatpush1.xpose.msra.mxu0 0.0
    %223 = vmatprep.subr.mxu0 0.0
    %224 = vmatpush1.xpose.msra.mxu0 0.0
    %225 = vmatprep.subr.mxu0 0.0
    %226 = vmatpush1.xpose.msra.mxu0 %v195
    %227 = vmatprep.subr.mxu0 0.0
    %228 = vmatpush1.xpose.msra.mxu0 %v193
    %229 = vmatprep.subr.mxu0 0.0
    %230 = vmatpush2.xpose.msra.mxu0 0.0
    %231 = vmatprep.subr.mxu0 0.0
    %232 = vmatpush2.xpose.msra.mxu0 0.0
    %233 = vmatprep.subr.mxu0 0.0
    %234 = vmatpush2.xpose.msra.mxu0 0.0
    %235 = vmatprep.subr.mxu0 0.0
    %236 = vmatpush2.xpose.msra.mxu0 0.0
    %237 = vmatprep.subr.mxu0 0.0
    %238 = vmatpush2.xpose.msra.mxu0 0.0
    %239 = vmatprep.subr.mxu0 0.0
    %240 = vmatpush2.xpose.msra.mxu0 0.0
    %241 = vmatprep.subr.mxu0 0.0
    %242 = vmatpush2.xpose.msra.mxu0 0.0
    %243 = vmatprep.subr.mxu0 0.0
    %244 = vmatpush2.xpose.msra.mxu0 0.0
    %245 = vmatprep.subr.mxu0 0.0
    %246 = vmatpush2.xpose.msra.mxu0 0.0
    %247 = vmatprep.subr.mxu0 0.0
    %248 = vmatpush2.xpose.msra.mxu0 0.0
    %249 = vmatprep.subr.mxu0 0.0
    %250 = vmatpush2.xpose.msra.mxu0 0.0
    %251 = vmatprep.subr.mxu0 0.0
    %252 = vmatpush2.xpose.msra.mxu0 0.0
    %253 = vmatprep.subr.mxu0 0.0
    %254 = vmatpush2.xpose.msra.mxu0 0.0
    %255 = vmatprep.subr.mxu0 0.0
    %256 = vmatpush2.xpose.msra.mxu0 0.0
    %257 = vmatprep.subr.mxu0 0.0
    %258 = vmatpush2.xpose.msra.mxu0 0.0
    %259 = vmatprep.subr.mxu0 0.0
    %260 = vmatpush2.xpose.msra.mxu0 0.0
    %261 = vmatprep.mubr.f32.mxu0 0.0
    %262 = vmatmul.mubr.f32.gmra.mxu0 %v189
    %v263 = vpop.f32.mrf.mxu0
    %v264 = vadd.f32 0.0, %v263
    %v265 = vpop.f32.mrf.mxu0
    %266 = vmatprep.mubr.f32.mxu0 0.0
    %267 = vmatmul.mubr.f32.gmra.mxu0 %v191
    %v268 = vpop.f32.mrf.mxu0
    %v269 = vadd.f32 0.0, %v268
    %v270 = vpop.f32.mrf.mxu0
    %271 = vdwg.mxu0
    %vm272 = vcmask 130048
    %v273 = vsel %vm272, %v264, -inf
    %274 = vmax.xlane.f32.xlu0 %v273
    %v275 = vpop.xlane.xlu0 %274
    %v276 = vsel %vm272, %v269, -inf
    %277 = vmax.xlane.f32.xlu0 %v276
    %v278 = vpop.xlane.xlu0 %277
    %v279 = vsub.f32 %v264, %v275
    %v280 = vsub.f32 %v269, %v278
    %v281 = vmul.f32 %v279, 1.442695
    %v282 = vpow.pop %v281
    %v283 = vmul.f32 %v280, 1.442695
    %v284 = vpow.pop %v283
    %v285 = vsel %vm272, %v282, 0.0
    %286 = vadd.xlane.f32.xlu0 %v285
    %v287 = vpop.xlane.xlu0 %286
    %v288 = vsel %vm272, %v284, 0.0
    %289 = vadd.xlane.f32.xlu0 %v288
    %v290 = vpop.xlane.xlu0 %289
    %v291 = vrcp.pop %v287
    %v292 = vrcp.pop %v290
    %v293 = vmul.f32 %v282, %v291
    %v294 = vmul.f32 %v284, %v292
    %v296 = vsel %vm272, %v293, 0
    %v299 = vsel %vm272, %v294, 0
    %301 = vmatprep.subr.mxu0 0.0
    %302 = vmatpush1.msra.mxu0 0.0
    %303 = vmatprep.subr.mxu0 0.0
    %304 = vmatpush1.msra.mxu0 0.0
    %305 = vmatprep.subr.mxu0 0.0
    %306 = vmatpush1.msra.mxu0 0.0
    %307 = vmatprep.subr.mxu0 0.0
    %308 = vmatpush1.msra.mxu0 0.0
    %309 = vmatprep.subr.mxu0 0.0
    %310 = vmatpush1.msra.mxu0 0.0
    %311 = vmatprep.subr.mxu0 0.0
    %312 = vmatpush1.msra.mxu0 0.0
    %313 = vmatprep.subr.mxu0 0.0
    %314 = vmatpush1.msra.mxu0 0.0
    %315 = vmatprep.subr.mxu0 0.0
    %316 = vmatpush1.msra.mxu0 0.0
    %317 = vmatprep.subr.mxu0 0.0
    %318 = vmatpush1.msra.mxu0 0.0
    %319 = vmatprep.subr.mxu0 0.0
    %320 = vmatpush1.msra.mxu0 0.0
    %321 = vmatprep.subr.mxu0 0.0
    %322 = vmatpush1.msra.mxu0 0.0
    %323 = vmatprep.subr.mxu0 0.0
    %324 = vmatpush1.msra.mxu0 0.0
    %325 = vmatprep.subr.mxu0 0.0
    %326 = vmatpush1.msra.mxu0 0.0
    %327 = vmatprep.subr.mxu0 0.0
    %328 = vmatpush1.msra.mxu0 0.0
    %329 = vmatprep.subr.mxu0 0.0
    %330 = vmatpush1.msra.mxu0 %v181
    %331 = vmatprep.subr.mxu0 0.0
    %332 = vmatpush1.msra.mxu0 %v175
    %333 = vmatprep.subr.mxu0 0.0
    %334 = vmatpush2.msra.mxu0 0.0
    %335 = vmatprep.subr.mxu0 0.0
    %336 = vmatpush2.msra.mxu0 0.0
    %337 = vmatprep.subr.mxu0 0.0
    %338 = vmatpush2.msra.mxu0 0.0
    %339 = vmatprep.subr.mxu0 0.0
    %340 = vmatpush2.msra.mxu0 0.0
    %341 = vmatprep.subr.mxu0 0.0
    %342 = vmatpush2.msra.mxu0 0.0
    %343 = vmatprep.subr.mxu0 0.0
    %344 = vmatpush2.msra.mxu0 0.0
    %345 = vmatprep.subr.mxu0 0.0
    %346 = vmatpush2.msra.mxu0 0.0
    %347 = vmatprep.subr.mxu0 0.0
    %348 = vmatpush2.msra.mxu0 0.0
    %349 = vmatprep.subr.mxu0 0.0
    %350 = vmatpush2.msra.mxu0 0.0
    %351 = vmatprep.subr.mxu0 0.0
    %352 = vmatpush2.msra.mxu0 0.0
    %353 = vmatprep.subr.mxu0 0.0
    %354 = vmatpush2.msra.mxu0 0.0
    %355 = vmatprep.subr.mxu0 0.0
    %356 = vmatpush2.msra.mxu0 0.0
    %357 = vmatprep.subr.mxu0 0.0
    %358 = vmatpush2.msra.mxu0 0.0
    %359 = vmatprep.subr.mxu0 0.0
    %360 = vmatpush2.msra.mxu0 0.0
    %361 = vmatprep.subr.mxu0 0.0
    %362 = vmatpush2.msra.mxu0 0.0
    %363 = vmatprep.subr.mxu0 0.0
    %364 = vmatpush2.msra.mxu0 0.0
    %365 = vmatprep.mubr.f32.mxu0 0.0
    %366 = vmatmul.mubr.f32.gmra.mxu0 %v296
    %v367 = vpop.f32.mrf.mxu0
    %v368 = vadd.f32 0.0, %v367
    %v369 = vpop.f32.mrf.mxu0
    %370 = vmatprep.mubr.f32.mxu0 0.0
    %371 = vmatmul.mubr.f32.gmra.mxu0 %v299
    %v372 = vpop.f32.mrf.mxu0
    %v373 = vadd.f32 0.0, %v372
    %v374 = vpop.f32.mrf.mxu0
    %375 = vdwg.mxu0
    %v376 = vld [vmem:[%s3] sm:$0xff]
    %v377 = vld [vmem:[%s3 + $0x8] sm:$0xff]
    %v378 = vld [vmem:[%s3 + $0x10] sm:$0xff]
    %v379 = vld [vmem:[%s3 + $0x18] sm:$0xff]
    %380 = vrot.lane.b32.xlu0 %v173, 96
    %v381 = vpop.permute.xlu0 %380
    %382 = vrot.lane.b32.xlu0 %v179, 96
    %v383 = vpop.permute.xlu0 %382
    %384 = vrot.lane.b32.xlu0 %v173, 32
    %v385 = vpop.permute.xlu0 %384
    %386 = vrot.lane.b32.xlu0 %v179, 32
    %v387 = vpop.permute.xlu0 %386
    %v388 = vsel %vm52, %v381, 0
    %v390 = vsel %vm52, %v383, 0
    %v392 = vsel %vm52, %v385, 0
    %v394 = vsel %vm52, %v387, 0
    %396 = vmatprep.subr.mxu0 0.0
    %397 = vmatpush1.xpose.msra.mxu0 0.0
    %398 = vmatprep.subr.mxu0 0.0
    %399 = vmatpush1.xpose.msra.mxu0 0.0
    %400 = vmatprep.subr.mxu0 0.0
    %401 = vmatpush1.xpose.msra.mxu0 0.0
    %402 = vmatprep.subr.mxu0 0.0
    %403 = vmatpush1.xpose.msra.mxu0 0.0
    %404 = vmatprep.subr.mxu0 0.0
    %405 = vmatpush1.xpose.msra.mxu0 0.0
    %406 = vmatprep.subr.mxu0 0.0
    %407 = vmatpush1.xpose.msra.mxu0 0.0
    %408 = vmatprep.subr.mxu0 0.0
    %409 = vmatpush1.xpose.msra.mxu0 0.0
    %410 = vmatprep.subr.mxu0 0.0
    %411 = vmatpush1.xpose.msra.mxu0 0.0
    %412 = vmatprep.subr.mxu0 0.0
    %413 = vmatpush1.xpose.msra.mxu0 0.0
    %414 = vmatprep.subr.mxu0 0.0
    %415 = vmatpush1.xpose.msra.mxu0 0.0
    %416 = vmatprep.subr.mxu0 0.0
    %417 = vmatpush1.xpose.msra.mxu0 0.0
    %418 = vmatprep.subr.mxu0 0.0
    %419 = vmatpush1.xpose.msra.mxu0 0.0
    %420 = vmatprep.subr.mxu0 0.0
    %421 = vmatpush1.xpose.msra.mxu0 0.0
    %422 = vmatprep.subr.mxu0 0.0
    %423 = vmatpush1.xpose.msra.mxu0 0.0
    %424 = vmatprep.subr.mxu0 0.0
    %425 = vmatpush1.xpose.msra.mxu0 %v394
    %426 = vmatprep.subr.mxu0 0.0
    %427 = vmatpush1.xpose.msra.mxu0 %v392
    %428 = vmatprep.subr.mxu0 0.0
    %429 = vmatpush2.xpose.msra.mxu0 0.0
    %430 = vmatprep.subr.mxu0 0.0
    %431 = vmatpush2.xpose.msra.mxu0 0.0
    %432 = vmatprep.subr.mxu0 0.0
    %433 = vmatpush2.xpose.msra.mxu0 0.0
    %434 = vmatprep.subr.mxu0 0.0
    %435 = vmatpush2.xpose.msra.mxu0 0.0
    %436 = vmatprep.subr.mxu0 0.0
    %437 = vmatpush2.xpose.msra.mxu0 0.0
    %438 = vmatprep.subr.mxu0 0.0
    %439 = vmatpush2.xpose.msra.mxu0 0.0
    %440 = vmatprep.subr.mxu0 0.0
    %441 = vmatpush2.xpose.msra.mxu0 0.0
    %442 = vmatprep.subr.mxu0 0.0
    %443 = vmatpush2.xpose.msra.mxu0 0.0
    %444 = vmatprep.subr.mxu0 0.0
    %445 = vmatpush2.xpose.msra.mxu0 0.0
    %446 = vmatprep.subr.mxu0 0.0
    %447 = vmatpush2.xpose.msra.mxu0 0.0
    %448 = vmatprep.subr.mxu0 0.0
    %449 = vmatpush2.xpose.msra.mxu0 0.0
    %450 = vmatprep.subr.mxu0 0.0
    %451 = vmatpush2.xpose.msra.mxu0 0.0
    %452 = vmatprep.subr.mxu0 0.0
    %453 = vmatpush2.xpose.msra.mxu0 0.0
    %454 = vmatprep.subr.mxu0 0.0
    %455 = vmatpush2.xpose.msra.mxu0 0.0
    %456 = vmatprep.subr.mxu0 0.0
    %457 = vmatpush2.xpose.msra.mxu0 0.0
    %458 = vmatprep.subr.mxu0 0.0
    %459 = vmatpush2.xpose.msra.mxu0 0.0
    %460 = vmatprep.mubr.f32.mxu0 0.0
    %461 = vmatmul.mubr.f32.gmra.mxu0 %v388
    %v462 = vpop.f32.mrf.mxu0
    %v463 = vadd.f32 0.0, %v462
    %v464 = vpop.f32.mrf.mxu0
    %465 = vmatprep.mubr.f32.mxu0 0.0
    %466 = vmatmul.mubr.f32.gmra.mxu0 %v390
    %v467 = vpop.f32.mrf.mxu0
    %v468 = vadd.f32 0.0, %v467
    %v469 = vpop.f32.mrf.mxu0
    %470 = vdwg.mxu0
    %v471 = vsel %vm272, %v463, -inf
    %472 = vmax.xlane.f32.xlu0 %v471
    %v473 = vpop.xlane.xlu0 %472
    %v474 = vsel %vm272, %v468, -inf
    %475 = vmax.xlane.f32.xlu0 %v474
    %v476 = vpop.xlane.xlu0 %475
    %v477 = vsub.f32 %v463, %v473
    %v478 = vsub.f32 %v468, %v476
    %v479 = vmul.f32 %v477, 1.442695
    %v480 = vpow.pop %v479
    %v481 = vmul.f32 %v478, 1.442695
    %v482 = vpow.pop %v481
    %v483 = vsel %vm272, %v480, 0.0
    %484 = vadd.xlane.f32.xlu0 %v483
    %v485 = vpop.xlane.xlu0 %484
    %v486 = vsel %vm272, %v482, 0.0
    %487 = vadd.xlane.f32.xlu0 %v486
    %v488 = vpop.xlane.xlu0 %487
    %v489 = vrcp.pop %v485
    %v490 = vrcp.pop %v488
    %v491 = vmul.f32 %v480, %v489
    %v492 = vmul.f32 %v482, %v490
    %495 = vrot.lane.b32.xlu0 %v175, 96
    %v496 = vpop.permute.xlu0 %495
    %497 = vrot.lane.b32.xlu0 %v181, 96
    %v498 = vpop.permute.xlu0 %497
    %v502 = vsel %vm272, %v491, 0
    %v505 = vsel %vm272, %v492, 0
    %507 = vmatprep.subr.mxu0 0.0
    %508 = vmatpush1.msra.mxu0 0.0
    %509 = vmatprep.subr.mxu0 0.0
    %510 = vmatpush1.msra.mxu0 0.0
    %511 = vmatprep.subr.mxu0 0.0
    %512 = vmatpush1.msra.mxu0 0.0
    %513 = vmatprep.subr.mxu0 0.0
    %514 = vmatpush1.msra.mxu0 0.0
    %515 = vmatprep.subr.mxu0 0.0
    %516 = vmatpush1.msra.mxu0 0.0
    %517 = vmatprep.subr.mxu0 0.0
    %518 = vmatpush1.msra.mxu0 0.0
    %519 = vmatprep.subr.mxu0 0.0
    %520 = vmatpush1.msra.mxu0 0.0
    %521 = vmatprep.subr.mxu0 0.0
    %522 = vmatpush1.msra.mxu0 0.0
    %523 = vmatprep.subr.mxu0 0.0
    %524 = vmatpush1.msra.mxu0 0.0
    %525 = vmatprep.subr.mxu0 0.0
    %526 = vmatpush1.msra.mxu0 0.0
    %527 = vmatprep.subr.mxu0 0.0
    %528 = vmatpush1.msra.mxu0 0.0
    %529 = vmatprep.subr.mxu0 0.0
    %530 = vmatpush1.msra.mxu0 0.0
    %531 = vmatprep.subr.mxu0 0.0
    %532 = vmatpush1.msra.mxu0 0.0
    %533 = vmatprep.subr.mxu0 0.0
    %534 = vmatpush1.msra.mxu0 0.0
    %535 = vmatprep.subr.mxu0 0.0
    %536 = vmatpush1.msra.mxu0 %v498
    %537 = vmatprep.subr.mxu0 0.0
    %538 = vmatpush1.msra.mxu0 %v496
    %539 = vmatprep.subr.mxu0 0.0
    %540 = vmatpush2.msra.mxu0 0.0
    %541 = vmatprep.subr.mxu0 0.0
    %542 = vmatpush2.msra.mxu0 0.0
    %543 = vmatprep.subr.mxu0 0.0
    %544 = vmatpush2.msra.mxu0 0.0
    %545 = vmatprep.subr.mxu0 0.0
    %546 = vmatpush2.msra.mxu0 0.0
    %547 = vmatprep.subr.mxu0 0.0
    %548 = vmatpush2.msra.mxu0 0.0
    %549 = vmatprep.subr.mxu0 0.0
    %550 = vmatpush2.msra.mxu0 0.0
    %551 = vmatprep.subr.mxu0 0.0
    %552 = vmatpush2.msra.mxu0 0.0
    %553 = vmatprep.subr.mxu0 0.0
    %554 = vmatpush2.msra.mxu0 0.0
    %555 = vmatprep.subr.mxu0 0.0
    %556 = vmatpush2.msra.mxu0 0.0
    %557 = vmatprep.subr.mxu0 0.0
    %558 = vmatpush2.msra.mxu0 0.0
    %559 = vmatprep.subr.mxu0 0.0
    %560 = vmatpush2.msra.mxu0 0.0
    %561 = vmatprep.subr.mxu0 0.0
    %562 = vmatpush2.msra.mxu0 0.0
    %563 = vmatprep.subr.mxu0 0.0
    %564 = vmatpush2.msra.mxu0 0.0
    %565 = vmatprep.subr.mxu0 0.0
    %566 = vmatpush2.msra.mxu0 0.0
    %567 = vmatprep.subr.mxu0 0.0
    %568 = vmatpush2.msra.mxu0 0.0
    %569 = vmatprep.subr.mxu0 0.0
    %570 = vmatpush2.msra.mxu0 0.0
    %571 = vmatprep.mubr.f32.mxu0 0.0
    %572 = vmatmul.mubr.f32.gmra.mxu0 %v502
    %v573 = vpop.f32.mrf.mxu0
    %v574 = vadd.f32 0.0, %v573
    %v575 = vpop.f32.mrf.mxu0
    %576 = vmatprep.mubr.f32.mxu0 0.0
    %577 = vmatmul.mubr.f32.gmra.mxu0 %v505
    %v578 = vpop.f32.mrf.mxu0
    %v579 = vadd.f32 0.0, %v578
    %v580 = vpop.f32.mrf.mxu0
    %581 = vdwg.mxu0
    %v582 = vld [vmem:[%s3 + $0x20] sm:$0xff]
    %v583 = vld [vmem:[%s3 + $0x28] sm:$0xff]
    %v584 = vld [vmem:[%s3 + $0x30] sm:$0xff]
    %v585 = vld [vmem:[%s3 + $0x38] sm:$0xff]
    %v587 = vsel %vm52, %v574, 0
    %v590 = vsel %vm52, %v579, 0
    %592 = vmatprep.subr.mxu0 0.0
    %593 = vmatpush1.msra.mxu0 0.0
    %594 = vmatprep.subr.mxu0 0.0
    %595 = vmatpush1.msra.mxu0 0.0
    %596 = vmatprep.subr.mxu0 0.0
    %597 = vmatpush1.msra.mxu0 0.0
    %598 = vmatprep.subr.mxu0 0.0
    %599 = vmatpush1.msra.mxu0 0.0
    %600 = vmatprep.subr.mxu0 0.0
    %601 = vmatpush1.msra.mxu0 0.0
    %602 = vmatprep.subr.mxu0 0.0
    %603 = vmatpush1.msra.mxu0 0.0
    %604 = vmatprep.subr.mxu0 0.0
    %605 = vmatpush1.msra.mxu0 0.0
    %606 = vmatprep.subr.mxu0 0.0
    %607 = vmatpush1.msra.mxu0 0.0
    %608 = vmatprep.subr.mxu0 0.0
    %609 = vmatpush1.msra.mxu0 0.0
    %610 = vmatprep.subr.mxu0 0.0
    %611 = vmatpush1.msra.mxu0 0.0
    %612 = vmatprep.subr.mxu0 0.0
    %613 = vmatpush1.msra.mxu0 0.0
    %614 = vmatprep.subr.mxu0 0.0
    %615 = vmatpush1.msra.mxu0 0.0
    %616 = vmatprep.subr.mxu0 0.0
    %617 = vmatpush1.msra.mxu0 %v585
    %618 = vmatprep.subr.mxu0 0.0
    %619 = vmatpush1.msra.mxu0 %v584
    %620 = vmatprep.subr.mxu0 0.0
    %621 = vmatpush1.msra.mxu0 %v583
    %622 = vmatprep.subr.mxu0 0.0
    %623 = vmatpush1.msra.mxu0 %v582
    %624 = vmatprep.subr.mxu0 0.0
    %625 = vmatpush2.msra.mxu0 0.0
    %626 = vmatprep.subr.mxu0 0.0
    %627 = vmatpush2.msra.mxu0 0.0
    %628 = vmatprep.subr.mxu0 0.0
    %629 = vmatpush2.msra.mxu0 0.0
    %630 = vmatprep.subr.mxu0 0.0
    %631 = vmatpush2.msra.mxu0 0.0
    %632 = vmatprep.subr.mxu0 0.0
    %633 = vmatpush2.msra.mxu0 0.0
    %634 = vmatprep.subr.mxu0 0.0
    %635 = vmatpush2.msra.mxu0 0.0
    %636 = vmatprep.subr.mxu0 0.0
    %637 = vmatpush2.msra.mxu0 0.0
    %638 = vmatprep.subr.mxu0 0.0
    %639 = vmatpush2.msra.mxu0 0.0
    %640 = vmatprep.subr.mxu0 0.0
    %641 = vmatpush2.msra.mxu0 0.0
    %642 = vmatprep.subr.mxu0 0.0
    %643 = vmatpush2.msra.mxu0 0.0
    %644 = vmatprep.subr.mxu0 0.0
    %645 = vmatpush2.msra.mxu0 0.0
    %646 = vmatprep.subr.mxu0 0.0
    %647 = vmatpush2.msra.mxu0 0.0
    %648 = vmatprep.subr.mxu0 0.0
    %649 = vmatpush2.msra.mxu0 0.0
    %650 = vmatprep.subr.mxu0 0.0
    %651 = vmatpush2.msra.mxu0 0.0
    %652 = vmatprep.subr.mxu0 0.0
    %653 = vmatpush2.msra.mxu0 0.0
    %654 = vmatprep.subr.mxu0 0.0
    %655 = vmatpush2.msra.mxu0 0.0
    %656 = vmatprep.mubr.f32.mxu0 0.0
    %657 = vmatmul.mubr.f32.gmra.mxu0 %v587
    %v658 = vpop.f32.mrf.mxu0
    %v659 = vadd.f32 0.0, %v658
    %v660 = vpop.f32.mrf.mxu0
    %661 = vmatprep.mubr.f32.mxu0 0.0
    %662 = vmatmul.mubr.f32.gmra.mxu0 %v590
    %v663 = vpop.f32.mrf.mxu0
    %v664 = vadd.f32 0.0, %v663
    %v665 = vpop.f32.mrf.mxu0
    %666 = vdwg.mxu0
    %v668 = vsel %vm52, %v368, 0
    %v671 = vsel %vm52, %v373, 0
    %673 = vmatprep.subr.mxu0 0.0
    %674 = vmatpush1.msra.mxu0 0.0
    %675 = vmatprep.subr.mxu0 0.0
    %676 = vmatpush1.msra.mxu0 0.0
    %677 = vmatprep.subr.mxu0 0.0
    %678 = vmatpush1.msra.mxu0 0.0
    %679 = vmatprep.subr.mxu0 0.0
    %680 = vmatpush1.msra.mxu0 0.0
    %681 = vmatprep.subr.mxu0 0.0
    %682 = vmatpush1.msra.mxu0 0.0
    %683 = vmatprep.subr.mxu0 0.0
    %684 = vmatpush1.msra.mxu0 0.0
    %685 = vmatprep.subr.mxu0 0.0
    %686 = vmatpush1.msra.mxu0 0.0
    %687 = vmatprep.subr.mxu0 0.0
    %688 = vmatpush1.msra.mxu0 0.0
    %689 = vmatprep.subr.mxu0 0.0
    %690 = vmatpush1.msra.mxu0 0.0
    %691 = vmatprep.subr.mxu0 0.0
    %692 = vmatpush1.msra.mxu0 0.0
    %693 = vmatprep.subr.mxu0 0.0
    %694 = vmatpush1.msra.mxu0 0.0
    %695 = vmatprep.subr.mxu0 0.0
    %696 = vmatpush1.msra.mxu0 0.0
    %697 = vmatprep.subr.mxu0 0.0
    %698 = vmatpush1.msra.mxu0 %v379
    %699 = vmatprep.subr.mxu0 0.0
    %700 = vmatpush1.msra.mxu0 %v378
    %701 = vmatprep.subr.mxu0 0.0
    %702 = vmatpush1.msra.mxu0 %v377
    %703 = vmatprep.subr.mxu0 0.0
    %704 = vmatpush1.msra.mxu0 %v376
    %705 = vmatprep.subr.mxu0 0.0
    %706 = vmatpush2.msra.mxu0 0.0
    %707 = vmatprep.subr.mxu0 0.0
    %708 = vmatpush2.msra.mxu0 0.0
    %709 = vmatprep.subr.mxu0 0.0
    %710 = vmatpush2.msra.mxu0 0.0
    %711 = vmatprep.subr.mxu0 0.0
    %712 = vmatpush2.msra.mxu0 0.0
    %713 = vmatprep.subr.mxu0 0.0
    %714 = vmatpush2.msra.mxu0 0.0
    %715 = vmatprep.subr.mxu0 0.0
    %716 = vmatpush2.msra.mxu0 0.0
    %717 = vmatprep.subr.mxu0 0.0
    %718 = vmatpush2.msra.mxu0 0.0
    %719 = vmatprep.subr.mxu0 0.0
    %720 = vmatpush2.msra.mxu0 0.0
    %721 = vmatprep.subr.mxu0 0.0
    %722 = vmatpush2.msra.mxu0 0.0
    %723 = vmatprep.subr.mxu0 0.0
    %724 = vmatpush2.msra.mxu0 0.0
    %725 = vmatprep.subr.mxu0 0.0
    %726 = vmatpush2.msra.mxu0 0.0
    %727 = vmatprep.subr.mxu0 0.0
    %728 = vmatpush2.msra.mxu0 0.0
    %729 = vmatprep.subr.mxu0 0.0
    %730 = vmatpush2.msra.mxu0 0.0
    %731 = vmatprep.subr.mxu0 0.0
    %732 = vmatpush2.msra.mxu0 0.0
    %733 = vmatprep.subr.mxu0 0.0
    %734 = vmatpush2.msra.mxu0 0.0
    %735 = vmatprep.subr.mxu0 0.0
    %736 = vmatpush2.msra.mxu0 0.0
    %737 = vmatprep.mubr.f32.mxu0 0.0
    %738 = vmatmul.mubr.f32.gmra.mxu0 %v668
    %v739 = vpop.f32.mrf.mxu0
    %v740 = vadd.f32 %v659, %v739
    %v741 = vpop.f32.mrf.mxu0
    %742 = vmatprep.mubr.f32.mxu0 0.0
    %743 = vmatmul.mubr.f32.gmra.mxu0 %v671
    %v744 = vpop.f32.mrf.mxu0
    %v745 = vadd.f32 %v664, %v744
    %v746 = vpop.f32.mrf.mxu0
    %747 = vdwg.mxu0
    %v748 = vld [vmem:[%s1 + $0x2] sm:$0x1]
    %v749 = vlaneseq
    %v750 = vshrl.u32 %v749, 7
    %v751 = vsub.s32 0, %v750
    %v752 = vrot.slane %v748, %v751
    %v753 = vadd.f32 %v740, %v752
    %v754 = vadd.f32 %v745, %v752
    %v755 = vlaneseq
    %v756 = vshrl.u32 %v755, 7
    %v757 = vadd.s32 %v756, 8
    %vm758 = vcmp.ge.s32.totalorder %v756, 1
    %vm759 = vcmp.ge.s32.totalorder %v757, 1
    %vm760 = vcmp.ge.s32.totalorder %v756, 2
    %vm761 = vcmp.ge.s32.totalorder %v757, 2
    %vm762 = vcmp.ge.s32.totalorder %v756, 3
    %vm763 = vcmp.ge.s32.totalorder %v757, 3
    %v764 = vld [vmem:[%s4] sm:$0x1]
    %v765 = vld [vmem:[%s4 + $0x1] sm:$0x1]
    %v766 = vsel %vm52, %v753, 0.0
    %767 = vadd.xlane.f32.xlu0 %v766
    %v768 = vpop.xlane.xlu0 %767
    %v769 = vsel %vm52, %v754, 0.0
    %770 = vadd.xlane.f32.xlu0 %v769
    %v771 = vpop.xlane.xlu0 %770
    %v772 = vmul.f32 %v768, %v59
    %v773 = vmul.f32 %v771, %v59
    %v774 = vsub.f32 %v753, %v772
    %v775 = vsub.f32 %v754, %v773
    %v776 = vmul.f32 %v774, %v774
    %v777 = vmul.f32 %v775, %v775
    %v778 = vsel %vm52, %v776, 0.0
    %779 = vadd.xlane.f32.xlu0 %v778
    %v780 = vpop.xlane.xlu0 %779
    %v781 = vsel %vm52, %v777, 0.0
    %782 = vadd.xlane.f32.xlu0 %v781
    %v783 = vpop.xlane.xlu0 %782
    %v784 = vmul.f32 %v780, %v59
    %v785 = vmul.f32 %v783, %v59
    %v786 = vadd.f32 %v784, 1e-05
    %v787 = vadd.f32 %v785, 1e-05
    %v788 = vrsqrt.pop %v786
    %v789 = vrsqrt.pop %v787
    %v790 = vmul.f32 %v774, %v788
    %v791 = vmul.f32 %v775, %v789
    %v792 = vlaneseq
    %v793 = vshrl.u32 %v792, 7
    %v794 = vsub.s32 0, %v793
    %v795 = vrot.slane %v764, %v794
    %v796 = vmul.f32 %v790, %v795
    %v797 = vmul.f32 %v791, %v795
    %v798 = vlaneseq
    %v799 = vshrl.u32 %v798, 7
    %v800 = vsub.s32 0, %v799
    %v801 = vrot.slane %v765, %v800
    %v802 = vadd.f32 %v796, %v801
    %v803 = vadd.f32 %v797, %v801
    %v804 = vld [vmem:[%s5] sm:$0xff]
    %v805 = vld [vmem:[%s5 + $0x8] sm:$0xff]
    %v806 = vld [vmem:[%s5 + $0x10] sm:$0xff]
    %v807 = vld [vmem:[%s5 + $0x18] sm:$0xff]
    %v809 = vsel %vm52, %v802, 0
    %v812 = vsel %vm52, %v803, 0
    %814 = vmatprep.subr.mxu0 0.0
    %815 = vmatpush1.msra.mxu0 0.0
    %816 = vmatprep.subr.mxu0 0.0
    %817 = vmatpush1.msra.mxu0 0.0
    %818 = vmatprep.subr.mxu0 0.0
    %819 = vmatpush1.msra.mxu0 0.0
    %820 = vmatprep.subr.mxu0 0.0
    %821 = vmatpush1.msra.mxu0 0.0
    %822 = vmatprep.subr.mxu0 0.0
    %823 = vmatpush1.msra.mxu0 0.0
    %824 = vmatprep.subr.mxu0 0.0
    %825 = vmatpush1.msra.mxu0 0.0
    %826 = vmatprep.subr.mxu0 0.0
    %827 = vmatpush1.msra.mxu0 0.0
    %828 = vmatprep.subr.mxu0 0.0
    %829 = vmatpush1.msra.mxu0 0.0
    %830 = vmatprep.subr.mxu0 0.0
    %831 = vmatpush1.msra.mxu0 0.0
    %832 = vmatprep.subr.mxu0 0.0
    %833 = vmatpush1.msra.mxu0 0.0
    %834 = vmatprep.subr.mxu0 0.0
    %835 = vmatpush1.msra.mxu0 0.0
    %836 = vmatprep.subr.mxu0 0.0
    %837 = vmatpush1.msra.mxu0 0.0
    %838 = vmatprep.subr.mxu0 0.0
    %839 = vmatpush1.msra.mxu0 %v807
    %840 = vmatprep.subr.mxu0 0.0
    %841 = vmatpush1.msra.mxu0 %v806
    %842 = vmatprep.subr.mxu0 0.0
    %843 = vmatpush1.msra.mxu0 %v805
    %844 = vmatprep.subr.mxu0 0.0
    %845 = vmatpush1.msra.mxu0 %v804
    %846 = vmatprep.subr.mxu0 0.0
    %847 = vmatpush2.msra.mxu0 0.0
    %848 = vmatprep.subr.mxu0 0.0
    %849 = vmatpush2.msra.mxu0 0.0
    %850 = vmatprep.subr.mxu0 0.0
    %851 = vmatpush2.msra.mxu0 0.0
    %852 = vmatprep.subr.mxu0 0.0
    %853 = vmatpush2.msra.mxu0 0.0
    %854 = vmatprep.subr.mxu0 0.0
    %855 = vmatpush2.msra.mxu0 0.0
    %856 = vmatprep.subr.mxu0 0.0
    %857 = vmatpush2.msra.mxu0 0.0
    %858 = vmatprep.subr.mxu0 0.0
    %859 = vmatpush2.msra.mxu0 0.0
    %860 = vmatprep.subr.mxu0 0.0
    %861 = vmatpush2.msra.mxu0 0.0
    %862 = vmatprep.subr.mxu0 0.0
    %863 = vmatpush2.msra.mxu0 0.0
    %864 = vmatprep.subr.mxu0 0.0
    %865 = vmatpush2.msra.mxu0 0.0
    %866 = vmatprep.subr.mxu0 0.0
    %867 = vmatpush2.msra.mxu0 0.0
    %868 = vmatprep.subr.mxu0 0.0
    %869 = vmatpush2.msra.mxu0 0.0
    %870 = vmatprep.subr.mxu0 0.0
    %871 = vmatpush2.msra.mxu0 0.0
    %872 = vmatprep.subr.mxu0 0.0
    %873 = vmatpush2.msra.mxu0 0.0
    %874 = vmatprep.subr.mxu0 0.0
    %875 = vmatpush2.msra.mxu0 0.0
    %876 = vmatprep.subr.mxu0 0.0
    %877 = vmatpush2.msra.mxu0 0.0
    %878 = vmatprep.mubr.f32.mxu0 0.0
    %879 = vmatmul.mubr.f32.gmra.mxu0 %v809
    %v880 = vpop.f32.mrf.mxu0
    %v881 = vadd.f32 0.0, %v880
    %v882 = vpop.f32.mrf.mxu0
    %883 = vmatprep.mubr.f32.mxu0 0.0
    %884 = vmatmul.mubr.f32.gmra.mxu0 %v812
    %v885 = vpop.f32.mrf.mxu0
    %v886 = vadd.f32 0.0, %v885
    %v887 = vpop.f32.mrf.mxu0
    %888 = vdwg.mxu0
    %v889 = vld [vmem:[%s7] sm:$0x1]
    %v890 = vlaneseq
    %v891 = vshrl.u32 %v890, 7
    %v892 = vsub.s32 0, %v891
    %v893 = vrot.slane %v889, %v892
    %v894 = vadd.f32 %v893, 0.0
    %v895 = vrot.slane %v881, 5
    %v896 = vrot.slane %v886, 5
    %vm897 = vcmp.lt.s32.totalorder %v756, 3
    %v898 = vsel %vm897, %v895, %v896
    %v899 = vsel %vm897, %v896, %v895
    %v900 = vsel %vm762, 1, 0
    %v901 = vsel %vm763, 1, 0
    %vm902 = vcmp.eq.s32.totalorder %v900, 1
    %vm903 = vcmp.eq.s32.totalorder %v901, 1
    %v904 = vsel %vm902, %v899, 0.0
    %v905 = vsel %vm903, %v898, 0.0
    %v906 = vld [vmem:[%s6] sm:$0x1]
    %v907 = vlaneseq
    %v908 = vshrl.u32 %v907, 7
    %v909 = vsub.s32 0, %v908
    %v910 = vrot.slane %v906, %v909
    %v911 = vmul.f32 %v910, %v904
    %v912 = vmul.f32 %v910, %v905
    %v913 = vadd.f32 %v894, %v911
    %v914 = vadd.f32 %v894, %v912
    %v915 = vrot.slane %v881, 6
    %v916 = vrot.slane %v886, 6
    %vm917 = vcmp.lt.s32.totalorder %v756, 2
    %v918 = vsel %vm917, %v915, %v916
    %v919 = vsel %vm917, %v916, %v915
    %v920 = vsel %vm760, 1, 0
    %v921 = vsel %vm761, 1, 0
    %vm922 = vcmp.eq.s32.totalorder %v920, 1
    %vm923 = vcmp.eq.s32.totalorder %v921, 1
    %v924 = vsel %vm922, %v919, 0.0
    %v925 = vsel %vm923, %v918, 0.0
    %v926 = vld [vmem:[%s6 + $0x1] sm:$0x1]
    %v927 = vlaneseq
    %v928 = vshrl.u32 %v927, 7
    %v929 = vsub.s32 0, %v928
    %v930 = vrot.slane %v926, %v929
    %v931 = vmul.f32 %v930, %v924
    %v932 = vmul.f32 %v930, %v925
    %v933 = vadd.f32 %v913, %v931
    %v934 = vadd.f32 %v914, %v932
    %v935 = vrot.slane %v881, 7
    %v936 = vrot.slane %v886, 7
    %vm937 = vcmp.lt.s32.totalorder %v756, 1
    %v938 = vsel %vm937, %v935, %v936
    %v939 = vsel %vm937, %v936, %v935
    %v940 = vsel %vm758, 1, 0
    %v941 = vsel %vm759, 1, 0
    %vm942 = vcmp.eq.s32.totalorder %v940, 1
    %vm943 = vcmp.eq.s32.totalorder %v941, 1
    %v944 = vsel %vm942, %v939, 0.0
    %v945 = vsel %vm943, %v938, 0.0
    %v946 = vld [vmem:[%s6 + $0x2] sm:$0x1]
    %v947 = vlaneseq
    %v948 = vshrl.u32 %v947, 7
    %v949 = vsub.s32 0, %v948
    %v950 = vrot.slane %v946, %v949
    %v951 = vmul.f32 %v950, %v944
    %v952 = vmul.f32 %v950, %v945
    %v953 = vadd.f32 %v933, %v951
    %v954 = vadd.f32 %v934, %v952
    %v955 = vld [vmem:[%s6 + $0x3] sm:$0x1]
    %v956 = vlaneseq
    %v957 = vshrl.u32 %v956, 7
    %v958 = vsub.s32 0, %v957
    %v959 = vrot.slane %v955, %v958
    %v960 = vmul.f32 %v959, %v881
    %v961 = vmul.f32 %v959, %v886
    %v962 = vadd.f32 %v953, %v960
    %v963 = vadd.f32 %v954, %v961
    %v964 = vxor.u32 %v962, 2147483648
    %v965 = vxor.u32 %v963, 2147483648
    %v966 = vmul.f32 %v964, 1.442695
    %v967 = vpow.pop %v966
    %v968 = vmul.f32 %v965, 1.442695
    %v969 = vpow.pop %v968
    %v970 = vadd.f32 %v967, 1.0
    %v971 = vadd.f32 %v969, 1.0
    %v972 = vrcp.pop %v970
    %v973 = vmul.f32 1.0, %v972
    %v974 = vrcp.pop %v971
    %v975 = vmul.f32 1.0, %v974
    %v976 = vmul.f32 %v962, %v973
    %v977 = vmul.f32 %v963, %v975
    %v978 = vld [vmem:[%s8] sm:$0xff]
    %v979 = vld [vmem:[%s8 + $0x8] sm:$0xff]
    %v980 = vld [vmem:[%s8 + $0x10] sm:$0xff]
    %v981 = vld [vmem:[%s8 + $0x18] sm:$0xff]
    %v982 = vld [vmem:[%s8 + $0x20] sm:$0xff]
    %v983 = vld [vmem:[%s8 + $0x28] sm:$0xff]
    %v984 = vld [vmem:[%s8 + $0x30] sm:$0xff]
    %v985 = vld [vmem:[%s8 + $0x38] sm:$0xff]
    %vm986 = vcmask 523264
    %v988 = vsel %vm986, %v976, 0
    %v991 = vsel %vm986, %v977, 0
    %993 = vmatprep.subr.mxu0 0.0
    %994 = vmatpush1.msra.mxu0 0.0
    %995 = vmatprep.subr.mxu0 0.0
    %996 = vmatpush1.msra.mxu0 0.0
    %997 = vmatprep.subr.mxu0 0.0
    %998 = vmatpush1.msra.mxu0 0.0
    %999 = vmatprep.subr.mxu0 0.0
    %1000 = vmatpush1.msra.mxu0 0.0
    %1001 = vmatprep.subr.mxu0 0.0
    %1002 = vmatpush1.msra.mxu0 0.0
    %1003 = vmatprep.subr.mxu0 0.0
    %1004 = vmatpush1.msra.mxu0 0.0
    %1005 = vmatprep.subr.mxu0 0.0
    %1006 = vmatpush1.msra.mxu0 0.0
    %1007 = vmatprep.subr.mxu0 0.0
    %1008 = vmatpush1.msra.mxu0 0.0
    %1009 = vmatprep.subr.mxu0 0.0
    %1010 = vmatpush1.msra.mxu0 %v985
    %1011 = vmatprep.subr.mxu0 0.0
    %1012 = vmatpush1.msra.mxu0 %v984
    %1013 = vmatprep.subr.mxu0 0.0
    %1014 = vmatpush1.msra.mxu0 %v983
    %1015 = vmatprep.subr.mxu0 0.0
    %1016 = vmatpush1.msra.mxu0 %v982
    %1017 = vmatprep.subr.mxu0 0.0
    %1018 = vmatpush1.msra.mxu0 %v981
    %1019 = vmatprep.subr.mxu0 0.0
    %1020 = vmatpush1.msra.mxu0 %v980
    %1021 = vmatprep.subr.mxu0 0.0
    %1022 = vmatpush1.msra.mxu0 %v979
    %1023 = vmatprep.subr.mxu0 0.0
    %1024 = vmatpush1.msra.mxu0 %v978
    %1025 = vmatprep.subr.mxu0 0.0
    %1026 = vmatpush2.msra.mxu0 0.0
    %1027 = vmatprep.subr.mxu0 0.0
    %1028 = vmatpush2.msra.mxu0 0.0
    %1029 = vmatprep.subr.mxu0 0.0
    %1030 = vmatpush2.msra.mxu0 0.0
    %1031 = vmatprep.subr.mxu0 0.0
    %1032 = vmatpush2.msra.mxu0 0.0
    %1033 = vmatprep.subr.mxu0 0.0
    %1034 = vmatpush2.msra.mxu0 0.0
    %1035 = vmatprep.subr.mxu0 0.0
    %1036 = vmatpush2.msra.mxu0 0.0
    %1037 = vmatprep.subr.mxu0 0.0
    %1038 = vmatpush2.msra.mxu0 0.0
    %1039 = vmatprep.subr.mxu0 0.0
    %1040 = vmatpush2.msra.mxu0 0.0
    %1041 = vmatprep.subr.mxu0 0.0
    %1042 = vmatpush2.msra.mxu0 0.0
    %1043 = vmatprep.subr.mxu0 0.0
    %1044 = vmatpush2.msra.mxu0 0.0
    %1045 = vmatprep.subr.mxu0 0.0
    %1046 = vmatpush2.msra.mxu0 0.0
    %1047 = vmatprep.subr.mxu0 0.0
    %1048 = vmatpush2.msra.mxu0 0.0
    %1049 = vmatprep.subr.mxu0 0.0
    %1050 = vmatpush2.msra.mxu0 0.0
    %1051 = vmatprep.subr.mxu0 0.0
    %1052 = vmatpush2.msra.mxu0 0.0
    %1053 = vmatprep.subr.mxu0 0.0
    %1054 = vmatpush2.msra.mxu0 0.0
    %1055 = vmatprep.subr.mxu0 0.0
    %1056 = vmatpush2.msra.mxu0 0.0
    %1057 = vmatprep.mubr.f32.mxu0 0.0
    %1058 = vmatmul.mubr.f32.gmra.mxu0 %v988
    %v1059 = vpop.f32.mrf.mxu0
    %v1060 = vadd.f32 0.0, %v1059
    %v1061 = vpop.f32.mrf.mxu0
    %1062 = vmatprep.mubr.f32.mxu0 0.0
    %1063 = vmatmul.mubr.f32.gmra.mxu0 %v991
    %v1064 = vpop.f32.mrf.mxu0
    %v1065 = vadd.f32 0.0, %v1064
    %v1066 = vpop.f32.mrf.mxu0
    %1067 = vdwg.mxu0
    %1070 = vrot.lane.b32.xlu0 %v1060, 126
    %v1071 = vpop.permute.xlu0 %1070
    %1072 = vrot.lane.b32.xlu0 %v1065, 126
    %v1073 = vpop.permute.xlu0 %1072
    %1076 = vst.msk [vmem:[#allocation5] sm:$0xff] %vm272, %v1071
    %1077 = vst.msk [vmem:[#allocation5 + $0x8] sm:$0xff] %vm272, %v1073
    %v1078 = vld [vmem:[%s9] sm:$0xff]
    %v1079 = vld [vmem:[%s9 + $0x8] sm:$0xff]
    %v1081 = vsel %vm986, %v1078, 0
    %v1084 = vsel %vm986, %v1079, 0
    %1086 = vmatprep.subr.mxu0 0.0
    %1087 = vmatpush1.xpose.msra.mxu0 0.0
    %1088 = vmatprep.subr.mxu0 0.0
    %1089 = vmatpush1.xpose.msra.mxu0 0.0
    %1090 = vmatprep.subr.mxu0 0.0
    %1091 = vmatpush1.xpose.msra.mxu0 0.0
    %1092 = vmatprep.subr.mxu0 0.0
    %1093 = vmatpush1.xpose.msra.mxu0 0.0
    %1094 = vmatprep.subr.mxu0 0.0
    %1095 = vmatpush1.xpose.msra.mxu0 0.0
    %1096 = vmatprep.subr.mxu0 0.0
    %1097 = vmatpush1.xpose.msra.mxu0 0.0
    %1098 = vmatprep.subr.mxu0 0.0
    %1099 = vmatpush1.xpose.msra.mxu0 0.0
    %1100 = vmatprep.subr.mxu0 0.0
    %1101 = vmatpush1.xpose.msra.mxu0 0.0
    %1102 = vmatprep.subr.mxu0 0.0
    %1103 = vmatpush1.xpose.msra.mxu0 0.0
    %1104 = vmatprep.subr.mxu0 0.0
    %1105 = vmatpush1.xpose.msra.mxu0 0.0
    %1106 = vmatprep.subr.mxu0 0.0
    %1107 = vmatpush1.xpose.msra.mxu0 0.0
    %1108 = vmatprep.subr.mxu0 0.0
    %1109 = vmatpush1.xpose.msra.mxu0 0.0
    %1110 = vmatprep.subr.mxu0 0.0
    %1111 = vmatpush1.xpose.msra.mxu0 0.0
    %1112 = vmatprep.subr.mxu0 0.0
    %1113 = vmatpush1.xpose.msra.mxu0 0.0
    %1114 = vmatprep.subr.mxu0 0.0
    %1115 = vmatpush1.xpose.msra.mxu0 %v991
    %1116 = vmatprep.subr.mxu0 0.0
    %1117 = vmatpush1.xpose.msra.mxu0 %v988
    %1118 = vmatprep.subr.mxu0 0.0
    %1119 = vmatpush2.xpose.msra.mxu0 0.0
    %1120 = vmatprep.subr.mxu0 0.0
    %1121 = vmatpush2.xpose.msra.mxu0 0.0
    %1122 = vmatprep.subr.mxu0 0.0
    %1123 = vmatpush2.xpose.msra.mxu0 0.0
    %1124 = vmatprep.subr.mxu0 0.0
    %1125 = vmatpush2.xpose.msra.mxu0 0.0
    %1126 = vmatprep.subr.mxu0 0.0
    %1127 = vmatpush2.xpose.msra.mxu0 0.0
    %1128 = vmatprep.subr.mxu0 0.0
    %1129 = vmatpush2.xpose.msra.mxu0 0.0
    %1130 = vmatprep.subr.mxu0 0.0
    %1131 = vmatpush2.xpose.msra.mxu0 0.0
    %1132 = vmatprep.subr.mxu0 0.0
    %1133 = vmatpush2.xpose.msra.mxu0 0.0
    %1134 = vmatprep.subr.mxu0 0.0
    %1135 = vmatpush2.xpose.msra.mxu0 0.0
    %1136 = vmatprep.subr.mxu0 0.0
    %1137 = vmatpush2.xpose.msra.mxu0 0.0
    %1138 = vmatprep.subr.mxu0 0.0
    %1139 = vmatpush2.xpose.msra.mxu0 0.0
    %1140 = vmatprep.subr.mxu0 0.0
    %1141 = vmatpush2.xpose.msra.mxu0 0.0
    %1142 = vmatprep.subr.mxu0 0.0
    %1143 = vmatpush2.xpose.msra.mxu0 0.0
    %1144 = vmatprep.subr.mxu0 0.0
    %1145 = vmatpush2.xpose.msra.mxu0 0.0
    %1146 = vmatprep.subr.mxu0 0.0
    %1147 = vmatpush2.xpose.msra.mxu0 0.0
    %1148 = vmatprep.subr.mxu0 0.0
    %1149 = vmatpush2.xpose.msra.mxu0 0.0
    %1150 = vmatprep.mubr.f32.mxu0 0.0
    %1151 = vmatmul.mubr.f32.gmra.mxu0 %v1081
    %v1152 = vpop.f32.mrf.mxu0
    %v1153 = vadd.f32 0.0, %v1152
    %v1154 = vpop.f32.mrf.mxu0
    %1155 = vmatprep.mubr.f32.mxu0 0.0
    %1156 = vmatmul.mubr.f32.gmra.mxu0 %v1084
    %v1157 = vpop.f32.mrf.mxu0
    %v1158 = vadd.f32 0.0, %v1157
    %v1159 = vpop.f32.mrf.mxu0
    %1160 = vdwg.mxu0
    %1161 = vst.msk [vmem:[#allocation4] sm:$0xff] %vm272, %v1153
    %1162 = vst.msk [vmem:[#allocation4 + $0x8] sm:$0xff] %vm272, %v1158
    %v1163 = vld [vmem:[%s10] sm:$0x3]
    %v1164 = vld [vmem:[%s7 + $0x1] sm:$0x1]
    %v1165 = vlaneseq
    %v1166 = vshrl.u32 %v1165, 7
    %v1167 = vsub.s32 0, %v1166
    %v1168 = vrot.slane %v1164, %v1167
    %vm1169 = vcmask 15360
    %v1170 = vsel %vm1169, %v1060, 0
    %v1172 = vsel %vm1169, %v1065, 0
    %vm1174 = vcmask 1041408
    %v1176 = vsel %vm1174, %v1163, 0
    %1178 = vmatprep.subr.mxu0 0.0
    %1179 = vmatpush1.msra.mxu0 0.0
    %1180 = vmatprep.subr.mxu0 0.0
    %1181 = vmatpush1.msra.mxu0 0.0
    %1182 = vmatprep.subr.mxu0 0.0
    %1183 = vmatpush1.msra.mxu0 0.0
    %1184 = vmatprep.subr.mxu0 0.0
    %1185 = vmatpush1.msra.mxu0 0.0
    %1186 = vmatprep.subr.mxu0 0.0
    %1187 = vmatpush1.msra.mxu0 0.0
    %1188 = vmatprep.subr.mxu0 0.0
    %1189 = vmatpush1.msra.mxu0 0.0
    %1190 = vmatprep.subr.mxu0 0.0
    %1191 = vmatpush1.msra.mxu0 0.0
    %1192 = vmatprep.subr.mxu0 0.0
    %1193 = vmatpush1.msra.mxu0 0.0
    %1194 = vmatprep.subr.mxu0 0.0
    %1195 = vmatpush1.msra.mxu0 0.0
    %1196 = vmatprep.subr.mxu0 0.0
    %1197 = vmatpush1.msra.mxu0 0.0
    %1198 = vmatprep.subr.mxu0 0.0
    %1199 = vmatpush1.msra.mxu0 0.0
    %1200 = vmatprep.subr.mxu0 0.0
    %1201 = vmatpush1.msra.mxu0 0.0
    %1202 = vmatprep.subr.mxu0 0.0
    %1203 = vmatpush1.msra.mxu0 0.0
    %1204 = vmatprep.subr.mxu0 0.0
    %1205 = vmatpush1.msra.mxu0 0.0
    %1206 = vmatprep.subr.mxu0 0.0
    %1207 = vmatpush1.msra.mxu0 0.0
    %1208 = vmatprep.subr.mxu0 0.0
    %1209 = vmatpush1.msra.mxu0 %v1176
    %1210 = vmatprep.subr.mxu0 0.0
    %1211 = vmatpush2.msra.mxu0 0.0
    %1212 = vmatprep.subr.mxu0 0.0
    %1213 = vmatpush2.msra.mxu0 0.0
    %1214 = vmatprep.subr.mxu0 0.0
    %1215 = vmatpush2.msra.mxu0 0.0
    %1216 = vmatprep.subr.mxu0 0.0
    %1217 = vmatpush2.msra.mxu0 0.0
    %1218 = vmatprep.subr.mxu0 0.0
    %1219 = vmatpush2.msra.mxu0 0.0
    %1220 = vmatprep.subr.mxu0 0.0
    %1221 = vmatpush2.msra.mxu0 0.0
    %1222 = vmatprep.subr.mxu0 0.0
    %1223 = vmatpush2.msra.mxu0 0.0
    %1224 = vmatprep.subr.mxu0 0.0
    %1225 = vmatpush2.msra.mxu0 0.0
    %1226 = vmatprep.subr.mxu0 0.0
    %1227 = vmatpush2.msra.mxu0 0.0
    %1228 = vmatprep.subr.mxu0 0.0
    %1229 = vmatpush2.msra.mxu0 0.0
    %1230 = vmatprep.subr.mxu0 0.0
    %1231 = vmatpush2.msra.mxu0 0.0
    %1232 = vmatprep.subr.mxu0 0.0
    %1233 = vmatpush2.msra.mxu0 0.0
    %1234 = vmatprep.subr.mxu0 0.0
    %1235 = vmatpush2.msra.mxu0 0.0
    %1236 = vmatprep.subr.mxu0 0.0
    %1237 = vmatpush2.msra.mxu0 0.0
    %1238 = vmatprep.subr.mxu0 0.0
    %1239 = vmatpush2.msra.mxu0 0.0
    %1240 = vmatprep.subr.mxu0 0.0
    %1241 = vmatpush2.msra.mxu0 0.0
    %1242 = vmatprep.mubr.f32.mxu0 0.0
    %1243 = vmatmul.mubr.f32.gmra.mxu0 %v1170
    %v1244 = vpop.f32.mrf.mxu0
    %v1245 = vadd.f32 %v1168, %v1244
    %v1246 = vpop.f32.mrf.mxu0
    %1247 = vmatprep.mubr.f32.mxu0 0.0
    %1248 = vmatmul.mubr.f32.gmra.mxu0 %v1172
    %v1249 = vpop.f32.mrf.mxu0
    %v1250 = vadd.f32 %v1168, %v1249
    %v1251 = vpop.f32.mrf.mxu0
    %1252 = vdwg.mxu0
    %v1253 = vmax.f32 %v1245, 0.0
    %v1254 = vmax.f32 %v1250, 0.0
    %v1255 = vand.u32 2147483647, %v1245
    %v1256 = vand.u32 2147483647, %v1250
    %v1257 = vsub.f32 0.0, %v1255
    %v1258 = vsub.f32 0.0, %v1256
    %v1259 = vmul.f32 %v1257, 1.442695
    %v1260 = vpow.pop %v1259
    %v1261 = vmul.f32 %v1258, 1.442695
    %v1262 = vpow.pop %v1261
    %v1263 = vadd.f32 %v1260, 1.0
    %v1264 = vlog2.pop %v1263
    %v1265 = vmul.f32 %v1264, 0.6931472
    %v1266 = vmul.f32 -0.5, %v1260
    %v1267 = vadd.f32 %v1266, 1.0
    %v1268 = vmul.f32 %v1267, %v1260
    %v1269 = vand.u32 2147483647, %v1260
    %vm1270 = vcmp.lt.f32.partialorder %v1269, 0.0004427343
    %v1271 = vsel %vm1270, %v1268, %v1265
    %v1272 = vadd.f32 %v1262, 1.0
    %v1273 = vlog2.pop %v1272
    %v1274 = vmul.f32 %v1273, 0.6931472
    %v1275 = vmul.f32 -0.5, %v1262
    %v1276 = vadd.f32 %v1275, 1.0
    %v1277 = vmul.f32 %v1276, %v1262
    %v1278 = vand.u32 2147483647, %v1262
    %vm1279 = vcmp.lt.f32.partialorder %v1278, 0.0004427343
    %v1280 = vsel %vm1279, %v1277, %v1274
    %v1281 = vadd.f32 %v1253, %v1271
    %v1282 = vadd.f32 %v1254, %v1280
    %1283 = vst.msk [vmem:[#allocation3] sm:$0xff] %vm986, %v1281
    %1284 = vst.msk [vmem:[#allocation3 + $0x8] sm:$0xff] %vm986, %v1282
    %v1285 = vmul.f32 %v1281, %v976
    %v1286 = vmul.f32 %v1282, %v977
    %1287 = vst.msk [vmem:[#allocation2] sm:$0xff] %vm986, %v1285
    %1288 = vst.msk [vmem:[#allocation2 + $0x8] sm:$0xff] %vm986, %v1286
    %v1289 = vld [vmem:[%s11] sm:$0xff]
    %v1290 = vld [vmem:[%s11 + $0x8] sm:$0xff]
    %v1291 = vmul.f32 %v1289, 1.442695
    %v1292 = vpow.pop %v1291
    %v1293 = vmul.f32 %v1290, 1.442695
    %v1294 = vpow.pop %v1293
    %v1295 = vsub.f32 0.0, %v1292
    %v1296 = vsub.f32 0.0, %v1294
    %v1297 = vld [vmem:[#allocation3] sm:$0x1]
    %v1298 = vlaneseq
    %v1299 = vshrl.u32 %v1298, 7
    %v1300 = vsub.s32 0, %v1299
    %v1301 = vrot.slane %v1297, %v1300
    %v1302 = vmul.f32 %v1295, %v1301
    %v1303 = vmul.f32 %v1296, %v1301
    %v1304 = vmul.f32 %v1302, 1.442695
    %v1305 = vpow.pop %v1304
    %v1306 = vmul.f32 %v1303, 1.442695
    %v1307 = vpow.pop %v1306
    %v1308 = vmul.f32 %v1305, 0.0
    %v1309 = vmul.f32 %v1307, 0.0
    %v1310 = vld [vmem:[#allocation4] sm:$0xff]
    %v1311 = vld [vmem:[#allocation4 + $0x8] sm:$0xff]
    %v1312 = vld [vmem:[#allocation2] sm:$0x1]
    %1314 = vset.pattern.permute.xlu0 0
    %1315 = vperm.xlu0 %1314, %v1310
    %v1316 = vpop.permute.xlu0 %1315
    %1319 = vset.pattern.permute.xlu0 0
    %1320 = vperm.xlu0 %1319, %v1311
    %v1321 = vpop.permute.xlu0 %1320
    %v1323 = vlaneseq
    %v1324 = vshrl.u32 %v1323, 7
    %v1325 = vsub.s32 0, %v1324
    %v1326 = vrot.slane %v1312, %v1325
    %v1327 = vmul.f32 %v1316, %v1326
    %v1328 = vmul.f32 %v1321, %v1326
    %v1329 = vadd.f32 %v1308, %v1327
    %v1330 = vadd.f32 %v1309, %v1328
    %v1331 = vld [vmem:[#allocation5] sm:$0x1]
    %v1333 = vsel %vm272, %v1331, 0
    %1335 = vmatprep.subr.mxu0 0.0
    %1336 = vmatpush1.msra.mxu0 0.0
    %1337 = vmatprep.subr.mxu0 0.0
    %1338 = vmatpush1.msra.mxu0 0.0
    %1339 = vmatprep.subr.mxu0 0.0
    %1340 = vmatpush1.msra.mxu0 0.0
    %1341 = vmatprep.subr.mxu0 0.0
    %1342 = vmatpush1.msra.mxu0 0.0
    %1343 = vmatprep.subr.mxu0 0.0
    %1344 = vmatpush1.msra.mxu0 0.0
    %1345 = vmatprep.subr.mxu0 0.0
    %1346 = vmatpush1.msra.mxu0 0.0
    %1347 = vmatprep.subr.mxu0 0.0
    %1348 = vmatpush1.msra.mxu0 0.0
    %1349 = vmatprep.subr.mxu0 0.0
    %1350 = vmatpush1.msra.mxu0 0.0
    %1351 = vmatprep.subr.mxu0 0.0
    %1352 = vmatpush1.msra.mxu0 0.0
    %1353 = vmatprep.subr.mxu0 0.0
    %1354 = vmatpush1.msra.mxu0 0.0
    %1355 = vmatprep.subr.mxu0 0.0
    %1356 = vmatpush1.msra.mxu0 0.0
    %1357 = vmatprep.subr.mxu0 0.0
    %1358 = vmatpush1.msra.mxu0 0.0
    %1359 = vmatprep.subr.mxu0 0.0
    %1360 = vmatpush1.msra.mxu0 0.0
    %1361 = vmatprep.subr.mxu0 0.0
    %1362 = vmatpush1.msra.mxu0 0.0
    %1363 = vmatprep.subr.mxu0 0.0
    %1364 = vmatpush1.msra.mxu0 %v1330
    %1365 = vmatprep.subr.mxu0 0.0
    %1366 = vmatpush1.msra.mxu0 %v1329
    %1367 = vmatprep.subr.mxu0 0.0
    %1368 = vmatpush2.msra.mxu0 0.0
    %1369 = vmatprep.subr.mxu0 0.0
    %1370 = vmatpush2.msra.mxu0 0.0
    %1371 = vmatprep.subr.mxu0 0.0
    %1372 = vmatpush2.msra.mxu0 0.0
    %1373 = vmatprep.subr.mxu0 0.0
    %1374 = vmatpush2.msra.mxu0 0.0
    %1375 = vmatprep.subr.mxu0 0.0
    %1376 = vmatpush2.msra.mxu0 0.0
    %1377 = vmatprep.subr.mxu0 0.0
    %1378 = vmatpush2.msra.mxu0 0.0
    %1379 = vmatprep.subr.mxu0 0.0
    %1380 = vmatpush2.msra.mxu0 0.0
    %1381 = vmatprep.subr.mxu0 0.0
    %1382 = vmatpush2.msra.mxu0 0.0
    %1383 = vmatprep.subr.mxu0 0.0
    %1384 = vmatpush2.msra.mxu0 0.0
    %1385 = vmatprep.subr.mxu0 0.0
    %1386 = vmatpush2.msra.mxu0 0.0
    %1387 = vmatprep.subr.mxu0 0.0
    %1388 = vmatpush2.msra.mxu0 0.0
    %1389 = vmatprep.subr.mxu0 0.0
    %1390 = vmatpush2.msra.mxu0 0.0
    %1391 = vmatprep.subr.mxu0 0.0
    %1392 = vmatpush2.msra.mxu0 0.0
    %1393 = vmatprep.subr.mxu0 0.0
    %1394 = vmatpush2.msra.mxu0 0.0
    %1395 = vmatprep.subr.mxu0 0.0
    %1396 = vmatpush2.msra.mxu0 0.0
    %1397 = vmatprep.subr.mxu0 0.0
    %1398 = vmatpush2.msra.mxu0 0.0
    %1399 = vmatprep.mubr.f32.mxu0 0.0
    %1400 = vmatmul.mubr.f32.gmra.mxu0 %v1333
    %v1401 = vpop.f32.mrf.mxu0
    %v1402 = vadd.f32 0.0, %v1401
    %v1403 = vpop.f32.mrf.mxu0
    %1404 = vdwg.mxu0
    %vm1405 = vcmask 516096
    %1406 = vst.msk [vmem:[#allocation6] sm:$0x1] %vm1405, %v1402
    %v1407 = vld [vmem:[#allocation3 + $0x1] sm:$0x1]
    %v1408 = vlaneseq
    %v1409 = vshrl.u32 %v1408, 7
    %v1410 = vsub.s32 0, %v1409
    %v1411 = vrot.slane %v1407, %v1410
    %v1412 = vmul.f32 %v1295, %v1411
    %v1413 = vmul.f32 %v1296, %v1411
    %v1414 = vmul.f32 %v1412, 1.442695
    %v1415 = vpow.pop %v1414
    %v1416 = vmul.f32 %v1413, 1.442695
    %v1417 = vpow.pop %v1416
    %v1418 = vmul.f32 %v1415, %v1329
    %v1419 = vmul.f32 %v1417, %v1330
    %v1420 = vld [vmem:[#allocation4] sm:$0xff]
    %v1421 = vld [vmem:[#allocation4 + $0x8] sm:$0xff]
    %v1422 = vld [vmem:[#allocation2 + $0x1] sm:$0x1]
    %1424 = vset.pattern.permute.xlu0 1
    %1425 = vperm.xlu0 %1424, %v1420
    %v1426 = vpop.permute.xlu0 %1425
    %1429 = vset.pattern.permute.xlu0 1
    %1430 = vperm.xlu0 %1429, %v1421
    %v1431 = vpop.permute.xlu0 %1430
    %v1433 = vlaneseq
    %v1434 = vshrl.u32 %v1433, 7
    %v1435 = vsub.s32 0, %v1434
    %v1436 = vrot.slane %v1422, %v1435
    %v1437 = vmul.f32 %v1426, %v1436
    %v1438 = vmul.f32 %v1431, %v1436
    %v1439 = vadd.f32 %v1418, %v1437
    %v1440 = vadd.f32 %v1419, %v1438
    %v1441 = vld [vmem:[#allocation5 + $0x1] sm:$0x1]
    %v1443 = vsel %vm272, %v1441, 0
    %1445 = vmatprep.subr.mxu0 0.0
    %1446 = vmatpush1.msra.mxu0 0.0
    %1447 = vmatprep.subr.mxu0 0.0
    %1448 = vmatpush1.msra.mxu0 0.0
    %1449 = vmatprep.subr.mxu0 0.0
    %1450 = vmatpush1.msra.mxu0 0.0
    %1451 = vmatprep.subr.mxu0 0.0
    %1452 = vmatpush1.msra.mxu0 0.0
    %1453 = vmatprep.subr.mxu0 0.0
    %1454 = vmatpush1.msra.mxu0 0.0
    %1455 = vmatprep.subr.mxu0 0.0
    %1456 = vmatpush1.msra.mxu0 0.0
    %1457 = vmatprep.subr.mxu0 0.0
    %1458 = vmatpush1.msra.mxu0 0.0
    %1459 = vmatprep.subr.mxu0 0.0
    %1460 = vmatpush1.msra.mxu0 0.0
    %1461 = vmatprep.subr.mxu0 0.0
    %1462 = vmatpush1.msra.mxu0 0.0
    %1463 = vmatprep.subr.mxu0 0.0
    %1464 = vmatpush1.msra.mxu0 0.0
    %1465 = vmatprep.subr.mxu0 0.0
    %1466 = vmatpush1.msra.mxu0 0.0
    %1467 = vmatprep.subr.mxu0 0.0
    %1468 = vmatpush1.msra.mxu0 0.0
    %1469 = vmatprep.subr.mxu0 0.0
    %1470 = vmatpush1.msra.mxu0 0.0
    %1471 = vmatprep.subr.mxu0 0.0
    %1472 = vmatpush1.msra.mxu0 0.0
    %1473 = vmatprep.subr.mxu0 0.0
    %1474 = vmatpush1.msra.mxu0 %v1440
    %1475 = vmatprep.subr.mxu0 0.0
    %1476 = vmatpush1.msra.mxu0 %v1439
    %1477 = vmatprep.subr.mxu0 0.0
    %1478 = vmatpush2.msra.mxu0 0.0
    %1479 = vmatprep.subr.mxu0 0.0
    %1480 = vmatpush2.msra.mxu0 0.0
    %1481 = vmatprep.subr.mxu0 0.0
    %1482 = vmatpush2.msra.mxu0 0.0
    %1483 = vmatprep.subr.mxu0 0.0
    %1484 = vmatpush2.msra.mxu0 0.0
    %1485 = vmatprep.subr.mxu0 0.0
    %1486 = vmatpush2.msra.mxu0 0.0
    %1487 = vmatprep.subr.mxu0 0.0
    %1488 = vmatpush2.msra.mxu0 0.0
    %1489 = vmatprep.subr.mxu0 0.0
    %1490 = vmatpush2.msra.mxu0 0.0
    %1491 = vmatprep.subr.mxu0 0.0
    %1492 = vmatpush2.msra.mxu0 0.0
    %1493 = vmatprep.subr.mxu0 0.0
    %1494 = vmatpush2.msra.mxu0 0.0
    %1495 = vmatprep.subr.mxu0 0.0
    %1496 = vmatpush2.msra.mxu0 0.0
    %1497 = vmatprep.subr.mxu0 0.0
    %1498 = vmatpush2.msra.mxu0 0.0
    %1499 = vmatprep.subr.mxu0 0.0
    %1500 = vmatpush2.msra.mxu0 0.0
    %1501 = vmatprep.subr.mxu0 0.0
    %1502 = vmatpush2.msra.mxu0 0.0
    %1503 = vmatprep.subr.mxu0 0.0
    %1504 = vmatpush2.msra.mxu0 0.0
    %1505 = vmatprep.subr.mxu0 0.0
    %1506 = vmatpush2.msra.mxu0 0.0
    %1507 = vmatprep.subr.mxu0 0.0
    %1508 = vmatpush2.msra.mxu0 0.0
    %1509 = vmatprep.mubr.f32.mxu0 0.0
    %1510 = vmatmul.mubr.f32.gmra.mxu0 %v1443
    %v1511 = vpop.f32.mrf.mxu0
    %v1512 = vadd.f32 0.0, %v1511
    %v1513 = vpop.f32.mrf.mxu0
    %1514 = vdwg.mxu0
    %1515 = vst.msk [vmem:[#allocation6 + $0x1] sm:$0x1] %vm1405, %v1512
    %v1516 = vld [vmem:[#allocation3 + $0x2] sm:$0x1]
    %v1517 = vlaneseq
    %v1518 = vshrl.u32 %v1517, 7
    %v1519 = vsub.s32 0, %v1518
    %v1520 = vrot.slane %v1516, %v1519
    %v1521 = vmul.f32 %v1295, %v1520
    %v1522 = vmul.f32 %v1296, %v1520
    %v1523 = vmul.f32 %v1521, 1.442695
    %v1524 = vpow.pop %v1523
    %v1525 = vmul.f32 %v1522, 1.442695
    %v1526 = vpow.pop %v1525
    %v1527 = vmul.f32 %v1524, %v1439
    %v1528 = vmul.f32 %v1526, %v1440
    %v1529 = vld [vmem:[#allocation4] sm:$0xff]
    %v1530 = vld [vmem:[#allocation4 + $0x8] sm:$0xff]
    %v1531 = vld [vmem:[#allocation2 + $0x2] sm:$0x1]
    %1533 = vset.pattern.permute.xlu0 2
    %1534 = vperm.xlu0 %1533, %v1529
    %v1535 = vpop.permute.xlu0 %1534
    %1538 = vset.pattern.permute.xlu0 2
    %1539 = vperm.xlu0 %1538, %v1530
    %v1540 = vpop.permute.xlu0 %1539
    %v1542 = vlaneseq
    %v1543 = vshrl.u32 %v1542, 7
    %v1544 = vsub.s32 0, %v1543
    %v1545 = vrot.slane %v1531, %v1544
    %v1546 = vmul.f32 %v1535, %v1545
    %v1547 = vmul.f32 %v1540, %v1545
    %v1548 = vadd.f32 %v1527, %v1546
    %v1549 = vadd.f32 %v1528, %v1547
    %v1550 = vld [vmem:[#allocation5 + $0x2] sm:$0x1]
    %v1552 = vsel %vm272, %v1550, 0
    %1554 = vmatprep.subr.mxu0 0.0
    %1555 = vmatpush1.msra.mxu0 0.0
    %1556 = vmatprep.subr.mxu0 0.0
    %1557 = vmatpush1.msra.mxu0 0.0
    %1558 = vmatprep.subr.mxu0 0.0
    %1559 = vmatpush1.msra.mxu0 0.0
    %1560 = vmatprep.subr.mxu0 0.0
    %1561 = vmatpush1.msra.mxu0 0.0
    %1562 = vmatprep.subr.mxu0 0.0
    %1563 = vmatpush1.msra.mxu0 0.0
    %1564 = vmatprep.subr.mxu0 0.0
    %1565 = vmatpush1.msra.mxu0 0.0
    %1566 = vmatprep.subr.mxu0 0.0
    %1567 = vmatpush1.msra.mxu0 0.0
    %1568 = vmatprep.subr.mxu0 0.0
    %1569 = vmatpush1.msra.mxu0 0.0
    %1570 = vmatprep.subr.mxu0 0.0
    %1571 = vmatpush1.msra.mxu0 0.0
    %1572 = vmatprep.subr.mxu0 0.0
    %1573 = vmatpush1.msra.mxu0 0.0
    %1574 = vmatprep.subr.mxu0 0.0
    %1575 = vmatpush1.msra.mxu0 0.0
    %1576 = vmatprep.subr.mxu0 0.0
    %1577 = vmatpush1.msra.mxu0 0.0
    %1578 = vmatprep.subr.mxu0 0.0
    %1579 = vmatpush1.msra.mxu0 0.0
    %1580 = vmatprep.subr.mxu0 0.0
    %1581 = vmatpush1.msra.mxu0 0.0
    %1582 = vmatprep.subr.mxu0 0.0
    %1583 = vmatpush1.msra.mxu0 %v1549
    %1584 = vmatprep.subr.mxu0 0.0
    %1585 = vmatpush1.msra.mxu0 %v1548
    %1586 = vmatprep.subr.mxu0 0.0
    %1587 = vmatpush2.msra.mxu0 0.0
    %1588 = vmatprep.subr.mxu0 0.0
    %1589 = vmatpush2.msra.mxu0 0.0
    %1590 = vmatprep.subr.mxu0 0.0
    %1591 = vmatpush2.msra.mxu0 0.0
    %1592 = vmatprep.subr.mxu0 0.0
    %1593 = vmatpush2.msra.mxu0 0.0
    %1594 = vmatprep.subr.mxu0 0.0
    %1595 = vmatpush2.msra.mxu0 0.0
    %1596 = vmatprep.subr.mxu0 0.0
    %1597 = vmatpush2.msra.mxu0 0.0
    %1598 = vmatprep.subr.mxu0 0.0
    %1599 = vmatpush2.msra.mxu0 0.0
    %1600 = vmatprep.subr.mxu0 0.0
    %1601 = vmatpush2.msra.mxu0 0.0
    %1602 = vmatprep.subr.mxu0 0.0
    %1603 = vmatpush2.msra.mxu0 0.0
    %1604 = vmatprep.subr.mxu0 0.0
    %1605 = vmatpush2.msra.mxu0 0.0
    %1606 = vmatprep.subr.mxu0 0.0
    %1607 = vmatpush2.msra.mxu0 0.0
    %1608 = vmatprep.subr.mxu0 0.0
    %1609 = vmatpush2.msra.mxu0 0.0
    %1610 = vmatprep.subr.mxu0 0.0
    %1611 = vmatpush2.msra.mxu0 0.0
    %1612 = vmatprep.subr.mxu0 0.0
    %1613 = vmatpush2.msra.mxu0 0.0
    %1614 = vmatprep.subr.mxu0 0.0
    %1615 = vmatpush2.msra.mxu0 0.0
    %1616 = vmatprep.subr.mxu0 0.0
    %1617 = vmatpush2.msra.mxu0 0.0
    %1618 = vmatprep.mubr.f32.mxu0 0.0
    %1619 = vmatmul.mubr.f32.gmra.mxu0 %v1552
    %v1620 = vpop.f32.mrf.mxu0
    %v1621 = vadd.f32 0.0, %v1620
    %v1622 = vpop.f32.mrf.mxu0
    %1623 = vdwg.mxu0
    %1624 = vst.msk [vmem:[#allocation6 + $0x2] sm:$0x1] %vm1405, %v1621
    %v1625 = vld [vmem:[#allocation3 + $0x3] sm:$0x1]
    %v1626 = vlaneseq
    %v1627 = vshrl.u32 %v1626, 7
    %v1628 = vsub.s32 0, %v1627
    %v1629 = vrot.slane %v1625, %v1628
    %v1630 = vmul.f32 %v1295, %v1629
    %v1631 = vmul.f32 %v1296, %v1629
    %v1632 = vmul.f32 %v1630, 1.442695
    %v1633 = vpow.pop %v1632
    %v1634 = vmul.f32 %v1631, 1.442695
    %v1635 = vpow.pop %v1634
    %v1636 = vmul.f32 %v1633, %v1548
    %v1637 = vmul.f32 %v1635, %v1549
    %v1638 = vld [vmem:[#allocation4] sm:$0xff]
    %v1639 = vld [vmem:[#allocation4 + $0x8] sm:$0xff]
    %v1640 = vld [vmem:[#allocation2 + $0x3] sm:$0x1]
    %1642 = vset.pattern.permute.xlu0 3
    %1643 = vperm.xlu0 %1642, %v1638
    %v1644 = vpop.permute.xlu0 %1643
    %1647 = vset.pattern.permute.xlu0 3
    %1648 = vperm.xlu0 %1647, %v1639
    %v1649 = vpop.permute.xlu0 %1648
    %v1651 = vlaneseq
    %v1652 = vshrl.u32 %v1651, 7
    %v1653 = vsub.s32 0, %v1652
    %v1654 = vrot.slane %v1640, %v1653
    %v1655 = vmul.f32 %v1644, %v1654
    %v1656 = vmul.f32 %v1649, %v1654
    %v1657 = vadd.f32 %v1636, %v1655
    %v1658 = vadd.f32 %v1637, %v1656
    %v1659 = vld [vmem:[#allocation5 + $0x3] sm:$0x1]
    %v1661 = vsel %vm272, %v1659, 0
    %1663 = vmatprep.subr.mxu0 0.0
    %1664 = vmatpush1.msra.mxu0 0.0
    %1665 = vmatprep.subr.mxu0 0.0
    %1666 = vmatpush1.msra.mxu0 0.0
    %1667 = vmatprep.subr.mxu0 0.0
    %1668 = vmatpush1.msra.mxu0 0.0
    %1669 = vmatprep.subr.mxu0 0.0
    %1670 = vmatpush1.msra.mxu0 0.0
    %1671 = vmatprep.subr.mxu0 0.0
    %1672 = vmatpush1.msra.mxu0 0.0
    %1673 = vmatprep.subr.mxu0 0.0
    %1674 = vmatpush1.msra.mxu0 0.0
    %1675 = vmatprep.subr.mxu0 0.0
    %1676 = vmatpush1.msra.mxu0 0.0
    %1677 = vmatprep.subr.mxu0 0.0
    %1678 = vmatpush1.msra.mxu0 0.0
    %1679 = vmatprep.subr.mxu0 0.0
    %1680 = vmatpush1.msra.mxu0 0.0
    %1681 = vmatprep.subr.mxu0 0.0
    %1682 = vmatpush1.msra.mxu0 0.0
    %1683 = vmatprep.subr.mxu0 0.0
    %1684 = vmatpush1.msra.mxu0 0.0
    %1685 = vmatprep.subr.mxu0 0.0
    %1686 = vmatpush1.msra.mxu0 0.0
    %1687 = vmatprep.subr.mxu0 0.0
    %1688 = vmatpush1.msra.mxu0 0.0
    %1689 = vmatprep.subr.mxu0 0.0
    %1690 = vmatpush1.msra.mxu0 0.0
    %1691 = vmatprep.subr.mxu0 0.0
    %1692 = vmatpush1.msra.mxu0 %v1658
    %1693 = vmatprep.subr.mxu0 0.0
    %1694 = vmatpush1.msra.mxu0 %v1657
    %1695 = vmatprep.subr.mxu0 0.0
    %1696 = vmatpush2.msra.mxu0 0.0
    %1697 = vmatprep.subr.mxu0 0.0
    %1698 = vmatpush2.msra.mxu0 0.0
    %1699 = vmatprep.subr.mxu0 0.0
    %1700 = vmatpush2.msra.mxu0 0.0
    %1701 = vmatprep.subr.mxu0 0.0
    %1702 = vmatpush2.msra.mxu0 0.0
    %1703 = vmatprep.subr.mxu0 0.0
    %1704 = vmatpush2.msra.mxu0 0.0
    %1705 = vmatprep.subr.mxu0 0.0
    %1706 = vmatpush2.msra.mxu0 0.0
    %1707 = vmatprep.subr.mxu0 0.0
    %1708 = vmatpush2.msra.mxu0 0.0
    %1709 = vmatprep.subr.mxu0 0.0
    %1710 = vmatpush2.msra.mxu0 0.0
    %1711 = vmatprep.subr.mxu0 0.0
    %1712 = vmatpush2.msra.mxu0 0.0
    %1713 = vmatprep.subr.mxu0 0.0
    %1714 = vmatpush2.msra.mxu0 0.0
    %1715 = vmatprep.subr.mxu0 0.0
    %1716 = vmatpush2.msra.mxu0 0.0
    %1717 = vmatprep.subr.mxu0 0.0
    %1718 = vmatpush2.msra.mxu0 0.0
    %1719 = vmatprep.subr.mxu0 0.0
    %1720 = vmatpush2.msra.mxu0 0.0
    %1721 = vmatprep.subr.mxu0 0.0
    %1722 = vmatpush2.msra.mxu0 0.0
    %1723 = vmatprep.subr.mxu0 0.0
    %1724 = vmatpush2.msra.mxu0 0.0
    %1725 = vmatprep.subr.mxu0 0.0
    %1726 = vmatpush2.msra.mxu0 0.0
    %1727 = vmatprep.mubr.f32.mxu0 0.0
    %1728 = vmatmul.mubr.f32.gmra.mxu0 %v1661
    %v1729 = vpop.f32.mrf.mxu0
    %v1730 = vadd.f32 0.0, %v1729
    %v1731 = vpop.f32.mrf.mxu0
    %1732 = vdwg.mxu0
    %1733 = vst.msk [vmem:[#allocation6 + $0x3] sm:$0x1] %vm1405, %v1730
    %v1734 = vld [vmem:[#allocation3 + $0x4] sm:$0x1]
    %v1735 = vlaneseq
    %v1736 = vshrl.u32 %v1735, 7
    %v1737 = vsub.s32 0, %v1736
    %v1738 = vrot.slane %v1734, %v1737
    %v1739 = vmul.f32 %v1295, %v1738
    %v1740 = vmul.f32 %v1296, %v1738
    %v1741 = vmul.f32 %v1739, 1.442695
    %v1742 = vpow.pop %v1741
    %v1743 = vmul.f32 %v1740, 1.442695
    %v1744 = vpow.pop %v1743
    %v1745 = vmul.f32 %v1742, %v1657
    %v1746 = vmul.f32 %v1744, %v1658
    %v1747 = vld [vmem:[#allocation4] sm:$0xff]
    %v1748 = vld [vmem:[#allocation4 + $0x8] sm:$0xff]
    %v1749 = vld [vmem:[#allocation2 + $0x4] sm:$0x1]
    %1751 = vset.pattern.permute.xlu0 4
    %1752 = vperm.xlu0 %1751, %v1747
    %v1753 = vpop.permute.xlu0 %1752
    %1756 = vset.pattern.permute.xlu0 4
    %1757 = vperm.xlu0 %1756, %v1748
    %v1758 = vpop.permute.xlu0 %1757
    %v1760 = vlaneseq
    %v1761 = vshrl.u32 %v1760, 7
    %v1762 = vsub.s32 0, %v1761
    %v1763 = vrot.slane %v1749, %v1762
    %v1764 = vmul.f32 %v1753, %v1763
    %v1765 = vmul.f32 %v1758, %v1763
    %v1766 = vadd.f32 %v1745, %v1764
    %v1767 = vadd.f32 %v1746, %v1765
    %v1768 = vld [vmem:[#allocation5 + $0x4] sm:$0x1]
    %v1770 = vsel %vm272, %v1768, 0
    %1772 = vmatprep.subr.mxu0 0.0
    %1773 = vmatpush1.msra.mxu0 0.0
    %1774 = vmatprep.subr.mxu0 0.0
    %1775 = vmatpush1.msra.mxu0 0.0
    %1776 = vmatprep.subr.mxu0 0.0
    %1777 = vmatpush1.msra.mxu0 0.0
    %1778 = vmatprep.subr.mxu0 0.0
    %1779 = vmatpush1.msra.mxu0 0.0
    %1780 = vmatprep.subr.mxu0 0.0
    %1781 = vmatpush1.msra.mxu0 0.0
    %1782 = vmatprep.subr.mxu0 0.0
    %1783 = vmatpush1.msra.mxu0 0.0
    %1784 = vmatprep.subr.mxu0 0.0
    %1785 = vmatpush1.msra.mxu0 0.0
    %1786 = vmatprep.subr.mxu0 0.0
    %1787 = vmatpush1.msra.mxu0 0.0
    %1788 = vmatprep.subr.mxu0 0.0
    %1789 = vmatpush1.msra.mxu0 0.0
    %1790 = vmatprep.subr.mxu0 0.0
    %1791 = vmatpush1.msra.mxu0 0.0
    %1792 = vmatprep.subr.mxu0 0.0
    %1793 = vmatpush1.msra.mxu0 0.0
    %1794 = vmatprep.subr.mxu0 0.0
    %1795 = vmatpush1.msra.mxu0 0.0
    %1796 = vmatprep.subr.mxu0 0.0
    %1797 = vmatpush1.msra.mxu0 0.0
    %1798 = vmatprep.subr.mxu0 0.0
    %1799 = vmatpush1.msra.mxu0 0.0
    %1800 = vmatprep.subr.mxu0 0.0
    %1801 = vmatpush1.msra.mxu0 %v1767
    %1802 = vmatprep.subr.mxu0 0.0
    %1803 = vmatpush1.msra.mxu0 %v1766
    %1804 = vmatprep.subr.mxu0 0.0
    %1805 = vmatpush2.msra.mxu0 0.0
    %1806 = vmatprep.subr.mxu0 0.0
    %1807 = vmatpush2.msra.mxu0 0.0
    %1808 = vmatprep.subr.mxu0 0.0
    %1809 = vmatpush2.msra.mxu0 0.0
    %1810 = vmatprep.subr.mxu0 0.0
    %1811 = vmatpush2.msra.mxu0 0.0
    %1812 = vmatprep.subr.mxu0 0.0
    %1813 = vmatpush2.msra.mxu0 0.0
    %1814 = vmatprep.subr.mxu0 0.0
    %1815 = vmatpush2.msra.mxu0 0.0
    %1816 = vmatprep.subr.mxu0 0.0
    %1817 = vmatpush2.msra.mxu0 0.0
    %1818 = vmatprep.subr.mxu0 0.0
    %1819 = vmatpush2.msra.mxu0 0.0
    %1820 = vmatprep.subr.mxu0 0.0
    %1821 = vmatpush2.msra.mxu0 0.0
    %1822 = vmatprep.subr.mxu0 0.0
    %1823 = vmatpush2.msra.mxu0 0.0
    %1824 = vmatprep.subr.mxu0 0.0
    %1825 = vmatpush2.msra.mxu0 0.0
    %1826 = vmatprep.subr.mxu0 0.0
    %1827 = vmatpush2.msra.mxu0 0.0
    %1828 = vmatprep.subr.mxu0 0.0
    %1829 = vmatpush2.msra.mxu0 0.0
    %1830 = vmatprep.subr.mxu0 0.0
    %1831 = vmatpush2.msra.mxu0 0.0
    %1832 = vmatprep.subr.mxu0 0.0
    %1833 = vmatpush2.msra.mxu0 0.0
    %1834 = vmatprep.subr.mxu0 0.0
    %1835 = vmatpush2.msra.mxu0 0.0
    %1836 = vmatprep.mubr.f32.mxu0 0.0
    %1837 = vmatmul.mubr.f32.gmra.mxu0 %v1770
    %v1838 = vpop.f32.mrf.mxu0
    %v1839 = vadd.f32 0.0, %v1838
    %v1840 = vpop.f32.mrf.mxu0
    %1841 = vdwg.mxu0
    %1842 = vst.msk [vmem:[#allocation6 + $0x4] sm:$0x1] %vm1405, %v1839
    %v1843 = vld [vmem:[#allocation3 + $0x5] sm:$0x1]
    %v1844 = vlaneseq
    %v1845 = vshrl.u32 %v1844, 7
    %v1846 = vsub.s32 0, %v1845
    %v1847 = vrot.slane %v1843, %v1846
    %v1848 = vmul.f32 %v1295, %v1847
    %v1849 = vmul.f32 %v1296, %v1847
    %v1850 = vmul.f32 %v1848, 1.442695
    %v1851 = vpow.pop %v1850
    %v1852 = vmul.f32 %v1849, 1.442695
    %v1853 = vpow.pop %v1852
    %v1854 = vmul.f32 %v1851, %v1766
    %v1855 = vmul.f32 %v1853, %v1767
    %v1856 = vld [vmem:[#allocation4] sm:$0xff]
    %v1857 = vld [vmem:[#allocation4 + $0x8] sm:$0xff]
    %v1858 = vld [vmem:[#allocation2 + $0x5] sm:$0x1]
    %1860 = vset.pattern.permute.xlu0 5
    %1861 = vperm.xlu0 %1860, %v1856
    %v1862 = vpop.permute.xlu0 %1861
    %1865 = vset.pattern.permute.xlu0 5
    %1866 = vperm.xlu0 %1865, %v1857
    %v1867 = vpop.permute.xlu0 %1866
    %v1869 = vlaneseq
    %v1870 = vshrl.u32 %v1869, 7
    %v1871 = vsub.s32 0, %v1870
    %v1872 = vrot.slane %v1858, %v1871
    %v1873 = vmul.f32 %v1862, %v1872
    %v1874 = vmul.f32 %v1867, %v1872
    %v1875 = vadd.f32 %v1854, %v1873
    %v1876 = vadd.f32 %v1855, %v1874
    %v1877 = vld [vmem:[#allocation5 + $0x5] sm:$0x1]
    %v1879 = vsel %vm272, %v1877, 0
    %1881 = vmatprep.subr.mxu0 0.0
    %1882 = vmatpush1.msra.mxu0 0.0
    %1883 = vmatprep.subr.mxu0 0.0
    %1884 = vmatpush1.msra.mxu0 0.0
    %1885 = vmatprep.subr.mxu0 0.0
    %1886 = vmatpush1.msra.mxu0 0.0
    %1887 = vmatprep.subr.mxu0 0.0
    %1888 = vmatpush1.msra.mxu0 0.0
    %1889 = vmatprep.subr.mxu0 0.0
    %1890 = vmatpush1.msra.mxu0 0.0
    %1891 = vmatprep.subr.mxu0 0.0
    %1892 = vmatpush1.msra.mxu0 0.0
    %1893 = vmatprep.subr.mxu0 0.0
    %1894 = vmatpush1.msra.mxu0 0.0
    %1895 = vmatprep.subr.mxu0 0.0
    %1896 = vmatpush1.msra.mxu0 0.0
    %1897 = vmatprep.subr.mxu0 0.0
    %1898 = vmatpush1.msra.mxu0 0.0
    %1899 = vmatprep.subr.mxu0 0.0
    %1900 = vmatpush1.msra.mxu0 0.0
    %1901 = vmatprep.subr.mxu0 0.0
    %1902 = vmatpush1.msra.mxu0 0.0
    %1903 = vmatprep.subr.mxu0 0.0
    %1904 = vmatpush1.msra.mxu0 0.0
    %1905 = vmatprep.subr.mxu0 0.0
    %1906 = vmatpush1.msra.mxu0 0.0
    %1907 = vmatprep.subr.mxu0 0.0
    %1908 = vmatpush1.msra.mxu0 0.0
    %1909 = vmatprep.subr.mxu0 0.0
    %1910 = vmatpush1.msra.mxu0 %v1876
    %1911 = vmatprep.subr.mxu0 0.0
    %1912 = vmatpush1.msra.mxu0 %v1875
    %1913 = vmatprep.subr.mxu0 0.0
    %1914 = vmatpush2.msra.mxu0 0.0
    %1915 = vmatprep.subr.mxu0 0.0
    %1916 = vmatpush2.msra.mxu0 0.0
    %1917 = vmatprep.subr.mxu0 0.0
    %1918 = vmatpush2.msra.mxu0 0.0
    %1919 = vmatprep.subr.mxu0 0.0
    %1920 = vmatpush2.msra.mxu0 0.0
    %1921 = vmatprep.subr.mxu0 0.0
    %1922 = vmatpush2.msra.mxu0 0.0
    %1923 = vmatprep.subr.mxu0 0.0
    %1924 = vmatpush2.msra.mxu0 0.0
    %1925 = vmatprep.subr.mxu0 0.0
    %1926 = vmatpush2.msra.mxu0 0.0
    %1927 = vmatprep.subr.mxu0 0.0
    %1928 = vmatpush2.msra.mxu0 0.0
    %1929 = vmatprep.subr.mxu0 0.0
    %1930 = vmatpush2.msra.mxu0 0.0
    %1931 = vmatprep.subr.mxu0 0.0
    %1932 = vmatpush2.msra.mxu0 0.0
    %1933 = vmatprep.subr.mxu0 0.0
    %1934 = vmatpush2.msra.mxu0 0.0
    %1935 = vmatprep.subr.mxu0 0.0
    %1936 = vmatpush2.msra.mxu0 0.0
    %1937 = vmatprep.subr.mxu0 0.0
    %1938 = vmatpush2.msra.mxu0 0.0
    %1939 = vmatprep.subr.mxu0 0.0
    %1940 = vmatpush2.msra.mxu0 0.0
    %1941 = vmatprep.subr.mxu0 0.0
    %1942 = vmatpush2.msra.mxu0 0.0
    %1943 = vmatprep.subr.mxu0 0.0
    %1944 = vmatpush2.msra.mxu0 0.0
    %1945 = vmatprep.mubr.f32.mxu0 0.0
    %1946 = vmatmul.mubr.f32.gmra.mxu0 %v1879
    %v1947 = vpop.f32.mrf.mxu0
    %v1948 = vadd.f32 0.0, %v1947
    %v1949 = vpop.f32.mrf.mxu0
    %1950 = vdwg.mxu0
    %1951 = vst.msk [vmem:[#allocation6 + $0x5] sm:$0x1] %vm1405, %v1948
    %v1952 = vld [vmem:[#allocation3 + $0x6] sm:$0x1]
    %v1953 = vlaneseq
    %v1954 = vshrl.u32 %v1953, 7
    %v1955 = vsub.s32 0, %v1954
    %v1956 = vrot.slane %v1952, %v1955
    %v1957 = vmul.f32 %v1295, %v1956
    %v1958 = vmul.f32 %v1296, %v1956
    %v1959 = vmul.f32 %v1957, 1.442695
    %v1960 = vpow.pop %v1959
    %v1961 = vmul.f32 %v1958, 1.442695
    %v1962 = vpow.pop %v1961
    %v1963 = vmul.f32 %v1960, %v1875
    %v1964 = vmul.f32 %v1962, %v1876
    %v1965 = vld [vmem:[#allocation4] sm:$0xff]
    %v1966 = vld [vmem:[#allocation4 + $0x8] sm:$0xff]
    %v1967 = vld [vmem:[#allocation2 + $0x6] sm:$0x1]
    %1969 = vset.pattern.permute.xlu0 6
    %1970 = vperm.xlu0 %1969, %v1965
    %v1971 = vpop.permute.xlu0 %1970
    %1974 = vset.pattern.permute.xlu0 6
    %1975 = vperm.xlu0 %1974, %v1966
    %v1976 = vpop.permute.xlu0 %1975
    %v1978 = vlaneseq
    %v1979 = vshrl.u32 %v1978, 7
    %v1980 = vsub.s32 0, %v1979
    %v1981 = vrot.slane %v1967, %v1980
    %v1982 = vmul.f32 %v1971, %v1981
    %v1983 = vmul.f32 %v1976, %v1981
    %v1984 = vadd.f32 %v1963, %v1982
    %v1985 = vadd.f32 %v1964, %v1983
    %v1986 = vld [vmem:[#allocation5 + $0x6] sm:$0x1]
    %v1988 = vsel %vm272, %v1986, 0
    %1990 = vmatprep.subr.mxu0 0.0
    %1991 = vmatpush1.msra.mxu0 0.0
    %1992 = vmatprep.subr.mxu0 0.0
    %1993 = vmatpush1.msra.mxu0 0.0
    %1994 = vmatprep.subr.mxu0 0.0
    %1995 = vmatpush1.msra.mxu0 0.0
    %1996 = vmatprep.subr.mxu0 0.0
    %1997 = vmatpush1.msra.mxu0 0.0
    %1998 = vmatprep.subr.mxu0 0.0
    %1999 = vmatpush1.msra.mxu0 0.0
    %2000 = vmatprep.subr.mxu0 0.0
    %2001 = vmatpush1.msra.mxu0 0.0
    %2002 = vmatprep.subr.mxu0 0.0
    %2003 = vmatpush1.msra.mxu0 0.0
    %2004 = vmatprep.subr.mxu0 0.0
    %2005 = vmatpush1.msra.mxu0 0.0
    %2006 = vmatprep.subr.mxu0 0.0
    %2007 = vmatpush1.msra.mxu0 0.0
    %2008 = vmatprep.subr.mxu0 0.0
    %2009 = vmatpush1.msra.mxu0 0.0
    %2010 = vmatprep.subr.mxu0 0.0
    %2011 = vmatpush1.msra.mxu0 0.0
    %2012 = vmatprep.subr.mxu0 0.0
    %2013 = vmatpush1.msra.mxu0 0.0
    %2014 = vmatprep.subr.mxu0 0.0
    %2015 = vmatpush1.msra.mxu0 0.0
    %2016 = vmatprep.subr.mxu0 0.0
    %2017 = vmatpush1.msra.mxu0 0.0
    %2018 = vmatprep.subr.mxu0 0.0
    %2019 = vmatpush1.msra.mxu0 %v1985
    %2020 = vmatprep.subr.mxu0 0.0
    %2021 = vmatpush1.msra.mxu0 %v1984
    %2022 = vmatprep.subr.mxu0 0.0
    %2023 = vmatpush2.msra.mxu0 0.0
    %2024 = vmatprep.subr.mxu0 0.0
    %2025 = vmatpush2.msra.mxu0 0.0
    %2026 = vmatprep.subr.mxu0 0.0
    %2027 = vmatpush2.msra.mxu0 0.0
    %2028 = vmatprep.subr.mxu0 0.0
    %2029 = vmatpush2.msra.mxu0 0.0
    %2030 = vmatprep.subr.mxu0 0.0
    %2031 = vmatpush2.msra.mxu0 0.0
    %2032 = vmatprep.subr.mxu0 0.0
    %2033 = vmatpush2.msra.mxu0 0.0
    %2034 = vmatprep.subr.mxu0 0.0
    %2035 = vmatpush2.msra.mxu0 0.0
    %2036 = vmatprep.subr.mxu0 0.0
    %2037 = vmatpush2.msra.mxu0 0.0
    %2038 = vmatprep.subr.mxu0 0.0
    %2039 = vmatpush2.msra.mxu0 0.0
    %2040 = vmatprep.subr.mxu0 0.0
    %2041 = vmatpush2.msra.mxu0 0.0
    %2042 = vmatprep.subr.mxu0 0.0
    %2043 = vmatpush2.msra.mxu0 0.0
    %2044 = vmatprep.subr.mxu0 0.0
    %2045 = vmatpush2.msra.mxu0 0.0
    %2046 = vmatprep.subr.mxu0 0.0
    %2047 = vmatpush2.msra.mxu0 0.0
    %2048 = vmatprep.subr.mxu0 0.0
    %2049 = vmatpush2.msra.mxu0 0.0
    %2050 = vmatprep.subr.mxu0 0.0
    %2051 = vmatpush2.msra.mxu0 0.0
    %2052 = vmatprep.subr.mxu0 0.0
    %2053 = vmatpush2.msra.mxu0 0.0
    %2054 = vmatprep.mubr.f32.mxu0 0.0
    %2055 = vmatmul.mubr.f32.gmra.mxu0 %v1988
    %v2056 = vpop.f32.mrf.mxu0
    %v2057 = vadd.f32 0.0, %v2056
    %v2058 = vpop.f32.mrf.mxu0
    %2059 = vdwg.mxu0
    %2060 = vst.msk [vmem:[#allocation6 + $0x6] sm:$0x1] %vm1405, %v2057
    %v2061 = vld [vmem:[#allocation3 + $0x7] sm:$0x1]
    %v2062 = vlaneseq
    %v2063 = vshrl.u32 %v2062, 7
    %v2064 = vsub.s32 0, %v2063
    %v2065 = vrot.slane %v2061, %v2064
    %v2066 = vmul.f32 %v1295, %v2065
    %v2067 = vmul.f32 %v1296, %v2065
    %v2068 = vmul.f32 %v2066, 1.442695
    %v2069 = vpow.pop %v2068
    %v2070 = vmul.f32 %v2067, 1.442695
    %v2071 = vpow.pop %v2070
    %v2072 = vmul.f32 %v2069, %v1984
    %v2073 = vmul.f32 %v2071, %v1985
    %v2074 = vld [vmem:[#allocation4] sm:$0xff]
    %v2075 = vld [vmem:[#allocation4 + $0x8] sm:$0xff]
    %v2076 = vld [vmem:[#allocation2 + $0x7] sm:$0x1]
    %2078 = vset.pattern.permute.xlu0 7
    %2079 = vperm.xlu0 %2078, %v2074
    %v2080 = vpop.permute.xlu0 %2079
    %2083 = vset.pattern.permute.xlu0 7
    %2084 = vperm.xlu0 %2083, %v2075
    %v2085 = vpop.permute.xlu0 %2084
    %v2087 = vlaneseq
    %v2088 = vshrl.u32 %v2087, 7
    %v2089 = vsub.s32 0, %v2088
    %v2090 = vrot.slane %v2076, %v2089
    %v2091 = vmul.f32 %v2080, %v2090
    %v2092 = vmul.f32 %v2085, %v2090
    %v2093 = vadd.f32 %v2072, %v2091
    %v2094 = vadd.f32 %v2073, %v2092
    %v2095 = vld [vmem:[#allocation5 + $0x7] sm:$0x1]
    %v2097 = vsel %vm272, %v2095, 0
    %2099 = vmatprep.subr.mxu0 0.0
    %2100 = vmatpush1.msra.mxu0 0.0
    %2101 = vmatprep.subr.mxu0 0.0
    %2102 = vmatpush1.msra.mxu0 0.0
    %2103 = vmatprep.subr.mxu0 0.0
    %2104 = vmatpush1.msra.mxu0 0.0
    %2105 = vmatprep.subr.mxu0 0.0
    %2106 = vmatpush1.msra.mxu0 0.0
    %2107 = vmatprep.subr.mxu0 0.0
    %2108 = vmatpush1.msra.mxu0 0.0
    %2109 = vmatprep.subr.mxu0 0.0
    %2110 = vmatpush1.msra.mxu0 0.0
    %2111 = vmatprep.subr.mxu0 0.0
    %2112 = vmatpush1.msra.mxu0 0.0
    %2113 = vmatprep.subr.mxu0 0.0
    %2114 = vmatpush1.msra.mxu0 0.0
    %2115 = vmatprep.subr.mxu0 0.0
    %2116 = vmatpush1.msra.mxu0 0.0
    %2117 = vmatprep.subr.mxu0 0.0
    %2118 = vmatpush1.msra.mxu0 0.0
    %2119 = vmatprep.subr.mxu0 0.0
    %2120 = vmatpush1.msra.mxu0 0.0
    %2121 = vmatprep.subr.mxu0 0.0
    %2122 = vmatpush1.msra.mxu0 0.0
    %2123 = vmatprep.subr.mxu0 0.0
    %2124 = vmatpush1.msra.mxu0 0.0
    %2125 = vmatprep.subr.mxu0 0.0
    %2126 = vmatpush1.msra.mxu0 0.0
    %2127 = vmatprep.subr.mxu0 0.0
    %2128 = vmatpush1.msra.mxu0 %v2094
    %2129 = vmatprep.subr.mxu0 0.0
    %2130 = vmatpush1.msra.mxu0 %v2093
    %2131 = vmatprep.subr.mxu0 0.0
    %2132 = vmatpush2.msra.mxu0 0.0
    %2133 = vmatprep.subr.mxu0 0.0
    %2134 = vmatpush2.msra.mxu0 0.0
    %2135 = vmatprep.subr.mxu0 0.0
    %2136 = vmatpush2.msra.mxu0 0.0
    %2137 = vmatprep.subr.mxu0 0.0
    %2138 = vmatpush2.msra.mxu0 0.0
    %2139 = vmatprep.subr.mxu0 0.0
    %2140 = vmatpush2.msra.mxu0 0.0
    %2141 = vmatprep.subr.mxu0 0.0
    %2142 = vmatpush2.msra.mxu0 0.0
    %2143 = vmatprep.subr.mxu0 0.0
    %2144 = vmatpush2.msra.mxu0 0.0
    %2145 = vmatprep.subr.mxu0 0.0
    %2146 = vmatpush2.msra.mxu0 0.0
    %2147 = vmatprep.subr.mxu0 0.0
    %2148 = vmatpush2.msra.mxu0 0.0
    %2149 = vmatprep.subr.mxu0 0.0
    %2150 = vmatpush2.msra.mxu0 0.0
    %2151 = vmatprep.subr.mxu0 0.0
    %2152 = vmatpush2.msra.mxu0 0.0
    %2153 = vmatprep.subr.mxu0 0.0
    %2154 = vmatpush2.msra.mxu0 0.0
    %2155 = vmatprep.subr.mxu0 0.0
    %2156 = vmatpush2.msra.mxu0 0.0
    %2157 = vmatprep.subr.mxu0 0.0
    %2158 = vmatpush2.msra.mxu0 0.0
    %2159 = vmatprep.subr.mxu0 0.0
    %2160 = vmatpush2.msra.mxu0 0.0
    %2161 = vmatprep.subr.mxu0 0.0
    %2162 = vmatpush2.msra.mxu0 0.0
    %2163 = vmatprep.mubr.f32.mxu0 0.0
    %2164 = vmatmul.mubr.f32.gmra.mxu0 %v2097
    %v2165 = vpop.f32.mrf.mxu0
    %v2166 = vadd.f32 0.0, %v2165
    %v2167 = vpop.f32.mrf.mxu0
    %2168 = vdwg.mxu0
    %2169 = vst.msk [vmem:[#allocation6 + $0x7] sm:$0x1] %vm1405, %v2166
    %v2170 = vld [vmem:[#allocation3 + $0x8] sm:$0x1]
    %v2171 = vlaneseq
    %v2172 = vshrl.u32 %v2171, 7
    %v2173 = vsub.s32 0, %v2172
    %v2174 = vrot.slane %v2170, %v2173
    %v2175 = vmul.f32 %v1295, %v2174
    %v2176 = vmul.f32 %v1296, %v2174
    %v2177 = vmul.f32 %v2175, 1.442695
    %v2178 = vpow.pop %v2177
    %v2179 = vmul.f32 %v2176, 1.442695
    %v2180 = vpow.pop %v2179
    %v2181 = vmul.f32 %v2178, %v2093
    %v2182 = vmul.f32 %v2180, %v2094
    %v2183 = vld [vmem:[#allocation4] sm:$0xff]
    %v2184 = vld [vmem:[#allocation4 + $0x8] sm:$0xff]
    %v2185 = vld [vmem:[#allocation2 + $0x8] sm:$0x1]
    %2187 = vset.pattern.permute.xlu0 8
    %2188 = vperm.xlu0 %2187, %v2183
    %v2189 = vpop.permute.xlu0 %2188
    %2192 = vset.pattern.permute.xlu0 8
    %2193 = vperm.xlu0 %2192, %v2184
    %v2194 = vpop.permute.xlu0 %2193
    %v2196 = vlaneseq
    %v2197 = vshrl.u32 %v2196, 7
    %v2198 = vsub.s32 0, %v2197
    %v2199 = vrot.slane %v2185, %v2198
    %v2200 = vmul.f32 %v2189, %v2199
    %v2201 = vmul.f32 %v2194, %v2199
    %v2202 = vadd.f32 %v2181, %v2200
    %v2203 = vadd.f32 %v2182, %v2201
    %v2204 = vld [vmem:[#allocation5 + $0x8] sm:$0x1]
    %v2206 = vsel %vm272, %v2204, 0
    %2208 = vmatprep.subr.mxu0 0.0
    %2209 = vmatpush1.msra.mxu0 0.0
    %2210 = vmatprep.subr.mxu0 0.0
    %2211 = vmatpush1.msra.mxu0 0.0
    %2212 = vmatprep.subr.mxu0 0.0
    %2213 = vmatpush1.msra.mxu0 0.0
    %2214 = vmatprep.subr.mxu0 0.0
    %2215 = vmatpush1.msra.mxu0 0.0
    %2216 = vmatprep.subr.mxu0 0.0
    %2217 = vmatpush1.msra.mxu0 0.0
    %2218 = vmatprep.subr.mxu0 0.0
    %2219 = vmatpush1.msra.mxu0 0.0
    %2220 = vmatprep.subr.mxu0 0.0
    %2221 = vmatpush1.msra.mxu0 0.0
    %2222 = vmatprep.subr.mxu0 0.0
    %2223 = vmatpush1.msra.mxu0 0.0
    %2224 = vmatprep.subr.mxu0 0.0
    %2225 = vmatpush1.msra.mxu0 0.0
    %2226 = vmatprep.subr.mxu0 0.0
    %2227 = vmatpush1.msra.mxu0 0.0
    %2228 = vmatprep.subr.mxu0 0.0
    %2229 = vmatpush1.msra.mxu0 0.0
    %2230 = vmatprep.subr.mxu0 0.0
    %2231 = vmatpush1.msra.mxu0 0.0
    %2232 = vmatprep.subr.mxu0 0.0
    %2233 = vmatpush1.msra.mxu0 0.0
    %2234 = vmatprep.subr.mxu0 0.0
    %2235 = vmatpush1.msra.mxu0 0.0
    %2236 = vmatprep.subr.mxu0 0.0
    %2237 = vmatpush1.msra.mxu0 %v2203
    %2238 = vmatprep.subr.mxu0 0.0
    %2239 = vmatpush1.msra.mxu0 %v2202
    %2240 = vmatprep.subr.mxu0 0.0
    %2241 = vmatpush2.msra.mxu0 0.0
    %2242 = vmatprep.subr.mxu0 0.0
    %2243 = vmatpush2.msra.mxu0 0.0
    %2244 = vmatprep.subr.mxu0 0.0
    %2245 = vmatpush2.msra.mxu0 0.0
    %2246 = vmatprep.subr.mxu0 0.0
    %2247 = vmatpush2.msra.mxu0 0.0
    %2248 = vmatprep.subr.mxu0 0.0
    %2249 = vmatpush2.msra.mxu0 0.0
    %2250 = vmatprep.subr.mxu0 0.0
    %2251 = vmatpush2.msra.mxu0 0.0
    %2252 = vmatprep.subr.mxu0 0.0
    %2253 = vmatpush2.msra.mxu0 0.0
    %2254 = vmatprep.subr.mxu0 0.0
    %2255 = vmatpush2.msra.mxu0 0.0
    %2256 = vmatprep.subr.mxu0 0.0
    %2257 = vmatpush2.msra.mxu0 0.0
    %2258 = vmatprep.subr.mxu0 0.0
    %2259 = vmatpush2.msra.mxu0 0.0
    %2260 = vmatprep.subr.mxu0 0.0
    %2261 = vmatpush2.msra.mxu0 0.0
    %2262 = vmatprep.subr.mxu0 0.0
    %2263 = vmatpush2.msra.mxu0 0.0
    %2264 = vmatprep.subr.mxu0 0.0
    %2265 = vmatpush2.msra.mxu0 0.0
    %2266 = vmatprep.subr.mxu0 0.0
    %2267 = vmatpush2.msra.mxu0 0.0
    %2268 = vmatprep.subr.mxu0 0.0
    %2269 = vmatpush2.msra.mxu0 0.0
    %2270 = vmatprep.subr.mxu0 0.0
    %2271 = vmatpush2.msra.mxu0 0.0
    %2272 = vmatprep.mubr.f32.mxu0 0.0
    %2273 = vmatmul.mubr.f32.gmra.mxu0 %v2206
    %v2274 = vpop.f32.mrf.mxu0
    %v2275 = vadd.f32 0.0, %v2274
    %v2276 = vpop.f32.mrf.mxu0
    %2277 = vdwg.mxu0
    %2278 = vst.msk [vmem:[#allocation6 + $0x8] sm:$0x1] %vm1405, %v2275
    %v2279 = vld [vmem:[#allocation3 + $0x9] sm:$0x1]
    %v2280 = vlaneseq
    %v2281 = vshrl.u32 %v2280, 7
    %v2282 = vsub.s32 0, %v2281
    %v2283 = vrot.slane %v2279, %v2282
    %v2284 = vmul.f32 %v1295, %v2283
    %v2285 = vmul.f32 %v1296, %v2283
    %v2286 = vmul.f32 %v2284, 1.442695
    %v2287 = vpow.pop %v2286
    %v2288 = vmul.f32 %v2285, 1.442695
    %v2289 = vpow.pop %v2288
    %v2290 = vmul.f32 %v2287, %v2202
    %v2291 = vmul.f32 %v2289, %v2203
    %v2292 = vld [vmem:[#allocation4] sm:$0xff]
    %v2293 = vld [vmem:[#allocation4 + $0x8] sm:$0xff]
    %v2294 = vld [vmem:[#allocation2 + $0x9] sm:$0x1]
    %2296 = vset.pattern.permute.xlu0 9
    %2297 = vperm.xlu0 %2296, %v2292
    %v2298 = vpop.permute.xlu0 %2297
    %2301 = vset.pattern.permute.xlu0 9
    %2302 = vperm.xlu0 %2301, %v2293
    %v2303 = vpop.permute.xlu0 %2302
    %v2305 = vlaneseq
    %v2306 = vshrl.u32 %v2305, 7
    %v2307 = vsub.s32 0, %v2306
    %v2308 = vrot.slane %v2294, %v2307
    %v2309 = vmul.f32 %v2298, %v2308
    %v2310 = vmul.f32 %v2303, %v2308
    %v2311 = vadd.f32 %v2290, %v2309
    %v2312 = vadd.f32 %v2291, %v2310
    %v2313 = vld [vmem:[#allocation5 + $0x9] sm:$0x1]
    %v2315 = vsel %vm272, %v2313, 0
    %2317 = vmatprep.subr.mxu0 0.0
    %2318 = vmatpush1.msra.mxu0 0.0
    %2319 = vmatprep.subr.mxu0 0.0
    %2320 = vmatpush1.msra.mxu0 0.0
    %2321 = vmatprep.subr.mxu0 0.0
    %2322 = vmatpush1.msra.mxu0 0.0
    %2323 = vmatprep.subr.mxu0 0.0
    %2324 = vmatpush1.msra.mxu0 0.0
    %2325 = vmatprep.subr.mxu0 0.0
    %2326 = vmatpush1.msra.mxu0 0.0
    %2327 = vmatprep.subr.mxu0 0.0
    %2328 = vmatpush1.msra.mxu0 0.0
    %2329 = vmatprep.subr.mxu0 0.0
    %2330 = vmatpush1.msra.mxu0 0.0
    %2331 = vmatprep.subr.mxu0 0.0
    %2332 = vmatpush1.msra.mxu0 0.0
    %2333 = vmatprep.subr.mxu0 0.0
    %2334 = vmatpush1.msra.mxu0 0.0
    %2335 = vmatprep.subr.mxu0 0.0
    %2336 = vmatpush1.msra.mxu0 0.0
    %2337 = vmatprep.subr.mxu0 0.0
    %2338 = vmatpush1.msra.mxu0 0.0
    %2339 = vmatprep.subr.mxu0 0.0
    %2340 = vmatpush1.msra.mxu0 0.0
    %2341 = vmatprep.subr.mxu0 0.0
    %2342 = vmatpush1.msra.mxu0 0.0
    %2343 = vmatprep.subr.mxu0 0.0
    %2344 = vmatpush1.msra.mxu0 0.0
    %2345 = vmatprep.subr.mxu0 0.0
    %2346 = vmatpush1.msra.mxu0 %v2312
    %2347 = vmatprep.subr.mxu0 0.0
    %2348 = vmatpush1.msra.mxu0 %v2311
    %2349 = vmatprep.subr.mxu0 0.0
    %2350 = vmatpush2.msra.mxu0 0.0
    %2351 = vmatprep.subr.mxu0 0.0
    %2352 = vmatpush2.msra.mxu0 0.0
    %2353 = vmatprep.subr.mxu0 0.0
    %2354 = vmatpush2.msra.mxu0 0.0
    %2355 = vmatprep.subr.mxu0 0.0
    %2356 = vmatpush2.msra.mxu0 0.0
    %2357 = vmatprep.subr.mxu0 0.0
    %2358 = vmatpush2.msra.mxu0 0.0
    %2359 = vmatprep.subr.mxu0 0.0
    %2360 = vmatpush2.msra.mxu0 0.0
    %2361 = vmatprep.subr.mxu0 0.0
    %2362 = vmatpush2.msra.mxu0 0.0
    %2363 = vmatprep.subr.mxu0 0.0
    %2364 = vmatpush2.msra.mxu0 0.0
    %2365 = vmatprep.subr.mxu0 0.0
    %2366 = vmatpush2.msra.mxu0 0.0
    %2367 = vmatprep.subr.mxu0 0.0
    %2368 = vmatpush2.msra.mxu0 0.0
    %2369 = vmatprep.subr.mxu0 0.0
    %2370 = vmatpush2.msra.mxu0 0.0
    %2371 = vmatprep.subr.mxu0 0.0
    %2372 = vmatpush2.msra.mxu0 0.0
    %2373 = vmatprep.subr.mxu0 0.0
    %2374 = vmatpush2.msra.mxu0 0.0
    %2375 = vmatprep.subr.mxu0 0.0
    %2376 = vmatpush2.msra.mxu0 0.0
    %2377 = vmatprep.subr.mxu0 0.0
    %2378 = vmatpush2.msra.mxu0 0.0
    %2379 = vmatprep.subr.mxu0 0.0
    %2380 = vmatpush2.msra.mxu0 0.0
    %2381 = vmatprep.mubr.f32.mxu0 0.0
    %2382 = vmatmul.mubr.f32.gmra.mxu0 %v2315
    %v2383 = vpop.f32.mrf.mxu0
    %v2384 = vadd.f32 0.0, %v2383
    %v2385 = vpop.f32.mrf.mxu0
    %2386 = vdwg.mxu0
    %2387 = vst.msk [vmem:[#allocation6 + $0x9] sm:$0x1] %vm1405, %v2384
    %v2388 = vld [vmem:[#allocation3 + $0xa] sm:$0x1]
    %v2389 = vlaneseq
    %v2390 = vshrl.u32 %v2389, 7
    %v2391 = vsub.s32 0, %v2390
    %v2392 = vrot.slane %v2388, %v2391
    %v2393 = vmul.f32 %v1295, %v2392
    %v2394 = vmul.f32 %v1296, %v2392
    %v2395 = vmul.f32 %v2393, 1.442695
    %v2396 = vpow.pop %v2395
    %v2397 = vmul.f32 %v2394, 1.442695
    %v2398 = vpow.pop %v2397
    %v2399 = vmul.f32 %v2396, %v2311
    %v2400 = vmul.f32 %v2398, %v2312
    %v2401 = vld [vmem:[#allocation4] sm:$0xff]
    %v2402 = vld [vmem:[#allocation4 + $0x8] sm:$0xff]
    %v2403 = vld [vmem:[#allocation2 + $0xa] sm:$0x1]
    %2405 = vset.pattern.permute.xlu0 10
    %2406 = vperm.xlu0 %2405, %v2401
    %v2407 = vpop.permute.xlu0 %2406
    %2410 = vset.pattern.permute.xlu0 10
    %2411 = vperm.xlu0 %2410, %v2402
    %v2412 = vpop.permute.xlu0 %2411
    %v2414 = vlaneseq
    %v2415 = vshrl.u32 %v2414, 7
    %v2416 = vsub.s32 0, %v2415
    %v2417 = vrot.slane %v2403, %v2416
    %v2418 = vmul.f32 %v2407, %v2417
    %v2419 = vmul.f32 %v2412, %v2417
    %v2420 = vadd.f32 %v2399, %v2418
    %v2421 = vadd.f32 %v2400, %v2419
    %v2422 = vld [vmem:[#allocation5 + $0xa] sm:$0x1]
    %v2424 = vsel %vm272, %v2422, 0
    %2426 = vmatprep.subr.mxu0 0.0
    %2427 = vmatpush1.msra.mxu0 0.0
    %2428 = vmatprep.subr.mxu0 0.0
    %2429 = vmatpush1.msra.mxu0 0.0
    %2430 = vmatprep.subr.mxu0 0.0
    %2431 = vmatpush1.msra.mxu0 0.0
    %2432 = vmatprep.subr.mxu0 0.0
    %2433 = vmatpush1.msra.mxu0 0.0
    %2434 = vmatprep.subr.mxu0 0.0
    %2435 = vmatpush1.msra.mxu0 0.0
    %2436 = vmatprep.subr.mxu0 0.0
    %2437 = vmatpush1.msra.mxu0 0.0
    %2438 = vmatprep.subr.mxu0 0.0
    %2439 = vmatpush1.msra.mxu0 0.0
    %2440 = vmatprep.subr.mxu0 0.0
    %2441 = vmatpush1.msra.mxu0 0.0
    %2442 = vmatprep.subr.mxu0 0.0
    %2443 = vmatpush1.msra.mxu0 0.0
    %2444 = vmatprep.subr.mxu0 0.0
    %2445 = vmatpush1.msra.mxu0 0.0
    %2446 = vmatprep.subr.mxu0 0.0
    %2447 = vmatpush1.msra.mxu0 0.0
    %2448 = vmatprep.subr.mxu0 0.0
    %2449 = vmatpush1.msra.mxu0 0.0
    %2450 = vmatprep.subr.mxu0 0.0
    %2451 = vmatpush1.msra.mxu0 0.0
    %2452 = vmatprep.subr.mxu0 0.0
    %2453 = vmatpush1.msra.mxu0 0.0
    %2454 = vmatprep.subr.mxu0 0.0
    %2455 = vmatpush1.msra.mxu0 %v2421
    %2456 = vmatprep.subr.mxu0 0.0
    %2457 = vmatpush1.msra.mxu0 %v2420
    %2458 = vmatprep.subr.mxu0 0.0
    %2459 = vmatpush2.msra.mxu0 0.0
    %2460 = vmatprep.subr.mxu0 0.0
    %2461 = vmatpush2.msra.mxu0 0.0
    %2462 = vmatprep.subr.mxu0 0.0
    %2463 = vmatpush2.msra.mxu0 0.0
    %2464 = vmatprep.subr.mxu0 0.0
    %2465 = vmatpush2.msra.mxu0 0.0
    %2466 = vmatprep.subr.mxu0 0.0
    %2467 = vmatpush2.msra.mxu0 0.0
    %2468 = vmatprep.subr.mxu0 0.0
    %2469 = vmatpush2.msra.mxu0 0.0
    %2470 = vmatprep.subr.mxu0 0.0
    %2471 = vmatpush2.msra.mxu0 0.0
    %2472 = vmatprep.subr.mxu0 0.0
    %2473 = vmatpush2.msra.mxu0 0.0
    %2474 = vmatprep.subr.mxu0 0.0
    %2475 = vmatpush2.msra.mxu0 0.0
    %2476 = vmatprep.subr.mxu0 0.0
    %2477 = vmatpush2.msra.mxu0 0.0
    %2478 = vmatprep.subr.mxu0 0.0
    %2479 = vmatpush2.msra.mxu0 0.0
    %2480 = vmatprep.subr.mxu0 0.0
    %2481 = vmatpush2.msra.mxu0 0.0
    %2482 = vmatprep.subr.mxu0 0.0
    %2483 = vmatpush2.msra.mxu0 0.0
    %2484 = vmatprep.subr.mxu0 0.0
    %2485 = vmatpush2.msra.mxu0 0.0
    %2486 = vmatprep.subr.mxu0 0.0
    %2487 = vmatpush2.msra.mxu0 0.0
    %2488 = vmatprep.subr.mxu0 0.0
    %2489 = vmatpush2.msra.mxu0 0.0
    %2490 = vmatprep.mubr.f32.mxu0 0.0
    %2491 = vmatmul.mubr.f32.gmra.mxu0 %v2424
    %v2492 = vpop.f32.mrf.mxu0
    %v2493 = vadd.f32 0.0, %v2492
    %v2494 = vpop.f32.mrf.mxu0
    %2495 = vdwg.mxu0
    %2496 = vst.msk [vmem:[#allocation6 + $0xa] sm:$0x1] %vm1405, %v2493
    %v2497 = vld [vmem:[#allocation3 + $0xb] sm:$0x1]
    %v2498 = vlaneseq
    %v2499 = vshrl.u32 %v2498, 7
    %v2500 = vsub.s32 0, %v2499
    %v2501 = vrot.slane %v2497, %v2500
    %v2502 = vmul.f32 %v1295, %v2501
    %v2503 = vmul.f32 %v1296, %v2501
    %v2504 = vmul.f32 %v2502, 1.442695
    %v2505 = vpow.pop %v2504
    %v2506 = vmul.f32 %v2503, 1.442695
    %v2507 = vpow.pop %v2506
    %v2508 = vmul.f32 %v2505, %v2420
    %v2509 = vmul.f32 %v2507, %v2421
    %v2510 = vld [vmem:[#allocation4] sm:$0xff]
    %v2511 = vld [vmem:[#allocation4 + $0x8] sm:$0xff]
    %v2512 = vld [vmem:[#allocation2 + $0xb] sm:$0x1]
    %2514 = vset.pattern.permute.xlu0 11
    %2515 = vperm.xlu0 %2514, %v2510
    %v2516 = vpop.permute.xlu0 %2515
    %2519 = vset.pattern.permute.xlu0 11
    %2520 = vperm.xlu0 %2519, %v2511
    %v2521 = vpop.permute.xlu0 %2520
    %v2523 = vlaneseq
    %v2524 = vshrl.u32 %v2523, 7
    %v2525 = vsub.s32 0, %v2524
    %v2526 = vrot.slane %v2512, %v2525
    %v2527 = vmul.f32 %v2516, %v2526
    %v2528 = vmul.f32 %v2521, %v2526
    %v2529 = vadd.f32 %v2508, %v2527
    %v2530 = vadd.f32 %v2509, %v2528
    %v2531 = vld [vmem:[#allocation5 + $0xb] sm:$0x1]
    %v2533 = vsel %vm272, %v2531, 0
    %2535 = vmatprep.subr.mxu0 0.0
    %2536 = vmatpush1.msra.mxu0 0.0
    %2537 = vmatprep.subr.mxu0 0.0
    %2538 = vmatpush1.msra.mxu0 0.0
    %2539 = vmatprep.subr.mxu0 0.0
    %2540 = vmatpush1.msra.mxu0 0.0
    %2541 = vmatprep.subr.mxu0 0.0
    %2542 = vmatpush1.msra.mxu0 0.0
    %2543 = vmatprep.subr.mxu0 0.0
    %2544 = vmatpush1.msra.mxu0 0.0
    %2545 = vmatprep.subr.mxu0 0.0
    %2546 = vmatpush1.msra.mxu0 0.0
    %2547 = vmatprep.subr.mxu0 0.0
    %2548 = vmatpush1.msra.mxu0 0.0
    %2549 = vmatprep.subr.mxu0 0.0
    %2550 = vmatpush1.msra.mxu0 0.0
    %2551 = vmatprep.subr.mxu0 0.0
    %2552 = vmatpush1.msra.mxu0 0.0
    %2553 = vmatprep.subr.mxu0 0.0
    %2554 = vmatpush1.msra.mxu0 0.0
    %2555 = vmatprep.subr.mxu0 0.0
    %2556 = vmatpush1.msra.mxu0 0.0
    %2557 = vmatprep.subr.mxu0 0.0
    %2558 = vmatpush1.msra.mxu0 0.0
    %2559 = vmatprep.subr.mxu0 0.0
    %2560 = vmatpush1.msra.mxu0 0.0
    %2561 = vmatprep.subr.mxu0 0.0
    %2562 = vmatpush1.msra.mxu0 0.0
    %2563 = vmatprep.subr.mxu0 0.0
    %2564 = vmatpush1.msra.mxu0 %v2530
    %2565 = vmatprep.subr.mxu0 0.0
    %2566 = vmatpush1.msra.mxu0 %v2529
    %2567 = vmatprep.subr.mxu0 0.0
    %2568 = vmatpush2.msra.mxu0 0.0
    %2569 = vmatprep.subr.mxu0 0.0
    %2570 = vmatpush2.msra.mxu0 0.0
    %2571 = vmatprep.subr.mxu0 0.0
    %2572 = vmatpush2.msra.mxu0 0.0
    %2573 = vmatprep.subr.mxu0 0.0
    %2574 = vmatpush2.msra.mxu0 0.0
    %2575 = vmatprep.subr.mxu0 0.0
    %2576 = vmatpush2.msra.mxu0 0.0
    %2577 = vmatprep.subr.mxu0 0.0
    %2578 = vmatpush2.msra.mxu0 0.0
    %2579 = vmatprep.subr.mxu0 0.0
    %2580 = vmatpush2.msra.mxu0 0.0
    %2581 = vmatprep.subr.mxu0 0.0
    %2582 = vmatpush2.msra.mxu0 0.0
    %2583 = vmatprep.subr.mxu0 0.0
    %2584 = vmatpush2.msra.mxu0 0.0
    %2585 = vmatprep.subr.mxu0 0.0
    %2586 = vmatpush2.msra.mxu0 0.0
    %2587 = vmatprep.subr.mxu0 0.0
    %2588 = vmatpush2.msra.mxu0 0.0
    %2589 = vmatprep.subr.mxu0 0.0
    %2590 = vmatpush2.msra.mxu0 0.0
    %2591 = vmatprep.subr.mxu0 0.0
    %2592 = vmatpush2.msra.mxu0 0.0
    %2593 = vmatprep.subr.mxu0 0.0
    %2594 = vmatpush2.msra.mxu0 0.0
    %2595 = vmatprep.subr.mxu0 0.0
    %2596 = vmatpush2.msra.mxu0 0.0
    %2597 = vmatprep.subr.mxu0 0.0
    %2598 = vmatpush2.msra.mxu0 0.0
    %2599 = vmatprep.mubr.f32.mxu0 0.0
    %2600 = vmatmul.mubr.f32.gmra.mxu0 %v2533
    %v2601 = vpop.f32.mrf.mxu0
    %v2602 = vadd.f32 0.0, %v2601
    %v2603 = vpop.f32.mrf.mxu0
    %2604 = vdwg.mxu0
    %2605 = vst.msk [vmem:[#allocation6 + $0xb] sm:$0x1] %vm1405, %v2602
    %v2606 = vld [vmem:[#allocation3 + $0xc] sm:$0x1]
    %v2607 = vlaneseq
    %v2608 = vshrl.u32 %v2607, 7
    %v2609 = vsub.s32 0, %v2608
    %v2610 = vrot.slane %v2606, %v2609
    %v2611 = vmul.f32 %v1295, %v2610
    %v2612 = vmul.f32 %v1296, %v2610
    %v2613 = vmul.f32 %v2611, 1.442695
    %v2614 = vpow.pop %v2613
    %v2615 = vmul.f32 %v2612, 1.442695
    %v2616 = vpow.pop %v2615
    %v2617 = vmul.f32 %v2614, %v2529
    %v2618 = vmul.f32 %v2616, %v2530
    %v2619 = vld [vmem:[#allocation4] sm:$0xff]
    %v2620 = vld [vmem:[#allocation4 + $0x8] sm:$0xff]
    %v2621 = vld [vmem:[#allocation2 + $0xc] sm:$0x1]
    %2623 = vset.pattern.permute.xlu0 12
    %2624 = vperm.xlu0 %2623, %v2619
    %v2625 = vpop.permute.xlu0 %2624
    %2628 = vset.pattern.permute.xlu0 12
    %2629 = vperm.xlu0 %2628, %v2620
    %v2630 = vpop.permute.xlu0 %2629
    %v2632 = vlaneseq
    %v2633 = vshrl.u32 %v2632, 7
    %v2634 = vsub.s32 0, %v2633
    %v2635 = vrot.slane %v2621, %v2634
    %v2636 = vmul.f32 %v2625, %v2635
    %v2637 = vmul.f32 %v2630, %v2635
    %v2638 = vadd.f32 %v2617, %v2636
    %v2639 = vadd.f32 %v2618, %v2637
    %v2640 = vld [vmem:[#allocation5 + $0xc] sm:$0x1]
    %v2642 = vsel %vm272, %v2640, 0
    %2644 = vmatprep.subr.mxu0 0.0
    %2645 = vmatpush1.msra.mxu0 0.0
    %2646 = vmatprep.subr.mxu0 0.0
    %2647 = vmatpush1.msra.mxu0 0.0
    %2648 = vmatprep.subr.mxu0 0.0
    %2649 = vmatpush1.msra.mxu0 0.0
    %2650 = vmatprep.subr.mxu0 0.0
    %2651 = vmatpush1.msra.mxu0 0.0
    %2652 = vmatprep.subr.mxu0 0.0
    %2653 = vmatpush1.msra.mxu0 0.0
    %2654 = vmatprep.subr.mxu0 0.0
    %2655 = vmatpush1.msra.mxu0 0.0
    %2656 = vmatprep.subr.mxu0 0.0
    %2657 = vmatpush1.msra.mxu0 0.0
    %2658 = vmatprep.subr.mxu0 0.0
    %2659 = vmatpush1.msra.mxu0 0.0
    %2660 = vmatprep.subr.mxu0 0.0
    %2661 = vmatpush1.msra.mxu0 0.0
    %2662 = vmatprep.subr.mxu0 0.0
    %2663 = vmatpush1.msra.mxu0 0.0
    %2664 = vmatprep.subr.mxu0 0.0
    %2665 = vmatpush1.msra.mxu0 0.0
    %2666 = vmatprep.subr.mxu0 0.0
    %2667 = vmatpush1.msra.mxu0 0.0
    %2668 = vmatprep.subr.mxu0 0.0
    %2669 = vmatpush1.msra.mxu0 0.0
    %2670 = vmatprep.subr.mxu0 0.0
    %2671 = vmatpush1.msra.mxu0 0.0
    %2672 = vmatprep.subr.mxu0 0.0
    %2673 = vmatpush1.msra.mxu0 %v2639
    %2674 = vmatprep.subr.mxu0 0.0
    %2675 = vmatpush1.msra.mxu0 %v2638
    %2676 = vmatprep.subr.mxu0 0.0
    %2677 = vmatpush2.msra.mxu0 0.0
    %2678 = vmatprep.subr.mxu0 0.0
    %2679 = vmatpush2.msra.mxu0 0.0
    %2680 = vmatprep.subr.mxu0 0.0
    %2681 = vmatpush2.msra.mxu0 0.0
    %2682 = vmatprep.subr.mxu0 0.0
    %2683 = vmatpush2.msra.mxu0 0.0
    %2684 = vmatprep.subr.mxu0 0.0
    %2685 = vmatpush2.msra.mxu0 0.0
    %2686 = vmatprep.subr.mxu0 0.0
    %2687 = vmatpush2.msra.mxu0 0.0
    %2688 = vmatprep.subr.mxu0 0.0
    %2689 = vmatpush2.msra.mxu0 0.0
    %2690 = vmatprep.subr.mxu0 0.0
    %2691 = vmatpush2.msra.mxu0 0.0
    %2692 = vmatprep.subr.mxu0 0.0
    %2693 = vmatpush2.msra.mxu0 0.0
    %2694 = vmatprep.subr.mxu0 0.0
    %2695 = vmatpush2.msra.mxu0 0.0
    %2696 = vmatprep.subr.mxu0 0.0
    %2697 = vmatpush2.msra.mxu0 0.0
    %2698 = vmatprep.subr.mxu0 0.0
    %2699 = vmatpush2.msra.mxu0 0.0
    %2700 = vmatprep.subr.mxu0 0.0
    %2701 = vmatpush2.msra.mxu0 0.0
    %2702 = vmatprep.subr.mxu0 0.0
    %2703 = vmatpush2.msra.mxu0 0.0
    %2704 = vmatprep.subr.mxu0 0.0
    %2705 = vmatpush2.msra.mxu0 0.0
    %2706 = vmatprep.subr.mxu0 0.0
    %2707 = vmatpush2.msra.mxu0 0.0
    %2708 = vmatprep.mubr.f32.mxu0 0.0
    %2709 = vmatmul.mubr.f32.gmra.mxu0 %v2642
    %v2710 = vpop.f32.mrf.mxu0
    %v2711 = vadd.f32 0.0, %v2710
    %v2712 = vpop.f32.mrf.mxu0
    %2713 = vdwg.mxu0
    %2714 = vst.msk [vmem:[#allocation6 + $0xc] sm:$0x1] %vm1405, %v2711
    %v2715 = vld [vmem:[#allocation3 + $0xd] sm:$0x1]
    %v2716 = vlaneseq
    %v2717 = vshrl.u32 %v2716, 7
    %v2718 = vsub.s32 0, %v2717
    %v2719 = vrot.slane %v2715, %v2718
    %v2720 = vmul.f32 %v1295, %v2719
    %v2721 = vmul.f32 %v1296, %v2719
    %v2722 = vmul.f32 %v2720, 1.442695
    %v2723 = vpow.pop %v2722
    %v2724 = vmul.f32 %v2721, 1.442695
    %v2725 = vpow.pop %v2724
    %v2726 = vmul.f32 %v2723, %v2638
    %v2727 = vmul.f32 %v2725, %v2639
    %v2728 = vld [vmem:[#allocation4] sm:$0xff]
    %v2729 = vld [vmem:[#allocation4 + $0x8] sm:$0xff]
    %v2730 = vld [vmem:[#allocation2 + $0xd] sm:$0x1]
    %2732 = vset.pattern.permute.xlu0 13
    %2733 = vperm.xlu0 %2732, %v2728
    %v2734 = vpop.permute.xlu0 %2733
    %2737 = vset.pattern.permute.xlu0 13
    %2738 = vperm.xlu0 %2737, %v2729
    %v2739 = vpop.permute.xlu0 %2738
    %v2741 = vlaneseq
    %v2742 = vshrl.u32 %v2741, 7
    %v2743 = vsub.s32 0, %v2742
    %v2744 = vrot.slane %v2730, %v2743
    %v2745 = vmul.f32 %v2734, %v2744
    %v2746 = vmul.f32 %v2739, %v2744
    %v2747 = vadd.f32 %v2726, %v2745
    %v2748 = vadd.f32 %v2727, %v2746
    %v2749 = vld [vmem:[#allocation5 + $0xd] sm:$0x1]
    %v2751 = vsel %vm272, %v2749, 0
    %2753 = vmatprep.subr.mxu0 0.0
    %2754 = vmatpush1.msra.mxu0 0.0
    %2755 = vmatprep.subr.mxu0 0.0
    %2756 = vmatpush1.msra.mxu0 0.0
    %2757 = vmatprep.subr.mxu0 0.0
    %2758 = vmatpush1.msra.mxu0 0.0
    %2759 = vmatprep.subr.mxu0 0.0
    %2760 = vmatpush1.msra.mxu0 0.0
    %2761 = vmatprep.subr.mxu0 0.0
    %2762 = vmatpush1.msra.mxu0 0.0
    %2763 = vmatprep.subr.mxu0 0.0
    %2764 = vmatpush1.msra.mxu0 0.0
    %2765 = vmatprep.subr.mxu0 0.0
    %2766 = vmatpush1.msra.mxu0 0.0
    %2767 = vmatprep.subr.mxu0 0.0
    %2768 = vmatpush1.msra.mxu0 0.0
    %2769 = vmatprep.subr.mxu0 0.0
    %2770 = vmatpush1.msra.mxu0 0.0
    %2771 = vmatprep.subr.mxu0 0.0
    %2772 = vmatpush1.msra.mxu0 0.0
    %2773 = vmatprep.subr.mxu0 0.0
    %2774 = vmatpush1.msra.mxu0 0.0
    %2775 = vmatprep.subr.mxu0 0.0
    %2776 = vmatpush1.msra.mxu0 0.0
    %2777 = vmatprep.subr.mxu0 0.0
    %2778 = vmatpush1.msra.mxu0 0.0
    %2779 = vmatprep.subr.mxu0 0.0
    %2780 = vmatpush1.msra.mxu0 0.0
    %2781 = vmatprep.subr.mxu0 0.0
    %2782 = vmatpush1.msra.mxu0 %v2748
    %2783 = vmatprep.subr.mxu0 0.0
    %2784 = vmatpush1.msra.mxu0 %v2747
    %2785 = vmatprep.subr.mxu0 0.0
    %2786 = vmatpush2.msra.mxu0 0.0
    %2787 = vmatprep.subr.mxu0 0.0
    %2788 = vmatpush2.msra.mxu0 0.0
    %2789 = vmatprep.subr.mxu0 0.0
    %2790 = vmatpush2.msra.mxu0 0.0
    %2791 = vmatprep.subr.mxu0 0.0
    %2792 = vmatpush2.msra.mxu0 0.0
    %2793 = vmatprep.subr.mxu0 0.0
    %2794 = vmatpush2.msra.mxu0 0.0
    %2795 = vmatprep.subr.mxu0 0.0
    %2796 = vmatpush2.msra.mxu0 0.0
    %2797 = vmatprep.subr.mxu0 0.0
    %2798 = vmatpush2.msra.mxu0 0.0
    %2799 = vmatprep.subr.mxu0 0.0
    %2800 = vmatpush2.msra.mxu0 0.0
    %2801 = vmatprep.subr.mxu0 0.0
    %2802 = vmatpush2.msra.mxu0 0.0
    %2803 = vmatprep.subr.mxu0 0.0
    %2804 = vmatpush2.msra.mxu0 0.0
    %2805 = vmatprep.subr.mxu0 0.0
    %2806 = vmatpush2.msra.mxu0 0.0
    %2807 = vmatprep.subr.mxu0 0.0
    %2808 = vmatpush2.msra.mxu0 0.0
    %2809 = vmatprep.subr.mxu0 0.0
    %2810 = vmatpush2.msra.mxu0 0.0
    %2811 = vmatprep.subr.mxu0 0.0
    %2812 = vmatpush2.msra.mxu0 0.0
    %2813 = vmatprep.subr.mxu0 0.0
    %2814 = vmatpush2.msra.mxu0 0.0
    %2815 = vmatprep.subr.mxu0 0.0
    %2816 = vmatpush2.msra.mxu0 0.0
    %2817 = vmatprep.mubr.f32.mxu0 0.0
    %2818 = vmatmul.mubr.f32.gmra.mxu0 %v2751
    %v2819 = vpop.f32.mrf.mxu0
    %v2820 = vadd.f32 0.0, %v2819
    %v2821 = vpop.f32.mrf.mxu0
    %2822 = vdwg.mxu0
    %2823 = vst.msk [vmem:[#allocation6 + $0xd] sm:$0x1] %vm1405, %v2820
    %v2824 = vld [vmem:[#allocation3 + $0xe] sm:$0x1]
    %v2825 = vlaneseq
    %v2826 = vshrl.u32 %v2825, 7
    %v2827 = vsub.s32 0, %v2826
    %v2828 = vrot.slane %v2824, %v2827
    %v2829 = vmul.f32 %v1295, %v2828
    %v2830 = vmul.f32 %v1296, %v2828
    %v2831 = vmul.f32 %v2829, 1.442695
    %v2832 = vpow.pop %v2831
    %v2833 = vmul.f32 %v2830, 1.442695
    %v2834 = vpow.pop %v2833
    %v2835 = vmul.f32 %v2832, %v2747
    %v2836 = vmul.f32 %v2834, %v2748
    %v2837 = vld [vmem:[#allocation4] sm:$0xff]
    %v2838 = vld [vmem:[#allocation4 + $0x8] sm:$0xff]
    %v2839 = vld [vmem:[#allocation2 + $0xe] sm:$0x1]
    %2841 = vset.pattern.permute.xlu0 14
    %2842 = vperm.xlu0 %2841, %v2837
    %v2843 = vpop.permute.xlu0 %2842
    %2846 = vset.pattern.permute.xlu0 14
    %2847 = vperm.xlu0 %2846, %v2838
    %v2848 = vpop.permute.xlu0 %2847
    %v2850 = vlaneseq
    %v2851 = vshrl.u32 %v2850, 7
    %v2852 = vsub.s32 0, %v2851
    %v2853 = vrot.slane %v2839, %v2852
    %v2854 = vmul.f32 %v2843, %v2853
    %v2855 = vmul.f32 %v2848, %v2853
    %v2856 = vadd.f32 %v2835, %v2854
    %v2857 = vadd.f32 %v2836, %v2855
    %v2858 = vld [vmem:[#allocation5 + $0xe] sm:$0x1]
    %v2860 = vsel %vm272, %v2858, 0
    %2862 = vmatprep.subr.mxu0 0.0
    %2863 = vmatpush1.msra.mxu0 0.0
    %2864 = vmatprep.subr.mxu0 0.0
    %2865 = vmatpush1.msra.mxu0 0.0
    %2866 = vmatprep.subr.mxu0 0.0
    %2867 = vmatpush1.msra.mxu0 0.0
    %2868 = vmatprep.subr.mxu0 0.0
    %2869 = vmatpush1.msra.mxu0 0.0
    %2870 = vmatprep.subr.mxu0 0.0
    %2871 = vmatpush1.msra.mxu0 0.0
    %2872 = vmatprep.subr.mxu0 0.0
    %2873 = vmatpush1.msra.mxu0 0.0
    %2874 = vmatprep.subr.mxu0 0.0
    %2875 = vmatpush1.msra.mxu0 0.0
    %2876 = vmatprep.subr.mxu0 0.0
    %2877 = vmatpush1.msra.mxu0 0.0
    %2878 = vmatprep.subr.mxu0 0.0
    %2879 = vmatpush1.msra.mxu0 0.0
    %2880 = vmatprep.subr.mxu0 0.0
    %2881 = vmatpush1.msra.mxu0 0.0
    %2882 = vmatprep.subr.mxu0 0.0
    %2883 = vmatpush1.msra.mxu0 0.0
    %2884 = vmatprep.subr.mxu0 0.0
    %2885 = vmatpush1.msra.mxu0 0.0
    %2886 = vmatprep.subr.mxu0 0.0
    %2887 = vmatpush1.msra.mxu0 0.0
    %2888 = vmatprep.subr.mxu0 0.0
    %2889 = vmatpush1.msra.mxu0 0.0
    %2890 = vmatprep.subr.mxu0 0.0
    %2891 = vmatpush1.msra.mxu0 %v2857
    %2892 = vmatprep.subr.mxu0 0.0
    %2893 = vmatpush1.msra.mxu0 %v2856
    %2894 = vmatprep.subr.mxu0 0.0
    %2895 = vmatpush2.msra.mxu0 0.0
    %2896 = vmatprep.subr.mxu0 0.0
    %2897 = vmatpush2.msra.mxu0 0.0
    %2898 = vmatprep.subr.mxu0 0.0
    %2899 = vmatpush2.msra.mxu0 0.0
    %2900 = vmatprep.subr.mxu0 0.0
    %2901 = vmatpush2.msra.mxu0 0.0
    %2902 = vmatprep.subr.mxu0 0.0
    %2903 = vmatpush2.msra.mxu0 0.0
    %2904 = vmatprep.subr.mxu0 0.0
    %2905 = vmatpush2.msra.mxu0 0.0
    %2906 = vmatprep.subr.mxu0 0.0
    %2907 = vmatpush2.msra.mxu0 0.0
    %2908 = vmatprep.subr.mxu0 0.0
    %2909 = vmatpush2.msra.mxu0 0.0
    %2910 = vmatprep.subr.mxu0 0.0
    %2911 = vmatpush2.msra.mxu0 0.0
    %2912 = vmatprep.subr.mxu0 0.0
    %2913 = vmatpush2.msra.mxu0 0.0
    %2914 = vmatprep.subr.mxu0 0.0
    %2915 = vmatpush2.msra.mxu0 0.0
    %2916 = vmatprep.subr.mxu0 0.0
    %2917 = vmatpush2.msra.mxu0 0.0
    %2918 = vmatprep.subr.mxu0 0.0
    %2919 = vmatpush2.msra.mxu0 0.0
    %2920 = vmatprep.subr.mxu0 0.0
    %2921 = vmatpush2.msra.mxu0 0.0
    %2922 = vmatprep.subr.mxu0 0.0
    %2923 = vmatpush2.msra.mxu0 0.0
    %2924 = vmatprep.subr.mxu0 0.0
    %2925 = vmatpush2.msra.mxu0 0.0
    %2926 = vmatprep.mubr.f32.mxu0 0.0
    %2927 = vmatmul.mubr.f32.gmra.mxu0 %v2860
    %v2928 = vpop.f32.mrf.mxu0
    %v2929 = vadd.f32 0.0, %v2928
    %v2930 = vpop.f32.mrf.mxu0
    %2931 = vdwg.mxu0
    %2932 = vst.msk [vmem:[#allocation6 + $0xe] sm:$0x1] %vm1405, %v2929
    %v2933 = vld [vmem:[#allocation3 + $0xf] sm:$0x1]
    %v2934 = vlaneseq
    %v2935 = vshrl.u32 %v2934, 7
    %v2936 = vsub.s32 0, %v2935
    %v2937 = vrot.slane %v2933, %v2936
    %v2938 = vmul.f32 %v1295, %v2937
    %v2939 = vmul.f32 %v1296, %v2937
    %v2940 = vmul.f32 %v2938, 1.442695
    %v2941 = vpow.pop %v2940
    %v2942 = vmul.f32 %v2939, 1.442695
    %v2943 = vpow.pop %v2942
    %v2944 = vmul.f32 %v2941, %v2856
    %v2945 = vmul.f32 %v2943, %v2857
    %v2946 = vld [vmem:[#allocation4] sm:$0xff]
    %v2947 = vld [vmem:[#allocation4 + $0x8] sm:$0xff]
    %v2948 = vld [vmem:[#allocation2 + $0xf] sm:$0x1]
    %2950 = vset.pattern.permute.xlu0 15
    %2951 = vperm.xlu0 %2950, %v2946
    %v2952 = vpop.permute.xlu0 %2951
    %2955 = vset.pattern.permute.xlu0 15
    %2956 = vperm.xlu0 %2955, %v2947
    %v2957 = vpop.permute.xlu0 %2956
    %v2959 = vlaneseq
    %v2960 = vshrl.u32 %v2959, 7
    %v2961 = vsub.s32 0, %v2960
    %v2962 = vrot.slane %v2948, %v2961
    %v2963 = vmul.f32 %v2952, %v2962
    %v2964 = vmul.f32 %v2957, %v2962
    %v2965 = vadd.f32 %v2944, %v2963
    %v2966 = vadd.f32 %v2945, %v2964
    %v2967 = vld [vmem:[#allocation5 + $0xf] sm:$0x1]
    %v2969 = vsel %vm272, %v2967, 0
    %2971 = vmatprep.subr.mxu0 0.0
    %2972 = vmatpush1.msra.mxu0 0.0
    %2973 = vmatprep.subr.mxu0 0.0
    %2974 = vmatpush1.msra.mxu0 0.0
    %2975 = vmatprep.subr.mxu0 0.0
    %2976 = vmatpush1.msra.mxu0 0.0
    %2977 = vmatprep.subr.mxu0 0.0
    %2978 = vmatpush1.msra.mxu0 0.0
    %2979 = vmatprep.subr.mxu0 0.0
    %2980 = vmatpush1.msra.mxu0 0.0
    %2981 = vmatprep.subr.mxu0 0.0
    %2982 = vmatpush1.msra.mxu0 0.0
    %2983 = vmatprep.subr.mxu0 0.0
    %2984 = vmatpush1.msra.mxu0 0.0
    %2985 = vmatprep.subr.mxu0 0.0
    %2986 = vmatpush1.msra.mxu0 0.0
    %2987 = vmatprep.subr.mxu0 0.0
    %2988 = vmatpush1.msra.mxu0 0.0
    %2989 = vmatprep.subr.mxu0 0.0
    %2990 = vmatpush1.msra.mxu0 0.0
    %2991 = vmatprep.subr.mxu0 0.0
    %2992 = vmatpush1.msra.mxu0 0.0
    %2993 = vmatprep.subr.mxu0 0.0
    %2994 = vmatpush1.msra.mxu0 0.0
    %2995 = vmatprep.subr.mxu0 0.0
    %2996 = vmatpush1.msra.mxu0 0.0
    %2997 = vmatprep.subr.mxu0 0.0
    %2998 = vmatpush1.msra.mxu0 0.0
    %2999 = vmatprep.subr.mxu0 0.0
    %3000 = vmatpush1.msra.mxu0 %v2966
    %3001 = vmatprep.subr.mxu0 0.0
    %3002 = vmatpush1.msra.mxu0 %v2965
    %3003 = vmatprep.subr.mxu0 0.0
    %3004 = vmatpush2.msra.mxu0 0.0
    %3005 = vmatprep.subr.mxu0 0.0
    %3006 = vmatpush2.msra.mxu0 0.0
    %3007 = vmatprep.subr.mxu0 0.0
    %3008 = vmatpush2.msra.mxu0 0.0
    %3009 = vmatprep.subr.mxu0 0.0
    %3010 = vmatpush2.msra.mxu0 0.0
    %3011 = vmatprep.subr.mxu0 0.0
    %3012 = vmatpush2.msra.mxu0 0.0
    %3013 = vmatprep.subr.mxu0 0.0
    %3014 = vmatpush2.msra.mxu0 0.0
    %3015 = vmatprep.subr.mxu0 0.0
    %3016 = vmatpush2.msra.mxu0 0.0
    %3017 = vmatprep.subr.mxu0 0.0
    %3018 = vmatpush2.msra.mxu0 0.0
    %3019 = vmatprep.subr.mxu0 0.0
    %3020 = vmatpush2.msra.mxu0 0.0
    %3021 = vmatprep.subr.mxu0 0.0
    %3022 = vmatpush2.msra.mxu0 0.0
    %3023 = vmatprep.subr.mxu0 0.0
    %3024 = vmatpush2.msra.mxu0 0.0
    %3025 = vmatprep.subr.mxu0 0.0
    %3026 = vmatpush2.msra.mxu0 0.0
    %3027 = vmatprep.subr.mxu0 0.0
    %3028 = vmatpush2.msra.mxu0 0.0
    %3029 = vmatprep.subr.mxu0 0.0
    %3030 = vmatpush2.msra.mxu0 0.0
    %3031 = vmatprep.subr.mxu0 0.0
    %3032 = vmatpush2.msra.mxu0 0.0
    %3033 = vmatprep.subr.mxu0 0.0
    %3034 = vmatpush2.msra.mxu0 0.0
    %3035 = vmatprep.mubr.f32.mxu0 0.0
    %3036 = vmatmul.mubr.f32.gmra.mxu0 %v2969
    %v3037 = vpop.f32.mrf.mxu0
    %v3038 = vadd.f32 0.0, %v3037
    %v3039 = vpop.f32.mrf.mxu0
    %3040 = vdwg.mxu0
    %3041 = vst.msk [vmem:[#allocation6 + $0xf] sm:$0x1] %vm1405, %v3038
    %v3042 = vld [vmem:[#allocation6] sm:$0xff]
    %v3043 = vld [vmem:[#allocation6 + $0x8] sm:$0xff]
    %v3044 = vld [vmem:[%s7 + $0x2] sm:$0x1]
    %v3045 = vlaneseq
    %v3046 = vshrl.u32 %v3045, 7
    %v3047 = vsub.s32 0, %v3046
    %v3048 = vrot.slane %v3044, %v3047
    %v3049 = vmul.f32 %v3048, %v976
    %v3050 = vmul.f32 %v3048, %v977
    %v3051 = vadd.f32 %v3042, %v3049
    %v3052 = vadd.f32 %v3043, %v3050
    %v3053 = vxor.u32 %v881, 2147483648
    %v3054 = vxor.u32 %v886, 2147483648
    %v3055 = vmul.f32 %v3053, 1.442695
    %v3056 = vpow.pop %v3055
    %v3057 = vmul.f32 %v3054, 1.442695
    %v3058 = vpow.pop %v3057
    %v3059 = vadd.f32 %v3056, 1.0
    %v3060 = vadd.f32 %v3058, 1.0
    %v3061 = vrcp.pop %v3059
    %v3062 = vmul.f32 1.0, %v3061
    %v3063 = vrcp.pop %v3060
    %v3064 = vmul.f32 1.0, %v3063
    %v3065 = vmul.f32 %v881, %v3062
    %v3066 = vmul.f32 %v886, %v3064
    %3069 = vrot.lane.b32.xlu0 %v3065, 64
    %v3070 = vpop.permute.xlu0 %3069
    %3071 = vrot.lane.b32.xlu0 %v3066, 64
    %v3072 = vpop.permute.xlu0 %3071
    %v3075 = vmul.f32 %v3051, %v3070
    %v3076 = vmul.f32 %v3052, %v3072
    %v3077 = vld [vmem:[%s12] sm:$0xff]
    %v3078 = vld [vmem:[%s12 + $0x8] sm:$0xff]
    %v3079 = vld [vmem:[%s12 + $0x10] sm:$0xff]
    %v3080 = vld [vmem:[%s12 + $0x18] sm:$0xff]
    %v3081 = vld [vmem:[%s12 + $0x20] sm:$0xff]
    %v3082 = vld [vmem:[%s12 + $0x28] sm:$0xff]
    %v3083 = vld [vmem:[%s12 + $0x30] sm:$0xff]
    %v3084 = vld [vmem:[%s12 + $0x38] sm:$0xff]
    %v3086 = vsel %vm986, %v3075, 0
    %v3089 = vsel %vm986, %v3076, 0
    %3091 = vmatprep.subr.mxu0 0.0
    %3092 = vmatpush1.msra.mxu0 0.0
    %3093 = vmatprep.subr.mxu0 0.0
    %3094 = vmatpush1.msra.mxu0 0.0
    %3095 = vmatprep.subr.mxu0 0.0
    %3096 = vmatpush1.msra.mxu0 0.0
    %3097 = vmatprep.subr.mxu0 0.0
    %3098 = vmatpush1.msra.mxu0 0.0
    %3099 = vmatprep.subr.mxu0 0.0
    %3100 = vmatpush1.msra.mxu0 0.0
    %3101 = vmatprep.subr.mxu0 0.0
    %3102 = vmatpush1.msra.mxu0 0.0
    %3103 = vmatprep.subr.mxu0 0.0
    %3104 = vmatpush1.msra.mxu0 0.0
    %3105 = vmatprep.subr.mxu0 0.0
    %3106 = vmatpush1.msra.mxu0 0.0
    %3107 = vmatprep.subr.mxu0 0.0
    %3108 = vmatpush1.msra.mxu0 %v3084
    %3109 = vmatprep.subr.mxu0 0.0
    %3110 = vmatpush1.msra.mxu0 %v3083
    %3111 = vmatprep.subr.mxu0 0.0
    %3112 = vmatpush1.msra.mxu0 %v3082
    %3113 = vmatprep.subr.mxu0 0.0
    %3114 = vmatpush1.msra.mxu0 %v3081
    %3115 = vmatprep.subr.mxu0 0.0
    %3116 = vmatpush1.msra.mxu0 %v3080
    %3117 = vmatprep.subr.mxu0 0.0
    %3118 = vmatpush1.msra.mxu0 %v3079
    %3119 = vmatprep.subr.mxu0 0.0
    %3120 = vmatpush1.msra.mxu0 %v3078
    %3121 = vmatprep.subr.mxu0 0.0
    %3122 = vmatpush1.msra.mxu0 %v3077
    %3123 = vmatprep.subr.mxu0 0.0
    %3124 = vmatpush2.msra.mxu0 0.0
    %3125 = vmatprep.subr.mxu0 0.0
    %3126 = vmatpush2.msra.mxu0 0.0
    %3127 = vmatprep.subr.mxu0 0.0
    %3128 = vmatpush2.msra.mxu0 0.0
    %3129 = vmatprep.subr.mxu0 0.0
    %3130 = vmatpush2.msra.mxu0 0.0
    %3131 = vmatprep.subr.mxu0 0.0
    %3132 = vmatpush2.msra.mxu0 0.0
    %3133 = vmatprep.subr.mxu0 0.0
    %3134 = vmatpush2.msra.mxu0 0.0
    %3135 = vmatprep.subr.mxu0 0.0
    %3136 = vmatpush2.msra.mxu0 0.0
    %3137 = vmatprep.subr.mxu0 0.0
    %3138 = vmatpush2.msra.mxu0 0.0
    %3139 = vmatprep.subr.mxu0 0.0
    %3140 = vmatpush2.msra.mxu0 0.0
    %3141 = vmatprep.subr.mxu0 0.0
    %3142 = vmatpush2.msra.mxu0 0.0
    %3143 = vmatprep.subr.mxu0 0.0
    %3144 = vmatpush2.msra.mxu0 0.0
    %3145 = vmatprep.subr.mxu0 0.0
    %3146 = vmatpush2.msra.mxu0 0.0
    %3147 = vmatprep.subr.mxu0 0.0
    %3148 = vmatpush2.msra.mxu0 0.0
    %3149 = vmatprep.subr.mxu0 0.0
    %3150 = vmatpush2.msra.mxu0 0.0
    %3151 = vmatprep.subr.mxu0 0.0
    %3152 = vmatpush2.msra.mxu0 0.0
    %3153 = vmatprep.subr.mxu0 0.0
    %3154 = vmatpush2.msra.mxu0 0.0
    %3155 = vmatprep.mubr.f32.mxu0 0.0
    %3156 = vmatmul.mubr.f32.gmra.mxu0 %v3086
    %v3157 = vpop.f32.mrf.mxu0
    %v3158 = vadd.f32 %v753, %v3157
    %v3159 = vpop.f32.mrf.mxu0
    %3160 = vmatprep.mubr.f32.mxu0 0.0
    %3161 = vmatmul.mubr.f32.gmra.mxu0 %v3089
    %v3162 = vpop.f32.mrf.mxu0
    %v3163 = vadd.f32 %v754, %v3162
    %v3164 = vpop.f32.mrf.mxu0
    %3165 = vdwg.mxu0
    %s3166 = scalar_lea.vmem %s4, 2
    %v3167 = vld [vmem:[%s3166] sm:$0x1]
    %v3168 = vld [vmem:[%s3166 + $0x1] sm:$0x1]
    %v3169 = vsel %vm52, %v3158, 0.0
    %3170 = vadd.xlane.f32.xlu0 %v3169
    %v3171 = vpop.xlane.xlu0 %3170
    %v3172 = vsel %vm52, %v3163, 0.0
    %3173 = vadd.xlane.f32.xlu0 %v3172
    %v3174 = vpop.xlane.xlu0 %3173
    %v3175 = vmul.f32 %v3171, %v59
    %v3176 = vmul.f32 %v3174, %v59
    %v3177 = vsub.f32 %v3158, %v3175
    %v3178 = vsub.f32 %v3163, %v3176
    %v3179 = vmul.f32 %v3177, %v3177
    %v3180 = vmul.f32 %v3178, %v3178
    %v3181 = vsel %vm52, %v3179, 0.0
    %3182 = vadd.xlane.f32.xlu0 %v3181
    %v3183 = vpop.xlane.xlu0 %3182
    %v3184 = vsel %vm52, %v3180, 0.0
    %3185 = vadd.xlane.f32.xlu0 %v3184
    %v3186 = vpop.xlane.xlu0 %3185
    %v3187 = vmul.f32 %v3183, %v59
    %v3188 = vmul.f32 %v3186, %v59
    %v3189 = vadd.f32 %v3187, 1e-05
    %v3190 = vadd.f32 %v3188, 1e-05
    %v3191 = vrsqrt.pop %v3189
    %v3192 = vrsqrt.pop %v3190
    %v3193 = vmul.f32 %v3177, %v3191
    %v3194 = vmul.f32 %v3178, %v3192
    %v3195 = vlaneseq
    %v3196 = vshrl.u32 %v3195, 7
    %v3197 = vsub.s32 0, %v3196
    %v3198 = vrot.slane %v3167, %v3197
    %v3199 = vmul.f32 %v3193, %v3198
    %v3200 = vmul.f32 %v3194, %v3198
    %v3201 = vlaneseq
    %v3202 = vshrl.u32 %v3201, 7
    %v3203 = vsub.s32 0, %v3202
    %v3204 = vrot.slane %v3168, %v3203
    %v3205 = vadd.f32 %v3199, %v3204
    %v3206 = vadd.f32 %v3200, %v3204
    %s3207 = scalar_lea.vmem %s5, 32
    %v3208 = vld [vmem:[%s3207] sm:$0xff]
    %v3209 = vld [vmem:[%s3207 + $0x8] sm:$0xff]
    %v3210 = vld [vmem:[%s3207 + $0x10] sm:$0xff]
    %v3211 = vld [vmem:[%s3207 + $0x18] sm:$0xff]
    %v3213 = vsel %vm52, %v3205, 0
    %v3216 = vsel %vm52, %v3206, 0
    %3218 = vmatprep.subr.mxu0 0.0
    %3219 = vmatpush1.msra.mxu0 0.0
    %3220 = vmatprep.subr.mxu0 0.0
    %3221 = vmatpush1.msra.mxu0 0.0
    %3222 = vmatprep.subr.mxu0 0.0
    %3223 = vmatpush1.msra.mxu0 0.0
    %3224 = vmatprep.subr.mxu0 0.0
    %3225 = vmatpush1.msra.mxu0 0.0
    %3226 = vmatprep.subr.mxu0 0.0
    %3227 = vmatpush1.msra.mxu0 0.0
    %3228 = vmatprep.subr.mxu0 0.0
    %3229 = vmatpush1.msra.mxu0 0.0
    %3230 = vmatprep.subr.mxu0 0.0
    %3231 = vmatpush1.msra.mxu0 0.0
    %3232 = vmatprep.subr.mxu0 0.0
    %3233 = vmatpush1.msra.mxu0 0.0
    %3234 = vmatprep.subr.mxu0 0.0
    %3235 = vmatpush1.msra.mxu0 0.0
    %3236 = vmatprep.subr.mxu0 0.0
    %3237 = vmatpush1.msra.mxu0 0.0
    %3238 = vmatprep.subr.mxu0 0.0
    %3239 = vmatpush1.msra.mxu0 0.0
    %3240 = vmatprep.subr.mxu0 0.0
    %3241 = vmatpush1.msra.mxu0 0.0
    %3242 = vmatprep.subr.mxu0 0.0
    %3243 = vmatpush1.msra.mxu0 %v3211
    %3244 = vmatprep.subr.mxu0 0.0
    %3245 = vmatpush1.msra.mxu0 %v3210
    %3246 = vmatprep.subr.mxu0 0.0
    %3247 = vmatpush1.msra.mxu0 %v3209
    %3248 = vmatprep.subr.mxu0 0.0
    %3249 = vmatpush1.msra.mxu0 %v3208
    %3250 = vmatprep.subr.mxu0 0.0
    %3251 = vmatpush2.msra.mxu0 0.0
    %3252 = vmatprep.subr.mxu0 0.0
    %3253 = vmatpush2.msra.mxu0 0.0
    %3254 = vmatprep.subr.mxu0 0.0
    %3255 = vmatpush2.msra.mxu0 0.0
    %3256 = vmatprep.subr.mxu0 0.0
    %3257 = vmatpush2.msra.mxu0 0.0
    %3258 = vmatprep.subr.mxu0 0.0
    %3259 = vmatpush2.msra.mxu0 0.0
    %3260 = vmatprep.subr.mxu0 0.0
    %3261 = vmatpush2.msra.mxu0 0.0
    %3262 = vmatprep.subr.mxu0 0.0
    %3263 = vmatpush2.msra.mxu0 0.0
    %3264 = vmatprep.subr.mxu0 0.0
    %3265 = vmatpush2.msra.mxu0 0.0
    %3266 = vmatprep.subr.mxu0 0.0
    %3267 = vmatpush2.msra.mxu0 0.0
    %3268 = vmatprep.subr.mxu0 0.0
    %3269 = vmatpush2.msra.mxu0 0.0
    %3270 = vmatprep.subr.mxu0 0.0
    %3271 = vmatpush2.msra.mxu0 0.0
    %3272 = vmatprep.subr.mxu0 0.0
    %3273 = vmatpush2.msra.mxu0 0.0
    %3274 = vmatprep.subr.mxu0 0.0
    %3275 = vmatpush2.msra.mxu0 0.0
    %3276 = vmatprep.subr.mxu0 0.0
    %3277 = vmatpush2.msra.mxu0 0.0
    %3278 = vmatprep.subr.mxu0 0.0
    %3279 = vmatpush2.msra.mxu0 0.0
    %3280 = vmatprep.subr.mxu0 0.0
    %3281 = vmatpush2.msra.mxu0 0.0
    %3282 = vmatprep.mubr.f32.mxu0 0.0
    %3283 = vmatmul.mubr.f32.gmra.mxu0 %v3213
    %v3284 = vpop.f32.mrf.mxu0
    %v3285 = vadd.f32 0.0, %v3284
    %v3286 = vpop.f32.mrf.mxu0
    %3287 = vmatprep.mubr.f32.mxu0 0.0
    %3288 = vmatmul.mubr.f32.gmra.mxu0 %v3216
    %v3289 = vpop.f32.mrf.mxu0
    %v3290 = vadd.f32 0.0, %v3289
    %v3291 = vpop.f32.mrf.mxu0
    %3292 = vdwg.mxu0
    %s3293 = scalar_lea.vmem %s7, 4
    %v3294 = vld [vmem:[%s3293] sm:$0x1]
    %v3295 = vlaneseq
    %v3296 = vshrl.u32 %v3295, 7
    %v3297 = vsub.s32 0, %v3296
    %v3298 = vrot.slane %v3294, %v3297
    %v3299 = vadd.f32 %v3298, 0.0
    %v3300 = vrot.slane %v3285, 5
    %v3301 = vrot.slane %v3290, 5
    %v3302 = vsel %vm897, %v3300, %v3301
    %v3303 = vsel %vm897, %v3301, %v3300
    %v3304 = vsel %vm902, %v3303, 0.0
    %v3305 = vsel %vm903, %v3302, 0.0
    %s3306 = scalar_lea.vmem %s6, 4
    %v3307 = vld [vmem:[%s3306] sm:$0x1]
    %v3308 = vlaneseq
    %v3309 = vshrl.u32 %v3308, 7
    %v3310 = vsub.s32 0, %v3309
    %v3311 = vrot.slane %v3307, %v3310
    %v3312 = vmul.f32 %v3311, %v3304
    %v3313 = vmul.f32 %v3311, %v3305
    %v3314 = vadd.f32 %v3299, %v3312
    %v3315 = vadd.f32 %v3299, %v3313
    %v3316 = vrot.slane %v3285, 6
    %v3317 = vrot.slane %v3290, 6
    %v3318 = vsel %vm917, %v3316, %v3317
    %v3319 = vsel %vm917, %v3317, %v3316
    %v3320 = vsel %vm922, %v3319, 0.0
    %v3321 = vsel %vm923, %v3318, 0.0
    %v3322 = vld [vmem:[%s3306 + $0x1] sm:$0x1]
    %v3323 = vlaneseq
    %v3324 = vshrl.u32 %v3323, 7
    %v3325 = vsub.s32 0, %v3324
    %v3326 = vrot.slane %v3322, %v3325
    %v3327 = vmul.f32 %v3326, %v3320
    %v3328 = vmul.f32 %v3326, %v3321
    %v3329 = vadd.f32 %v3314, %v3327
    %v3330 = vadd.f32 %v3315, %v3328
    %v3331 = vrot.slane %v3285, 7
    %v3332 = vrot.slane %v3290, 7
    %v3333 = vsel %vm937, %v3331, %v3332
    %v3334 = vsel %vm937, %v3332, %v3331
    %v3335 = vsel %vm942, %v3334, 0.0
    %v3336 = vsel %vm943, %v3333, 0.0
    %v3337 = vld [vmem:[%s3306 + $0x2] sm:$0x1]
    %v3338 = vlaneseq
    %v3339 = vshrl.u32 %v3338, 7
    %v3340 = vsub.s32 0, %v3339
    %v3341 = vrot.slane %v3337, %v3340
    %v3342 = vmul.f32 %v3341, %v3335
    %v3343 = vmul.f32 %v3341, %v3336
    %v3344 = vadd.f32 %v3329, %v3342
    %v3345 = vadd.f32 %v3330, %v3343
    %v3346 = vld [vmem:[%s3306 + $0x3] sm:$0x1]
    %v3347 = vlaneseq
    %v3348 = vshrl.u32 %v3347, 7
    %v3349 = vsub.s32 0, %v3348
    %v3350 = vrot.slane %v3346, %v3349
    %v3351 = vmul.f32 %v3350, %v3285
    %v3352 = vmul.f32 %v3350, %v3290
    %v3353 = vadd.f32 %v3344, %v3351
    %v3354 = vadd.f32 %v3345, %v3352
    %v3355 = vxor.u32 %v3353, 2147483648
    %v3356 = vxor.u32 %v3354, 2147483648
    %v3357 = vmul.f32 %v3355, 1.442695
    %v3358 = vpow.pop %v3357
    %v3359 = vmul.f32 %v3356, 1.442695
    %v3360 = vpow.pop %v3359
    %v3361 = vadd.f32 %v3358, 1.0
    %v3362 = vadd.f32 %v3360, 1.0
    %v3363 = vrcp.pop %v3361
    %v3364 = vmul.f32 1.0, %v3363
    %v3365 = vrcp.pop %v3362
    %v3366 = vmul.f32 1.0, %v3365
    %v3367 = vmul.f32 %v3353, %v3364
    %v3368 = vmul.f32 %v3354, %v3366
    %s3369 = scalar_lea.vmem %s8, 64
    %v3370 = vld [vmem:[%s3369] sm:$0xff]
    %v3371 = vld [vmem:[%s3369 + $0x8] sm:$0xff]
    %v3372 = vld [vmem:[%s3369 + $0x10] sm:$0xff]
    %v3373 = vld [vmem:[%s3369 + $0x18] sm:$0xff]
    %v3374 = vld [vmem:[%s3369 + $0x20] sm:$0xff]
    %v3375 = vld [vmem:[%s3369 + $0x28] sm:$0xff]
    %v3376 = vld [vmem:[%s3369 + $0x30] sm:$0xff]
    %v3377 = vld [vmem:[%s3369 + $0x38] sm:$0xff]
    %v3379 = vsel %vm986, %v3367, 0
    %v3382 = vsel %vm986, %v3368, 0
    %3384 = vmatprep.subr.mxu0 0.0
    %3385 = vmatpush1.msra.mxu0 0.0
    %3386 = vmatprep.subr.mxu0 0.0
    %3387 = vmatpush1.msra.mxu0 0.0
    %3388 = vmatprep.subr.mxu0 0.0
    %3389 = vmatpush1.msra.mxu0 0.0
    %3390 = vmatprep.subr.mxu0 0.0
    %3391 = vmatpush1.msra.mxu0 0.0
    %3392 = vmatprep.subr.mxu0 0.0
    %3393 = vmatpush1.msra.mxu0 0.0
    %3394 = vmatprep.subr.mxu0 0.0
    %3395 = vmatpush1.msra.mxu0 0.0
    %3396 = vmatprep.subr.mxu0 0.0
    %3397 = vmatpush1.msra.mxu0 0.0
    %3398 = vmatprep.subr.mxu0 0.0
    %3399 = vmatpush1.msra.mxu0 0.0
    %3400 = vmatprep.subr.mxu0 0.0
    %3401 = vmatpush1.msra.mxu0 %v3377
    %3402 = vmatprep.subr.mxu0 0.0
    %3403 = vmatpush1.msra.mxu0 %v3376
    %3404 = vmatprep.subr.mxu0 0.0
    %3405 = vmatpush1.msra.mxu0 %v3375
    %3406 = vmatprep.subr.mxu0 0.0
    %3407 = vmatpush1.msra.mxu0 %v3374
    %3408 = vmatprep.subr.mxu0 0.0
    %3409 = vmatpush1.msra.mxu0 %v3373
    %3410 = vmatprep.subr.mxu0 0.0
    %3411 = vmatpush1.msra.mxu0 %v3372
    %3412 = vmatprep.subr.mxu0 0.0
    %3413 = vmatpush1.msra.mxu0 %v3371
    %3414 = vmatprep.subr.mxu0 0.0
    %3415 = vmatpush1.msra.mxu0 %v3370
    %3416 = vmatprep.subr.mxu0 0.0
    %3417 = vmatpush2.msra.mxu0 0.0
    %3418 = vmatprep.subr.mxu0 0.0
    %3419 = vmatpush2.msra.mxu0 0.0
    %3420 = vmatprep.subr.mxu0 0.0
    %3421 = vmatpush2.msra.mxu0 0.0
    %3422 = vmatprep.subr.mxu0 0.0
    %3423 = vmatpush2.msra.mxu0 0.0
    %3424 = vmatprep.subr.mxu0 0.0
    %3425 = vmatpush2.msra.mxu0 0.0
    %3426 = vmatprep.subr.mxu0 0.0
    %3427 = vmatpush2.msra.mxu0 0.0
    %3428 = vmatprep.subr.mxu0 0.0
    %3429 = vmatpush2.msra.mxu0 0.0
    %3430 = vmatprep.subr.mxu0 0.0
    %3431 = vmatpush2.msra.mxu0 0.0
    %3432 = vmatprep.subr.mxu0 0.0
    %3433 = vmatpush2.msra.mxu0 0.0
    %3434 = vmatprep.subr.mxu0 0.0
    %3435 = vmatpush2.msra.mxu0 0.0
    %3436 = vmatprep.subr.mxu0 0.0
    %3437 = vmatpush2.msra.mxu0 0.0
    %3438 = vmatprep.subr.mxu0 0.0
    %3439 = vmatpush2.msra.mxu0 0.0
    %3440 = vmatprep.subr.mxu0 0.0
    %3441 = vmatpush2.msra.mxu0 0.0
    %3442 = vmatprep.subr.mxu0 0.0
    %3443 = vmatpush2.msra.mxu0 0.0
    %3444 = vmatprep.subr.mxu0 0.0
    %3445 = vmatpush2.msra.mxu0 0.0
    %3446 = vmatprep.subr.mxu0 0.0
    %3447 = vmatpush2.msra.mxu0 0.0
    %3448 = vmatprep.mubr.f32.mxu0 0.0
    %3449 = vmatmul.mubr.f32.gmra.mxu0 %v3379
    %v3450 = vpop.f32.mrf.mxu0
    %v3451 = vadd.f32 0.0, %v3450
    %v3452 = vpop.f32.mrf.mxu0
    %3453 = vmatprep.mubr.f32.mxu0 0.0
    %3454 = vmatmul.mubr.f32.gmra.mxu0 %v3382
    %v3455 = vpop.f32.mrf.mxu0
    %v3456 = vadd.f32 0.0, %v3455
    %v3457 = vpop.f32.mrf.mxu0
    %3458 = vdwg.mxu0
    %3461 = vrot.lane.b32.xlu0 %v3451, 126
    %v3462 = vpop.permute.xlu0 %3461
    %3463 = vrot.lane.b32.xlu0 %v3456, 126
    %v3464 = vpop.permute.xlu0 %3463
    %3467 = vst.msk [vmem:[#allocation5] sm:$0xff] %vm272, %v3462
    %3468 = vst.msk [vmem:[#allocation5 + $0x8] sm:$0xff] %vm272, %v3464
    %s3469 = scalar_lea.vmem %s9, 16
    %v3470 = vld [vmem:[%s3469] sm:$0xff]
    %v3471 = vld [vmem:[%s3469 + $0x8] sm:$0xff]
    %v3473 = vsel %vm986, %v3470, 0
    %v3476 = vsel %vm986, %v3471, 0
    %3478 = vmatprep.subr.mxu0 0.0
    %3479 = vmatpush1.xpose.msra.mxu0 0.0
    %3480 = vmatprep.subr.mxu0 0.0
    %3481 = vmatpush1.xpose.msra.mxu0 0.0
    %3482 = vmatprep.subr.mxu0 0.0
    %3483 = vmatpush1.xpose.msra.mxu0 0.0
    %3484 = vmatprep.subr.mxu0 0.0
    %3485 = vmatpush1.xpose.msra.mxu0 0.0
    %3486 = vmatprep.subr.mxu0 0.0
    %3487 = vmatpush1.xpose.msra.mxu0 0.0
    %3488 = vmatprep.subr.mxu0 0.0
    %3489 = vmatpush1.xpose.msra.mxu0 0.0
    %3490 = vmatprep.subr.mxu0 0.0
    %3491 = vmatpush1.xpose.msra.mxu0 0.0
    %3492 = vmatprep.subr.mxu0 0.0
    %3493 = vmatpush1.xpose.msra.mxu0 0.0
    %3494 = vmatprep.subr.mxu0 0.0
    %3495 = vmatpush1.xpose.msra.mxu0 0.0
    %3496 = vmatprep.subr.mxu0 0.0
    %3497 = vmatpush1.xpose.msra.mxu0 0.0
    %3498 = vmatprep.subr.mxu0 0.0
    %3499 = vmatpush1.xpose.msra.mxu0 0.0
    %3500 = vmatprep.subr.mxu0 0.0
    %3501 = vmatpush1.xpose.msra.mxu0 0.0
    %3502 = vmatprep.subr.mxu0 0.0
    %3503 = vmatpush1.xpose.msra.mxu0 0.0
    %3504 = vmatprep.subr.mxu0 0.0
    %3505 = vmatpush1.xpose.msra.mxu0 0.0
    %3506 = vmatprep.subr.mxu0 0.0
    %3507 = vmatpush1.xpose.msra.mxu0 %v3382
    %3508 = vmatprep.subr.mxu0 0.0
    %3509 = vmatpush1.xpose.msra.mxu0 %v3379
    %3510 = vmatprep.subr.mxu0 0.0
    %3511 = vmatpush2.xpose.msra.mxu0 0.0
    %3512 = vmatprep.subr.mxu0 0.0
    %3513 = vmatpush2.xpose.msra.mxu0 0.0
    %3514 = vmatprep.subr.mxu0 0.0
    %3515 = vmatpush2.xpose.msra.mxu0 0.0
    %3516 = vmatprep.subr.mxu0 0.0
    %3517 = vmatpush2.xpose.msra.mxu0 0.0
    %3518 = vmatprep.subr.mxu0 0.0
    %3519 = vmatpush2.xpose.msra.mxu0 0.0
    %3520 = vmatprep.subr.mxu0 0.0
    %3521 = vmatpush2.xpose.msra.mxu0 0.0
    %3522 = vmatprep.subr.mxu0 0.0
    %3523 = vmatpush2.xpose.msra.mxu0 0.0
    %3524 = vmatprep.subr.mxu0 0.0
    %3525 = vmatpush2.xpose.msra.mxu0 0.0
    %3526 = vmatprep.subr.mxu0 0.0
    %3527 = vmatpush2.xpose.msra.mxu0 0.0
    %3528 = vmatprep.subr.mxu0 0.0
    %3529 = vmatpush2.xpose.msra.mxu0 0.0
    %3530 = vmatprep.subr.mxu0 0.0
    %3531 = vmatpush2.xpose.msra.mxu0 0.0
    %3532 = vmatprep.subr.mxu0 0.0
    %3533 = vmatpush2.xpose.msra.mxu0 0.0
    %3534 = vmatprep.subr.mxu0 0.0
    %3535 = vmatpush2.xpose.msra.mxu0 0.0
    %3536 = vmatprep.subr.mxu0 0.0
    %3537 = vmatpush2.xpose.msra.mxu0 0.0
    %3538 = vmatprep.subr.mxu0 0.0
    %3539 = vmatpush2.xpose.msra.mxu0 0.0
    %3540 = vmatprep.subr.mxu0 0.0
    %3541 = vmatpush2.xpose.msra.mxu0 0.0
    %3542 = vmatprep.mubr.f32.mxu0 0.0
    %3543 = vmatmul.mubr.f32.gmra.mxu0 %v3473
    %v3544 = vpop.f32.mrf.mxu0
    %v3545 = vadd.f32 0.0, %v3544
    %v3546 = vpop.f32.mrf.mxu0
    %3547 = vmatprep.mubr.f32.mxu0 0.0
    %3548 = vmatmul.mubr.f32.gmra.mxu0 %v3476
    %v3549 = vpop.f32.mrf.mxu0
    %v3550 = vadd.f32 0.0, %v3549
    %v3551 = vpop.f32.mrf.mxu0
    %3552 = vdwg.mxu0
    %3553 = vst.msk [vmem:[#allocation4] sm:$0xff] %vm272, %v3545
    %3554 = vst.msk [vmem:[#allocation4 + $0x8] sm:$0xff] %vm272, %v3550
    %s3555 = scalar_lea.vmem %s10, 2
    %v3556 = vld [vmem:[%s3555] sm:$0x3]
    %v3557 = vld [vmem:[%s3293 + $0x1] sm:$0x1]
    %v3558 = vlaneseq
    %v3559 = vshrl.u32 %v3558, 7
    %v3560 = vsub.s32 0, %v3559
    %v3561 = vrot.slane %v3557, %v3560
    %v3562 = vsel %vm1169, %v3451, 0
    %v3564 = vsel %vm1169, %v3456, 0
    %v3567 = vsel %vm1174, %v3556, 0
    %3569 = vmatprep.subr.mxu0 0.0
    %3570 = vmatpush1.msra.mxu0 0.0
    %3571 = vmatprep.subr.mxu0 0.0
    %3572 = vmatpush1.msra.mxu0 0.0
    %3573 = vmatprep.subr.mxu0 0.0
    %3574 = vmatpush1.msra.mxu0 0.0
    %3575 = vmatprep.subr.mxu0 0.0
    %3576 = vmatpush1.msra.mxu0 0.0
    %3577 = vmatprep.subr.mxu0 0.0
    %3578 = vmatpush1.msra.mxu0 0.0
    %3579 = vmatprep.subr.mxu0 0.0
    %3580 = vmatpush1.msra.mxu0 0.0
    %3581 = vmatprep.subr.mxu0 0.0
    %3582 = vmatpush1.msra.mxu0 0.0
    %3583 = vmatprep.subr.mxu0 0.0
    %3584 = vmatpush1.msra.mxu0 0.0
    %3585 = vmatprep.subr.mxu0 0.0
    %3586 = vmatpush1.msra.mxu0 0.0
    %3587 = vmatprep.subr.mxu0 0.0
    %3588 = vmatpush1.msra.mxu0 0.0
    %3589 = vmatprep.subr.mxu0 0.0
    %3590 = vmatpush1.msra.mxu0 0.0
    %3591 = vmatprep.subr.mxu0 0.0
    %3592 = vmatpush1.msra.mxu0 0.0
    %3593 = vmatprep.subr.mxu0 0.0
    %3594 = vmatpush1.msra.mxu0 0.0
    %3595 = vmatprep.subr.mxu0 0.0
    %3596 = vmatpush1.msra.mxu0 0.0
    %3597 = vmatprep.subr.mxu0 0.0
    %3598 = vmatpush1.msra.mxu0 0.0
    %3599 = vmatprep.subr.mxu0 0.0
    %3600 = vmatpush1.msra.mxu0 %v3567
    %3601 = vmatprep.subr.mxu0 0.0
    %3602 = vmatpush2.msra.mxu0 0.0
    %3603 = vmatprep.subr.mxu0 0.0
    %3604 = vmatpush2.msra.mxu0 0.0
    %3605 = vmatprep.subr.mxu0 0.0
    %3606 = vmatpush2.msra.mxu0 0.0
    %3607 = vmatprep.subr.mxu0 0.0
    %3608 = vmatpush2.msra.mxu0 0.0
    %3609 = vmatprep.subr.mxu0 0.0
    %3610 = vmatpush2.msra.mxu0 0.0
    %3611 = vmatprep.subr.mxu0 0.0
    %3612 = vmatpush2.msra.mxu0 0.0
    %3613 = vmatprep.subr.mxu0 0.0
    %3614 = vmatpush2.msra.mxu0 0.0
    %3615 = vmatprep.subr.mxu0 0.0
    %3616 = vmatpush2.msra.mxu0 0.0
    %3617 = vmatprep.subr.mxu0 0.0
    %3618 = vmatpush2.msra.mxu0 0.0
    %3619 = vmatprep.subr.mxu0 0.0
    %3620 = vmatpush2.msra.mxu0 0.0
    %3621 = vmatprep.subr.mxu0 0.0
    %3622 = vmatpush2.msra.mxu0 0.0
    %3623 = vmatprep.subr.mxu0 0.0
    %3624 = vmatpush2.msra.mxu0 0.0
    %3625 = vmatprep.subr.mxu0 0.0
    %3626 = vmatpush2.msra.mxu0 0.0
    %3627 = vmatprep.subr.mxu0 0.0
    %3628 = vmatpush2.msra.mxu0 0.0
    %3629 = vmatprep.subr.mxu0 0.0
    %3630 = vmatpush2.msra.mxu0 0.0
    %3631 = vmatprep.subr.mxu0 0.0
    %3632 = vmatpush2.msra.mxu0 0.0
    %3633 = vmatprep.mubr.f32.mxu0 0.0
    %3634 = vmatmul.mubr.f32.gmra.mxu0 %v3562
    %v3635 = vpop.f32.mrf.mxu0
    %v3636 = vadd.f32 %v3561, %v3635
    %v3637 = vpop.f32.mrf.mxu0
    %3638 = vmatprep.mubr.f32.mxu0 0.0
    %3639 = vmatmul.mubr.f32.gmra.mxu0 %v3564
    %v3640 = vpop.f32.mrf.mxu0
    %v3641 = vadd.f32 %v3561, %v3640
    %v3642 = vpop.f32.mrf.mxu0
    %3643 = vdwg.mxu0
    %v3644 = vmax.f32 %v3636, 0.0
    %v3645 = vmax.f32 %v3641, 0.0
    %v3646 = vand.u32 2147483647, %v3636
    %v3647 = vand.u32 2147483647, %v3641
    %v3648 = vsub.f32 0.0, %v3646
    %v3649 = vsub.f32 0.0, %v3647
    %v3650 = vmul.f32 %v3648, 1.442695
    %v3651 = vpow.pop %v3650
    %v3652 = vmul.f32 %v3649, 1.442695
    %v3653 = vpow.pop %v3652
    %v3654 = vadd.f32 %v3651, 1.0
    %v3655 = vlog2.pop %v3654
    %v3656 = vmul.f32 %v3655, 0.6931472
    %v3657 = vmul.f32 -0.5, %v3651
    %v3658 = vadd.f32 %v3657, 1.0
    %v3659 = vmul.f32 %v3658, %v3651
    %v3660 = vand.u32 2147483647, %v3651
    %vm3661 = vcmp.lt.f32.partialorder %v3660, 0.0004427343
    %v3662 = vsel %vm3661, %v3659, %v3656
    %v3663 = vadd.f32 %v3653, 1.0
    %v3664 = vlog2.pop %v3663
    %v3665 = vmul.f32 %v3664, 0.6931472
    %v3666 = vmul.f32 -0.5, %v3653
    %v3667 = vadd.f32 %v3666, 1.0
    %v3668 = vmul.f32 %v3667, %v3653
    %v3669 = vand.u32 2147483647, %v3653
    %vm3670 = vcmp.lt.f32.partialorder %v3669, 0.0004427343
    %v3671 = vsel %vm3670, %v3668, %v3665
    %v3672 = vadd.f32 %v3644, %v3662
    %v3673 = vadd.f32 %v3645, %v3671
    %3674 = vst.msk [vmem:[#allocation3] sm:$0xff] %vm986, %v3672
    %3675 = vst.msk [vmem:[#allocation3 + $0x8] sm:$0xff] %vm986, %v3673
    %v3676 = vmul.f32 %v3672, %v3367
    %v3677 = vmul.f32 %v3673, %v3368
    %3678 = vst.msk [vmem:[#allocation2] sm:$0xff] %vm986, %v3676
    %3679 = vst.msk [vmem:[#allocation2 + $0x8] sm:$0xff] %vm986, %v3677
    %s3680 = scalar_lea.vmem %s11, 16
    %v3681 = vld [vmem:[%s3680] sm:$0xff]
    %v3682 = vld [vmem:[%s3680 + $0x8] sm:$0xff]
    %v3683 = vmul.f32 %v3681, 1.442695
    %v3684 = vpow.pop %v3683
    %v3685 = vmul.f32 %v3682, 1.442695
    %v3686 = vpow.pop %v3685
    %v3687 = vsub.f32 0.0, %v3684
    %v3688 = vsub.f32 0.0, %v3686
    %v3689 = vld [vmem:[#allocation3] sm:$0x1]
    %v3690 = vlaneseq
    %v3691 = vshrl.u32 %v3690, 7
    %v3692 = vsub.s32 0, %v3691
    %v3693 = vrot.slane %v3689, %v3692
    %v3694 = vmul.f32 %v3687, %v3693
    %v3695 = vmul.f32 %v3688, %v3693
    %v3696 = vmul.f32 %v3694, 1.442695
    %v3697 = vpow.pop %v3696
    %v3698 = vmul.f32 %v3695, 1.442695
    %v3699 = vpow.pop %v3698
    %v3700 = vmul.f32 %v3697, 0.0
    %v3701 = vmul.f32 %v3699, 0.0
    %v3702 = vld [vmem:[#allocation4] sm:$0xff]
    %v3703 = vld [vmem:[#allocation4 + $0x8] sm:$0xff]
    %v3704 = vld [vmem:[#allocation2] sm:$0x1]
    %3706 = vset.pattern.permute.xlu0 0
    %3707 = vperm.xlu0 %3706, %v3702
    %v3708 = vpop.permute.xlu0 %3707
    %3711 = vset.pattern.permute.xlu0 0
    %3712 = vperm.xlu0 %3711, %v3703
    %v3713 = vpop.permute.xlu0 %3712
    %v3715 = vlaneseq
    %v3716 = vshrl.u32 %v3715, 7
    %v3717 = vsub.s32 0, %v3716
    %v3718 = vrot.slane %v3704, %v3717
    %v3719 = vmul.f32 %v3708, %v3718
    %v3720 = vmul.f32 %v3713, %v3718
    %v3721 = vadd.f32 %v3700, %v3719
    %v3722 = vadd.f32 %v3701, %v3720
    %v3723 = vld [vmem:[#allocation5] sm:$0x1]
    %v3725 = vsel %vm272, %v3723, 0
    %3727 = vmatprep.subr.mxu0 0.0
    %3728 = vmatpush1.msra.mxu0 0.0
    %3729 = vmatprep.subr.mxu0 0.0
    %3730 = vmatpush1.msra.mxu0 0.0
    %3731 = vmatprep.subr.mxu0 0.0
    %3732 = vmatpush1.msra.mxu0 0.0
    %3733 = vmatprep.subr.mxu0 0.0
    %3734 = vmatpush1.msra.mxu0 0.0
    %3735 = vmatprep.subr.mxu0 0.0
    %3736 = vmatpush1.msra.mxu0 0.0
    %3737 = vmatprep.subr.mxu0 0.0
    %3738 = vmatpush1.msra.mxu0 0.0
    %3739 = vmatprep.subr.mxu0 0.0
    %3740 = vmatpush1.msra.mxu0 0.0
    %3741 = vmatprep.subr.mxu0 0.0
    %3742 = vmatpush1.msra.mxu0 0.0
    %3743 = vmatprep.subr.mxu0 0.0
    %3744 = vmatpush1.msra.mxu0 0.0
    %3745 = vmatprep.subr.mxu0 0.0
    %3746 = vmatpush1.msra.mxu0 0.0
    %3747 = vmatprep.subr.mxu0 0.0
    %3748 = vmatpush1.msra.mxu0 0.0
    %3749 = vmatprep.subr.mxu0 0.0
    %3750 = vmatpush1.msra.mxu0 0.0
    %3751 = vmatprep.subr.mxu0 0.0
    %3752 = vmatpush1.msra.mxu0 0.0
    %3753 = vmatprep.subr.mxu0 0.0
    %3754 = vmatpush1.msra.mxu0 0.0
    %3755 = vmatprep.subr.mxu0 0.0
    %3756 = vmatpush1.msra.mxu0 %v3722
    %3757 = vmatprep.subr.mxu0 0.0
    %3758 = vmatpush1.msra.mxu0 %v3721
    %3759 = vmatprep.subr.mxu0 0.0
    %3760 = vmatpush2.msra.mxu0 0.0
    %3761 = vmatprep.subr.mxu0 0.0
    %3762 = vmatpush2.msra.mxu0 0.0
    %3763 = vmatprep.subr.mxu0 0.0
    %3764 = vmatpush2.msra.mxu0 0.0
    %3765 = vmatprep.subr.mxu0 0.0
    %3766 = vmatpush2.msra.mxu0 0.0
    %3767 = vmatprep.subr.mxu0 0.0
    %3768 = vmatpush2.msra.mxu0 0.0
    %3769 = vmatprep.subr.mxu0 0.0
    %3770 = vmatpush2.msra.mxu0 0.0
    %3771 = vmatprep.subr.mxu0 0.0
    %3772 = vmatpush2.msra.mxu0 0.0
    %3773 = vmatprep.subr.mxu0 0.0
    %3774 = vmatpush2.msra.mxu0 0.0
    %3775 = vmatprep.subr.mxu0 0.0
    %3776 = vmatpush2.msra.mxu0 0.0
    %3777 = vmatprep.subr.mxu0 0.0
    %3778 = vmatpush2.msra.mxu0 0.0
    %3779 = vmatprep.subr.mxu0 0.0
    %3780 = vmatpush2.msra.mxu0 0.0
    %3781 = vmatprep.subr.mxu0 0.0
    %3782 = vmatpush2.msra.mxu0 0.0
    %3783 = vmatprep.subr.mxu0 0.0
    %3784 = vmatpush2.msra.mxu0 0.0
    %3785 = vmatprep.subr.mxu0 0.0
    %3786 = vmatpush2.msra.mxu0 0.0
    %3787 = vmatprep.subr.mxu0 0.0
    %3788 = vmatpush2.msra.mxu0 0.0
    %3789 = vmatprep.subr.mxu0 0.0
    %3790 = vmatpush2.msra.mxu0 0.0
    %3791 = vmatprep.mubr.f32.mxu0 0.0
    %3792 = vmatmul.mubr.f32.gmra.mxu0 %v3725
    %v3793 = vpop.f32.mrf.mxu0
    %v3794 = vadd.f32 0.0, %v3793
    %v3795 = vpop.f32.mrf.mxu0
    %3796 = vdwg.mxu0
    %3797 = vst.msk [vmem:[#allocation6] sm:$0x1] %vm1405, %v3794
    %v3798 = vld [vmem:[#allocation3 + $0x1] sm:$0x1]
    %v3799 = vlaneseq
    %v3800 = vshrl.u32 %v3799, 7
    %v3801 = vsub.s32 0, %v3800
    %v3802 = vrot.slane %v3798, %v3801
    %v3803 = vmul.f32 %v3687, %v3802
    %v3804 = vmul.f32 %v3688, %v3802
    %v3805 = vmul.f32 %v3803, 1.442695
    %v3806 = vpow.pop %v3805
    %v3807 = vmul.f32 %v3804, 1.442695
    %v3808 = vpow.pop %v3807
    %v3809 = vmul.f32 %v3806, %v3721
    %v3810 = vmul.f32 %v3808, %v3722
    %v3811 = vld [vmem:[#allocation4] sm:$0xff]
    %v3812 = vld [vmem:[#allocation4 + $0x8] sm:$0xff]
    %v3813 = vld [vmem:[#allocation2 + $0x1] sm:$0x1]
    %3815 = vset.pattern.permute.xlu0 1
    %3816 = vperm.xlu0 %3815, %v3811
    %v3817 = vpop.permute.xlu0 %3816
    %3820 = vset.pattern.permute.xlu0 1
    %3821 = vperm.xlu0 %3820, %v3812
    %v3822 = vpop.permute.xlu0 %3821
    %v3824 = vlaneseq
    %v3825 = vshrl.u32 %v3824, 7
    %v3826 = vsub.s32 0, %v3825
    %v3827 = vrot.slane %v3813, %v3826
    %v3828 = vmul.f32 %v3817, %v3827
    %v3829 = vmul.f32 %v3822, %v3827
    %v3830 = vadd.f32 %v3809, %v3828
    %v3831 = vadd.f32 %v3810, %v3829
    %v3832 = vld [vmem:[#allocation5 + $0x1] sm:$0x1]
    %v3834 = vsel %vm272, %v3832, 0
    %3836 = vmatprep.subr.mxu0 0.0
    %3837 = vmatpush1.msra.mxu0 0.0
    %3838 = vmatprep.subr.mxu0 0.0
    %3839 = vmatpush1.msra.mxu0 0.0
    %3840 = vmatprep.subr.mxu0 0.0
    %3841 = vmatpush1.msra.mxu0 0.0
    %3842 = vmatprep.subr.mxu0 0.0
    %3843 = vmatpush1.msra.mxu0 0.0
    %3844 = vmatprep.subr.mxu0 0.0
    %3845 = vmatpush1.msra.mxu0 0.0
    %3846 = vmatprep.subr.mxu0 0.0
    %3847 = vmatpush1.msra.mxu0 0.0
    %3848 = vmatprep.subr.mxu0 0.0
    %3849 = vmatpush1.msra.mxu0 0.0
    %3850 = vmatprep.subr.mxu0 0.0
    %3851 = vmatpush1.msra.mxu0 0.0
    %3852 = vmatprep.subr.mxu0 0.0
    %3853 = vmatpush1.msra.mxu0 0.0
    %3854 = vmatprep.subr.mxu0 0.0
    %3855 = vmatpush1.msra.mxu0 0.0
    %3856 = vmatprep.subr.mxu0 0.0
    %3857 = vmatpush1.msra.mxu0 0.0
    %3858 = vmatprep.subr.mxu0 0.0
    %3859 = vmatpush1.msra.mxu0 0.0
    %3860 = vmatprep.subr.mxu0 0.0
    %3861 = vmatpush1.msra.mxu0 0.0
    %3862 = vmatprep.subr.mxu0 0.0
    %3863 = vmatpush1.msra.mxu0 0.0
    %3864 = vmatprep.subr.mxu0 0.0
    %3865 = vmatpush1.msra.mxu0 %v3831
    %3866 = vmatprep.subr.mxu0 0.0
    %3867 = vmatpush1.msra.mxu0 %v3830
    %3868 = vmatprep.subr.mxu0 0.0
    %3869 = vmatpush2.msra.mxu0 0.0
    %3870 = vmatprep.subr.mxu0 0.0
    %3871 = vmatpush2.msra.mxu0 0.0
    %3872 = vmatprep.subr.mxu0 0.0
    %3873 = vmatpush2.msra.mxu0 0.0
    %3874 = vmatprep.subr.mxu0 0.0
    %3875 = vmatpush2.msra.mxu0 0.0
    %3876 = vmatprep.subr.mxu0 0.0
    %3877 = vmatpush2.msra.mxu0 0.0
    %3878 = vmatprep.subr.mxu0 0.0
    %3879 = vmatpush2.msra.mxu0 0.0
    %3880 = vmatprep.subr.mxu0 0.0
    %3881 = vmatpush2.msra.mxu0 0.0
    %3882 = vmatprep.subr.mxu0 0.0
    %3883 = vmatpush2.msra.mxu0 0.0
    %3884 = vmatprep.subr.mxu0 0.0
    %3885 = vmatpush2.msra.mxu0 0.0
    %3886 = vmatprep.subr.mxu0 0.0
    %3887 = vmatpush2.msra.mxu0 0.0
    %3888 = vmatprep.subr.mxu0 0.0
    %3889 = vmatpush2.msra.mxu0 0.0
    %3890 = vmatprep.subr.mxu0 0.0
    %3891 = vmatpush2.msra.mxu0 0.0
    %3892 = vmatprep.subr.mxu0 0.0
    %3893 = vmatpush2.msra.mxu0 0.0
    %3894 = vmatprep.subr.mxu0 0.0
    %3895 = vmatpush2.msra.mxu0 0.0
    %3896 = vmatprep.subr.mxu0 0.0
    %3897 = vmatpush2.msra.mxu0 0.0
    %3898 = vmatprep.subr.mxu0 0.0
    %3899 = vmatpush2.msra.mxu0 0.0
    %3900 = vmatprep.mubr.f32.mxu0 0.0
    %3901 = vmatmul.mubr.f32.gmra.mxu0 %v3834
    %v3902 = vpop.f32.mrf.mxu0
    %v3903 = vadd.f32 0.0, %v3902
    %v3904 = vpop.f32.mrf.mxu0
    %3905 = vdwg.mxu0
    %3906 = vst.msk [vmem:[#allocation6 + $0x1] sm:$0x1] %vm1405, %v3903
    %v3907 = vld [vmem:[#allocation3 + $0x2] sm:$0x1]
    %v3908 = vlaneseq
    %v3909 = vshrl.u32 %v3908, 7
    %v3910 = vsub.s32 0, %v3909
    %v3911 = vrot.slane %v3907, %v3910
    %v3912 = vmul.f32 %v3687, %v3911
    %v3913 = vmul.f32 %v3688, %v3911
    %v3914 = vmul.f32 %v3912, 1.442695
    %v3915 = vpow.pop %v3914
    %v3916 = vmul.f32 %v3913, 1.442695
    %v3917 = vpow.pop %v3916
    %v3918 = vmul.f32 %v3915, %v3830
    %v3919 = vmul.f32 %v3917, %v3831
    %v3920 = vld [vmem:[#allocation4] sm:$0xff]
    %v3921 = vld [vmem:[#allocation4 + $0x8] sm:$0xff]
    %v3922 = vld [vmem:[#allocation2 + $0x2] sm:$0x1]
    %3924 = vset.pattern.permute.xlu0 2
    %3925 = vperm.xlu0 %3924, %v3920
    %v3926 = vpop.permute.xlu0 %3925
    %3929 = vset.pattern.permute.xlu0 2
    %3930 = vperm.xlu0 %3929, %v3921
    %v3931 = vpop.permute.xlu0 %3930
    %v3933 = vlaneseq
    %v3934 = vshrl.u32 %v3933, 7
    %v3935 = vsub.s32 0, %v3934
    %v3936 = vrot.slane %v3922, %v3935
    %v3937 = vmul.f32 %v3926, %v3936
    %v3938 = vmul.f32 %v3931, %v3936
    %v3939 = vadd.f32 %v3918, %v3937
    %v3940 = vadd.f32 %v3919, %v3938
    %v3941 = vld [vmem:[#allocation5 + $0x2] sm:$0x1]
    %v3943 = vsel %vm272, %v3941, 0
    %3945 = vmatprep.subr.mxu0 0.0
    %3946 = vmatpush1.msra.mxu0 0.0
    %3947 = vmatprep.subr.mxu0 0.0
    %3948 = vmatpush1.msra.mxu0 0.0
    %3949 = vmatprep.subr.mxu0 0.0
    %3950 = vmatpush1.msra.mxu0 0.0
    %3951 = vmatprep.subr.mxu0 0.0
    %3952 = vmatpush1.msra.mxu0 0.0
    %3953 = vmatprep.subr.mxu0 0.0
    %3954 = vmatpush1.msra.mxu0 0.0
    %3955 = vmatprep.subr.mxu0 0.0
    %3956 = vmatpush1.msra.mxu0 0.0
    %3957 = vmatprep.subr.mxu0 0.0
    %3958 = vmatpush1.msra.mxu0 0.0
    %3959 = vmatprep.subr.mxu0 0.0
    %3960 = vmatpush1.msra.mxu0 0.0
    %3961 = vmatprep.subr.mxu0 0.0
    %3962 = vmatpush1.msra.mxu0 0.0
    %3963 = vmatprep.subr.mxu0 0.0
    %3964 = vmatpush1.msra.mxu0 0.0
    %3965 = vmatprep.subr.mxu0 0.0
    %3966 = vmatpush1.msra.mxu0 0.0
    %3967 = vmatprep.subr.mxu0 0.0
    %3968 = vmatpush1.msra.mxu0 0.0
    %3969 = vmatprep.subr.mxu0 0.0
    %3970 = vmatpush1.msra.mxu0 0.0
    %3971 = vmatprep.subr.mxu0 0.0
    %3972 = vmatpush1.msra.mxu0 0.0
    %3973 = vmatprep.subr.mxu0 0.0
    %3974 = vmatpush1.msra.mxu0 %v3940
    %3975 = vmatprep.subr.mxu0 0.0
    %3976 = vmatpush1.msra.mxu0 %v3939
    %3977 = vmatprep.subr.mxu0 0.0
    %3978 = vmatpush2.msra.mxu0 0.0
    %3979 = vmatprep.subr.mxu0 0.0
    %3980 = vmatpush2.msra.mxu0 0.0
    %3981 = vmatprep.subr.mxu0 0.0
    %3982 = vmatpush2.msra.mxu0 0.0
    %3983 = vmatprep.subr.mxu0 0.0
    %3984 = vmatpush2.msra.mxu0 0.0
    %3985 = vmatprep.subr.mxu0 0.0
    %3986 = vmatpush2.msra.mxu0 0.0
    %3987 = vmatprep.subr.mxu0 0.0
    %3988 = vmatpush2.msra.mxu0 0.0
    %3989 = vmatprep.subr.mxu0 0.0
    %3990 = vmatpush2.msra.mxu0 0.0
    %3991 = vmatprep.subr.mxu0 0.0
    %3992 = vmatpush2.msra.mxu0 0.0
    %3993 = vmatprep.subr.mxu0 0.0
    %3994 = vmatpush2.msra.mxu0 0.0
    %3995 = vmatprep.subr.mxu0 0.0
    %3996 = vmatpush2.msra.mxu0 0.0
    %3997 = vmatprep.subr.mxu0 0.0
    %3998 = vmatpush2.msra.mxu0 0.0
    %3999 = vmatprep.subr.mxu0 0.0
    %4000 = vmatpush2.msra.mxu0 0.0
    %4001 = vmatprep.subr.mxu0 0.0
    %4002 = vmatpush2.msra.mxu0 0.0
    %4003 = vmatprep.subr.mxu0 0.0
    %4004 = vmatpush2.msra.mxu0 0.0
    %4005 = vmatprep.subr.mxu0 0.0
    %4006 = vmatpush2.msra.mxu0 0.0
    %4007 = vmatprep.subr.mxu0 0.0
    %4008 = vmatpush2.msra.mxu0 0.0
    %4009 = vmatprep.mubr.f32.mxu0 0.0
    %4010 = vmatmul.mubr.f32.gmra.mxu0 %v3943
    %v4011 = vpop.f32.mrf.mxu0
    %v4012 = vadd.f32 0.0, %v4011
    %v4013 = vpop.f32.mrf.mxu0
    %4014 = vdwg.mxu0
    %4015 = vst.msk [vmem:[#allocation6 + $0x2] sm:$0x1] %vm1405, %v4012
    %v4016 = vld [vmem:[#allocation3 + $0x3] sm:$0x1]
    %v4017 = vlaneseq
    %v4018 = vshrl.u32 %v4017, 7
    %v4019 = vsub.s32 0, %v4018
    %v4020 = vrot.slane %v4016, %v4019
    %v4021 = vmul.f32 %v3687, %v4020
    %v4022 = vmul.f32 %v3688, %v4020
    %v4023 = vmul.f32 %v4021, 1.442695
    %v4024 = vpow.pop %v4023
    %v4025 = vmul.f32 %v4022, 1.442695
    %v4026 = vpow.pop %v4025
    %v4027 = vmul.f32 %v4024, %v3939
    %v4028 = vmul.f32 %v4026, %v3940
    %v4029 = vld [vmem:[#allocation4] sm:$0xff]
    %v4030 = vld [vmem:[#allocation4 + $0x8] sm:$0xff]
    %v4031 = vld [vmem:[#allocation2 + $0x3] sm:$0x1]
    %4033 = vset.pattern.permute.xlu0 3
    %4034 = vperm.xlu0 %4033, %v4029
    %v4035 = vpop.permute.xlu0 %4034
    %4038 = vset.pattern.permute.xlu0 3
    %4039 = vperm.xlu0 %4038, %v4030
    %v4040 = vpop.permute.xlu0 %4039
    %v4042 = vlaneseq
    %v4043 = vshrl.u32 %v4042, 7
    %v4044 = vsub.s32 0, %v4043
    %v4045 = vrot.slane %v4031, %v4044
    %v4046 = vmul.f32 %v4035, %v4045
    %v4047 = vmul.f32 %v4040, %v4045
    %v4048 = vadd.f32 %v4027, %v4046
    %v4049 = vadd.f32 %v4028, %v4047
    %v4050 = vld [vmem:[#allocation5 + $0x3] sm:$0x1]
    %v4052 = vsel %vm272, %v4050, 0
    %4054 = vmatprep.subr.mxu0 0.0
    %4055 = vmatpush1.msra.mxu0 0.0
    %4056 = vmatprep.subr.mxu0 0.0
    %4057 = vmatpush1.msra.mxu0 0.0
    %4058 = vmatprep.subr.mxu0 0.0
    %4059 = vmatpush1.msra.mxu0 0.0
    %4060 = vmatprep.subr.mxu0 0.0
    %4061 = vmatpush1.msra.mxu0 0.0
    %4062 = vmatprep.subr.mxu0 0.0
    %4063 = vmatpush1.msra.mxu0 0.0
    %4064 = vmatprep.subr.mxu0 0.0
    %4065 = vmatpush1.msra.mxu0 0.0
    %4066 = vmatprep.subr.mxu0 0.0
    %4067 = vmatpush1.msra.mxu0 0.0
    %4068 = vmatprep.subr.mxu0 0.0
    %4069 = vmatpush1.msra.mxu0 0.0
    %4070 = vmatprep.subr.mxu0 0.0
    %4071 = vmatpush1.msra.mxu0 0.0
    %4072 = vmatprep.subr.mxu0 0.0
    %4073 = vmatpush1.msra.mxu0 0.0
    %4074 = vmatprep.subr.mxu0 0.0
    %4075 = vmatpush1.msra.mxu0 0.0
    %4076 = vmatprep.subr.mxu0 0.0
    %4077 = vmatpush1.msra.mxu0 0.0
    %4078 = vmatprep.subr.mxu0 0.0
    %4079 = vmatpush1.msra.mxu0 0.0
    %4080 = vmatprep.subr.mxu0 0.0
    %4081 = vmatpush1.msra.mxu0 0.0
    %4082 = vmatprep.subr.mxu0 0.0
    %4083 = vmatpush1.msra.mxu0 %v4049
    %4084 = vmatprep.subr.mxu0 0.0
    %4085 = vmatpush1.msra.mxu0 %v4048
    %4086 = vmatprep.subr.mxu0 0.0
    %4087 = vmatpush2.msra.mxu0 0.0
    %4088 = vmatprep.subr.mxu0 0.0
    %4089 = vmatpush2.msra.mxu0 0.0
    %4090 = vmatprep.subr.mxu0 0.0
    %4091 = vmatpush2.msra.mxu0 0.0
    %4092 = vmatprep.subr.mxu0 0.0
    %4093 = vmatpush2.msra.mxu0 0.0
    %4094 = vmatprep.subr.mxu0 0.0
    %4095 = vmatpush2.msra.mxu0 0.0
    %4096 = vmatprep.subr.mxu0 0.0
    %4097 = vmatpush2.msra.mxu0 0.0
    %4098 = vmatprep.subr.mxu0 0.0
    %4099 = vmatpush2.msra.mxu0 0.0
    %4100 = vmatprep.subr.mxu0 0.0
    %4101 = vmatpush2.msra.mxu0 0.0
    %4102 = vmatprep.subr.mxu0 0.0
    %4103 = vmatpush2.msra.mxu0 0.0
    %4104 = vmatprep.subr.mxu0 0.0
    %4105 = vmatpush2.msra.mxu0 0.0
    %4106 = vmatprep.subr.mxu0 0.0
    %4107 = vmatpush2.msra.mxu0 0.0
    %4108 = vmatprep.subr.mxu0 0.0
    %4109 = vmatpush2.msra.mxu0 0.0
    %4110 = vmatprep.subr.mxu0 0.0
    %4111 = vmatpush2.msra.mxu0 0.0
    %4112 = vmatprep.subr.mxu0 0.0
    %4113 = vmatpush2.msra.mxu0 0.0
    %4114 = vmatprep.subr.mxu0 0.0
    %4115 = vmatpush2.msra.mxu0 0.0
    %4116 = vmatprep.subr.mxu0 0.0
    %4117 = vmatpush2.msra.mxu0 0.0
    %4118 = vmatprep.mubr.f32.mxu0 0.0
    %4119 = vmatmul.mubr.f32.gmra.mxu0 %v4052
    %v4120 = vpop.f32.mrf.mxu0
    %v4121 = vadd.f32 0.0, %v4120
    %v4122 = vpop.f32.mrf.mxu0
    %4123 = vdwg.mxu0
    %4124 = vst.msk [vmem:[#allocation6 + $0x3] sm:$0x1] %vm1405, %v4121
    %v4125 = vld [vmem:[#allocation3 + $0x4] sm:$0x1]
    %v4126 = vlaneseq
    %v4127 = vshrl.u32 %v4126, 7
    %v4128 = vsub.s32 0, %v4127
    %v4129 = vrot.slane %v4125, %v4128
    %v4130 = vmul.f32 %v3687, %v4129
    %v4131 = vmul.f32 %v3688, %v4129
    %v4132 = vmul.f32 %v4130, 1.442695
    %v4133 = vpow.pop %v4132
    %v4134 = vmul.f32 %v4131, 1.442695
    %v4135 = vpow.pop %v4134
    %v4136 = vmul.f32 %v4133, %v4048
    %v4137 = vmul.f32 %v4135, %v4049
    %v4138 = vld [vmem:[#allocation4] sm:$0xff]
    %v4139 = vld [vmem:[#allocation4 + $0x8] sm:$0xff]
    %v4140 = vld [vmem:[#allocation2 + $0x4] sm:$0x1]
    %4142 = vset.pattern.permute.xlu0 4
    %4143 = vperm.xlu0 %4142, %v4138
    %v4144 = vpop.permute.xlu0 %4143
    %4147 = vset.pattern.permute.xlu0 4
    %4148 = vperm.xlu0 %4147, %v4139
    %v4149 = vpop.permute.xlu0 %4148
    %v4151 = vlaneseq
    %v4152 = vshrl.u32 %v4151, 7
    %v4153 = vsub.s32 0, %v4152
    %v4154 = vrot.slane %v4140, %v4153
    %v4155 = vmul.f32 %v4144, %v4154
    %v4156 = vmul.f32 %v4149, %v4154
    %v4157 = vadd.f32 %v4136, %v4155
    %v4158 = vadd.f32 %v4137, %v4156
    %v4159 = vld [vmem:[#allocation5 + $0x4] sm:$0x1]
    %v4161 = vsel %vm272, %v4159, 0
    %4163 = vmatprep.subr.mxu0 0.0
    %4164 = vmatpush1.msra.mxu0 0.0
    %4165 = vmatprep.subr.mxu0 0.0
    %4166 = vmatpush1.msra.mxu0 0.0
    %4167 = vmatprep.subr.mxu0 0.0
    %4168 = vmatpush1.msra.mxu0 0.0
    %4169 = vmatprep.subr.mxu0 0.0
    %4170 = vmatpush1.msra.mxu0 0.0
    %4171 = vmatprep.subr.mxu0 0.0
    %4172 = vmatpush1.msra.mxu0 0.0
    %4173 = vmatprep.subr.mxu0 0.0
    %4174 = vmatpush1.msra.mxu0 0.0
    %4175 = vmatprep.subr.mxu0 0.0
    %4176 = vmatpush1.msra.mxu0 0.0
    %4177 = vmatprep.subr.mxu0 0.0
    %4178 = vmatpush1.msra.mxu0 0.0
    %4179 = vmatprep.subr.mxu0 0.0
    %4180 = vmatpush1.msra.mxu0 0.0
    %4181 = vmatprep.subr.mxu0 0.0
    %4182 = vmatpush1.msra.mxu0 0.0
    %4183 = vmatprep.subr.mxu0 0.0
    %4184 = vmatpush1.msra.mxu0 0.0
    %4185 = vmatprep.subr.mxu0 0.0
    %4186 = vmatpush1.msra.mxu0 0.0
    %4187 = vmatprep.subr.mxu0 0.0
    %4188 = vmatpush1.msra.mxu0 0.0
    %4189 = vmatprep.subr.mxu0 0.0
    %4190 = vmatpush1.msra.mxu0 0.0
    %4191 = vmatprep.subr.mxu0 0.0
    %4192 = vmatpush1.msra.mxu0 %v4158
    %4193 = vmatprep.subr.mxu0 0.0
    %4194 = vmatpush1.msra.mxu0 %v4157
    %4195 = vmatprep.subr.mxu0 0.0
    %4196 = vmatpush2.msra.mxu0 0.0
    %4197 = vmatprep.subr.mxu0 0.0
    %4198 = vmatpush2.msra.mxu0 0.0
    %4199 = vmatprep.subr.mxu0 0.0
    %4200 = vmatpush2.msra.mxu0 0.0
    %4201 = vmatprep.subr.mxu0 0.0
    %4202 = vmatpush2.msra.mxu0 0.0
    %4203 = vmatprep.subr.mxu0 0.0
    %4204 = vmatpush2.msra.mxu0 0.0
    %4205 = vmatprep.subr.mxu0 0.0
    %4206 = vmatpush2.msra.mxu0 0.0
    %4207 = vmatprep.subr.mxu0 0.0
    %4208 = vmatpush2.msra.mxu0 0.0
    %4209 = vmatprep.subr.mxu0 0.0
    %4210 = vmatpush2.msra.mxu0 0.0
    %4211 = vmatprep.subr.mxu0 0.0
    %4212 = vmatpush2.msra.mxu0 0.0
    %4213 = vmatprep.subr.mxu0 0.0
    %4214 = vmatpush2.msra.mxu0 0.0
    %4215 = vmatprep.subr.mxu0 0.0
    %4216 = vmatpush2.msra.mxu0 0.0
    %4217 = vmatprep.subr.mxu0 0.0
    %4218 = vmatpush2.msra.mxu0 0.0
    %4219 = vmatprep.subr.mxu0 0.0
    %4220 = vmatpush2.msra.mxu0 0.0
    %4221 = vmatprep.subr.mxu0 0.0
    %4222 = vmatpush2.msra.mxu0 0.0
    %4223 = vmatprep.subr.mxu0 0.0
    %4224 = vmatpush2.msra.mxu0 0.0
    %4225 = vmatprep.subr.mxu0 0.0
    %4226 = vmatpush2.msra.mxu0 0.0
    %4227 = vmatprep.mubr.f32.mxu0 0.0
    %4228 = vmatmul.mubr.f32.gmra.mxu0 %v4161
    %v4229 = vpop.f32.mrf.mxu0
    %v4230 = vadd.f32 0.0, %v4229
    %v4231 = vpop.f32.mrf.mxu0
    %4232 = vdwg.mxu0
    %4233 = vst.msk [vmem:[#allocation6 + $0x4] sm:$0x1] %vm1405, %v4230
    %v4234 = vld [vmem:[#allocation3 + $0x5] sm:$0x1]
    %v4235 = vlaneseq
    %v4236 = vshrl.u32 %v4235, 7
    %v4237 = vsub.s32 0, %v4236
    %v4238 = vrot.slane %v4234, %v4237
    %v4239 = vmul.f32 %v3687, %v4238
    %v4240 = vmul.f32 %v3688, %v4238
    %v4241 = vmul.f32 %v4239, 1.442695
    %v4242 = vpow.pop %v4241
    %v4243 = vmul.f32 %v4240, 1.442695
    %v4244 = vpow.pop %v4243
    %v4245 = vmul.f32 %v4242, %v4157
    %v4246 = vmul.f32 %v4244, %v4158
    %v4247 = vld [vmem:[#allocation4] sm:$0xff]
    %v4248 = vld [vmem:[#allocation4 + $0x8] sm:$0xff]
    %v4249 = vld [vmem:[#allocation2 + $0x5] sm:$0x1]
    %4251 = vset.pattern.permute.xlu0 5
    %4252 = vperm.xlu0 %4251, %v4247
    %v4253 = vpop.permute.xlu0 %4252
    %4256 = vset.pattern.permute.xlu0 5
    %4257 = vperm.xlu0 %4256, %v4248
    %v4258 = vpop.permute.xlu0 %4257
    %v4260 = vlaneseq
    %v4261 = vshrl.u32 %v4260, 7
    %v4262 = vsub.s32 0, %v4261
    %v4263 = vrot.slane %v4249, %v4262
    %v4264 = vmul.f32 %v4253, %v4263
    %v4265 = vmul.f32 %v4258, %v4263
    %v4266 = vadd.f32 %v4245, %v4264
    %v4267 = vadd.f32 %v4246, %v4265
    %v4268 = vld [vmem:[#allocation5 + $0x5] sm:$0x1]
    %v4270 = vsel %vm272, %v4268, 0
    %4272 = vmatprep.subr.mxu0 0.0
    %4273 = vmatpush1.msra.mxu0 0.0
    %4274 = vmatprep.subr.mxu0 0.0
    %4275 = vmatpush1.msra.mxu0 0.0
    %4276 = vmatprep.subr.mxu0 0.0
    %4277 = vmatpush1.msra.mxu0 0.0
    %4278 = vmatprep.subr.mxu0 0.0
    %4279 = vmatpush1.msra.mxu0 0.0
    %4280 = vmatprep.subr.mxu0 0.0
    %4281 = vmatpush1.msra.mxu0 0.0
    %4282 = vmatprep.subr.mxu0 0.0
    %4283 = vmatpush1.msra.mxu0 0.0
    %4284 = vmatprep.subr.mxu0 0.0
    %4285 = vmatpush1.msra.mxu0 0.0
    %4286 = vmatprep.subr.mxu0 0.0
    %4287 = vmatpush1.msra.mxu0 0.0
    %4288 = vmatprep.subr.mxu0 0.0
    %4289 = vmatpush1.msra.mxu0 0.0
    %4290 = vmatprep.subr.mxu0 0.0
    %4291 = vmatpush1.msra.mxu0 0.0
    %4292 = vmatprep.subr.mxu0 0.0
    %4293 = vmatpush1.msra.mxu0 0.0
    %4294 = vmatprep.subr.mxu0 0.0
    %4295 = vmatpush1.msra.mxu0 0.0
    %4296 = vmatprep.subr.mxu0 0.0
    %4297 = vmatpush1.msra.mxu0 0.0
    %4298 = vmatprep.subr.mxu0 0.0
    %4299 = vmatpush1.msra.mxu0 0.0
    %4300 = vmatprep.subr.mxu0 0.0
    %4301 = vmatpush1.msra.mxu0 %v4267
    %4302 = vmatprep.subr.mxu0 0.0
    %4303 = vmatpush1.msra.mxu0 %v4266
    %4304 = vmatprep.subr.mxu0 0.0
    %4305 = vmatpush2.msra.mxu0 0.0
    %4306 = vmatprep.subr.mxu0 0.0
    %4307 = vmatpush2.msra.mxu0 0.0
    %4308 = vmatprep.subr.mxu0 0.0
    %4309 = vmatpush2.msra.mxu0 0.0
    %4310 = vmatprep.subr.mxu0 0.0
    %4311 = vmatpush2.msra.mxu0 0.0
    %4312 = vmatprep.subr.mxu0 0.0
    %4313 = vmatpush2.msra.mxu0 0.0
    %4314 = vmatprep.subr.mxu0 0.0
    %4315 = vmatpush2.msra.mxu0 0.0
    %4316 = vmatprep.subr.mxu0 0.0
    %4317 = vmatpush2.msra.mxu0 0.0
    %4318 = vmatprep.subr.mxu0 0.0
    %4319 = vmatpush2.msra.mxu0 0.0
    %4320 = vmatprep.subr.mxu0 0.0
    %4321 = vmatpush2.msra.mxu0 0.0
    %4322 = vmatprep.subr.mxu0 0.0
    %4323 = vmatpush2.msra.mxu0 0.0
    %4324 = vmatprep.subr.mxu0 0.0
    %4325 = vmatpush2.msra.mxu0 0.0
    %4326 = vmatprep.subr.mxu0 0.0
    %4327 = vmatpush2.msra.mxu0 0.0
    %4328 = vmatprep.subr.mxu0 0.0
    %4329 = vmatpush2.msra.mxu0 0.0
    %4330 = vmatprep.subr.mxu0 0.0
    %4331 = vmatpush2.msra.mxu0 0.0
    %4332 = vmatprep.subr.mxu0 0.0
    %4333 = vmatpush2.msra.mxu0 0.0
    %4334 = vmatprep.subr.mxu0 0.0
    %4335 = vmatpush2.msra.mxu0 0.0
    %4336 = vmatprep.mubr.f32.mxu0 0.0
    %4337 = vmatmul.mubr.f32.gmra.mxu0 %v4270
    %v4338 = vpop.f32.mrf.mxu0
    %v4339 = vadd.f32 0.0, %v4338
    %v4340 = vpop.f32.mrf.mxu0
    %4341 = vdwg.mxu0
    %4342 = vst.msk [vmem:[#allocation6 + $0x5] sm:$0x1] %vm1405, %v4339
    %v4343 = vld [vmem:[#allocation3 + $0x6] sm:$0x1]
    %v4344 = vlaneseq
    %v4345 = vshrl.u32 %v4344, 7
    %v4346 = vsub.s32 0, %v4345
    %v4347 = vrot.slane %v4343, %v4346
    %v4348 = vmul.f32 %v3687, %v4347
    %v4349 = vmul.f32 %v3688, %v4347
    %v4350 = vmul.f32 %v4348, 1.442695
    %v4351 = vpow.pop %v4350
    %v4352 = vmul.f32 %v4349, 1.442695
    %v4353 = vpow.pop %v4352
    %v4354 = vmul.f32 %v4351, %v4266
    %v4355 = vmul.f32 %v4353, %v4267
    %v4356 = vld [vmem:[#allocation4] sm:$0xff]
    %v4357 = vld [vmem:[#allocation4 + $0x8] sm:$0xff]
    %v4358 = vld [vmem:[#allocation2 + $0x6] sm:$0x1]
    %4360 = vset.pattern.permute.xlu0 6
    %4361 = vperm.xlu0 %4360, %v4356
    %v4362 = vpop.permute.xlu0 %4361
    %4365 = vset.pattern.permute.xlu0 6
    %4366 = vperm.xlu0 %4365, %v4357
    %v4367 = vpop.permute.xlu0 %4366
    %v4369 = vlaneseq
    %v4370 = vshrl.u32 %v4369, 7
    %v4371 = vsub.s32 0, %v4370
    %v4372 = vrot.slane %v4358, %v4371
    %v4373 = vmul.f32 %v4362, %v4372
    %v4374 = vmul.f32 %v4367, %v4372
    %v4375 = vadd.f32 %v4354, %v4373
    %v4376 = vadd.f32 %v4355, %v4374
    %v4377 = vld [vmem:[#allocation5 + $0x6] sm:$0x1]
    %v4379 = vsel %vm272, %v4377, 0
    %4381 = vmatprep.subr.mxu0 0.0
    %4382 = vmatpush1.msra.mxu0 0.0
    %4383 = vmatprep.subr.mxu0 0.0
    %4384 = vmatpush1.msra.mxu0 0.0
    %4385 = vmatprep.subr.mxu0 0.0
    %4386 = vmatpush1.msra.mxu0 0.0
    %4387 = vmatprep.subr.mxu0 0.0
    %4388 = vmatpush1.msra.mxu0 0.0
    %4389 = vmatprep.subr.mxu0 0.0
    %4390 = vmatpush1.msra.mxu0 0.0
    %4391 = vmatprep.subr.mxu0 0.0
    %4392 = vmatpush1.msra.mxu0 0.0
    %4393 = vmatprep.subr.mxu0 0.0
    %4394 = vmatpush1.msra.mxu0 0.0
    %4395 = vmatprep.subr.mxu0 0.0
    %4396 = vmatpush1.msra.mxu0 0.0
    %4397 = vmatprep.subr.mxu0 0.0
    %4398 = vmatpush1.msra.mxu0 0.0
    %4399 = vmatprep.subr.mxu0 0.0
    %4400 = vmatpush1.msra.mxu0 0.0
    %4401 = vmatprep.subr.mxu0 0.0
    %4402 = vmatpush1.msra.mxu0 0.0
    %4403 = vmatprep.subr.mxu0 0.0
    %4404 = vmatpush1.msra.mxu0 0.0
    %4405 = vmatprep.subr.mxu0 0.0
    %4406 = vmatpush1.msra.mxu0 0.0
    %4407 = vmatprep.subr.mxu0 0.0
    %4408 = vmatpush1.msra.mxu0 0.0
    %4409 = vmatprep.subr.mxu0 0.0
    %4410 = vmatpush1.msra.mxu0 %v4376
    %4411 = vmatprep.subr.mxu0 0.0
    %4412 = vmatpush1.msra.mxu0 %v4375
    %4413 = vmatprep.subr.mxu0 0.0
    %4414 = vmatpush2.msra.mxu0 0.0
    %4415 = vmatprep.subr.mxu0 0.0
    %4416 = vmatpush2.msra.mxu0 0.0
    %4417 = vmatprep.subr.mxu0 0.0
    %4418 = vmatpush2.msra.mxu0 0.0
    %4419 = vmatprep.subr.mxu0 0.0
    %4420 = vmatpush2.msra.mxu0 0.0
    %4421 = vmatprep.subr.mxu0 0.0
    %4422 = vmatpush2.msra.mxu0 0.0
    %4423 = vmatprep.subr.mxu0 0.0
    %4424 = vmatpush2.msra.mxu0 0.0
    %4425 = vmatprep.subr.mxu0 0.0
    %4426 = vmatpush2.msra.mxu0 0.0
    %4427 = vmatprep.subr.mxu0 0.0
    %4428 = vmatpush2.msra.mxu0 0.0
    %4429 = vmatprep.subr.mxu0 0.0
    %4430 = vmatpush2.msra.mxu0 0.0
    %4431 = vmatprep.subr.mxu0 0.0
    %4432 = vmatpush2.msra.mxu0 0.0
    %4433 = vmatprep.subr.mxu0 0.0
    %4434 = vmatpush2.msra.mxu0 0.0
    %4435 = vmatprep.subr.mxu0 0.0
    %4436 = vmatpush2.msra.mxu0 0.0
    %4437 = vmatprep.subr.mxu0 0.0
    %4438 = vmatpush2.msra.mxu0 0.0
    %4439 = vmatprep.subr.mxu0 0.0
    %4440 = vmatpush2.msra.mxu0 0.0
    %4441 = vmatprep.subr.mxu0 0.0
    %4442 = vmatpush2.msra.mxu0 0.0
    %4443 = vmatprep.subr.mxu0 0.0
    %4444 = vmatpush2.msra.mxu0 0.0
    %4445 = vmatprep.mubr.f32.mxu0 0.0
    %4446 = vmatmul.mubr.f32.gmra.mxu0 %v4379
    %v4447 = vpop.f32.mrf.mxu0
    %v4448 = vadd.f32 0.0, %v4447
    %v4449 = vpop.f32.mrf.mxu0
    %4450 = vdwg.mxu0
    %4451 = vst.msk [vmem:[#allocation6 + $0x6] sm:$0x1] %vm1405, %v4448
    %v4452 = vld [vmem:[#allocation3 + $0x7] sm:$0x1]
    %v4453 = vlaneseq
    %v4454 = vshrl.u32 %v4453, 7
    %v4455 = vsub.s32 0, %v4454
    %v4456 = vrot.slane %v4452, %v4455
    %v4457 = vmul.f32 %v3687, %v4456
    %v4458 = vmul.f32 %v3688, %v4456
    %v4459 = vmul.f32 %v4457, 1.442695
    %v4460 = vpow.pop %v4459
    %v4461 = vmul.f32 %v4458, 1.442695
    %v4462 = vpow.pop %v4461
    %v4463 = vmul.f32 %v4460, %v4375
    %v4464 = vmul.f32 %v4462, %v4376
    %v4465 = vld [vmem:[#allocation4] sm:$0xff]
    %v4466 = vld [vmem:[#allocation4 + $0x8] sm:$0xff]
    %v4467 = vld [vmem:[#allocation2 + $0x7] sm:$0x1]
    %4469 = vset.pattern.permute.xlu0 7
    %4470 = vperm.xlu0 %4469, %v4465
    %v4471 = vpop.permute.xlu0 %4470
    %4474 = vset.pattern.permute.xlu0 7
    %4475 = vperm.xlu0 %4474, %v4466
    %v4476 = vpop.permute.xlu0 %4475
    %v4478 = vlaneseq
    %v4479 = vshrl.u32 %v4478, 7
    %v4480 = vsub.s32 0, %v4479
    %v4481 = vrot.slane %v4467, %v4480
    %v4482 = vmul.f32 %v4471, %v4481
    %v4483 = vmul.f32 %v4476, %v4481
    %v4484 = vadd.f32 %v4463, %v4482
    %v4485 = vadd.f32 %v4464, %v4483
    %v4486 = vld [vmem:[#allocation5 + $0x7] sm:$0x1]
    %v4488 = vsel %vm272, %v4486, 0
    %4490 = vmatprep.subr.mxu0 0.0
    %4491 = vmatpush1.msra.mxu0 0.0
    %4492 = vmatprep.subr.mxu0 0.0
    %4493 = vmatpush1.msra.mxu0 0.0
    %4494 = vmatprep.subr.mxu0 0.0
    %4495 = vmatpush1.msra.mxu0 0.0
    %4496 = vmatprep.subr.mxu0 0.0
    %4497 = vmatpush1.msra.mxu0 0.0
    %4498 = vmatprep.subr.mxu0 0.0
    %4499 = vmatpush1.msra.mxu0 0.0
    %4500 = vmatprep.subr.mxu0 0.0
    %4501 = vmatpush1.msra.mxu0 0.0
    %4502 = vmatprep.subr.mxu0 0.0
    %4503 = vmatpush1.msra.mxu0 0.0
    %4504 = vmatprep.subr.mxu0 0.0
    %4505 = vmatpush1.msra.mxu0 0.0
    %4506 = vmatprep.subr.mxu0 0.0
    %4507 = vmatpush1.msra.mxu0 0.0
    %4508 = vmatprep.subr.mxu0 0.0
    %4509 = vmatpush1.msra.mxu0 0.0
    %4510 = vmatprep.subr.mxu0 0.0
    %4511 = vmatpush1.msra.mxu0 0.0
    %4512 = vmatprep.subr.mxu0 0.0
    %4513 = vmatpush1.msra.mxu0 0.0
    %4514 = vmatprep.subr.mxu0 0.0
    %4515 = vmatpush1.msra.mxu0 0.0
    %4516 = vmatprep.subr.mxu0 0.0
    %4517 = vmatpush1.msra.mxu0 0.0
    %4518 = vmatprep.subr.mxu0 0.0
    %4519 = vmatpush1.msra.mxu0 %v4485
    %4520 = vmatprep.subr.mxu0 0.0
    %4521 = vmatpush1.msra.mxu0 %v4484
    %4522 = vmatprep.subr.mxu0 0.0
    %4523 = vmatpush2.msra.mxu0 0.0
    %4524 = vmatprep.subr.mxu0 0.0
    %4525 = vmatpush2.msra.mxu0 0.0
    %4526 = vmatprep.subr.mxu0 0.0
    %4527 = vmatpush2.msra.mxu0 0.0
    %4528 = vmatprep.subr.mxu0 0.0
    %4529 = vmatpush2.msra.mxu0 0.0
    %4530 = vmatprep.subr.mxu0 0.0
    %4531 = vmatpush2.msra.mxu0 0.0
    %4532 = vmatprep.subr.mxu0 0.0
    %4533 = vmatpush2.msra.mxu0 0.0
    %4534 = vmatprep.subr.mxu0 0.0
    %4535 = vmatpush2.msra.mxu0 0.0
    %4536 = vmatprep.subr.mxu0 0.0
    %4537 = vmatpush2.msra.mxu0 0.0
    %4538 = vmatprep.subr.mxu0 0.0
    %4539 = vmatpush2.msra.mxu0 0.0
    %4540 = vmatprep.subr.mxu0 0.0
    %4541 = vmatpush2.msra.mxu0 0.0
    %4542 = vmatprep.subr.mxu0 0.0
    %4543 = vmatpush2.msra.mxu0 0.0
    %4544 = vmatprep.subr.mxu0 0.0
    %4545 = vmatpush2.msra.mxu0 0.0
    %4546 = vmatprep.subr.mxu0 0.0
    %4547 = vmatpush2.msra.mxu0 0.0
    %4548 = vmatprep.subr.mxu0 0.0
    %4549 = vmatpush2.msra.mxu0 0.0
    %4550 = vmatprep.subr.mxu0 0.0
    %4551 = vmatpush2.msra.mxu0 0.0
    %4552 = vmatprep.subr.mxu0 0.0
    %4553 = vmatpush2.msra.mxu0 0.0
    %4554 = vmatprep.mubr.f32.mxu0 0.0
    %4555 = vmatmul.mubr.f32.gmra.mxu0 %v4488
    %v4556 = vpop.f32.mrf.mxu0
    %v4557 = vadd.f32 0.0, %v4556
    %v4558 = vpop.f32.mrf.mxu0
    %4559 = vdwg.mxu0
    %4560 = vst.msk [vmem:[#allocation6 + $0x7] sm:$0x1] %vm1405, %v4557
    %v4561 = vld [vmem:[#allocation3 + $0x8] sm:$0x1]
    %v4562 = vlaneseq
    %v4563 = vshrl.u32 %v4562, 7
    %v4564 = vsub.s32 0, %v4563
    %v4565 = vrot.slane %v4561, %v4564
    %v4566 = vmul.f32 %v3687, %v4565
    %v4567 = vmul.f32 %v3688, %v4565
    %v4568 = vmul.f32 %v4566, 1.442695
    %v4569 = vpow.pop %v4568
    %v4570 = vmul.f32 %v4567, 1.442695
    %v4571 = vpow.pop %v4570
    %v4572 = vmul.f32 %v4569, %v4484
    %v4573 = vmul.f32 %v4571, %v4485
    %v4574 = vld [vmem:[#allocation4] sm:$0xff]
    %v4575 = vld [vmem:[#allocation4 + $0x8] sm:$0xff]
    %v4576 = vld [vmem:[#allocation2 + $0x8] sm:$0x1]
    %4578 = vset.pattern.permute.xlu0 8
    %4579 = vperm.xlu0 %4578, %v4574
    %v4580 = vpop.permute.xlu0 %4579
    %4583 = vset.pattern.permute.xlu0 8
    %4584 = vperm.xlu0 %4583, %v4575
    %v4585 = vpop.permute.xlu0 %4584
    %v4587 = vlaneseq
    %v4588 = vshrl.u32 %v4587, 7
    %v4589 = vsub.s32 0, %v4588
    %v4590 = vrot.slane %v4576, %v4589
    %v4591 = vmul.f32 %v4580, %v4590
    %v4592 = vmul.f32 %v4585, %v4590
    %v4593 = vadd.f32 %v4572, %v4591
    %v4594 = vadd.f32 %v4573, %v4592
    %v4595 = vld [vmem:[#allocation5 + $0x8] sm:$0x1]
    %v4597 = vsel %vm272, %v4595, 0
    %4599 = vmatprep.subr.mxu0 0.0
    %4600 = vmatpush1.msra.mxu0 0.0
    %4601 = vmatprep.subr.mxu0 0.0
    %4602 = vmatpush1.msra.mxu0 0.0
    %4603 = vmatprep.subr.mxu0 0.0
    %4604 = vmatpush1.msra.mxu0 0.0
    %4605 = vmatprep.subr.mxu0 0.0
    %4606 = vmatpush1.msra.mxu0 0.0
    %4607 = vmatprep.subr.mxu0 0.0
    %4608 = vmatpush1.msra.mxu0 0.0
    %4609 = vmatprep.subr.mxu0 0.0
    %4610 = vmatpush1.msra.mxu0 0.0
    %4611 = vmatprep.subr.mxu0 0.0
    %4612 = vmatpush1.msra.mxu0 0.0
    %4613 = vmatprep.subr.mxu0 0.0
    %4614 = vmatpush1.msra.mxu0 0.0
    %4615 = vmatprep.subr.mxu0 0.0
    %4616 = vmatpush1.msra.mxu0 0.0
    %4617 = vmatprep.subr.mxu0 0.0
    %4618 = vmatpush1.msra.mxu0 0.0
    %4619 = vmatprep.subr.mxu0 0.0
    %4620 = vmatpush1.msra.mxu0 0.0
    %4621 = vmatprep.subr.mxu0 0.0
    %4622 = vmatpush1.msra.mxu0 0.0
    %4623 = vmatprep.subr.mxu0 0.0
    %4624 = vmatpush1.msra.mxu0 0.0
    %4625 = vmatprep.subr.mxu0 0.0
    %4626 = vmatpush1.msra.mxu0 0.0
    %4627 = vmatprep.subr.mxu0 0.0
    %4628 = vmatpush1.msra.mxu0 %v4594
    %4629 = vmatprep.subr.mxu0 0.0
    %4630 = vmatpush1.msra.mxu0 %v4593
    %4631 = vmatprep.subr.mxu0 0.0
    %4632 = vmatpush2.msra.mxu0 0.0
    %4633 = vmatprep.subr.mxu0 0.0
    %4634 = vmatpush2.msra.mxu0 0.0
    %4635 = vmatprep.subr.mxu0 0.0
    %4636 = vmatpush2.msra.mxu0 0.0
    %4637 = vmatprep.subr.mxu0 0.0
    %4638 = vmatpush2.msra.mxu0 0.0
    %4639 = vmatprep.subr.mxu0 0.0
    %4640 = vmatpush2.msra.mxu0 0.0
    %4641 = vmatprep.subr.mxu0 0.0
    %4642 = vmatpush2.msra.mxu0 0.0
    %4643 = vmatprep.subr.mxu0 0.0
    %4644 = vmatpush2.msra.mxu0 0.0
    %4645 = vmatprep.subr.mxu0 0.0
    %4646 = vmatpush2.msra.mxu0 0.0
    %4647 = vmatprep.subr.mxu0 0.0
    %4648 = vmatpush2.msra.mxu0 0.0
    %4649 = vmatprep.subr.mxu0 0.0
    %4650 = vmatpush2.msra.mxu0 0.0
    %4651 = vmatprep.subr.mxu0 0.0
    %4652 = vmatpush2.msra.mxu0 0.0
    %4653 = vmatprep.subr.mxu0 0.0
    %4654 = vmatpush2.msra.mxu0 0.0
    %4655 = vmatprep.subr.mxu0 0.0
    %4656 = vmatpush2.msra.mxu0 0.0
    %4657 = vmatprep.subr.mxu0 0.0
    %4658 = vmatpush2.msra.mxu0 0.0
    %4659 = vmatprep.subr.mxu0 0.0
    %4660 = vmatpush2.msra.mxu0 0.0
    %4661 = vmatprep.subr.mxu0 0.0
    %4662 = vmatpush2.msra.mxu0 0.0
    %4663 = vmatprep.mubr.f32.mxu0 0.0
    %4664 = vmatmul.mubr.f32.gmra.mxu0 %v4597
    %v4665 = vpop.f32.mrf.mxu0
    %v4666 = vadd.f32 0.0, %v4665
    %v4667 = vpop.f32.mrf.mxu0
    %4668 = vdwg.mxu0
    %4669 = vst.msk [vmem:[#allocation6 + $0x8] sm:$0x1] %vm1405, %v4666
    %v4670 = vld [vmem:[#allocation3 + $0x9] sm:$0x1]
    %v4671 = vlaneseq
    %v4672 = vshrl.u32 %v4671, 7
    %v4673 = vsub.s32 0, %v4672
    %v4674 = vrot.slane %v4670, %v4673
    %v4675 = vmul.f32 %v3687, %v4674
    %v4676 = vmul.f32 %v3688, %v4674
    %v4677 = vmul.f32 %v4675, 1.442695
    %v4678 = vpow.pop %v4677
    %v4679 = vmul.f32 %v4676, 1.442695
    %v4680 = vpow.pop %v4679
    %v4681 = vmul.f32 %v4678, %v4593
    %v4682 = vmul.f32 %v4680, %v4594
    %v4683 = vld [vmem:[#allocation4] sm:$0xff]
    %v4684 = vld [vmem:[#allocation4 + $0x8] sm:$0xff]
    %v4685 = vld [vmem:[#allocation2 + $0x9] sm:$0x1]
    %4687 = vset.pattern.permute.xlu0 9
    %4688 = vperm.xlu0 %4687, %v4683
    %v4689 = vpop.permute.xlu0 %4688
    %4692 = vset.pattern.permute.xlu0 9
    %4693 = vperm.xlu0 %4692, %v4684
    %v4694 = vpop.permute.xlu0 %4693
    %v4696 = vlaneseq
    %v4697 = vshrl.u32 %v4696, 7
    %v4698 = vsub.s32 0, %v4697
    %v4699 = vrot.slane %v4685, %v4698
    %v4700 = vmul.f32 %v4689, %v4699
    %v4701 = vmul.f32 %v4694, %v4699
    %v4702 = vadd.f32 %v4681, %v4700
    %v4703 = vadd.f32 %v4682, %v4701
    %v4704 = vld [vmem:[#allocation5 + $0x9] sm:$0x1]
    %v4706 = vsel %vm272, %v4704, 0
    %4708 = vmatprep.subr.mxu0 0.0
    %4709 = vmatpush1.msra.mxu0 0.0
    %4710 = vmatprep.subr.mxu0 0.0
    %4711 = vmatpush1.msra.mxu0 0.0
    %4712 = vmatprep.subr.mxu0 0.0
    %4713 = vmatpush1.msra.mxu0 0.0
    %4714 = vmatprep.subr.mxu0 0.0
    %4715 = vmatpush1.msra.mxu0 0.0
    %4716 = vmatprep.subr.mxu0 0.0
    %4717 = vmatpush1.msra.mxu0 0.0
    %4718 = vmatprep.subr.mxu0 0.0
    %4719 = vmatpush1.msra.mxu0 0.0
    %4720 = vmatprep.subr.mxu0 0.0
    %4721 = vmatpush1.msra.mxu0 0.0
    %4722 = vmatprep.subr.mxu0 0.0
    %4723 = vmatpush1.msra.mxu0 0.0
    %4724 = vmatprep.subr.mxu0 0.0
    %4725 = vmatpush1.msra.mxu0 0.0
    %4726 = vmatprep.subr.mxu0 0.0
    %4727 = vmatpush1.msra.mxu0 0.0
    %4728 = vmatprep.subr.mxu0 0.0
    %4729 = vmatpush1.msra.mxu0 0.0
    %4730 = vmatprep.subr.mxu0 0.0
    %4731 = vmatpush1.msra.mxu0 0.0
    %4732 = vmatprep.subr.mxu0 0.0
    %4733 = vmatpush1.msra.mxu0 0.0
    %4734 = vmatprep.subr.mxu0 0.0
    %4735 = vmatpush1.msra.mxu0 0.0
    %4736 = vmatprep.subr.mxu0 0.0
    %4737 = vmatpush1.msra.mxu0 %v4703
    %4738 = vmatprep.subr.mxu0 0.0
    %4739 = vmatpush1.msra.mxu0 %v4702
    %4740 = vmatprep.subr.mxu0 0.0
    %4741 = vmatpush2.msra.mxu0 0.0
    %4742 = vmatprep.subr.mxu0 0.0
    %4743 = vmatpush2.msra.mxu0 0.0
    %4744 = vmatprep.subr.mxu0 0.0
    %4745 = vmatpush2.msra.mxu0 0.0
    %4746 = vmatprep.subr.mxu0 0.0
    %4747 = vmatpush2.msra.mxu0 0.0
    %4748 = vmatprep.subr.mxu0 0.0
    %4749 = vmatpush2.msra.mxu0 0.0
    %4750 = vmatprep.subr.mxu0 0.0
    %4751 = vmatpush2.msra.mxu0 0.0
    %4752 = vmatprep.subr.mxu0 0.0
    %4753 = vmatpush2.msra.mxu0 0.0
    %4754 = vmatprep.subr.mxu0 0.0
    %4755 = vmatpush2.msra.mxu0 0.0
    %4756 = vmatprep.subr.mxu0 0.0
    %4757 = vmatpush2.msra.mxu0 0.0
    %4758 = vmatprep.subr.mxu0 0.0
    %4759 = vmatpush2.msra.mxu0 0.0
    %4760 = vmatprep.subr.mxu0 0.0
    %4761 = vmatpush2.msra.mxu0 0.0
    %4762 = vmatprep.subr.mxu0 0.0
    %4763 = vmatpush2.msra.mxu0 0.0
    %4764 = vmatprep.subr.mxu0 0.0
    %4765 = vmatpush2.msra.mxu0 0.0
    %4766 = vmatprep.subr.mxu0 0.0
    %4767 = vmatpush2.msra.mxu0 0.0
    %4768 = vmatprep.subr.mxu0 0.0
    %4769 = vmatpush2.msra.mxu0 0.0
    %4770 = vmatprep.subr.mxu0 0.0
    %4771 = vmatpush2.msra.mxu0 0.0
    %4772 = vmatprep.mubr.f32.mxu0 0.0
    %4773 = vmatmul.mubr.f32.gmra.mxu0 %v4706
    %v4774 = vpop.f32.mrf.mxu0
    %v4775 = vadd.f32 0.0, %v4774
    %v4776 = vpop.f32.mrf.mxu0
    %4777 = vdwg.mxu0
    %4778 = vst.msk [vmem:[#allocation6 + $0x9] sm:$0x1] %vm1405, %v4775
    %v4779 = vld [vmem:[#allocation3 + $0xa] sm:$0x1]
    %v4780 = vlaneseq
    %v4781 = vshrl.u32 %v4780, 7
    %v4782 = vsub.s32 0, %v4781
    %v4783 = vrot.slane %v4779, %v4782
    %v4784 = vmul.f32 %v3687, %v4783
    %v4785 = vmul.f32 %v3688, %v4783
    %v4786 = vmul.f32 %v4784, 1.442695
    %v4787 = vpow.pop %v4786
    %v4788 = vmul.f32 %v4785, 1.442695
    %v4789 = vpow.pop %v4788
    %v4790 = vmul.f32 %v4787, %v4702
    %v4791 = vmul.f32 %v4789, %v4703
    %v4792 = vld [vmem:[#allocation4] sm:$0xff]
    %v4793 = vld [vmem:[#allocation4 + $0x8] sm:$0xff]
    %v4794 = vld [vmem:[#allocation2 + $0xa] sm:$0x1]
    %4796 = vset.pattern.permute.xlu0 10
    %4797 = vperm.xlu0 %4796, %v4792
    %v4798 = vpop.permute.xlu0 %4797
    %4801 = vset.pattern.permute.xlu0 10
    %4802 = vperm.xlu0 %4801, %v4793
    %v4803 = vpop.permute.xlu0 %4802
    %v4805 = vlaneseq
    %v4806 = vshrl.u32 %v4805, 7
    %v4807 = vsub.s32 0, %v4806
    %v4808 = vrot.slane %v4794, %v4807
    %v4809 = vmul.f32 %v4798, %v4808
    %v4810 = vmul.f32 %v4803, %v4808
    %v4811 = vadd.f32 %v4790, %v4809
    %v4812 = vadd.f32 %v4791, %v4810
    %v4813 = vld [vmem:[#allocation5 + $0xa] sm:$0x1]
    %v4815 = vsel %vm272, %v4813, 0
    %4817 = vmatprep.subr.mxu0 0.0
    %4818 = vmatpush1.msra.mxu0 0.0
    %4819 = vmatprep.subr.mxu0 0.0
    %4820 = vmatpush1.msra.mxu0 0.0
    %4821 = vmatprep.subr.mxu0 0.0
    %4822 = vmatpush1.msra.mxu0 0.0
    %4823 = vmatprep.subr.mxu0 0.0
    %4824 = vmatpush1.msra.mxu0 0.0
    %4825 = vmatprep.subr.mxu0 0.0
    %4826 = vmatpush1.msra.mxu0 0.0
    %4827 = vmatprep.subr.mxu0 0.0
    %4828 = vmatpush1.msra.mxu0 0.0
    %4829 = vmatprep.subr.mxu0 0.0
    %4830 = vmatpush1.msra.mxu0 0.0
    %4831 = vmatprep.subr.mxu0 0.0
    %4832 = vmatpush1.msra.mxu0 0.0
    %4833 = vmatprep.subr.mxu0 0.0
    %4834 = vmatpush1.msra.mxu0 0.0
    %4835 = vmatprep.subr.mxu0 0.0
    %4836 = vmatpush1.msra.mxu0 0.0
    %4837 = vmatprep.subr.mxu0 0.0
    %4838 = vmatpush1.msra.mxu0 0.0
    %4839 = vmatprep.subr.mxu0 0.0
    %4840 = vmatpush1.msra.mxu0 0.0
    %4841 = vmatprep.subr.mxu0 0.0
    %4842 = vmatpush1.msra.mxu0 0.0
    %4843 = vmatprep.subr.mxu0 0.0
    %4844 = vmatpush1.msra.mxu0 0.0
    %4845 = vmatprep.subr.mxu0 0.0
    %4846 = vmatpush1.msra.mxu0 %v4812
    %4847 = vmatprep.subr.mxu0 0.0
    %4848 = vmatpush1.msra.mxu0 %v4811
    %4849 = vmatprep.subr.mxu0 0.0
    %4850 = vmatpush2.msra.mxu0 0.0
    %4851 = vmatprep.subr.mxu0 0.0
    %4852 = vmatpush2.msra.mxu0 0.0
    %4853 = vmatprep.subr.mxu0 0.0
    %4854 = vmatpush2.msra.mxu0 0.0
    %4855 = vmatprep.subr.mxu0 0.0
    %4856 = vmatpush2.msra.mxu0 0.0
    %4857 = vmatprep.subr.mxu0 0.0
    %4858 = vmatpush2.msra.mxu0 0.0
    %4859 = vmatprep.subr.mxu0 0.0
    %4860 = vmatpush2.msra.mxu0 0.0
    %4861 = vmatprep.subr.mxu0 0.0
    %4862 = vmatpush2.msra.mxu0 0.0
    %4863 = vmatprep.subr.mxu0 0.0
    %4864 = vmatpush2.msra.mxu0 0.0
    %4865 = vmatprep.subr.mxu0 0.0
    %4866 = vmatpush2.msra.mxu0 0.0
    %4867 = vmatprep.subr.mxu0 0.0
    %4868 = vmatpush2.msra.mxu0 0.0
    %4869 = vmatprep.subr.mxu0 0.0
    %4870 = vmatpush2.msra.mxu0 0.0
    %4871 = vmatprep.subr.mxu0 0.0
    %4872 = vmatpush2.msra.mxu0 0.0
    %4873 = vmatprep.subr.mxu0 0.0
    %4874 = vmatpush2.msra.mxu0 0.0
    %4875 = vmatprep.subr.mxu0 0.0
    %4876 = vmatpush2.msra.mxu0 0.0
    %4877 = vmatprep.subr.mxu0 0.0
    %4878 = vmatpush2.msra.mxu0 0.0
    %4879 = vmatprep.subr.mxu0 0.0
    %4880 = vmatpush2.msra.mxu0 0.0
    %4881 = vmatprep.mubr.f32.mxu0 0.0
    %4882 = vmatmul.mubr.f32.gmra.mxu0 %v4815
    %v4883 = vpop.f32.mrf.mxu0
    %v4884 = vadd.f32 0.0, %v4883
    %v4885 = vpop.f32.mrf.mxu0
    %4886 = vdwg.mxu0
    %4887 = vst.msk [vmem:[#allocation6 + $0xa] sm:$0x1] %vm1405, %v4884
    %v4888 = vld [vmem:[#allocation3 + $0xb] sm:$0x1]
    %v4889 = vlaneseq
    %v4890 = vshrl.u32 %v4889, 7
    %v4891 = vsub.s32 0, %v4890
    %v4892 = vrot.slane %v4888, %v4891
    %v4893 = vmul.f32 %v3687, %v4892
    %v4894 = vmul.f32 %v3688, %v4892
    %v4895 = vmul.f32 %v4893, 1.442695
    %v4896 = vpow.pop %v4895
    %v4897 = vmul.f32 %v4894, 1.442695
    %v4898 = vpow.pop %v4897
    %v4899 = vmul.f32 %v4896, %v4811
    %v4900 = vmul.f32 %v4898, %v4812
    %v4901 = vld [vmem:[#allocation4] sm:$0xff]
    %v4902 = vld [vmem:[#allocation4 + $0x8] sm:$0xff]
    %v4903 = vld [vmem:[#allocation2 + $0xb] sm:$0x1]
    %4905 = vset.pattern.permute.xlu0 11
    %4906 = vperm.xlu0 %4905, %v4901
    %v4907 = vpop.permute.xlu0 %4906
    %4910 = vset.pattern.permute.xlu0 11
    %4911 = vperm.xlu0 %4910, %v4902
    %v4912 = vpop.permute.xlu0 %4911
    %v4914 = vlaneseq
    %v4915 = vshrl.u32 %v4914, 7
    %v4916 = vsub.s32 0, %v4915
    %v4917 = vrot.slane %v4903, %v4916
    %v4918 = vmul.f32 %v4907, %v4917
    %v4919 = vmul.f32 %v4912, %v4917
    %v4920 = vadd.f32 %v4899, %v4918
    %v4921 = vadd.f32 %v4900, %v4919
    %v4922 = vld [vmem:[#allocation5 + $0xb] sm:$0x1]
    %v4924 = vsel %vm272, %v4922, 0
    %4926 = vmatprep.subr.mxu0 0.0
    %4927 = vmatpush1.msra.mxu0 0.0
    %4928 = vmatprep.subr.mxu0 0.0
    %4929 = vmatpush1.msra.mxu0 0.0
    %4930 = vmatprep.subr.mxu0 0.0
    %4931 = vmatpush1.msra.mxu0 0.0
    %4932 = vmatprep.subr.mxu0 0.0
    %4933 = vmatpush1.msra.mxu0 0.0
    %4934 = vmatprep.subr.mxu0 0.0
    %4935 = vmatpush1.msra.mxu0 0.0
    %4936 = vmatprep.subr.mxu0 0.0
    %4937 = vmatpush1.msra.mxu0 0.0
    %4938 = vmatprep.subr.mxu0 0.0
    %4939 = vmatpush1.msra.mxu0 0.0
    %4940 = vmatprep.subr.mxu0 0.0
    %4941 = vmatpush1.msra.mxu0 0.0
    %4942 = vmatprep.subr.mxu0 0.0
    %4943 = vmatpush1.msra.mxu0 0.0
    %4944 = vmatprep.subr.mxu0 0.0
    %4945 = vmatpush1.msra.mxu0 0.0
    %4946 = vmatprep.subr.mxu0 0.0
    %4947 = vmatpush1.msra.mxu0 0.0
    %4948 = vmatprep.subr.mxu0 0.0
    %4949 = vmatpush1.msra.mxu0 0.0
    %4950 = vmatprep.subr.mxu0 0.0
    %4951 = vmatpush1.msra.mxu0 0.0
    %4952 = vmatprep.subr.mxu0 0.0
    %4953 = vmatpush1.msra.mxu0 0.0
    %4954 = vmatprep.subr.mxu0 0.0
    %4955 = vmatpush1.msra.mxu0 %v4921
    %4956 = vmatprep.subr.mxu0 0.0
    %4957 = vmatpush1.msra.mxu0 %v4920
    %4958 = vmatprep.subr.mxu0 0.0
    %4959 = vmatpush2.msra.mxu0 0.0
    %4960 = vmatprep.subr.mxu0 0.0
    %4961 = vmatpush2.msra.mxu0 0.0
    %4962 = vmatprep.subr.mxu0 0.0
    %4963 = vmatpush2.msra.mxu0 0.0
    %4964 = vmatprep.subr.mxu0 0.0
    %4965 = vmatpush2.msra.mxu0 0.0
    %4966 = vmatprep.subr.mxu0 0.0
    %4967 = vmatpush2.msra.mxu0 0.0
    %4968 = vmatprep.subr.mxu0 0.0
    %4969 = vmatpush2.msra.mxu0 0.0
    %4970 = vmatprep.subr.mxu0 0.0
    %4971 = vmatpush2.msra.mxu0 0.0
    %4972 = vmatprep.subr.mxu0 0.0
    %4973 = vmatpush2.msra.mxu0 0.0
    %4974 = vmatprep.subr.mxu0 0.0
    %4975 = vmatpush2.msra.mxu0 0.0
    %4976 = vmatprep.subr.mxu0 0.0
    %4977 = vmatpush2.msra.mxu0 0.0
    %4978 = vmatprep.subr.mxu0 0.0
    %4979 = vmatpush2.msra.mxu0 0.0
    %4980 = vmatprep.subr.mxu0 0.0
    %4981 = vmatpush2.msra.mxu0 0.0
    %4982 = vmatprep.subr.mxu0 0.0
    %4983 = vmatpush2.msra.mxu0 0.0
    %4984 = vmatprep.subr.mxu0 0.0
    %4985 = vmatpush2.msra.mxu0 0.0
    %4986 = vmatprep.subr.mxu0 0.0
    %4987 = vmatpush2.msra.mxu0 0.0
    %4988 = vmatprep.subr.mxu0 0.0
    %4989 = vmatpush2.msra.mxu0 0.0
    %4990 = vmatprep.mubr.f32.mxu0 0.0
    %4991 = vmatmul.mubr.f32.gmra.mxu0 %v4924
    %v4992 = vpop.f32.mrf.mxu0
    %v4993 = vadd.f32 0.0, %v4992
    %v4994 = vpop.f32.mrf.mxu0
    %4995 = vdwg.mxu0
    %4996 = vst.msk [vmem:[#allocation6 + $0xb] sm:$0x1] %vm1405, %v4993
    %v4997 = vld [vmem:[#allocation3 + $0xc] sm:$0x1]
    %v4998 = vlaneseq
    %v4999 = vshrl.u32 %v4998, 7
    %v5000 = vsub.s32 0, %v4999
    %v5001 = vrot.slane %v4997, %v5000
    %v5002 = vmul.f32 %v3687, %v5001
    %v5003 = vmul.f32 %v3688, %v5001
    %v5004 = vmul.f32 %v5002, 1.442695
    %v5005 = vpow.pop %v5004
    %v5006 = vmul.f32 %v5003, 1.442695
    %v5007 = vpow.pop %v5006
    %v5008 = vmul.f32 %v5005, %v4920
    %v5009 = vmul.f32 %v5007, %v4921
    %v5010 = vld [vmem:[#allocation4] sm:$0xff]
    %v5011 = vld [vmem:[#allocation4 + $0x8] sm:$0xff]
    %v5012 = vld [vmem:[#allocation2 + $0xc] sm:$0x1]
    %5014 = vset.pattern.permute.xlu0 12
    %5015 = vperm.xlu0 %5014, %v5010
    %v5016 = vpop.permute.xlu0 %5015
    %5019 = vset.pattern.permute.xlu0 12
    %5020 = vperm.xlu0 %5019, %v5011
    %v5021 = vpop.permute.xlu0 %5020
    %v5023 = vlaneseq
    %v5024 = vshrl.u32 %v5023, 7
    %v5025 = vsub.s32 0, %v5024
    %v5026 = vrot.slane %v5012, %v5025
    %v5027 = vmul.f32 %v5016, %v5026
    %v5028 = vmul.f32 %v5021, %v5026
    %v5029 = vadd.f32 %v5008, %v5027
    %v5030 = vadd.f32 %v5009, %v5028
    %v5031 = vld [vmem:[#allocation5 + $0xc] sm:$0x1]
    %v5033 = vsel %vm272, %v5031, 0
    %5035 = vmatprep.subr.mxu0 0.0
    %5036 = vmatpush1.msra.mxu0 0.0
    %5037 = vmatprep.subr.mxu0 0.0
    %5038 = vmatpush1.msra.mxu0 0.0
    %5039 = vmatprep.subr.mxu0 0.0
    %5040 = vmatpush1.msra.mxu0 0.0
    %5041 = vmatprep.subr.mxu0 0.0
    %5042 = vmatpush1.msra.mxu0 0.0
    %5043 = vmatprep.subr.mxu0 0.0
    %5044 = vmatpush1.msra.mxu0 0.0
    %5045 = vmatprep.subr.mxu0 0.0
    %5046 = vmatpush1.msra.mxu0 0.0
    %5047 = vmatprep.subr.mxu0 0.0
    %5048 = vmatpush1.msra.mxu0 0.0
    %5049 = vmatprep.subr.mxu0 0.0
    %5050 = vmatpush1.msra.mxu0 0.0
    %5051 = vmatprep.subr.mxu0 0.0
    %5052 = vmatpush1.msra.mxu0 0.0
    %5053 = vmatprep.subr.mxu0 0.0
    %5054 = vmatpush1.msra.mxu0 0.0
    %5055 = vmatprep.subr.mxu0 0.0
    %5056 = vmatpush1.msra.mxu0 0.0
    %5057 = vmatprep.subr.mxu0 0.0
    %5058 = vmatpush1.msra.mxu0 0.0
    %5059 = vmatprep.subr.mxu0 0.0
    %5060 = vmatpush1.msra.mxu0 0.0
    %5061 = vmatprep.subr.mxu0 0.0
    %5062 = vmatpush1.msra.mxu0 0.0
    %5063 = vmatprep.subr.mxu0 0.0
    %5064 = vmatpush1.msra.mxu0 %v5030
    %5065 = vmatprep.subr.mxu0 0.0
    %5066 = vmatpush1.msra.mxu0 %v5029
    %5067 = vmatprep.subr.mxu0 0.0
    %5068 = vmatpush2.msra.mxu0 0.0
    %5069 = vmatprep.subr.mxu0 0.0
    %5070 = vmatpush2.msra.mxu0 0.0
    %5071 = vmatprep.subr.mxu0 0.0
    %5072 = vmatpush2.msra.mxu0 0.0
    %5073 = vmatprep.subr.mxu0 0.0
    %5074 = vmatpush2.msra.mxu0 0.0
    %5075 = vmatprep.subr.mxu0 0.0
    %5076 = vmatpush2.msra.mxu0 0.0
    %5077 = vmatprep.subr.mxu0 0.0
    %5078 = vmatpush2.msra.mxu0 0.0
    %5079 = vmatprep.subr.mxu0 0.0
    %5080 = vmatpush2.msra.mxu0 0.0
    %5081 = vmatprep.subr.mxu0 0.0
    %5082 = vmatpush2.msra.mxu0 0.0
    %5083 = vmatprep.subr.mxu0 0.0
    %5084 = vmatpush2.msra.mxu0 0.0
    %5085 = vmatprep.subr.mxu0 0.0
    %5086 = vmatpush2.msra.mxu0 0.0
    %5087 = vmatprep.subr.mxu0 0.0
    %5088 = vmatpush2.msra.mxu0 0.0
    %5089 = vmatprep.subr.mxu0 0.0
    %5090 = vmatpush2.msra.mxu0 0.0
    %5091 = vmatprep.subr.mxu0 0.0
    %5092 = vmatpush2.msra.mxu0 0.0
    %5093 = vmatprep.subr.mxu0 0.0
    %5094 = vmatpush2.msra.mxu0 0.0
    %5095 = vmatprep.subr.mxu0 0.0
    %5096 = vmatpush2.msra.mxu0 0.0
    %5097 = vmatprep.subr.mxu0 0.0
    %5098 = vmatpush2.msra.mxu0 0.0
    %5099 = vmatprep.mubr.f32.mxu0 0.0
    %5100 = vmatmul.mubr.f32.gmra.mxu0 %v5033
    %v5101 = vpop.f32.mrf.mxu0
    %v5102 = vadd.f32 0.0, %v5101
    %v5103 = vpop.f32.mrf.mxu0
    %5104 = vdwg.mxu0
    %5105 = vst.msk [vmem:[#allocation6 + $0xc] sm:$0x1] %vm1405, %v5102
    %v5106 = vld [vmem:[#allocation3 + $0xd] sm:$0x1]
    %v5107 = vlaneseq
    %v5108 = vshrl.u32 %v5107, 7
    %v5109 = vsub.s32 0, %v5108
    %v5110 = vrot.slane %v5106, %v5109
    %v5111 = vmul.f32 %v3687, %v5110
    %v5112 = vmul.f32 %v3688, %v5110
    %v5113 = vmul.f32 %v5111, 1.442695
    %v5114 = vpow.pop %v5113
    %v5115 = vmul.f32 %v5112, 1.442695
    %v5116 = vpow.pop %v5115
    %v5117 = vmul.f32 %v5114, %v5029
    %v5118 = vmul.f32 %v5116, %v5030
    %v5119 = vld [vmem:[#allocation4] sm:$0xff]
    %v5120 = vld [vmem:[#allocation4 + $0x8] sm:$0xff]
    %v5121 = vld [vmem:[#allocation2 + $0xd] sm:$0x1]
    %5123 = vset.pattern.permute.xlu0 13
    %5124 = vperm.xlu0 %5123, %v5119
    %v5125 = vpop.permute.xlu0 %5124
    %5128 = vset.pattern.permute.xlu0 13
    %5129 = vperm.xlu0 %5128, %v5120
    %v5130 = vpop.permute.xlu0 %5129
    %v5132 = vlaneseq
    %v5133 = vshrl.u32 %v5132, 7
    %v5134 = vsub.s32 0, %v5133
    %v5135 = vrot.slane %v5121, %v5134
    %v5136 = vmul.f32 %v5125, %v5135
    %v5137 = vmul.f32 %v5130, %v5135
    %v5138 = vadd.f32 %v5117, %v5136
    %v5139 = vadd.f32 %v5118, %v5137
    %v5140 = vld [vmem:[#allocation5 + $0xd] sm:$0x1]
    %v5142 = vsel %vm272, %v5140, 0
    %5144 = vmatprep.subr.mxu0 0.0
    %5145 = vmatpush1.msra.mxu0 0.0
    %5146 = vmatprep.subr.mxu0 0.0
    %5147 = vmatpush1.msra.mxu0 0.0
    %5148 = vmatprep.subr.mxu0 0.0
    %5149 = vmatpush1.msra.mxu0 0.0
    %5150 = vmatprep.subr.mxu0 0.0
    %5151 = vmatpush1.msra.mxu0 0.0
    %5152 = vmatprep.subr.mxu0 0.0
    %5153 = vmatpush1.msra.mxu0 0.0
    %5154 = vmatprep.subr.mxu0 0.0
    %5155 = vmatpush1.msra.mxu0 0.0
    %5156 = vmatprep.subr.mxu0 0.0
    %5157 = vmatpush1.msra.mxu0 0.0
    %5158 = vmatprep.subr.mxu0 0.0
    %5159 = vmatpush1.msra.mxu0 0.0
    %5160 = vmatprep.subr.mxu0 0.0
    %5161 = vmatpush1.msra.mxu0 0.0
    %5162 = vmatprep.subr.mxu0 0.0
    %5163 = vmatpush1.msra.mxu0 0.0
    %5164 = vmatprep.subr.mxu0 0.0
    %5165 = vmatpush1.msra.mxu0 0.0
    %5166 = vmatprep.subr.mxu0 0.0
    %5167 = vmatpush1.msra.mxu0 0.0
    %5168 = vmatprep.subr.mxu0 0.0
    %5169 = vmatpush1.msra.mxu0 0.0
    %5170 = vmatprep.subr.mxu0 0.0
    %5171 = vmatpush1.msra.mxu0 0.0
    %5172 = vmatprep.subr.mxu0 0.0
    %5173 = vmatpush1.msra.mxu0 %v5139
    %5174 = vmatprep.subr.mxu0 0.0
    %5175 = vmatpush1.msra.mxu0 %v5138
    %5176 = vmatprep.subr.mxu0 0.0
    %5177 = vmatpush2.msra.mxu0 0.0
    %5178 = vmatprep.subr.mxu0 0.0
    %5179 = vmatpush2.msra.mxu0 0.0
    %5180 = vmatprep.subr.mxu0 0.0
    %5181 = vmatpush2.msra.mxu0 0.0
    %5182 = vmatprep.subr.mxu0 0.0
    %5183 = vmatpush2.msra.mxu0 0.0
    %5184 = vmatprep.subr.mxu0 0.0
    %5185 = vmatpush2.msra.mxu0 0.0
    %5186 = vmatprep.subr.mxu0 0.0
    %5187 = vmatpush2.msra.mxu0 0.0
    %5188 = vmatprep.subr.mxu0 0.0
    %5189 = vmatpush2.msra.mxu0 0.0
    %5190 = vmatprep.subr.mxu0 0.0
    %5191 = vmatpush2.msra.mxu0 0.0
    %5192 = vmatprep.subr.mxu0 0.0
    %5193 = vmatpush2.msra.mxu0 0.0
    %5194 = vmatprep.subr.mxu0 0.0
    %5195 = vmatpush2.msra.mxu0 0.0
    %5196 = vmatprep.subr.mxu0 0.0
    %5197 = vmatpush2.msra.mxu0 0.0
    %5198 = vmatprep.subr.mxu0 0.0
    %5199 = vmatpush2.msra.mxu0 0.0
    %5200 = vmatprep.subr.mxu0 0.0
    %5201 = vmatpush2.msra.mxu0 0.0
    %5202 = vmatprep.subr.mxu0 0.0
    %5203 = vmatpush2.msra.mxu0 0.0
    %5204 = vmatprep.subr.mxu0 0.0
    %5205 = vmatpush2.msra.mxu0 0.0
    %5206 = vmatprep.subr.mxu0 0.0
    %5207 = vmatpush2.msra.mxu0 0.0
    %5208 = vmatprep.mubr.f32.mxu0 0.0
    %5209 = vmatmul.mubr.f32.gmra.mxu0 %v5142
    %v5210 = vpop.f32.mrf.mxu0
    %v5211 = vadd.f32 0.0, %v5210
    %v5212 = vpop.f32.mrf.mxu0
    %5213 = vdwg.mxu0
    %5214 = vst.msk [vmem:[#allocation6 + $0xd] sm:$0x1] %vm1405, %v5211
    %v5215 = vld [vmem:[#allocation3 + $0xe] sm:$0x1]
    %v5216 = vlaneseq
    %v5217 = vshrl.u32 %v5216, 7
    %v5218 = vsub.s32 0, %v5217
    %v5219 = vrot.slane %v5215, %v5218
    %v5220 = vmul.f32 %v3687, %v5219
    %v5221 = vmul.f32 %v3688, %v5219
    %v5222 = vmul.f32 %v5220, 1.442695
    %v5223 = vpow.pop %v5222
    %v5224 = vmul.f32 %v5221, 1.442695
    %v5225 = vpow.pop %v5224
    %v5226 = vmul.f32 %v5223, %v5138
    %v5227 = vmul.f32 %v5225, %v5139
    %v5228 = vld [vmem:[#allocation4] sm:$0xff]
    %v5229 = vld [vmem:[#allocation4 + $0x8] sm:$0xff]
    %v5230 = vld [vmem:[#allocation2 + $0xe] sm:$0x1]
    %5232 = vset.pattern.permute.xlu0 14
    %5233 = vperm.xlu0 %5232, %v5228
    %v5234 = vpop.permute.xlu0 %5233
    %5237 = vset.pattern.permute.xlu0 14
    %5238 = vperm.xlu0 %5237, %v5229
    %v5239 = vpop.permute.xlu0 %5238
    %v5241 = vlaneseq
    %v5242 = vshrl.u32 %v5241, 7
    %v5243 = vsub.s32 0, %v5242
    %v5244 = vrot.slane %v5230, %v5243
    %v5245 = vmul.f32 %v5234, %v5244
    %v5246 = vmul.f32 %v5239, %v5244
    %v5247 = vadd.f32 %v5226, %v5245
    %v5248 = vadd.f32 %v5227, %v5246
    %v5249 = vld [vmem:[#allocation5 + $0xe] sm:$0x1]
    %v5251 = vsel %vm272, %v5249, 0
    %5253 = vmatprep.subr.mxu0 0.0
    %5254 = vmatpush1.msra.mxu0 0.0
    %5255 = vmatprep.subr.mxu0 0.0
    %5256 = vmatpush1.msra.mxu0 0.0
    %5257 = vmatprep.subr.mxu0 0.0
    %5258 = vmatpush1.msra.mxu0 0.0
    %5259 = vmatprep.subr.mxu0 0.0
    %5260 = vmatpush1.msra.mxu0 0.0
    %5261 = vmatprep.subr.mxu0 0.0
    %5262 = vmatpush1.msra.mxu0 0.0
    %5263 = vmatprep.subr.mxu0 0.0
    %5264 = vmatpush1.msra.mxu0 0.0
    %5265 = vmatprep.subr.mxu0 0.0
    %5266 = vmatpush1.msra.mxu0 0.0
    %5267 = vmatprep.subr.mxu0 0.0
    %5268 = vmatpush1.msra.mxu0 0.0
    %5269 = vmatprep.subr.mxu0 0.0
    %5270 = vmatpush1.msra.mxu0 0.0
    %5271 = vmatprep.subr.mxu0 0.0
    %5272 = vmatpush1.msra.mxu0 0.0
    %5273 = vmatprep.subr.mxu0 0.0
    %5274 = vmatpush1.msra.mxu0 0.0
    %5275 = vmatprep.subr.mxu0 0.0
    %5276 = vmatpush1.msra.mxu0 0.0
    %5277 = vmatprep.subr.mxu0 0.0
    %5278 = vmatpush1.msra.mxu0 0.0
    %5279 = vmatprep.subr.mxu0 0.0
    %5280 = vmatpush1.msra.mxu0 0.0
    %5281 = vmatprep.subr.mxu0 0.0
    %5282 = vmatpush1.msra.mxu0 %v5248
    %5283 = vmatprep.subr.mxu0 0.0
    %5284 = vmatpush1.msra.mxu0 %v5247
    %5285 = vmatprep.subr.mxu0 0.0
    %5286 = vmatpush2.msra.mxu0 0.0
    %5287 = vmatprep.subr.mxu0 0.0
    %5288 = vmatpush2.msra.mxu0 0.0
    %5289 = vmatprep.subr.mxu0 0.0
    %5290 = vmatpush2.msra.mxu0 0.0
    %5291 = vmatprep.subr.mxu0 0.0
    %5292 = vmatpush2.msra.mxu0 0.0
    %5293 = vmatprep.subr.mxu0 0.0
    %5294 = vmatpush2.msra.mxu0 0.0
    %5295 = vmatprep.subr.mxu0 0.0
    %5296 = vmatpush2.msra.mxu0 0.0
    %5297 = vmatprep.subr.mxu0 0.0
    %5298 = vmatpush2.msra.mxu0 0.0
    %5299 = vmatprep.subr.mxu0 0.0
    %5300 = vmatpush2.msra.mxu0 0.0
    %5301 = vmatprep.subr.mxu0 0.0
    %5302 = vmatpush2.msra.mxu0 0.0
    %5303 = vmatprep.subr.mxu0 0.0
    %5304 = vmatpush2.msra.mxu0 0.0
    %5305 = vmatprep.subr.mxu0 0.0
    %5306 = vmatpush2.msra.mxu0 0.0
    %5307 = vmatprep.subr.mxu0 0.0
    %5308 = vmatpush2.msra.mxu0 0.0
    %5309 = vmatprep.subr.mxu0 0.0
    %5310 = vmatpush2.msra.mxu0 0.0
    %5311 = vmatprep.subr.mxu0 0.0
    %5312 = vmatpush2.msra.mxu0 0.0
    %5313 = vmatprep.subr.mxu0 0.0
    %5314 = vmatpush2.msra.mxu0 0.0
    %5315 = vmatprep.subr.mxu0 0.0
    %5316 = vmatpush2.msra.mxu0 0.0
    %5317 = vmatprep.mubr.f32.mxu0 0.0
    %5318 = vmatmul.mubr.f32.gmra.mxu0 %v5251
    %v5319 = vpop.f32.mrf.mxu0
    %v5320 = vadd.f32 0.0, %v5319
    %v5321 = vpop.f32.mrf.mxu0
    %5322 = vdwg.mxu0
    %5323 = vst.msk [vmem:[#allocation6 + $0xe] sm:$0x1] %vm1405, %v5320
    %v5324 = vld [vmem:[#allocation3 + $0xf] sm:$0x1]
    %v5325 = vlaneseq
    %v5326 = vshrl.u32 %v5325, 7
    %v5327 = vsub.s32 0, %v5326
    %v5328 = vrot.slane %v5324, %v5327
    %v5329 = vmul.f32 %v3687, %v5328
    %v5330 = vmul.f32 %v3688, %v5328
    %v5331 = vmul.f32 %v5329, 1.442695
    %v5332 = vpow.pop %v5331
    %v5333 = vmul.f32 %v5330, 1.442695
    %v5334 = vpow.pop %v5333
    %v5335 = vmul.f32 %v5332, %v5247
    %v5336 = vmul.f32 %v5334, %v5248
    %v5337 = vld [vmem:[#allocation4] sm:$0xff]
    %v5338 = vld [vmem:[#allocation4 + $0x8] sm:$0xff]
    %v5339 = vld [vmem:[#allocation2 + $0xf] sm:$0x1]
    %5341 = vset.pattern.permute.xlu0 15
    %5342 = vperm.xlu0 %5341, %v5337
    %v5343 = vpop.permute.xlu0 %5342
    %5346 = vset.pattern.permute.xlu0 15
    %5347 = vperm.xlu0 %5346, %v5338
    %v5348 = vpop.permute.xlu0 %5347
    %v5350 = vlaneseq
    %v5351 = vshrl.u32 %v5350, 7
    %v5352 = vsub.s32 0, %v5351
    %v5353 = vrot.slane %v5339, %v5352
    %v5354 = vmul.f32 %v5343, %v5353
    %v5355 = vmul.f32 %v5348, %v5353
    %v5356 = vadd.f32 %v5335, %v5354
    %v5357 = vadd.f32 %v5336, %v5355
    %v5358 = vld [vmem:[#allocation5 + $0xf] sm:$0x1]
    %v5360 = vsel %vm272, %v5358, 0
    %5362 = vmatprep.subr.mxu0 0.0
    %5363 = vmatpush1.msra.mxu0 0.0
    %5364 = vmatprep.subr.mxu0 0.0
    %5365 = vmatpush1.msra.mxu0 0.0
    %5366 = vmatprep.subr.mxu0 0.0
    %5367 = vmatpush1.msra.mxu0 0.0
    %5368 = vmatprep.subr.mxu0 0.0
    %5369 = vmatpush1.msra.mxu0 0.0
    %5370 = vmatprep.subr.mxu0 0.0
    %5371 = vmatpush1.msra.mxu0 0.0
    %5372 = vmatprep.subr.mxu0 0.0
    %5373 = vmatpush1.msra.mxu0 0.0
    %5374 = vmatprep.subr.mxu0 0.0
    %5375 = vmatpush1.msra.mxu0 0.0
    %5376 = vmatprep.subr.mxu0 0.0
    %5377 = vmatpush1.msra.mxu0 0.0
    %5378 = vmatprep.subr.mxu0 0.0
    %5379 = vmatpush1.msra.mxu0 0.0
    %5380 = vmatprep.subr.mxu0 0.0
    %5381 = vmatpush1.msra.mxu0 0.0
    %5382 = vmatprep.subr.mxu0 0.0
    %5383 = vmatpush1.msra.mxu0 0.0
    %5384 = vmatprep.subr.mxu0 0.0
    %5385 = vmatpush1.msra.mxu0 0.0
    %5386 = vmatprep.subr.mxu0 0.0
    %5387 = vmatpush1.msra.mxu0 0.0
    %5388 = vmatprep.subr.mxu0 0.0
    %5389 = vmatpush1.msra.mxu0 0.0
    %5390 = vmatprep.subr.mxu0 0.0
    %5391 = vmatpush1.msra.mxu0 %v5357
    %5392 = vmatprep.subr.mxu0 0.0
    %5393 = vmatpush1.msra.mxu0 %v5356
    %5394 = vmatprep.subr.mxu0 0.0
    %5395 = vmatpush2.msra.mxu0 0.0
    %5396 = vmatprep.subr.mxu0 0.0
    %5397 = vmatpush2.msra.mxu0 0.0
    %5398 = vmatprep.subr.mxu0 0.0
    %5399 = vmatpush2.msra.mxu0 0.0
    %5400 = vmatprep.subr.mxu0 0.0
    %5401 = vmatpush2.msra.mxu0 0.0
    %5402 = vmatprep.subr.mxu0 0.0
    %5403 = vmatpush2.msra.mxu0 0.0
    %5404 = vmatprep.subr.mxu0 0.0
    %5405 = vmatpush2.msra.mxu0 0.0
    %5406 = vmatprep.subr.mxu0 0.0
    %5407 = vmatpush2.msra.mxu0 0.0
    %5408 = vmatprep.subr.mxu0 0.0
    %5409 = vmatpush2.msra.mxu0 0.0
    %5410 = vmatprep.subr.mxu0 0.0
    %5411 = vmatpush2.msra.mxu0 0.0
    %5412 = vmatprep.subr.mxu0 0.0
    %5413 = vmatpush2.msra.mxu0 0.0
    %5414 = vmatprep.subr.mxu0 0.0
    %5415 = vmatpush2.msra.mxu0 0.0
    %5416 = vmatprep.subr.mxu0 0.0
    %5417 = vmatpush2.msra.mxu0 0.0
    %5418 = vmatprep.subr.mxu0 0.0
    %5419 = vmatpush2.msra.mxu0 0.0
    %5420 = vmatprep.subr.mxu0 0.0
    %5421 = vmatpush2.msra.mxu0 0.0
    %5422 = vmatprep.subr.mxu0 0.0
    %5423 = vmatpush2.msra.mxu0 0.0
    %5424 = vmatprep.subr.mxu0 0.0
    %5425 = vmatpush2.msra.mxu0 0.0
    %5426 = vmatprep.mubr.f32.mxu0 0.0
    %5427 = vmatmul.mubr.f32.gmra.mxu0 %v5360
    %v5428 = vpop.f32.mrf.mxu0
    %v5429 = vadd.f32 0.0, %v5428
    %v5430 = vpop.f32.mrf.mxu0
    %5431 = vdwg.mxu0
    %5432 = vst.msk [vmem:[#allocation6 + $0xf] sm:$0x1] %vm1405, %v5429
    %v5433 = vld [vmem:[#allocation6] sm:$0xff]
    %v5434 = vld [vmem:[#allocation6 + $0x8] sm:$0xff]
    %v5435 = vld [vmem:[%s3293 + $0x2] sm:$0x1]
    %v5436 = vlaneseq
    %v5437 = vshrl.u32 %v5436, 7
    %v5438 = vsub.s32 0, %v5437
    %v5439 = vrot.slane %v5435, %v5438
    %v5440 = vmul.f32 %v5439, %v3367
    %v5441 = vmul.f32 %v5439, %v3368
    %v5442 = vadd.f32 %v5433, %v5440
    %v5443 = vadd.f32 %v5434, %v5441
    %v5444 = vxor.u32 %v3285, 2147483648
    %v5445 = vxor.u32 %v3290, 2147483648
    %v5446 = vmul.f32 %v5444, 1.442695
    %v5447 = vpow.pop %v5446
    %v5448 = vmul.f32 %v5445, 1.442695
    %v5449 = vpow.pop %v5448
    %v5450 = vadd.f32 %v5447, 1.0
    %v5451 = vadd.f32 %v5449, 1.0
    %v5452 = vrcp.pop %v5450
    %v5453 = vmul.f32 1.0, %v5452
    %v5454 = vrcp.pop %v5451
    %v5455 = vmul.f32 1.0, %v5454
    %v5456 = vmul.f32 %v3285, %v5453
    %v5457 = vmul.f32 %v3290, %v5455
    %5460 = vrot.lane.b32.xlu0 %v5456, 64
    %v5461 = vpop.permute.xlu0 %5460
    %5462 = vrot.lane.b32.xlu0 %v5457, 64
    %v5463 = vpop.permute.xlu0 %5462
    %v5466 = vmul.f32 %v5442, %v5461
    %v5467 = vmul.f32 %v5443, %v5463
    %s5468 = scalar_lea.vmem %s12, 64
    %v5469 = vld [vmem:[%s5468] sm:$0xff]
    %v5470 = vld [vmem:[%s5468 + $0x8] sm:$0xff]
    %v5471 = vld [vmem:[%s5468 + $0x10] sm:$0xff]
    %v5472 = vld [vmem:[%s5468 + $0x18] sm:$0xff]
    %v5473 = vld [vmem:[%s5468 + $0x20] sm:$0xff]
    %v5474 = vld [vmem:[%s5468 + $0x28] sm:$0xff]
    %v5475 = vld [vmem:[%s5468 + $0x30] sm:$0xff]
    %v5476 = vld [vmem:[%s5468 + $0x38] sm:$0xff]
    %v5478 = vsel %vm986, %v5466, 0
    %v5481 = vsel %vm986, %v5467, 0
    %5483 = vmatprep.subr.mxu0 0.0
    %5484 = vmatpush1.msra.mxu0 0.0
    %5485 = vmatprep.subr.mxu0 0.0
    %5486 = vmatpush1.msra.mxu0 0.0
    %5487 = vmatprep.subr.mxu0 0.0
    %5488 = vmatpush1.msra.mxu0 0.0
    %5489 = vmatprep.subr.mxu0 0.0
    %5490 = vmatpush1.msra.mxu0 0.0
    %5491 = vmatprep.subr.mxu0 0.0
    %5492 = vmatpush1.msra.mxu0 0.0
    %5493 = vmatprep.subr.mxu0 0.0
    %5494 = vmatpush1.msra.mxu0 0.0
    %5495 = vmatprep.subr.mxu0 0.0
    %5496 = vmatpush1.msra.mxu0 0.0
    %5497 = vmatprep.subr.mxu0 0.0
    %5498 = vmatpush1.msra.mxu0 0.0
    %5499 = vmatprep.subr.mxu0 0.0
    %5500 = vmatpush1.msra.mxu0 %v5476
    %5501 = vmatprep.subr.mxu0 0.0
    %5502 = vmatpush1.msra.mxu0 %v5475
    %5503 = vmatprep.subr.mxu0 0.0
    %5504 = vmatpush1.msra.mxu0 %v5474
    %5505 = vmatprep.subr.mxu0 0.0
    %5506 = vmatpush1.msra.mxu0 %v5473
    %5507 = vmatprep.subr.mxu0 0.0
    %5508 = vmatpush1.msra.mxu0 %v5472
    %5509 = vmatprep.subr.mxu0 0.0
    %5510 = vmatpush1.msra.mxu0 %v5471
    %5511 = vmatprep.subr.mxu0 0.0
    %5512 = vmatpush1.msra.mxu0 %v5470
    %5513 = vmatprep.subr.mxu0 0.0
    %5514 = vmatpush1.msra.mxu0 %v5469
    %5515 = vmatprep.subr.mxu0 0.0
    %5516 = vmatpush2.msra.mxu0 0.0
    %5517 = vmatprep.subr.mxu0 0.0
    %5518 = vmatpush2.msra.mxu0 0.0
    %5519 = vmatprep.subr.mxu0 0.0
    %5520 = vmatpush2.msra.mxu0 0.0
    %5521 = vmatprep.subr.mxu0 0.0
    %5522 = vmatpush2.msra.mxu0 0.0
    %5523 = vmatprep.subr.mxu0 0.0
    %5524 = vmatpush2.msra.mxu0 0.0
    %5525 = vmatprep.subr.mxu0 0.0
    %5526 = vmatpush2.msra.mxu0 0.0
    %5527 = vmatprep.subr.mxu0 0.0
    %5528 = vmatpush2.msra.mxu0 0.0
    %5529 = vmatprep.subr.mxu0 0.0
    %5530 = vmatpush2.msra.mxu0 0.0
    %5531 = vmatprep.subr.mxu0 0.0
    %5532 = vmatpush2.msra.mxu0 0.0
    %5533 = vmatprep.subr.mxu0 0.0
    %5534 = vmatpush2.msra.mxu0 0.0
    %5535 = vmatprep.subr.mxu0 0.0
    %5536 = vmatpush2.msra.mxu0 0.0
    %5537 = vmatprep.subr.mxu0 0.0
    %5538 = vmatpush2.msra.mxu0 0.0
    %5539 = vmatprep.subr.mxu0 0.0
    %5540 = vmatpush2.msra.mxu0 0.0
    %5541 = vmatprep.subr.mxu0 0.0
    %5542 = vmatpush2.msra.mxu0 0.0
    %5543 = vmatprep.subr.mxu0 0.0
    %5544 = vmatpush2.msra.mxu0 0.0
    %5545 = vmatprep.subr.mxu0 0.0
    %5546 = vmatpush2.msra.mxu0 0.0
    %5547 = vmatprep.mubr.f32.mxu0 0.0
    %5548 = vmatmul.mubr.f32.gmra.mxu0 %v5478
    %v5549 = vpop.f32.mrf.mxu0
    %v5550 = vadd.f32 %v3158, %v5549
    %v5551 = vpop.f32.mrf.mxu0
    %5552 = vmatprep.mubr.f32.mxu0 0.0
    %5553 = vmatmul.mubr.f32.gmra.mxu0 %v5481
    %v5554 = vpop.f32.mrf.mxu0
    %v5555 = vadd.f32 %v3163, %v5554
    %v5556 = vpop.f32.mrf.mxu0
    %5557 = vdwg.mxu0
    %v5558 = vld [vmem:[%s13] sm:$0x1]
    %v5559 = vld [vmem:[%s13 + $0x1] sm:$0x1]
    %v5560 = vsel %vm52, %v5550, 0.0
    %5561 = vadd.xlane.f32.xlu0 %v5560
    %v5562 = vpop.xlane.xlu0 %5561
    %v5563 = vsel %vm52, %v5555, 0.0
    %5564 = vadd.xlane.f32.xlu0 %v5563
    %v5565 = vpop.xlane.xlu0 %5564
    %v5566 = vmul.f32 %v5562, %v59
    %v5567 = vmul.f32 %v5565, %v59
    %v5568 = vsub.f32 %v5550, %v5566
    %v5569 = vsub.f32 %v5555, %v5567
    %v5570 = vmul.f32 %v5568, %v5568
    %v5571 = vmul.f32 %v5569, %v5569
    %v5572 = vsel %vm52, %v5570, 0.0
    %5573 = vadd.xlane.f32.xlu0 %v5572
    %v5574 = vpop.xlane.xlu0 %5573
    %v5575 = vsel %vm52, %v5571, 0.0
    %5576 = vadd.xlane.f32.xlu0 %v5575
    %v5577 = vpop.xlane.xlu0 %5576
    %v5578 = vmul.f32 %v5574, %v59
    %v5579 = vmul.f32 %v5577, %v59
    %v5580 = vadd.f32 %v5578, 1e-05
    %v5581 = vadd.f32 %v5579, 1e-05
    %v5582 = vrsqrt.pop %v5580
    %v5583 = vrsqrt.pop %v5581
    %v5584 = vmul.f32 %v5568, %v5582
    %v5585 = vmul.f32 %v5569, %v5583
    %v5586 = vlaneseq
    %v5587 = vshrl.u32 %v5586, 7
    %v5588 = vsub.s32 0, %v5587
    %v5589 = vrot.slane %v5558, %v5588
    %v5590 = vmul.f32 %v5584, %v5589
    %v5591 = vmul.f32 %v5585, %v5589
    %v5592 = vlaneseq
    %v5593 = vshrl.u32 %v5592, 7
    %v5594 = vsub.s32 0, %v5593
    %v5595 = vrot.slane %v5559, %v5594
    %v5596 = vadd.f32 %v5590, %v5595
    %v5597 = vadd.f32 %v5591, %v5595
    %5598 = vst.msk [vmem:[#allocation7] sm:$0xff] %vm52, %v5596
    %5599 = vst.msk [vmem:[#allocation7 + $0x8] sm:$0xff] %vm52, %v5597
    // Predicated region
    $region58: #{mixer_model_forward.1} parent=1 // pred_check
      _
    $region59: #{mixer_model_forward.1} parent=1 // pred_check_branch
      %5601 = sbr.rel (0) target = $region61
    $region60: #{mixer_model_forward.1} parent=1 // pred_region
      %s5603 = ssub.s32 256, 256
      %5604 = vsyncadd [#allocation8], %s5603
      %s5605 = sshll.u32 [#allocation7], 4
      %s5606 = int_to_ptr.vmem [resolvable:$true] %s5605
      %5611 = dma.vmem_to_hbm [thread:$0]  %s5606, 256, %s14, [#allocation8], 128, 128, 8
    $region61: #{mixer_model_forward.1} parent=1 // pred_fallthru
      _
    // Predicated region
    $region62: #{mixer_model_forward.1} parent=1 // pred_check
      _
    $region63: #{mixer_model_forward.1} parent=1 // pred_check_branch
      %5613 = sbr.rel (0) target = $region65
    $region64: #{mixer_model_forward.1} parent=1 // pred_region
      %5614 = dma.done [#allocation8], 256
    $region65: #{mixer_model_forward.1} parent=1 // pred_fallthru
      _
    %5615 = vsyncpa [#allocation8], 1

</llo_original>
